<compile_context>
chip_gen: v7x
topology: tpu7x:2x2x1
jax: 0.10.0
libtpu: 0.0.40
codegen_flags: <defaults>
</compile_context>

<pallas_src>
from functools import partial

import jax
import jax.numpy as jnp
from jax.experimental import pallas as pl
from jax.experimental.pallas import tpu as pltpu

_BN_EPS = 1e-5


# --------------------------------------------------------------------------
# Pallas kernels
# --------------------------------------------------------------------------
def _mm_bias_kernel(x_ref, w_ref, b_ref, o_ref, *, relu):
    """o = maybe_relu(x @ w + b); BN already folded into w/b at prep time."""
    y = jnp.dot(x_ref[...], w_ref[...], preferred_element_type=jnp.float32)
    y = y + b_ref[...]
    if relu:
        y = jnp.maximum(y, 0.0)
    o_ref[...] = y.astype(o_ref.dtype)


def _head_kernel(x_ref, w3_ref, b3_ref, w4_ref, b4_ref, w5_ref, b5_ref,
                 w6_ref, b6_ref, v_ref, logit_ref):
    """Fused head: conv3(4x4 valid)+ReLU -> fc0+BN+ReLU -> fc1+BN+ReLU -> Linear.

    All four weight matrices are resident in VMEM; intermediates never leave
    the kernel.  Outputs are padded to 128 lanes (caller slices back).
    """
    v = jnp.dot(x_ref[...], w3_ref[...], preferred_element_type=jnp.float32) + b3_ref[...]
    v = jnp.maximum(v, 0.0)                                     # conv3 + ReLU
    v_ref[...] = v.astype(v_ref.dtype)
    h = jnp.dot(v, w4_ref[...], preferred_element_type=jnp.float32) + b4_ref[...]
    h = jnp.maximum(h, 0.0)                                     # fc0 + BN + ReLU
    h = jnp.dot(h, w5_ref[...], preferred_element_type=jnp.float32) + b5_ref[...]
    h = jnp.maximum(h, 0.0)                                     # fc1 + BN + ReLU
    y = jnp.dot(h, w6_ref[...], preferred_element_type=jnp.float32) + b6_ref[...]
    logit_ref[...] = y.astype(logit_ref.dtype)                  # final Linear


# --------------------------------------------------------------------------
# Pallas wrappers
# --------------------------------------------------------------------------
def _conv0_row_tile(m):
    """v7x has 2 TensorCores: keep a 2-step 'parallel' grid so both are used.
    v5e/v6e have one TC: a single block avoids the extra grid-step overhead."""
    try:
        kind = jax.devices()[0].device_kind.lower()
    except Exception:
        kind = ""
    single_core = ("v5" in kind) or ("v6" in kind)
    return min(512 if single_core else 256, m)


def fused_matmul(x, w, b, *, relu=True, tm=None):
    """maybe_relu(x @ w + b) in one Pallas kernel; x:(M,K), w:(K,N), b:(1,N).

    K and N are multiples of 128 (guaranteed by prepare_params), so every
    load/store is lane-dense and unmasked.
    """
    M, K = x.shape
    Kw, N = w.shape
    assert K == Kw and K % 128 == 0 and N % 128 == 0, (x.shape, w.shape)
    if tm is None or tm >= M or M % tm != 0:
        tm = M                                    # single block
    return pl.pallas_call(
        partial(_mm_bias_kernel, relu=relu),
        out_shape=jax.ShapeDtypeStruct((M, N), jnp.float32),
        grid=(M // tm,),
        in_specs=[
            pl.BlockSpec((tm, K), lambda i: (i, 0)),
            pl.BlockSpec((K, N), lambda i: (0, 0)),
            pl.BlockSpec((1, N), lambda i: (0, 0)),
        ],
        out_specs=pl.BlockSpec((tm, N), lambda i: (i, 0)),
        compiler_params=pltpu.CompilerParams(dimension_semantics=("parallel",)),
    )(x, w, b)


def fused_head(x, w3, b3, w4, b4, w5, b5, w6, b6):
    """One pallas_call for conv3 + fc0 + fc1 + fc2 (M = batch rows)."""
    B = x.shape[0]
    nzp, cnp = w3.shape[1], w6.shape[1]
    args = (x, w3, b3, w4, b4, w5, b5, w6, b6)
    in_specs = [pl.BlockSpec(a.shape, lambda i: (0, 0)) for a in args]
    return pl.pallas_call(
        _head_kernel,
        out_shape=(jax.ShapeDtypeStruct((B, nzp), jnp.float32),
                   jax.ShapeDtypeStruct((B, cnp), jnp.float32)),
        grid=(1,),
        in_specs=in_specs,
        out_specs=(pl.BlockSpec((B, nzp), lambda i: (0, 0)),
                   pl.BlockSpec((B, cnp), lambda i: (0, 0))),
        compiler_params=pltpu.CompilerParams(dimension_semantics=("arbitrary",)),
    )(*args)


# --------------------------------------------------------------------------
# Layout plumbing (plain JAX, fused by XLA) and one-time parameter prep
# --------------------------------------------------------------------------
def _im2col_nhwc(x, k, stride, pad):
    """(B,H,W,C) NHWC -> ((B*Ho*Wo, k*k*C), (B,Ho,Wo)); column order (ki,kj,c)."""
    B, H, W, C = x.shape
    if pad:
        x = jnp.pad(x, ((0, 0), (pad, pad), (pad, pad), (0, 0)))
    Ho = (H + 2 * pad - k) // stride + 1
    Wo = (W + 2 * pad - k) // stride + 1
    cols = [x[:, ki:ki + stride * (Ho - 1) + 1:stride,
                 kj:kj + stride * (Wo - 1) + 1:stride, :]
            for ki in range(k) for kj in range(k)]
    patches = jnp.concatenate(cols, axis=-1)                # (B,Ho,Wo,k*k*C)
    return patches.reshape(B * Ho * Wo, k * k * C), (B, Ho, Wo)


def _conv_weight_matrix(w):
    """(C_out, C_in, k, k) -> (k*k*C_in, C_out) in (ki, kj, c_in) row order."""
    return jnp.transpose(w, (2, 3, 1, 0)).reshape(-1, w.shape[0])


def _fold_bn(bias, gamma, beta, mean, var, eps=_BN_EPS):
    scale = gamma / jnp.sqrt(var + eps)
    return scale, bias * scale + (beta - mean * scale)


def _round128(n):
    return ((n + 127) // 128) * 128


def _pad_cols(a, n):
    return jnp.pad(a, ((0, 0), (0, n - a.shape[1]))) if a.shape[1] != n else a


def _pad_rows(a, n):
    return jnp.pad(a, ((0, n - a.shape[0]), (0, 0))) if a.shape[0] != n else a


def prepare_params(p):
    """One-time, outside-jit parameter prep:
       * fold eval-mode BN scale into the weight matrix and shift into the bias
       * reshape conv weights to im2col matmul layout
       * zero-pad every K and N to a multiple of 128 (lane-dense blocks,
         unmasked stores, no per-forward weight pads)."""
    prep = {}
    # conv0..conv2: 3x3 stride-2 conv + BN + ReLU
    for i in range(3):
        w, b, g, bt, mu, var = p[f"conv{i}"]
        s, bias = _fold_bn(b, g, bt, mu, var)
        wm = _conv_weight_matrix(w) * s[None, :]
        wm = _pad_rows(wm, _round128(wm.shape[0]))          # conv0: K 9 -> 128
        prep[f"conv{i}"] = (wm, bias.reshape(1, -1))

    # Head: conv3 (4x4 valid, ReLU) + fc0/fc1 (1x1 conv + BN + ReLU) + fc2 (Linear)
    w3_, b3_ = p["conv3"]
    nz = w3_.shape[0]
    nzp = _round128(nz)
    w3 = _pad_cols(_conv_weight_matrix(w3_), nzp)           # (4096, nzp)
    b3 = _pad_cols(b3_.reshape(1, -1), nzp)

    w4_, b4_, g4, bt4, mu4, var4 = p["fc0"]
    s4, bias4 = _fold_bn(b4_, g4, bt4, mu4, var4)
    w4 = _pad_rows(jnp.transpose(w4_[:, :, 0, 0], (1, 0)) * s4[None, :], nzp)
    b4 = bias4.reshape(1, -1)

    w5_, b5_, g5, bt5, mu5, var5 = p["fc1"]
    s5, bias5 = _fold_bn(b5_, g5, bt5, mu5, var5)
    w5 = jnp.transpose(w5_[:, :, 0, 0], (1, 0)) * s5[None, :]
    b5 = bias5.reshape(1, -1)

    w6_, b6_ = p["fc2"]
    cnp = _round128(w6_.shape[0])
    w6 = _pad_cols(jnp.transpose(w6_, (1, 0)), cnp)         # (nh, cnp)
    b6 = _pad_cols(b6_.reshape(1, -1), cnp)

    prep["head"] = (w3, b3, w4, b4, w5, b5, w6, b6)
    return prep


# --------------------------------------------------------------------------
# Encoder forward — Pallas pipeline
# --------------------------------------------------------------------------
def encoder_forward_pallas(prep, x, *, nz, class_num):
    B, _, H, W = x.shape
    h = x.astype(jnp.float32).reshape(B, H, W, 1)   # NCHW (C=1) -> NHWC: free

    # Three strided 3x3 conv + BN + ReLU blocks: im2col (plain-JAX layout
    # plumbing) + ONE fused (matmul + folded-BN bias + ReLU) kernel each.
    for i in range(3):
        w, b = prep[f"conv{i}"]
        cols, (_, Ho, Wo) = _im2col_nhwc(h, k=3, stride=2, pad=1)
        cols = _pad_cols(cols, w.shape[0])          # conv0 only: K 9 -> 128
        tm = _conv0_row_tile(cols.shape[0]) if i == 0 else None
        y = fused_matmul(cols, w, b, relu=True, tm=tm)
        h = y.reshape(B, Ho, Wo, -1)

    # Head: conv2 output is 4x4 spatially, so conv3 (4x4 valid conv) is a plain
    # (B, 4096) matmul — the NHWC reshape is free.  conv3+fc0+fc1+fc2 fused.
    assert h.shape[1] == 4 and h.shape[2] == 4, h.shape
    x_head = h.reshape(B, -1)
    v_pad, logits_pad = fused_head(x_head, *prep["head"])

    v = v_pad[:, :nz].reshape(B, nz, 1, 1)
    logits = logits_pad[:, :class_num]
    return logits, v


# --------------------------------------------------------------------------
# Pure-JAX reference (PyTorch eval-mode semantics) for correctness check
# --------------------------------------------------------------------------
def encoder_forward_ref(p, x):
    def conv(h, w, b, stride, pad):
        y = jax.lax.conv_general_dilated(
            h, w, window_strides=(stride, stride),
            padding=[(pad, pad), (pad, pad)],
            dimension_numbers=("NCHW", "OIHW", "NCHW"))
        return y + b[None, :, None, None]

    def bn(h, g, bt, mu, var, eps=_BN_EPS):
        s = g / jnp.sqrt(var + eps)
        return (h - mu[None, :, None, None]) * s[None, :, None, None] \
            + bt[None, :, None, None]

    relu = lambda t: jnp.maximum(t, 0.0)

    h = x.astype(jnp.float32)
    for i in range(3):
        w, b, g, bt, mu, var = p[f"conv{i}"]
        h = relu(bn(conv(h, w, b, 2, 1), g, bt, mu, var))
    w, b = p["conv3"]
    v = relu(conv(h, w, b, 1, 0))
    h = v
    for name in ("fc0", "fc1"):
        w, b, g, bt, mu, var = p[name]
        h = relu(bn(conv(h, w, b, 1, 0), g, bt, mu, var))
    h = jnp.squeeze(h)                                # nnSqueeze, B > 1
    w, b = p["fc2"]
    return h @ w.T + b, v


# --------------------------------------------------------------------------
# Parameter construction (deterministic)
# --------------------------------------------------------------------------
def _conv_bn_params(key, c_out, c_in, k):
    ks = jax.random.split(key, 6)
    fan_in = float(c_in * k * k)
    w = jax.random.normal(ks[0], (c_out, c_in, k, k), jnp.float32) * (fan_in ** -0.5)
    b = 0.05 * jax.random.normal(ks[1], (c_out,), jnp.float32)
    gamma = 1.0 + 0.1 * jax.random.normal(ks[2], (c_out,), jnp.float32)
    beta = 0.1 * jax.random.normal(ks[3], (c_out,), jnp.float32)
    mean = 0.1 * jax.random.normal(ks[4], (c_out,), jnp.float32)
    var = 0.9 + 0.2 * jax.random.uniform(ks[5], (c_out,), jnp.float32)
    return (w, b, gamma, beta, mean, var)


def _conv_params(key, c_out, c_in, k):
    ks = jax.random.split(key, 2)
    fan_in = float(c_in * k * k)
    w = jax.random.normal(ks[0], (c_out, c_in, k, k), jnp.float32) * (fan_in ** -0.5)
    b = 0.05 * jax.random.normal(ks[1], (c_out,), jnp.float32)
    return (w, b)


def _linear_params(key, c_out, c_in):
    ks = jax.random.split(key, 2)
    w = jax.random.normal(ks[0], (c_out, c_in), jnp.float32) * (float(c_in) ** -0.5)
    b = 0.05 * jax.random.normal(ks[1], (c_out,), jnp.float32)
    return (w, b)


def init_params(key, nz=64, class_num=10, nh=256):
    ks = jax.random.split(key, 7)
    return {
        "conv0": _conv_bn_params(ks[0], nh, 1, 3),
        "conv1": _conv_bn_params(ks[1], nh, nh, 3),
        "conv2": _conv_bn_params(ks[2], nh, nh, 3),
        "conv3": _conv_params(ks[3], nz, nh, 4),
        "fc0": _conv_bn_params(ks[4], nh, nz, 1),
        "fc1": _conv_bn_params(ks[5], nh, nh, 1),
        "fc2": _linear_params(ks[6], class_num, nh),
    }


# --------------------------------------------------------------------------
if __name__ == "__main__":
    key = jax.random.PRNGKey(0)
    kp, kx = jax.random.split(key)

    B, nz, class_num = 2, 64, 10
    params = init_params(kp, nz=nz, class_num=class_num)
    x = jax.random.normal(kx, (B, 1, 32, 32), jnp.float32)

    # One-time parameter prep (BN folding, layout, 128-lane padding) OUTSIDE jit.
    prep = prepare_params(params)

    fwd = jax.jit(partial(encoder_forward_pallas, nz=nz, class_num=class_num))
    logits, v = fwd(prep, x)
    jax.block_until_ready((logits, v))

    ref_logits, ref_v = jax.jit(encoder_forward_ref)(params, x)
    jax.block_until_ready((ref_logits, ref_v))

    assert logits.shape == (B, class_num), logits.shape
    assert v.shape == (B, nz, 1, 1), v.shape
    assert jnp.allclose(logits, ref_logits, rtol=2e-3, atol=2e-3), \
        float(jnp.max(jnp.abs(logits - ref_logits)))
    assert jnp.allclose(v, ref_v, rtol=2e-3, atol=2e-3), \
        float(jnp.max(jnp.abs(v - ref_v)))

    print("KERNEL_OK")
</pallas_src>

<mosaic_0001>
module attributes {stable_mosaic.version = 11 : i64} {
  func.func @_mm_bias_kernel(%arg0: i32, %arg1: memref<256x128xf32, #tpu.memory_space<vmem>>, %arg2: memref<128x256xf32, #tpu.memory_space<vmem>>, %arg3: memref<1x256xf32, #tpu.memory_space<vmem>>, %arg4: memref<256x256xf32, #tpu.memory_space<vmem>>) attributes {dimension_semantics = [#tpu.dimension_semantics<parallel>], iteration_bounds = array<i64: 2>, scalar_prefetch = 0 : i64, scratch_operands = 0 : i64, tpu.core_type = #tpu.core_type<tc>, window_params = [{transform_indices = @transform_0, window_bounds = array<i64: 256, 128>}, {pipeline_mode = #tpu.pipeline_mode<synchronous>, transform_indices = @transform_1, window_bounds = array<i64: 128, 256>}, {pipeline_mode = #tpu.pipeline_mode<synchronous>, transform_indices = @transform_2, window_bounds = array<i64: 1, 256>}, {transform_indices = @transform_3, window_bounds = array<i64: 256, 256>}]} {
    %c0 = arith.constant 0 : index
    %c0_0 = arith.constant 0 : index
    %0 = vector.load %arg1[%c0, %c0_0] : memref<256x128xf32, #tpu.memory_space<vmem>>, vector<256x128xf32>
    %c0_1 = arith.constant 0 : index
    %c0_2 = arith.constant 0 : index
    %1 = vector.load %arg2[%c0_1, %c0_2] : memref<128x256xf32, #tpu.memory_space<vmem>>, vector<128x256xf32>
    %cst = arith.constant dense<0.000000e+00> : vector<256x256xf32>
    %2 = tpu.matmul %0, %1, %cst {dimension_numbers = #tpu.dot_dimension_numbers<[1], [0], [0], [1], [0, 0, 1, 1], [], []>} : vector<256x128xf32>, vector<128x256xf32>, vector<256x256xf32> -> vector<256x256xf32>
    %c0_3 = arith.constant 0 : index
    %c0_4 = arith.constant 0 : index
    %3 = vector.load %arg3[%c0_3, %c0_4] : memref<1x256xf32, #tpu.memory_space<vmem>>, vector<1x256xf32>
    %4 = vector.broadcast %3 : vector<1x256xf32> to vector<256x256xf32>
    %5 = arith.addf %2, %4 : vector<256x256xf32>
    %cst_5 = arith.constant 0.000000e+00 : f32
    %6 = vector.broadcast %cst_5 : f32 to vector<256x256xf32>
    %7 = arith.maximumf %5, %6 : vector<256x256xf32>
    %c0_6 = arith.constant 0 : index
    %c0_7 = arith.constant 0 : index
    %8 = vector.load %arg4[%c0_6, %c0_7] : memref<256x256xf32, #tpu.memory_space<vmem>>, vector<256x256xf32>
    tpu.vector_store %arg4[%c0_6, %c0_7], %7 {strides = array<i32>} : memref<256x256xf32, #tpu.memory_space<vmem>>, vector<256x256xf32>,
    return
  }
  func.func @transform_0(%arg0: i32) -> (i32, i32) {
    %c0_i32 = arith.constant 0 : i32
    %c0_i32_0 = arith.constant 0 : i32
    return %arg0, %c0_i32 : i32, i32
  }
  func.func @transform_1(%arg0: i32) -> (i32, i32) {
    %c0_i32 = arith.constant 0 : i32
    %c0_i32_0 = arith.constant 0 : i32
    %c0_i32_1 = arith.constant 0 : i32
    return %c0_i32, %c0_i32_0 : i32, i32
  }
  func.func @transform_2(%arg0: i32) -> (i32, i32) {
    %c0_i32 = arith.constant 0 : i32
    %c0_i32_0 = arith.constant 0 : i32
    %c0_i32_1 = arith.constant 0 : i32
    return %c0_i32, %c0_i32_0 : i32, i32
  }
  func.func @transform_3(%arg0: i32) -> (i32, i32) {
    %c0_i32 = arith.constant 0 : i32
    %c0_i32_0 = arith.constant 0 : i32
    return %arg0, %c0_i32 : i32, i32
  }
}

module attributes {stable_mosaic.version = 11 : i64} {
  func.func @_mm_bias_kernel(%arg0: i32, %arg1: memref<128x2304xf32, #tpu.memory_space<vmem>>, %arg2: memref<2304x256xf32, #tpu.memory_space<vmem>>, %arg3: memref<1x256xf32, #tpu.memory_space<vmem>>, %arg4: memref<128x256xf32, #tpu.memory_space<vmem>>) attributes {dimension_semantics = [#tpu.dimension_semantics<parallel>], iteration_bounds = array<i64: 1>, scalar_prefetch = 0 : i64, scratch_operands = 0 : i64, tpu.core_type = #tpu.core_type<tc>, window_params = [{transform_indices = @transform_0, window_bounds = array<i64: 128, 2304>}, {pipeline_mode = #tpu.pipeline_mode<synchronous>, transform_indices = @transform_1, window_bounds = array<i64: 2304, 256>}, {pipeline_mode = #tpu.pipeline_mode<synchronous>, transform_indices = @transform_2, window_bounds = array<i64: 1, 256>}, {transform_indices = @transform_3, window_bounds = array<i64: 128, 256>}]} {
    %c0 = arith.constant 0 : index
    %c0_0 = arith.constant 0 : index
    %0 = vector.load %arg1[%c0, %c0_0] : memref<128x2304xf32, #tpu.memory_space<vmem>>, vector<128x2304xf32>
    %c0_1 = arith.constant 0 : index
    %c0_2 = arith.constant 0 : index
    %1 = vector.load %arg2[%c0_1, %c0_2] : memref<2304x256xf32, #tpu.memory_space<vmem>>, vector<2304x256xf32>
    %cst = arith.constant dense<0.000000e+00> : vector<128x256xf32>
    %2 = tpu.matmul %0, %1, %cst {dimension_numbers = #tpu.dot_dimension_numbers<[1], [0], [0], [1], [0, 0, 1, 1], [], []>} : vector<128x2304xf32>, vector<2304x256xf32>, vector<128x256xf32> -> vector<128x256xf32>
    %c0_3 = arith.constant 0 : index
    %c0_4 = arith.constant 0 : index
    %3 = vector.load %arg3[%c0_3, %c0_4] : memref<1x256xf32, #tpu.memory_space<vmem>>, vector<1x256xf32>
    %4 = vector.broadcast %3 : vector<1x256xf32> to vector<128x256xf32>
    %5 = arith.addf %2, %4 : vector<128x256xf32>
    %cst_5 = arith.constant 0.000000e+00 : f32
    %6 = vector.broadcast %cst_5 : f32 to vector<128x256xf32>
    %7 = arith.maximumf %5, %6 : vector<128x256xf32>
    %c0_6 = arith.constant 0 : index
    %c0_7 = arith.constant 0 : index
    %8 = vector.load %arg4[%c0_6, %c0_7] : memref<128x256xf32, #tpu.memory_space<vmem>>, vector<128x256xf32>
    tpu.vector_store %arg4[%c0_6, %c0_7], %7 {strides = array<i32>} : memref<128x256xf32, #tpu.memory_space<vmem>>, vector<128x256xf32>,
    return
  }
  func.func @transform_0(%arg0: i32) -> (i32, i32) {
    %c0_i32 = arith.constant 0 : i32
    %c0_i32_0 = arith.constant 0 : i32
    return %arg0, %c0_i32 : i32, i32
  }
  func.func @transform_1(%arg0: i32) -> (i32, i32) {
    %c0_i32 = arith.constant 0 : i32
    %c0_i32_0 = arith.constant 0 : i32
    %c0_i32_1 = arith.constant 0 : i32
    return %c0_i32, %c0_i32_0 : i32, i32
  }
  func.func @transform_2(%arg0: i32) -> (i32, i32) {
    %c0_i32 = arith.constant 0 : i32
    %c0_i32_0 = arith.constant 0 : i32
    %c0_i32_1 = arith.constant 0 : i32
    return %c0_i32, %c0_i32_0 : i32, i32
  }
  func.func @transform_3(%arg0: i32) -> (i32, i32) {
    %c0_i32 = arith.constant 0 : i32
    %c0_i32_0 = arith.constant 0 : i32
    return %arg0, %c0_i32 : i32, i32
  }
}

module attributes {stable_mosaic.version = 11 : i64} {
  func.func @_mm_bias_kernel(%arg0: i32, %arg1: memref<32x2304xf32, #tpu.memory_space<vmem>>, %arg2: memref<2304x256xf32, #tpu.memory_space<vmem>>, %arg3: memref<1x256xf32, #tpu.memory_space<vmem>>, %arg4: memref<32x256xf32, #tpu.memory_space<vmem>>) attributes {dimension_semantics = [#tpu.dimension_semantics<parallel>], iteration_bounds = array<i64: 1>, scalar_prefetch = 0 : i64, scratch_operands = 0 : i64, tpu.core_type = #tpu.core_type<tc>, window_params = [{transform_indices = @transform_0, window_bounds = array<i64: 32, 2304>}, {pipeline_mode = #tpu.pipeline_mode<synchronous>, transform_indices = @transform_1, window_bounds = array<i64: 2304, 256>}, {pipeline_mode = #tpu.pipeline_mode<synchronous>, transform_indices = @transform_2, window_bounds = array<i64: 1, 256>}, {transform_indices = @transform_3, window_bounds = array<i64: 32, 256>}]} {
    %c0 = arith.constant 0 : index
    %c0_0 = arith.constant 0 : index
    %0 = vector.load %arg1[%c0, %c0_0] : memref<32x2304xf32, #tpu.memory_space<vmem>>, vector<32x2304xf32>
    %c0_1 = arith.constant 0 : index
    %c0_2 = arith.constant 0 : index
    %1 = vector.load %arg2[%c0_1, %c0_2] : memref<2304x256xf32, #tpu.memory_space<vmem>>, vector<2304x256xf32>
    %cst = arith.constant dense<0.000000e+00> : vector<32x256xf32>
    %2 = tpu.matmul %0, %1, %cst {dimension_numbers = #tpu.dot_dimension_numbers<[1], [0], [0], [1], [0, 0, 1, 1], [], []>} : vector<32x2304xf32>, vector<2304x256xf32>, vector<32x256xf32> -> vector<32x256xf32>
    %c0_3 = arith.constant 0 : index
    %c0_4 = arith.constant 0 : index
    %3 = vector.load %arg3[%c0_3, %c0_4] : memref<1x256xf32, #tpu.memory_space<vmem>>, vector<1x256xf32>
    %4 = vector.broadcast %3 : vector<1x256xf32> to vector<32x256xf32>
    %5 = arith.addf %2, %4 : vector<32x256xf32>
    %cst_5 = arith.constant 0.000000e+00 : f32
    %6 = vector.broadcast %cst_5 : f32 to vector<32x256xf32>
    %7 = arith.maximumf %5, %6 : vector<32x256xf32>
    %c0_6 = arith.constant 0 : index
    %c0_7 = arith.constant 0 : index
    %8 = vector.load %arg4[%c0_6, %c0_7] : memref<32x256xf32, #tpu.memory_space<vmem>>, vector<32x256xf32>
    tpu.vector_store %arg4[%c0_6, %c0_7], %7 {strides = array<i32>} : memref<32x256xf32, #tpu.memory_space<vmem>>, vector<32x256xf32>,
    return
  }
  func.func @transform_0(%arg0: i32) -> (i32, i32) {
    %c0_i32 = arith.constant 0 : i32
    %c0_i32_0 = arith.constant 0 : i32
    return %arg0, %c0_i32 : i32, i32
  }
  func.func @transform_1(%arg0: i32) -> (i32, i32) {
    %c0_i32 = arith.constant 0 : i32
    %c0_i32_0 = arith.constant 0 : i32
    %c0_i32_1 = arith.constant 0 : i32
    return %c0_i32, %c0_i32_0 : i32, i32
  }
  func.func @transform_2(%arg0: i32) -> (i32, i32) {
    %c0_i32 = arith.constant 0 : i32
    %c0_i32_0 = arith.constant 0 : i32
    %c0_i32_1 = arith.constant 0 : i32
    return %c0_i32, %c0_i32_0 : i32, i32
  }
  func.func @transform_3(%arg0: i32) -> (i32, i32) {
    %c0_i32 = arith.constant 0 : i32
    %c0_i32_0 = arith.constant 0 : i32
    return %arg0, %c0_i32 : i32, i32
  }
}

module attributes {stable_mosaic.version = 11 : i64} {
  func.func @_head_kernel(%arg0: i32, %arg1: memref<2x4096xf32, #tpu.memory_space<vmem>>, %arg2: memref<4096x128xf32, #tpu.memory_space<vmem>>, %arg3: memref<1x128xf32, #tpu.memory_space<vmem>>, %arg4: memref<128x256xf32, #tpu.memory_space<vmem>>, %arg5: memref<1x256xf32, #tpu.memory_space<vmem>>, %arg6: memref<256x256xf32, #tpu.memory_space<vmem>>, %arg7: memref<1x256xf32, #tpu.memory_space<vmem>>, %arg8: memref<256x128xf32, #tpu.memory_space<vmem>>, %arg9: memref<1x128xf32, #tpu.memory_space<vmem>>, %arg10: memref<2x128xf32, #tpu.memory_space<vmem>>, %arg11: memref<2x128xf32, #tpu.memory_space<vmem>>) attributes {dimension_semantics = [#tpu.dimension_semantics<arbitrary>], iteration_bounds = array<i64: 1>, scalar_prefetch = 0 : i64, scratch_operands = 0 : i64, tpu.core_type = #tpu.core_type<tc>, window_params = [{pipeline_mode = #tpu.pipeline_mode<synchronous>, transform_indices = @transform_0, window_bounds = array<i64: 2, 4096>}, {pipeline_mode = #tpu.pipeline_mode<synchronous>, transform_indices = @transform_1, window_bounds = array<i64: 4096, 128>}, {pipeline_mode = #tpu.pipeline_mode<synchronous>, transform_indices = @transform_2, window_bounds = array<i64: 1, 128>}, {pipeline_mode = #tpu.pipeline_mode<synchronous>, transform_indices = @transform_3, window_bounds = array<i64: 128, 256>}, {pipeline_mode = #tpu.pipeline_mode<synchronous>, transform_indices = @transform_4, window_bounds = array<i64: 1, 256>}, {pipeline_mode = #tpu.pipeline_mode<synchronous>, transform_indices = @transform_5, window_bounds = array<i64: 256, 256>}, {pipeline_mode = #tpu.pipeline_mode<synchronous>, transform_indices = @transform_6, window_bounds = array<i64: 1, 256>}, {pipeline_mode = #tpu.pipeline_mode<synchronous>, transform_indices = @transform_7, window_bounds = array<i64: 256, 128>}, {pipeline_mode = #tpu.pipeline_mode<synchronous>, transform_indices = @transform_8, window_bounds = array<i64: 1, 128>}, {pipeline_mode = #tpu.pipeline_mode<synchronous>, transform_indices = @transform_9, window_bounds = array<i64: 2, 128>}, {pipeline_mode = #tpu.pipeline_mode<synchronous>, transform_indices = @transform_10, window_bounds = array<i64: 2, 128>}]} {
    %c0 = arith.constant 0 : index
    %c0_0 = arith.constant 0 : index
    %0 = vector.load %arg1[%c0, %c0_0] : memref<2x4096xf32, #tpu.memory_space<vmem>>, vector<2x4096xf32>
    %c0_1 = arith.constant 0 : index
    %c0_2 = arith.constant 0 : index
    %1 = vector.load %arg2[%c0_1, %c0_2] : memref<4096x128xf32, #tpu.memory_space<vmem>>, vector<4096x128xf32>
    %cst = arith.constant dense<0.000000e+00> : vector<2x128xf32>
    %2 = tpu.matmul %0, %1, %cst {dimension_numbers = #tpu.dot_dimension_numbers<[1], [0], [0], [1], [0, 0, 1, 1], [], []>} : vector<2x4096xf32>, vector<4096x128xf32>, vector<2x128xf32> -> vector<2x128xf32>
    %c0_3 = arith.constant 0 : index
    %c0_4 = arith.constant 0 : index
    %3 = vector.load %arg3[%c0_3, %c0_4] : memref<1x128xf32, #tpu.memory_space<vmem>>, vector<1x128xf32>
    %4 = vector.broadcast %3 : vector<1x128xf32> to vector<2x128xf32>
    %5 = arith.addf %2, %4 : vector<2x128xf32>
    %cst_5 = arith.constant 0.000000e+00 : f32
    %6 = vector.broadcast %cst_5 : f32 to vector<2x128xf32>
    %7 = arith.maximumf %5, %6 : vector<2x128xf32>
    %c0_6 = arith.constant 0 : index
    %c0_7 = arith.constant 0 : index
    %8 = vector.load %arg10[%c0_6, %c0_7] : memref<2x128xf32, #tpu.memory_space<vmem>>, vector<2x128xf32>
    tpu.vector_store %arg10[%c0_6, %c0_7], %7 {strides = array<i32>} : memref<2x128xf32, #tpu.memory_space<vmem>>, vector<2x128xf32>,
    %c0_8 = arith.constant 0 : index
    %c0_9 = arith.constant 0 : index
    %9 = vector.load %arg4[%c0_8, %c0_9] : memref<128x256xf32, #tpu.memory_space<vmem>>, vector<128x256xf32>
    %cst_10 = arith.constant dense<0.000000e+00> : vector<2x256xf32>
    %10 = tpu.matmul %7, %9, %cst_10 {dimension_numbers = #tpu.dot_dimension_numbers<[1], [0], [0], [1], [0, 0, 1, 1], [], []>} : vector<2x128xf32>, vector<128x256xf32>, vector<2x256xf32> -> vector<2x256xf32>
    %c0_11 = arith.constant 0 : index
    %c0_12 = arith.constant 0 : index
    %11 = vector.load %arg5[%c0_11, %c0_12] : memref<1x256xf32, #tpu.memory_space<vmem>>, vector<1x256xf32>
    %12 = vector.broadcast %11 : vector<1x256xf32> to vector<2x256xf32>
    %13 = arith.addf %10, %12 : vector<2x256xf32>
    %cst_13 = arith.constant 0.000000e+00 : f32
    %14 = vector.broadcast %cst_13 : f32 to vector<2x256xf32>
    %15 = arith.maximumf %13, %14 : vector<2x256xf32>
    %c0_14 = arith.constant 0 : index
    %c0_15 = arith.constant 0 : index
    %16 = vector.load %arg6[%c0_14, %c0_15] : memref<256x256xf32, #tpu.memory_space<vmem>>, vector<256x256xf32>
    %cst_16 = arith.constant dense<0.000000e+00> : vector<2x256xf32>
    %17 = tpu.matmul %15, %16, %cst_16 {dimension_numbers = #tpu.dot_dimension_numbers<[1], [0], [0], [1], [0, 0, 1, 1], [], []>} : vector<2x256xf32>, vector<256x256xf32>, vector<2x256xf32> -> vector<2x256xf32>
    %c0_17 = arith.constant 0 : index
    %c0_18 = arith.constant 0 : index
    %18 = vector.load %arg7[%c0_17, %c0_18] : memref<1x256xf32, #tpu.memory_space<vmem>>, vector<1x256xf32>
    %19 = vector.broadcast %18 : vector<1x256xf32> to vector<2x256xf32>
    %20 = arith.addf %17, %19 : vector<2x256xf32>
    %cst_19 = arith.constant 0.000000e+00 : f32
    %21 = vector.broadcast %cst_19 : f32 to vector<2x256xf32>
    %22 = arith.maximumf %20, %21 : vector<2x256xf32>
    %c0_20 = arith.constant 0 : index
    %c0_21 = arith.constant 0 : index
    %23 = vector.load %arg8[%c0_20, %c0_21] : memref<256x128xf32, #tpu.memory_space<vmem>>, vector<256x128xf32>
    %cst_22 = arith.constant dense<0.000000e+00> : vector<2x128xf32>
    %24 = tpu.matmul %22, %23, %cst_22 {dimension_numbers = #tpu.dot_dimension_numbers<[1], [0], [0], [1], [0, 0, 1, 1], [], []>} : vector<2x256xf32>, vector<256x128xf32>, vector<2x128xf32> -> vector<2x128xf32>
    %c0_23 = arith.constant 0 : index
    %c0_24 = arith.constant 0 : index
    %25 = vector.load %arg9[%c0_23, %c0_24] : memref<1x128xf32, #tpu.memory_space<vmem>>, vector<1x128xf32>
    %26 = vector.broadcast %25 : vector<1x128xf32> to vector<2x128xf32>
    %27 = arith.addf %24, %26 : vector<2x128xf32>
    %c0_25 = arith.constant 0 : index
    %c0_26 = arith.constant 0 : index
    %28 = vector.load %arg11[%c0_25, %c0_26] : memref<2x128xf32, #tpu.memory_space<vmem>>, vector<2x128xf32>
    tpu.vector_store %arg11[%c0_25, %c0_26], %27 {strides = array<i32>} : memref<2x128xf32, #tpu.memory_space<vmem>>, vector<2x128xf32>,
    return
  }
  func.func @transform_0(%arg0: i32) -> (i32, i32) {
    %c0_i32 = arith.constant 0 : i32
    %c0_i32_0 = arith.constant 0 : i32
    %c0_i32_1 = arith.constant 0 : i32
    return %c0_i32, %c0_i32_0 : i32, i32
  }
  func.func @transform_1(%arg0: i32) -> (i32, i32) {
    %c0_i32 = arith.constant 0 : i32
    %c0_i32_0 = arith.constant 0 : i32
    %c0_i32_1 = arith.constant 0 : i32
    return %c0_i32, %c0_i32_0 : i32, i32
  }
  func.func @transform_2(%arg0: i32) -> (i32, i32) {
    %c0_i32 = arith.constant 0 : i32
    %c0_i32_0 = arith.constant 0 : i32
    %c0_i32_1 = arith.constant 0 : i32
    return %c0_i32, %c0_i32_0 : i32, i32
  }
  func.func @transform_3(%arg0: i32) -> (i32, i32) {
    %c0_i32 = arith.constant 0 : i32
    %c0_i32_0 = arith.constant 0 : i32
    %c0_i32_1 = arith.constant 0 : i32
    return %c0_i32, %c0_i32_0 : i32, i32
  }
  func.func @transform_4(%arg0: i32) -> (i32, i32) {
    %c0_i32 = arith.constant 0 : i32
    %c0_i32_0 = arith.constant 0 : i32
    %c0_i32_1 = arith.constant 0 : i32
    return %c0_i32, %c0_i32_0 : i32, i32
  }
  func.func @transform_5(%arg0: i32) -> (i32, i32) {
    %c0_i32 = arith.constant 0 : i32
    %c0_i32_0 = arith.constant 0 : i32
    %c0_i32_1 = arith.constant 0 : i32
    return %c0_i32, %c0_i32_0 : i32, i32
  }
  func.func @transform_6(%arg0: i32) -> (i32, i32) {
    %c0_i32 = arith.constant 0 : i32
    %c0_i32_0 = arith.constant 0 : i32
    %c0_i32_1 = arith.constant 0 : i32
    return %c0_i32, %c0_i32_0 : i32, i32
  }
  func.func @transform_7(%arg0: i32) -> (i32, i32) {
    %c0_i32 = arith.constant 0 : i32
    %c0_i32_0 = arith.constant 0 : i32
    %c0_i32_1 = arith.constant 0 : i32
    return %c0_i32, %c0_i32_0 : i32, i32
  }
  func.func @transform_8(%arg0: i32) -> (i32, i32) {
    %c0_i32 = arith.constant 0 : i32
    %c0_i32_0 = arith.constant 0 : i32
    %c0_i32_1 = arith.constant 0 : i32
    return %c0_i32, %c0_i32_0 : i32, i32
  }
  func.func @transform_9(%arg0: i32) -> (i32, i32) {
    %c0_i32 = arith.constant 0 : i32
    %c0_i32_0 = arith.constant 0 : i32
    %c0_i32_1 = arith.constant 0 : i32
    return %c0_i32, %c0_i32_0 : i32, i32
  }
  func.func @transform_10(%arg0: i32) -> (i32, i32) {
    %c0_i32 = arith.constant 0 : i32
    %c0_i32_0 = arith.constant 0 : i32
    %c0_i32_1 = arith.constant 0 : i32
    return %c0_i32, %c0_i32_0 : i32, i32
  }
}

</mosaic_0001>

<llo_original>
// kernel: encoder_forward_pallas.4
$region0: #{encoder_forward_pallas.4}
  #allocation0 [shape = 'u32[]', space=smem, size = 0x4, offset = 0x4, fixed_abs, tag = 'smem constant byte address 0x4 - core index']
  #allocation1 [shape = 'u32[144,128]{1,0:T(1,128)}', space=vmem, size = 0x12000, scoped, tag = 'internal scratch']
  %s0 = inlined_call_operand.vmem [shape: f32[512,128], index: 0, kind: input, shape index: {}]
  %s1 = inlined_call_operand.vmem [shape: f32[128,256], index: 1, kind: input, shape index: {}]
  %s2 = inlined_call_operand.vmem [shape: f32[1,256], index: 2, kind: input, shape index: {}]
  %s3 = inlined_call_operand.vmem [shape: f32[512,256], index: 3, kind: output, shape index: {}]
  %s4 = sld [smem:[#allocation0]]
  $region45: #{encoder_forward_pallas.4} parent=0
    _
  %s6 = ssub.s32 1, %s4
  %s7 = scalar_select 0, %s6, %s4
  loop: start=0, step=1, limit=4
  $region2: #{encoder_forward_pallas.4} parent=0 // loop_pre_header
    _
  $region3: #{encoder_forward_pallas.4} parent=0 // loop_header
    %s9 = sphi 0, %s13
    %p10 = scmp.ge.s32.totalorder %s9, 4
    %s19 = sphi 0, %s21
    %s22 = sphi 0, %s19
    %s23 = sphi 0, %s22
    %s39 = sphi 0, %s23
    %s43 = sphi 0, %s43
    %s45 = sphi 0, %s43
    %s46 = sphi 0, %s45
    %s60 = sphi 0, %s46
    %s64 = sphi 0, %s64
    %s66 = sphi 0, %s64
    %s67 = sphi 0, %s66
    %s81 = sphi 0, %s67
    %s87 = sphi 0, %s89
    %s90 = sphi 0, %s87
    %s91 = sphi 0, %s90
    %s107 = sphi 0, %s91
  $region4: #{encoder_forward_pallas.4} parent=0 // loop_header_branch
    %12 = sbr.rel (%p10) target = $region8
  $region5: #{encoder_forward_pallas.4} parent=0 // loop_body
    %s14 = ssub.s32 %s9, 1
    %s15 = ssub.s32 %s9, 2
    %s16 = sadd.s32 %s9, 1
    %s17 = ssub.s32 %s9, %s16
    %p18 = scmp.eq.s32.totalorder %s17, 0
    %s20 = sadd.s32 %s19, 1
    %s21 = scalar_select %p18, %s19, %s20
    %p24 = pneg %p18
    %p25 = scmp.eq.s32.totalorder %s9, 1
    %p26 = por %p24, %p25
    %p27 = scmp.ne.s32.totalorder %s19, %s22
    %p28 = scmp.eq.s32.totalorder %s9, 0
    %p29 = por %p27, %p28
    %p30 = scmp.ne.s32.totalorder %s19, %s22
    %p31 = scmp.eq.s32.totalorder %s14, 1
    %p32 = por %p30, %p31
    %p33 = scmp.ne.s32.totalorder %s22, %s23
    %p34 = scmp.eq.s32.totalorder %s14, 0
    %p35 = por %p33, %p34
    %p36 = scmp.ne.s32.totalorder %s22, %s23
    %p37 = scmp.eq.s32.totalorder %s15, 1
    %p38 = por %p36, %p37
    %p40 = scmp.ne.s32.totalorder %s23, %s39
    %p41 = scmp.eq.s32.totalorder %s15, 0
    %p42 = por %p40, %p41
    %s44 = sadd.s32 %s43, 1
    %p47 = scmp.eq.s32.totalorder %s9, 1
    %p48 = scmp.ne.s32.totalorder %s43, %s45
    %p49 = scmp.eq.s32.totalorder %s9, 0
    %p50 = por %p48, %p49
    %p51 = scmp.ne.s32.totalorder %s43, %s45
    %p52 = scmp.eq.s32.totalorder %s14, 1
    %p53 = por %p51, %p52
    %p54 = scmp.ne.s32.totalorder %s45, %s46
    %p55 = scmp.eq.s32.totalorder %s14, 0
    %p56 = por %p54, %p55
    %p57 = scmp.ne.s32.totalorder %s45, %s46
    %p58 = scmp.eq.s32.totalorder %s15, 1
    %p59 = por %p57, %p58
    %p61 = scmp.ne.s32.totalorder %s46, %s60
    %p62 = scmp.eq.s32.totalorder %s15, 0
    %p63 = por %p61, %p62
    %s65 = sadd.s32 %s64, 1
    %p68 = scmp.eq.s32.totalorder %s9, 1
    %p69 = scmp.ne.s32.totalorder %s64, %s66
    %p70 = scmp.eq.s32.totalorder %s9, 0
    %p71 = por %p69, %p70
    %p72 = scmp.ne.s32.totalorder %s64, %s66
    %p73 = scmp.eq.s32.totalorder %s14, 1
    %p74 = por %p72, %p73
    %p75 = scmp.ne.s32.totalorder %s66, %s67
    %p76 = scmp.eq.s32.totalorder %s14, 0
    %p77 = por %p75, %p76
    %p78 = scmp.ne.s32.totalorder %s66, %s67
    %p79 = scmp.eq.s32.totalorder %s15, 1
    %p80 = por %p78, %p79
    %p82 = scmp.ne.s32.totalorder %s67, %s81
    %p83 = scmp.eq.s32.totalorder %s15, 0
    %p84 = por %p82, %p83
    %s85 = ssub.s32 %s9, %s16
    %p86 = scmp.eq.s32.totalorder %s85, 0
    %s88 = sadd.s32 %s87, 1
    %s89 = scalar_select %p86, %s87, %s88
    %p92 = pneg %p86
    %p93 = scmp.eq.s32.totalorder %s9, 1
    %p94 = por %p92, %p93
    %p95 = scmp.ne.s32.totalorder %s87, %s90
    %p96 = scmp.eq.s32.totalorder %s9, 0
    %p97 = por %p95, %p96
    %p98 = scmp.ne.s32.totalorder %s87, %s90
    %p99 = scmp.eq.s32.totalorder %s14, 1
    %p100 = por %p98, %p99
    %p101 = scmp.ne.s32.totalorder %s90, %s91
    %p102 = scmp.eq.s32.totalorder %s14, 0
    %p103 = por %p101, %p102
    %p104 = scmp.ne.s32.totalorder %s90, %s91
    %p105 = scmp.eq.s32.totalorder %s15, 1
    %p106 = por %p104, %p105
    %p108 = scmp.ne.s32.totalorder %s91, %s107
    %p109 = scmp.eq.s32.totalorder %s15, 0
    %p110 = por %p108, %p109
    %p111 = scmp.le.s32.totalorder 1, %s9
    %p112 = scmp.lt.s32.totalorder %s9, 3
    %p113 = pnand %p111, %p112
    %p114 = pneg %p113
    // Predicated region
    $region9: #{encoder_forward_pallas.4} parent=5 // pred_check
      _
    $region10: #{encoder_forward_pallas.4} parent=5 // pred_check_branch
      %116 = sbr.rel (%p113) target = $region12
    $region11: #{encoder_forward_pallas.4} parent=5 // pred_region
      %s117 = ssub.s32 %s9, 1
      // Predicated region
      $region13: #{encoder_forward_pallas.4} parent=11 // pred_check
        %p118 = pneg %p56
      $region14: #{encoder_forward_pallas.4} parent=11 // pred_check_branch
        %120 = sbr.rel (%p118) target = $region16
      $region15: #{encoder_forward_pallas.4} parent=11 // pred_region
        _
      $region16: #{encoder_forward_pallas.4} parent=11 // pred_fallthru
        _
      // Predicated region
      $region17: #{encoder_forward_pallas.4} parent=11 // pred_check
        %p121 = pneg %p77
      $region18: #{encoder_forward_pallas.4} parent=11 // pred_check_branch
        %123 = sbr.rel (%p121) target = $region20
      $region19: #{encoder_forward_pallas.4} parent=11 // pred_region
        _
      $region20: #{encoder_forward_pallas.4} parent=11 // pred_fallthru
        _
    $region12: #{encoder_forward_pallas.4} parent=5 // pred_fallthru
      _
    %p124 = scmp.lt.s32.totalorder %s9, 2
    // Predicated region
    $region21: #{encoder_forward_pallas.4} parent=5 // pred_check
      %p125 = pneg %p124
    $region22: #{encoder_forward_pallas.4} parent=5 // pred_check_branch
      %127 = sbr.rel (%p125) target = $region24
    $region23: #{encoder_forward_pallas.4} parent=5 // pred_region
      // Predicated region
      $region25: #{encoder_forward_pallas.4} parent=23 // pred_check
        %p128 = pneg %p29
      $region26: #{encoder_forward_pallas.4} parent=23 // pred_check_branch
        %130 = sbr.rel (%p128) target = $region28
      $region27: #{encoder_forward_pallas.4} parent=23 // pred_region
        %s131 = smul.u32 32, %s9
        %p132 = scmp.lt.s32.totalorder %s131, 63
        %s133 = scalar_select %p132, %s131, 63
        %s134 = smul.addr %s133, 8
        %s135 = scalar_lea.vmem %s0, %s134
        %s136 = smul.u32 32, %s9
      $region28: #{encoder_forward_pallas.4} parent=23 // pred_fallthru
        _
    $region24: #{encoder_forward_pallas.4} parent=5 // pred_fallthru
      _
    %p137 = scmp.le.s32.totalorder 1, %s9
    %p138 = scmp.lt.s32.totalorder %s9, 3
    %p139 = pnand %p137, %p138
    %p140 = pneg %p139
    // Predicated region
    $region29: #{encoder_forward_pallas.4} parent=5 // pred_check
      _
    $region30: #{encoder_forward_pallas.4} parent=5 // pred_check_branch
      %142 = sbr.rel (%p139) target = $region32
    $region31: #{encoder_forward_pallas.4} parent=5 // pred_region
      %s143 = ssub.s32 %s9, 1
      %s144 = smul.u32 32, %s14
      %p145 = scmp.lt.s32.totalorder %s144, 63
      %s146 = scalar_select %p145, %s144, 63
      %s147 = smul.addr %s146, 8
      %s148 = scalar_lea.vmem %s0, %s147
      %p149 = pneg %p35
      %p150 = pneg %p32
      %p151 = pneg %p56
      %p152 = pneg %p53
      %p153 = pneg %p77
      %p154 = pneg %p74
      %p155 = pneg %p103
      %p156 = pneg %p100
      %s157 = smul.u32 32, %s14
      %p158 = scmp.lt.s32.totalorder %s157, 63
      %s159 = scalar_select %p158, %s157, 63
      %s160 = smul.addr %s159, 2
      %s161 = smul.addr %s160, 8
      %s162 = scalar_lea.vmem %s3, %s161
      %s163 = smul.u32 32, %s14
      %p164 = scmp.lt.s32.totalorder %s163, 63
      %s165 = scalar_select %p164, %s163, 63
      %s166 = smul.addr %s165, 8
      %s167 = scalar_lea.vmem %s0, %s166
      %s168 = smul.u32 32, %s14
      %s169 = smul.u32 32, %s14
      %p170 = scmp.lt.s32.totalorder %s169, 63
      %s171 = scalar_select %p170, %s169, 63
      %s172 = smul.addr %s171, 2
      %s173 = smul.addr %s172, 8
      %s174 = scalar_lea.vmem %s3, %s173
      %s175 = smul.u32 32, %s14
      %v176 = vld [vmem:[%s167] sm:$0xff]
      %v177 = vld [vmem:[%s167 + $0x8] sm:$0xff]
      %v178 = vld [vmem:[%s167 + $0x10] sm:$0xff]
      %v179 = vld [vmem:[%s167 + $0x18] sm:$0xff]
      %v180 = vld [vmem:[%s167 + $0x20] sm:$0xff]
      %v181 = vld [vmem:[%s167 + $0x28] sm:$0xff]
      %v182 = vld [vmem:[%s167 + $0x30] sm:$0xff]
      %v183 = vld [vmem:[%s167 + $0x38] sm:$0xff]
      %v184 = vld [vmem:[%s167 + $0x40] sm:$0xff]
      %v185 = vld [vmem:[%s167 + $0x48] sm:$0xff]
      %v186 = vld [vmem:[%s167 + $0x50] sm:$0xff]
      %v187 = vld [vmem:[%s167 + $0x58] sm:$0xff]
      %v188 = vld [vmem:[%s167 + $0x60] sm:$0xff]
      %v189 = vld [vmem:[%s167 + $0x68] sm:$0xff]
      %v190 = vld [vmem:[%s167 + $0x70] sm:$0xff]
      %v191 = vld [vmem:[%s167 + $0x78] sm:$0xff]
      %v192 = vld [vmem:[%s167 + $0x80] sm:$0xff]
      %v193 = vld [vmem:[%s167 + $0x88] sm:$0xff]
      %v194 = vld [vmem:[%s167 + $0x90] sm:$0xff]
      %v195 = vld [vmem:[%s167 + $0x98] sm:$0xff]
      %v196 = vld [vmem:[%s167 + $0xa0] sm:$0xff]
      %v197 = vld [vmem:[%s167 + $0xa8] sm:$0xff]
      %v198 = vld [vmem:[%s167 + $0xb0] sm:$0xff]
      %v199 = vld [vmem:[%s167 + $0xb8] sm:$0xff]
      %v200 = vld [vmem:[%s167 + $0xc0] sm:$0xff]
      %v201 = vld [vmem:[%s167 + $0xc8] sm:$0xff]
      %v202 = vld [vmem:[%s167 + $0xd0] sm:$0xff]
      %v203 = vld [vmem:[%s167 + $0xd8] sm:$0xff]
      %v204 = vld [vmem:[%s167 + $0xe0] sm:$0xff]
      %v205 = vld [vmem:[%s167 + $0xe8] sm:$0xff]
      %v206 = vld [vmem:[%s167 + $0xf0] sm:$0xff]
      %v207 = vld [vmem:[%s167 + $0xf8] sm:$0xff]
      %v208 = vld [vmem:[%s1] sm:$0xff]
      %v209 = vld [vmem:[%s1 + $0x8] sm:$0xff]
      %v210 = vld [vmem:[%s1 + $0x10] sm:$0xff]
      %v211 = vld [vmem:[%s1 + $0x18] sm:$0xff]
      %v212 = vld [vmem:[%s1 + $0x20] sm:$0xff]
      %v213 = vld [vmem:[%s1 + $0x28] sm:$0xff]
      %v214 = vld [vmem:[%s1 + $0x30] sm:$0xff]
      %v215 = vld [vmem:[%s1 + $0x38] sm:$0xff]
      %v216 = vld [vmem:[%s1 + $0x40] sm:$0xff]
      %v217 = vld [vmem:[%s1 + $0x48] sm:$0xff]
      %v218 = vld [vmem:[%s1 + $0x50] sm:$0xff]
      %v219 = vld [vmem:[%s1 + $0x58] sm:$0xff]
      %v220 = vld [vmem:[%s1 + $0x60] sm:$0xff]
      %v221 = vld [vmem:[%s1 + $0x68] sm:$0xff]
      %v222 = vld [vmem:[%s1 + $0x70] sm:$0xff]
      %v223 = vld [vmem:[%s1 + $0x78] sm:$0xff]
      %v224 = vld [vmem:[%s1 + $0x80] sm:$0xff]
      %v225 = vld [vmem:[%s1 + $0x88] sm:$0xff]
      %v226 = vld [vmem:[%s1 + $0x90] sm:$0xff]
      %v227 = vld [vmem:[%s1 + $0x98] sm:$0xff]
      %v228 = vld [vmem:[%s1 + $0xa0] sm:$0xff]
      %v229 = vld [vmem:[%s1 + $0xa8] sm:$0xff]
      %v230 = vld [vmem:[%s1 + $0xb0] sm:$0xff]
      %v231 = vld [vmem:[%s1 + $0xb8] sm:$0xff]
      %v232 = vld [vmem:[%s1 + $0xc0] sm:$0xff]
      %v233 = vld [vmem:[%s1 + $0xc8] sm:$0xff]
      %v234 = vld [vmem:[%s1 + $0xd0] sm:$0xff]
      %v235 = vld [vmem:[%s1 + $0xd8] sm:$0xff]
      %v236 = vld [vmem:[%s1 + $0xe0] sm:$0xff]
      %v237 = vld [vmem:[%s1 + $0xe8] sm:$0xff]
      %v238 = vld [vmem:[%s1 + $0xf0] sm:$0xff]
      %v239 = vld [vmem:[%s1 + $0xf8] sm:$0xff]
      %v240 = vld [vmem:[%s2] sm:$0x3]
      %v242 = vlaneseq
      %v243 = vshrl.u32 %v242, 7
      %v244 = vsub.s32 0, %v243
      %v245 = vrot.slane %v240, %v244
      %v246 = vlaneseq
      %v247 = vshrl.u32 %v246, 7
      %v248 = vsub.s32 1, %v247
      %v249 = vrot.slane %v240, %v248
      %252 = vmatprep.subr.mxu0 %v209
      %253 = vmatpush1.msra.mxu0 %v208
      %254 = vmatprep.subr.mxu0 %v211
      %255 = vmatpush1.msra.mxu0 %v210
      %256 = vmatprep.subr.mxu0 %v213
      %257 = vmatpush1.msra.mxu0 %v212
      %258 = vmatprep.subr.mxu0 %v215
      %259 = vmatpush1.msra.mxu0 %v214
      %260 = vmatprep.subr.mxu0 %v217
      %261 = vmatpush1.msra.mxu0 %v216
      %262 = vmatprep.subr.mxu0 %v219
      %263 = vmatpush1.msra.mxu0 %v218
      %264 = vmatprep.subr.mxu0 %v221
      %265 = vmatpush1.msra.mxu0 %v220
      %266 = vmatprep.subr.mxu0 %v223
      %267 = vmatpush1.msra.mxu0 %v222
      %268 = vmatprep.subr.mxu0 %v225
      %269 = vmatpush1.msra.mxu0 %v224
      %270 = vmatprep.subr.mxu0 %v227
      %271 = vmatpush1.msra.mxu0 %v226
      %272 = vmatprep.subr.mxu0 %v229
      %273 = vmatpush1.msra.mxu0 %v228
      %274 = vmatprep.subr.mxu0 %v231
      %275 = vmatpush1.msra.mxu0 %v230
      %276 = vmatprep.subr.mxu0 %v233
      %277 = vmatpush1.msra.mxu0 %v232
      %278 = vmatprep.subr.mxu0 %v235
      %279 = vmatpush1.msra.mxu0 %v234
      %280 = vmatprep.subr.mxu0 %v237
      %281 = vmatpush1.msra.mxu0 %v236
      %282 = vmatprep.subr.mxu0 %v239
      %283 = vmatpush1.msra.mxu0 %v238
      %284 = vmatprep.subr.mxu0 0.0
      %285 = vmatpush1.msra.mxu0 0.0
      %286 = vmatprep.subr.mxu0 0.0
      %287 = vmatpush1.msra.mxu0 0.0
      %288 = vmatprep.subr.mxu0 0.0
      %289 = vmatpush1.msra.mxu0 0.0
      %290 = vmatprep.subr.mxu0 0.0
      %291 = vmatpush1.msra.mxu0 0.0
      %292 = vmatprep.subr.mxu0 0.0
      %293 = vmatpush1.msra.mxu0 0.0
      %294 = vmatprep.subr.mxu0 0.0
      %295 = vmatpush1.msra.mxu0 0.0
      %296 = vmatprep.subr.mxu0 0.0
      %297 = vmatpush1.msra.mxu0 0.0
      %298 = vmatprep.subr.mxu0 0.0
      %299 = vmatpush1.msra.mxu0 0.0
      %300 = vmatprep.subr.mxu0 0.0
      %301 = vmatpush1.msra.mxu0 0.0
      %302 = vmatprep.subr.mxu0 0.0
      %303 = vmatpush1.msra.mxu0 0.0
      %304 = vmatprep.subr.mxu0 0.0
      %305 = vmatpush1.msra.mxu0 0.0
      %306 = vmatprep.subr.mxu0 0.0
      %307 = vmatpush1.msra.mxu0 0.0
      %308 = vmatprep.subr.mxu0 0.0
      %309 = vmatpush1.msra.mxu0 0.0
      %310 = vmatprep.subr.mxu0 0.0
      %311 = vmatpush1.msra.mxu0 0.0
      %312 = vmatprep.subr.mxu0 0.0
      %313 = vmatpush1.msra.mxu0 0.0
      %314 = vmatprep.subr.mxu0 0.0
      %315 = vmatpush1.msra.mxu0 0.0
      %316 = vmatprep.mubr.f32.mxu0 0.0
      %317 = vmatmul.mubr.f32.gmra.mrb[0].mxu0 %v176
      %v318 = vpop.f32.mrb[0].mxu0
      %v319 = vadd.f32 %v245, %v318
      %v320 = vpop.f32.mrb[0].mxu0
      %v321 = vadd.f32 %v249, %v320
      %322 = vmatprep.mubr.f32.mxu0 0.0
      %323 = vmatmul.mubr.f32.gmra.mrb[0].mxu0 %v177
      %v324 = vpop.f32.mrb[0].mxu0
      %v325 = vadd.f32 %v245, %v324
      %v326 = vpop.f32.mrb[0].mxu0
      %v327 = vadd.f32 %v249, %v326
      %328 = vmatprep.mubr.f32.mxu0 0.0
      %329 = vmatmul.mubr.f32.gmra.mrb[0].mxu0 %v178
      %v330 = vpop.f32.mrb[0].mxu0
      %v331 = vadd.f32 %v245, %v330
      %v332 = vpop.f32.mrb[0].mxu0
      %v333 = vadd.f32 %v249, %v332
      %334 = vmatprep.mubr.f32.mxu0 0.0
      %335 = vmatmul.mubr.f32.gmra.mrb[0].mxu0 %v179
      %v336 = vpop.f32.mrb[0].mxu0
      %v337 = vadd.f32 %v245, %v336
      %v338 = vpop.f32.mrb[0].mxu0
      %v339 = vadd.f32 %v249, %v338
      %340 = vmatprep.mubr.f32.mxu0 0.0
      %341 = vmatmul.mubr.f32.gmra.mrb[0].mxu0 %v180
      %v342 = vpop.f32.mrb[0].mxu0
      %v343 = vadd.f32 %v245, %v342
      %v344 = vpop.f32.mrb[0].mxu0
      %v345 = vadd.f32 %v249, %v344
      %346 = vmatprep.mubr.f32.mxu0 0.0
      %347 = vmatmul.mubr.f32.gmra.mrb[0].mxu0 %v181
      %v348 = vpop.f32.mrb[0].mxu0
      %v349 = vadd.f32 %v245, %v348
      %v350 = vpop.f32.mrb[0].mxu0
      %v351 = vadd.f32 %v249, %v350
      %352 = vmatprep.mubr.f32.mxu0 0.0
      %353 = vmatmul.mubr.f32.gmra.mrb[0].mxu0 %v182
      %v354 = vpop.f32.mrb[0].mxu0
      %v355 = vadd.f32 %v245, %v354
      %v356 = vpop.f32.mrb[0].mxu0
      %v357 = vadd.f32 %v249, %v356
      %358 = vmatprep.mubr.f32.mxu0 0.0
      %359 = vmatmul.mubr.f32.gmra.mrb[0].mxu0 %v183
      %v360 = vpop.f32.mrb[0].mxu0
      %v361 = vadd.f32 %v245, %v360
      %v362 = vpop.f32.mrb[0].mxu0
      %v363 = vadd.f32 %v249, %v362
      %364 = vmatprep.mubr.f32.mxu0 0.0
      %365 = vmatmul.mubr.f32.gmra.mrb[0].mxu0 %v184
      %v366 = vpop.f32.mrb[0].mxu0
      %v367 = vadd.f32 %v245, %v366
      %v368 = vpop.f32.mrb[0].mxu0
      %v369 = vadd.f32 %v249, %v368
      %370 = vmatprep.mubr.f32.mxu0 0.0
      %371 = vmatmul.mubr.f32.gmra.mrb[0].mxu0 %v185
      %v372 = vpop.f32.mrb[0].mxu0
      %v373 = vadd.f32 %v245, %v372
      %v374 = vpop.f32.mrb[0].mxu0
      %v375 = vadd.f32 %v249, %v374
      %376 = vmatprep.mubr.f32.mxu0 0.0
      %377 = vmatmul.mubr.f32.gmra.mrb[0].mxu0 %v186
      %v378 = vpop.f32.mrb[0].mxu0
      %v379 = vadd.f32 %v245, %v378
      %v380 = vpop.f32.mrb[0].mxu0
      %v381 = vadd.f32 %v249, %v380
      %382 = vmatprep.mubr.f32.mxu0 0.0
      %383 = vmatmul.mubr.f32.gmra.mrb[0].mxu0 %v187
      %v384 = vpop.f32.mrb[0].mxu0
      %v385 = vadd.f32 %v245, %v384
      %v386 = vpop.f32.mrb[0].mxu0
      %v387 = vadd.f32 %v249, %v386
      %388 = vmatprep.mubr.f32.mxu0 0.0
      %389 = vmatmul.mubr.f32.gmra.mrb[0].mxu0 %v188
      %v390 = vpop.f32.mrb[0].mxu0
      %v391 = vadd.f32 %v245, %v390
      %v392 = vpop.f32.mrb[0].mxu0
      %v393 = vadd.f32 %v249, %v392
      %394 = vmatprep.mubr.f32.mxu0 0.0
      %395 = vmatmul.mubr.f32.gmra.mrb[0].mxu0 %v189
      %v396 = vpop.f32.mrb[0].mxu0
      %v397 = vadd.f32 %v245, %v396
      %v398 = vpop.f32.mrb[0].mxu0
      %v399 = vadd.f32 %v249, %v398
      %400 = vmatprep.mubr.f32.mxu0 0.0
      %401 = vmatmul.mubr.f32.gmra.mrb[0].mxu0 %v190
      %v402 = vpop.f32.mrb[0].mxu0
      %v403 = vadd.f32 %v245, %v402
      %v404 = vpop.f32.mrb[0].mxu0
      %v405 = vadd.f32 %v249, %v404
      %406 = vmatprep.mubr.f32.mxu0 0.0
      %407 = vmatmul.mubr.f32.gmra.mrb[0].mxu0 %v191
      %v408 = vpop.f32.mrb[0].mxu0
      %v409 = vadd.f32 %v245, %v408
      %v410 = vpop.f32.mrb[0].mxu0
      %v411 = vadd.f32 %v249, %v410
      %412 = vmatprep.mubr.f32.mxu0 0.0
      %413 = vmatmul.mubr.f32.gmra.mrb[0].mxu0 %v192
      %v414 = vpop.f32.mrb[0].mxu0
      %v415 = vadd.f32 %v245, %v414
      %v416 = vpop.f32.mrb[0].mxu0
      %v417 = vadd.f32 %v249, %v416
      %418 = vmatprep.mubr.f32.mxu0 0.0
      %419 = vmatmul.mubr.f32.gmra.mrb[0].mxu0 %v193
      %v420 = vpop.f32.mrb[0].mxu0
      %v421 = vadd.f32 %v245, %v420
      %v422 = vpop.f32.mrb[0].mxu0
      %v423 = vadd.f32 %v249, %v422
      %424 = vmatprep.mubr.f32.mxu0 0.0
      %425 = vmatmul.mubr.f32.gmra.mrb[0].mxu0 %v194
      %v426 = vpop.f32.mrb[0].mxu0
      %v427 = vadd.f32 %v245, %v426
      %v428 = vpop.f32.mrb[0].mxu0
      %v429 = vadd.f32 %v249, %v428
      %430 = vmatprep.mubr.f32.mxu0 0.0
      %431 = vmatmul.mubr.f32.gmra.mrb[0].mxu0 %v195
      %v432 = vpop.f32.mrb[0].mxu0
      %v433 = vadd.f32 %v245, %v432
      %v434 = vpop.f32.mrb[0].mxu0
      %v435 = vadd.f32 %v249, %v434
      %436 = vmatprep.mubr.f32.mxu0 0.0
      %437 = vmatmul.mubr.f32.gmra.mrb[0].mxu0 %v196
      %v438 = vpop.f32.mrb[0].mxu0
      %v439 = vadd.f32 %v245, %v438
      %v440 = vpop.f32.mrb[0].mxu0
      %v441 = vadd.f32 %v249, %v440
      %442 = vmatprep.mubr.f32.mxu0 0.0
      %443 = vmatmul.mubr.f32.gmra.mrb[0].mxu0 %v197
      %v444 = vpop.f32.mrb[0].mxu0
      %v445 = vadd.f32 %v245, %v444
      %v446 = vpop.f32.mrb[0].mxu0
      %v447 = vadd.f32 %v249, %v446
      %448 = vmatprep.mubr.f32.mxu0 0.0
      %449 = vmatmul.mubr.f32.gmra.mrb[0].mxu0 %v198
      %v450 = vpop.f32.mrb[0].mxu0
      %v451 = vadd.f32 %v245, %v450
      %v452 = vpop.f32.mrb[0].mxu0
      %v453 = vadd.f32 %v249, %v452
      %454 = vmatprep.mubr.f32.mxu0 0.0
      %455 = vmatmul.mubr.f32.gmra.mrb[0].mxu0 %v199
      %v456 = vpop.f32.mrb[0].mxu0
      %v457 = vadd.f32 %v245, %v456
      %v458 = vpop.f32.mrb[0].mxu0
      %v459 = vadd.f32 %v249, %v458
      %460 = vmatprep.mubr.f32.mxu0 0.0
      %461 = vmatmul.mubr.f32.gmra.mrb[0].mxu0 %v200
      %v462 = vpop.f32.mrb[0].mxu0
      %v463 = vadd.f32 %v245, %v462
      %v464 = vpop.f32.mrb[0].mxu0
      %v465 = vadd.f32 %v249, %v464
      %466 = vmatprep.mubr.f32.mxu0 0.0
      %467 = vmatmul.mubr.f32.gmra.mrb[0].mxu0 %v201
      %v468 = vpop.f32.mrb[0].mxu0
      %v469 = vadd.f32 %v245, %v468
      %v470 = vpop.f32.mrb[0].mxu0
      %v471 = vadd.f32 %v249, %v470
      %472 = vmatprep.mubr.f32.mxu0 0.0
      %473 = vmatmul.mubr.f32.gmra.mrb[0].mxu0 %v202
      %v474 = vpop.f32.mrb[0].mxu0
      %v475 = vadd.f32 %v245, %v474
      %v476 = vpop.f32.mrb[0].mxu0
      %v477 = vadd.f32 %v249, %v476
      %478 = vmatprep.mubr.f32.mxu0 0.0
      %479 = vmatmul.mubr.f32.gmra.mrb[0].mxu0 %v203
      %v480 = vpop.f32.mrb[0].mxu0
      %v481 = vadd.f32 %v245, %v480
      %v482 = vpop.f32.mrb[0].mxu0
      %v483 = vadd.f32 %v249, %v482
      %484 = vmatprep.mubr.f32.mxu0 0.0
      %485 = vmatmul.mubr.f32.gmra.mrb[0].mxu0 %v204
      %v486 = vpop.f32.mrb[0].mxu0
      %v487 = vadd.f32 %v245, %v486
      %v488 = vpop.f32.mrb[0].mxu0
      %v489 = vadd.f32 %v249, %v488
      %490 = vmatprep.mubr.f32.mxu0 0.0
      %491 = vmatmul.mubr.f32.gmra.mrb[0].mxu0 %v205
      %v492 = vpop.f32.mrb[0].mxu0
      %v493 = vadd.f32 %v245, %v492
      %v494 = vpop.f32.mrb[0].mxu0
      %v495 = vadd.f32 %v249, %v494
      %496 = vmatprep.mubr.f32.mxu0 0.0
      %497 = vmatmul.mubr.f32.gmra.mrb[0].mxu0 %v206
      %v498 = vpop.f32.mrb[0].mxu0
      %v499 = vadd.f32 %v245, %v498
      %v500 = vpop.f32.mrb[0].mxu0
      %v501 = vadd.f32 %v249, %v500
      %502 = vmatprep.mubr.f32.mxu0 0.0
      %503 = vmatmul.mubr.f32.gmra.mrb[0].mxu0 %v207
      %v504 = vpop.f32.mrb[0].mxu0
      %v505 = vadd.f32 %v245, %v504
      %v506 = vpop.f32.mrb[0].mxu0
      %v507 = vadd.f32 %v249, %v506
      %508 = vdwg.mxu0
      %v509 = vmax.f32 %v319, 0.0
      %v510 = vmax.f32 %v321, 0.0
      %v511 = vmax.f32 %v325, 0.0
      %v512 = vmax.f32 %v327, 0.0
      %v513 = vmax.f32 %v331, 0.0
      %v514 = vmax.f32 %v333, 0.0
      %v515 = vmax.f32 %v337, 0.0
      %v516 = vmax.f32 %v339, 0.0
      %v517 = vmax.f32 %v343, 0.0
      %v518 = vmax.f32 %v345, 0.0
      %v519 = vmax.f32 %v349, 0.0
      %v520 = vmax.f32 %v351, 0.0
      %v521 = vmax.f32 %v355, 0.0
      %v522 = vmax.f32 %v357, 0.0
      %v523 = vmax.f32 %v361, 0.0
      %v524 = vmax.f32 %v363, 0.0
      %v525 = vmax.f32 %v367, 0.0
      %v526 = vmax.f32 %v369, 0.0
      %v527 = vmax.f32 %v373, 0.0
      %v528 = vmax.f32 %v375, 0.0
      %v529 = vmax.f32 %v379, 0.0
      %v530 = vmax.f32 %v381, 0.0
      %v531 = vmax.f32 %v385, 0.0
      %v532 = vmax.f32 %v387, 0.0
      %v533 = vmax.f32 %v391, 0.0
      %v534 = vmax.f32 %v393, 0.0
      %v535 = vmax.f32 %v397, 0.0
      %v536 = vmax.f32 %v399, 0.0
      %v537 = vmax.f32 %v403, 0.0
      %v538 = vmax.f32 %v405, 0.0
      %v539 = vmax.f32 %v409, 0.0
      %v540 = vmax.f32 %v411, 0.0
      %v541 = vmax.f32 %v415, 0.0
      %v542 = vmax.f32 %v417, 0.0
      %v543 = vmax.f32 %v421, 0.0
      %v544 = vmax.f32 %v423, 0.0
      %v545 = vmax.f32 %v427, 0.0
      %v546 = vmax.f32 %v429, 0.0
      %v547 = vmax.f32 %v433, 0.0
      %v548 = vmax.f32 %v435, 0.0
      %v549 = vmax.f32 %v439, 0.0
      %v550 = vmax.f32 %v441, 0.0
      %v551 = vmax.f32 %v445, 0.0
      %v552 = vmax.f32 %v447, 0.0
      %v553 = vmax.f32 %v451, 0.0
      %v554 = vmax.f32 %v453, 0.0
      %v555 = vmax.f32 %v457, 0.0
      %v556 = vmax.f32 %v459, 0.0
      %v557 = vmax.f32 %v463, 0.0
      %v558 = vmax.f32 %v465, 0.0
      %v559 = vmax.f32 %v469, 0.0
      %v560 = vmax.f32 %v471, 0.0
      %v561 = vmax.f32 %v475, 0.0
      %v562 = vmax.f32 %v477, 0.0
      %v563 = vmax.f32 %v481, 0.0
      %v564 = vmax.f32 %v483, 0.0
      %v565 = vmax.f32 %v487, 0.0
      %v566 = vmax.f32 %v489, 0.0
      %v567 = vmax.f32 %v493, 0.0
      %v568 = vmax.f32 %v495, 0.0
      %v569 = vmax.f32 %v499, 0.0
      %v570 = vmax.f32 %v501, 0.0
      %v571 = vmax.f32 %v505, 0.0
      %v572 = vmax.f32 %v507, 0.0
      %573 = vst [vmem:[%s174] sm:$0xff] %v509
      %574 = vst [vmem:[%s174 + $0x8] sm:$0xff] %v510
      %575 = vst [vmem:[%s174 + $0x10] sm:$0xff] %v511
      %576 = vst [vmem:[%s174 + $0x18] sm:$0xff] %v512
      %577 = vst [vmem:[%s174 + $0x20] sm:$0xff] %v513
      %578 = vst [vmem:[%s174 + $0x28] sm:$0xff] %v514
      %579 = vst [vmem:[%s174 + $0x30] sm:$0xff] %v515
      %580 = vst [vmem:[%s174 + $0x38] sm:$0xff] %v516
      %581 = vst [vmem:[%s174 + $0x40] sm:$0xff] %v517
      %582 = vst [vmem:[%s174 + $0x48] sm:$0xff] %v518
      %583 = vst [vmem:[%s174 + $0x50] sm:$0xff] %v519
      %584 = vst [vmem:[%s174 + $0x58] sm:$0xff] %v520
      %585 = vst [vmem:[%s174 + $0x60] sm:$0xff] %v521
      %586 = vst [vmem:[%s174 + $0x68] sm:$0xff] %v522
      %587 = vst [vmem:[%s174 + $0x70] sm:$0xff] %v523
      %588 = vst [vmem:[%s174 + $0x78] sm:$0xff] %v524
      %589 = vst [vmem:[%s174 + $0x80] sm:$0xff] %v525
      %590 = vst [vmem:[%s174 + $0x88] sm:$0xff] %v526
      %591 = vst [vmem:[%s174 + $0x90] sm:$0xff] %v527
      %592 = vst [vmem:[%s174 + $0x98] sm:$0xff] %v528
      %593 = vst [vmem:[%s174 + $0xa0] sm:$0xff] %v529
      %594 = vst [vmem:[%s174 + $0xa8] sm:$0xff] %v530
      %595 = vst [vmem:[%s174 + $0xb0] sm:$0xff] %v531
      %596 = vst [vmem:[%s174 + $0xb8] sm:$0xff] %v532
      %597 = vst [vmem:[%s174 + $0xc0] sm:$0xff] %v533
      %598 = vst [vmem:[%s174 + $0xc8] sm:$0xff] %v534
      %599 = vst [vmem:[%s174 + $0xd0] sm:$0xff] %v535
      %600 = vst [vmem:[%s174 + $0xd8] sm:$0xff] %v536
      %601 = vst [vmem:[%s174 + $0xe0] sm:$0xff] %v537
      %602 = vst [vmem:[%s174 + $0xe8] sm:$0xff] %v538
      %603 = vst [vmem:[%s174 + $0xf0] sm:$0xff] %v539
      %604 = vst [vmem:[%s174 + $0xf8] sm:$0xff] %v540
      %605 = vst [vmem:[%s174 + $0x100] sm:$0xff] %v541
      %606 = vst [vmem:[%s174 + $0x108] sm:$0xff] %v542
      %607 = vst [vmem:[%s174 + $0x110] sm:$0xff] %v543
      %608 = vst [vmem:[%s174 + $0x118] sm:$0xff] %v544
      %609 = vst [vmem:[%s174 + $0x120] sm:$0xff] %v545
      %610 = vst [vmem:[%s174 + $0x128] sm:$0xff] %v546
      %611 = vst [vmem:[%s174 + $0x130] sm:$0xff] %v547
      %612 = vst [vmem:[%s174 + $0x138] sm:$0xff] %v548
      %613 = vst [vmem:[%s174 + $0x140] sm:$0xff] %v549
      %614 = vst [vmem:[%s174 + $0x148] sm:$0xff] %v550
      %615 = vst [vmem:[%s174 + $0x150] sm:$0xff] %v551
      %616 = vst [vmem:[%s174 + $0x158] sm:$0xff] %v552
      %617 = vst [vmem:[%s174 + $0x160] sm:$0xff] %v553
      %618 = vst [vmem:[%s174 + $0x168] sm:$0xff] %v554
      %619 = vst [vmem:[%s174 + $0x170] sm:$0xff] %v555
      %620 = vst [vmem:[%s174 + $0x178] sm:$0xff] %v556
      %621 = vst [vmem:[%s174 + $0x180] sm:$0xff] %v557
      %622 = vst [vmem:[%s174 + $0x188] sm:$0xff] %v558
      %623 = vst [vmem:[%s174 + $0x190] sm:$0xff] %v559
      %624 = vst [vmem:[%s174 + $0x198] sm:$0xff] %v560
      %625 = vst [vmem:[%s174 + $0x1a0] sm:$0xff] %v561
      %626 = vst [vmem:[%s174 + $0x1a8] sm:$0xff] %v562
      %627 = vst [vmem:[%s174 + $0x1b0] sm:$0xff] %v563
      %628 = vst [vmem:[%s174 + $0x1b8] sm:$0xff] %v564
      %629 = vst [vmem:[%s174 + $0x1c0] sm:$0xff] %v565
      %630 = vst [vmem:[%s174 + $0x1c8] sm:$0xff] %v566
      %631 = vst [vmem:[%s174 + $0x1d0] sm:$0xff] %v567
      %632 = vst [vmem:[%s174 + $0x1d8] sm:$0xff] %v568
      %633 = vst [vmem:[%s174 + $0x1e0] sm:$0xff] %v569
      %634 = vst [vmem:[%s174 + $0x1e8] sm:$0xff] %v570
      %635 = vst [vmem:[%s174 + $0x1f0] sm:$0xff] %v571
      %636 = vst [vmem:[%s174 + $0x1f8] sm:$0xff] %v572
      %s637 = smul.u32 32, %s14
      %p638 = scmp.lt.s32.totalorder %s637, 63
      %s639 = scalar_select %p638, %s637, 63
      %s640 = smul.addr %s639, 2
      %s641 = smul.addr %s640, 8
      %s642 = scalar_lea.vmem %s3, %s641
      // Predicated region
      $region33: #{encoder_forward_pallas.4} parent=31 // pred_check
        %p643 = pneg %p100
      $region34: #{encoder_forward_pallas.4} parent=31 // pred_check_branch
        %645 = sbr.rel (%p643) target = $region36
      $region35: #{encoder_forward_pallas.4} parent=31 // pred_region
        %s646 = smul.u32 32, %s14
      $region36: #{encoder_forward_pallas.4} parent=31 // pred_fallthru
        _
    $region32: #{encoder_forward_pallas.4} parent=5 // pred_fallthru
      _
    %p647 = scmp.le.s32.totalorder 2, %s9
    // Predicated region
    $region37: #{encoder_forward_pallas.4} parent=5 // pred_check
      %p648 = pneg %p647
    $region38: #{encoder_forward_pallas.4} parent=5 // pred_check_branch
      %650 = sbr.rel (%p648) target = $region40
    $region39: #{encoder_forward_pallas.4} parent=5 // pred_region
      %s651 = ssub.s32 %s9, 2
      // Predicated region
      $region41: #{encoder_forward_pallas.4} parent=39 // pred_check
        %p652 = pneg %p106
      $region42: #{encoder_forward_pallas.4} parent=39 // pred_check_branch
        %654 = sbr.rel (%p652) target = $region44
      $region43: #{encoder_forward_pallas.4} parent=39 // pred_region
        %s655 = smul.u32 32, %s15
        %p656 = scmp.lt.s32.totalorder %s655, 63
        %s657 = scalar_select %p656, %s655, 63
        %s658 = smul.addr %s657, 2
        %s659 = smul.addr %s658, 8
        %s660 = scalar_lea.vmem %s3, %s659
      $region44: #{encoder_forward_pallas.4} parent=39 // pred_fallthru
        _
    $region40: #{encoder_forward_pallas.4} parent=5 // pred_fallthru
      _
  $region6: #{encoder_forward_pallas.4} parent=0 // loop_footer
    %s13 = sadd.s32 1, %s9
  $region7: #{encoder_forward_pallas.4} parent=0 // loop_footer_branch
    %8 = sbr.rel target = $region3
  $region8: #{encoder_forward_pallas.4} parent=0 // loop_exit
    _

// kernel: encoder_forward_pallas.5
$region0: #{encoder_forward_pallas.5}
  #allocation0 [shape = 'u32[]', space=smem, size = 0x4, offset = 0x4, fixed_abs, tag = 'smem constant byte address 0x4 - core index']
  #allocation1 [shape = 'u32[144,128]{1,0:T(1,128)}', space=vmem, size = 0x12000, scoped, tag = 'internal scratch']
  %s0 = inlined_call_operand.vmem [shape: f32[128,2304], index: 0, kind: input, shape index: {}]
  %s1 = inlined_call_operand.vmem [shape: f32[2304,256], index: 1, kind: input, shape index: {}]
  %s2 = inlined_call_operand.vmem [shape: f32[1,256], index: 2, kind: input, shape index: {}]
  %s3 = inlined_call_operand.vmem [shape: f32[128,256], index: 3, kind: output, shape index: {}]
  %s4 = sld [smem:[#allocation0]]
  $region22: #{encoder_forward_pallas.5} parent=0
    _
  %s6 = ssub.s32 1, %s4
  %s7 = scalar_select 0, %s6, %s4
  // Predicated region
  $region2: #{encoder_forward_pallas.5} parent=0 // pred_check
    _
  $region3: #{encoder_forward_pallas.5} parent=0 // pred_check_branch
    %9 = sbr.rel (0) target = $region5
  $region4: #{encoder_forward_pallas.5} parent=0 // pred_region
    _
  $region5: #{encoder_forward_pallas.5} parent=0 // pred_fallthru
    _
  // Predicated region
  $region6: #{encoder_forward_pallas.5} parent=0 // pred_check
    _
  $region7: #{encoder_forward_pallas.5} parent=0 // pred_check_branch
    %11 = sbr.rel (0) target = $region9
  $region8: #{encoder_forward_pallas.5} parent=0 // pred_region
    _
  $region9: #{encoder_forward_pallas.5} parent=0 // pred_fallthru
    _
  // Predicated region
  $region10: #{encoder_forward_pallas.5} parent=0 // pred_check
    _
  $region11: #{encoder_forward_pallas.5} parent=0 // pred_check_branch
    %13 = sbr.rel (0) target = $region13
  $region12: #{encoder_forward_pallas.5} parent=0 // pred_region
    _
  $region13: #{encoder_forward_pallas.5} parent=0 // pred_fallthru
    _
  %v14 = vld [vmem:[%s0] sm:$0xff]
  %v15 = vld [vmem:[%s0 + $0x8] sm:$0xff]
  %v16 = vld [vmem:[%s0 + $0x10] sm:$0xff]
  %v17 = vld [vmem:[%s0 + $0x18] sm:$0xff]
  %v18 = vld [vmem:[%s0 + $0x20] sm:$0xff]
  %v19 = vld [vmem:[%s0 + $0x28] sm:$0xff]
  %v20 = vld [vmem:[%s0 + $0x30] sm:$0xff]
  %v21 = vld [vmem:[%s0 + $0x38] sm:$0xff]
  %v22 = vld [vmem:[%s0 + $0x40] sm:$0xff]
  %v23 = vld [vmem:[%s0 + $0x48] sm:$0xff]
  %v24 = vld [vmem:[%s0 + $0x50] sm:$0xff]
  %v25 = vld [vmem:[%s0 + $0x58] sm:$0xff]
  %v26 = vld [vmem:[%s0 + $0x60] sm:$0xff]
  %v27 = vld [vmem:[%s0 + $0x68] sm:$0xff]
  %v28 = vld [vmem:[%s0 + $0x70] sm:$0xff]
  %v29 = vld [vmem:[%s0 + $0x78] sm:$0xff]
  %v30 = vld [vmem:[%s0 + $0x80] sm:$0xff]
  %v31 = vld [vmem:[%s0 + $0x88] sm:$0xff]
  %v32 = vld [vmem:[%s0 + $0x90] sm:$0xff]
  %v33 = vld [vmem:[%s0 + $0x98] sm:$0xff]
  %v34 = vld [vmem:[%s0 + $0xa0] sm:$0xff]
  %v35 = vld [vmem:[%s0 + $0xa8] sm:$0xff]
  %v36 = vld [vmem:[%s0 + $0xb0] sm:$0xff]
  %v37 = vld [vmem:[%s0 + $0xb8] sm:$0xff]
  %v38 = vld [vmem:[%s0 + $0xc0] sm:$0xff]
  %v39 = vld [vmem:[%s0 + $0xc8] sm:$0xff]
  %v40 = vld [vmem:[%s0 + $0xd0] sm:$0xff]
  %v41 = vld [vmem:[%s0 + $0xd8] sm:$0xff]
  %v42 = vld [vmem:[%s0 + $0xe0] sm:$0xff]
  %v43 = vld [vmem:[%s0 + $0xe8] sm:$0xff]
  %v44 = vld [vmem:[%s0 + $0xf0] sm:$0xff]
  %v45 = vld [vmem:[%s0 + $0xf8] sm:$0xff]
  %v46 = vld [vmem:[%s0 + $0x100] sm:$0xff]
  %v47 = vld [vmem:[%s0 + $0x108] sm:$0xff]
  %v48 = vld [vmem:[%s0 + $0x110] sm:$0xff]
  %v49 = vld [vmem:[%s0 + $0x118] sm:$0xff]
  %v50 = vld [vmem:[%s0 + $0x120] sm:$0xff]
  %v51 = vld [vmem:[%s0 + $0x128] sm:$0xff]
  %v52 = vld [vmem:[%s0 + $0x130] sm:$0xff]
  %v53 = vld [vmem:[%s0 + $0x138] sm:$0xff]
  %v54 = vld [vmem:[%s0 + $0x140] sm:$0xff]
  %v55 = vld [vmem:[%s0 + $0x148] sm:$0xff]
  %v56 = vld [vmem:[%s0 + $0x150] sm:$0xff]
  %v57 = vld [vmem:[%s0 + $0x158] sm:$0xff]
  %v58 = vld [vmem:[%s0 + $0x160] sm:$0xff]
  %v59 = vld [vmem:[%s0 + $0x168] sm:$0xff]
  %v60 = vld [vmem:[%s0 + $0x170] sm:$0xff]
  %v61 = vld [vmem:[%s0 + $0x178] sm:$0xff]
  %v62 = vld [vmem:[%s0 + $0x180] sm:$0xff]
  %v63 = vld [vmem:[%s0 + $0x188] sm:$0xff]
  %v64 = vld [vmem:[%s0 + $0x190] sm:$0xff]
  %v65 = vld [vmem:[%s0 + $0x198] sm:$0xff]
  %v66 = vld [vmem:[%s0 + $0x1a0] sm:$0xff]
  %v67 = vld [vmem:[%s0 + $0x1a8] sm:$0xff]
  %v68 = vld [vmem:[%s0 + $0x1b0] sm:$0xff]
  %v69 = vld [vmem:[%s0 + $0x1b8] sm:$0xff]
  %v70 = vld [vmem:[%s0 + $0x1c0] sm:$0xff]
  %v71 = vld [vmem:[%s0 + $0x1c8] sm:$0xff]
  %v72 = vld [vmem:[%s0 + $0x1d0] sm:$0xff]
  %v73 = vld [vmem:[%s0 + $0x1d8] sm:$0xff]
  %v74 = vld [vmem:[%s0 + $0x1e0] sm:$0xff]
  %v75 = vld [vmem:[%s0 + $0x1e8] sm:$0xff]
  %v76 = vld [vmem:[%s0 + $0x1f0] sm:$0xff]
  %v77 = vld [vmem:[%s0 + $0x1f8] sm:$0xff]
  %v78 = vld [vmem:[%s0 + $0x200] sm:$0xff]
  %v79 = vld [vmem:[%s0 + $0x208] sm:$0xff]
  %v80 = vld [vmem:[%s0 + $0x210] sm:$0xff]
  %v81 = vld [vmem:[%s0 + $0x218] sm:$0xff]
  %v82 = vld [vmem:[%s0 + $0x220] sm:$0xff]
  %v83 = vld [vmem:[%s0 + $0x228] sm:$0xff]
  %v84 = vld [vmem:[%s0 + $0x230] sm:$0xff]
  %v85 = vld [vmem:[%s0 + $0x238] sm:$0xff]
  %v86 = vld [vmem:[%s0 + $0x240] sm:$0xff]
  %v87 = vld [vmem:[%s0 + $0x248] sm:$0xff]
  %v88 = vld [vmem:[%s0 + $0x250] sm:$0xff]
  %v89 = vld [vmem:[%s0 + $0x258] sm:$0xff]
  %v90 = vld [vmem:[%s0 + $0x260] sm:$0xff]
  %v91 = vld [vmem:[%s0 + $0x268] sm:$0xff]
  %v92 = vld [vmem:[%s0 + $0x270] sm:$0xff]
  %v93 = vld [vmem:[%s0 + $0x278] sm:$0xff]
  %v94 = vld [vmem:[%s0 + $0x280] sm:$0xff]
  %v95 = vld [vmem:[%s0 + $0x288] sm:$0xff]
  %v96 = vld [vmem:[%s0 + $0x290] sm:$0xff]
  %v97 = vld [vmem:[%s0 + $0x298] sm:$0xff]
  %v98 = vld [vmem:[%s0 + $0x2a0] sm:$0xff]
  %v99 = vld [vmem:[%s0 + $0x2a8] sm:$0xff]
  %v100 = vld [vmem:[%s0 + $0x2b0] sm:$0xff]
  %v101 = vld [vmem:[%s0 + $0x2b8] sm:$0xff]
  %v102 = vld [vmem:[%s0 + $0x2c0] sm:$0xff]
  %v103 = vld [vmem:[%s0 + $0x2c8] sm:$0xff]
  %v104 = vld [vmem:[%s0 + $0x2d0] sm:$0xff]
  %v105 = vld [vmem:[%s0 + $0x2d8] sm:$0xff]
  %v106 = vld [vmem:[%s0 + $0x2e0] sm:$0xff]
  %v107 = vld [vmem:[%s0 + $0x2e8] sm:$0xff]
  %v108 = vld [vmem:[%s0 + $0x2f0] sm:$0xff]
  %v109 = vld [vmem:[%s0 + $0x2f8] sm:$0xff]
  %v110 = vld [vmem:[%s0 + $0x300] sm:$0xff]
  %v111 = vld [vmem:[%s0 + $0x308] sm:$0xff]
  %v112 = vld [vmem:[%s0 + $0x310] sm:$0xff]
  %v113 = vld [vmem:[%s0 + $0x318] sm:$0xff]
  %v114 = vld [vmem:[%s0 + $0x320] sm:$0xff]
  %v115 = vld [vmem:[%s0 + $0x328] sm:$0xff]
  %v116 = vld [vmem:[%s0 + $0x330] sm:$0xff]
  %v117 = vld [vmem:[%s0 + $0x338] sm:$0xff]
  %v118 = vld [vmem:[%s0 + $0x340] sm:$0xff]
  %v119 = vld [vmem:[%s0 + $0x348] sm:$0xff]
  %v120 = vld [vmem:[%s0 + $0x350] sm:$0xff]
  %v121 = vld [vmem:[%s0 + $0x358] sm:$0xff]
  %v122 = vld [vmem:[%s0 + $0x360] sm:$0xff]
  %v123 = vld [vmem:[%s0 + $0x368] sm:$0xff]
  %v124 = vld [vmem:[%s0 + $0x370] sm:$0xff]
  %v125 = vld [vmem:[%s0 + $0x378] sm:$0xff]
  %v126 = vld [vmem:[%s0 + $0x380] sm:$0xff]
  %v127 = vld [vmem:[%s0 + $0x388] sm:$0xff]
  %v128 = vld [vmem:[%s0 + $0x390] sm:$0xff]
  %v129 = vld [vmem:[%s0 + $0x398] sm:$0xff]
  %v130 = vld [vmem:[%s0 + $0x3a0] sm:$0xff]
  %v131 = vld [vmem:[%s0 + $0x3a8] sm:$0xff]
  %v132 = vld [vmem:[%s0 + $0x3b0] sm:$0xff]
  %v133 = vld [vmem:[%s0 + $0x3b8] sm:$0xff]
  %v134 = vld [vmem:[%s0 + $0x3c0] sm:$0xff]
  %v135 = vld [vmem:[%s0 + $0x3c8] sm:$0xff]
  %v136 = vld [vmem:[%s0 + $0x3d0] sm:$0xff]
  %v137 = vld [vmem:[%s0 + $0x3d8] sm:$0xff]
  %v138 = vld [vmem:[%s0 + $0x3e0] sm:$0xff]
  %v139 = vld [vmem:[%s0 + $0x3e8] sm:$0xff]
  %v140 = vld [vmem:[%s0 + $0x3f0] sm:$0xff]
  %v141 = vld [vmem:[%s0 + $0x3f8] sm:$0xff]
  %v142 = vld [vmem:[%s0 + $0x400] sm:$0xff]
  %v143 = vld [vmem:[%s0 + $0x408] sm:$0xff]
  %v144 = vld [vmem:[%s0 + $0x410] sm:$0xff]
  %v145 = vld [vmem:[%s0 + $0x418] sm:$0xff]
  %v146 = vld [vmem:[%s0 + $0x420] sm:$0xff]
  %v147 = vld [vmem:[%s0 + $0x428] sm:$0xff]
  %v148 = vld [vmem:[%s0 + $0x430] sm:$0xff]
  %v149 = vld [vmem:[%s0 + $0x438] sm:$0xff]
  %v150 = vld [vmem:[%s0 + $0x440] sm:$0xff]
  %v151 = vld [vmem:[%s0 + $0x448] sm:$0xff]
  %v152 = vld [vmem:[%s0 + $0x450] sm:$0xff]
  %v153 = vld [vmem:[%s0 + $0x458] sm:$0xff]
  %v154 = vld [vmem:[%s0 + $0x460] sm:$0xff]
  %v155 = vld [vmem:[%s0 + $0x468] sm:$0xff]
  %v156 = vld [vmem:[%s0 + $0x470] sm:$0xff]
  %v157 = vld [vmem:[%s0 + $0x478] sm:$0xff]
  %v158 = vld [vmem:[%s0 + $0x480] sm:$0xff]
  %v159 = vld [vmem:[%s0 + $0x488] sm:$0xff]
  %v160 = vld [vmem:[%s0 + $0x490] sm:$0xff]
  %v161 = vld [vmem:[%s0 + $0x498] sm:$0xff]
  %v162 = vld [vmem:[%s0 + $0x4a0] sm:$0xff]
  %v163 = vld [vmem:[%s0 + $0x4a8] sm:$0xff]
  %v164 = vld [vmem:[%s0 + $0x4b0] sm:$0xff]
  %v165 = vld [vmem:[%s0 + $0x4b8] sm:$0xff]
  %v166 = vld [vmem:[%s0 + $0x4c0] sm:$0xff]
  %v167 = vld [vmem:[%s0 + $0x4c8] sm:$0xff]
  %v168 = vld [vmem:[%s0 + $0x4d0] sm:$0xff]
  %v169 = vld [vmem:[%s0 + $0x4d8] sm:$0xff]
  %v170 = vld [vmem:[%s0 + $0x4e0] sm:$0xff]
  %v171 = vld [vmem:[%s0 + $0x4e8] sm:$0xff]
  %v172 = vld [vmem:[%s0 + $0x4f0] sm:$0xff]
  %v173 = vld [vmem:[%s0 + $0x4f8] sm:$0xff]
  %v174 = vld [vmem:[%s0 + $0x500] sm:$0xff]
  %v175 = vld [vmem:[%s0 + $0x508] sm:$0xff]
  %v176 = vld [vmem:[%s0 + $0x510] sm:$0xff]
  %v177 = vld [vmem:[%s0 + $0x518] sm:$0xff]
  %v178 = vld [vmem:[%s0 + $0x520] sm:$0xff]
  %v179 = vld [vmem:[%s0 + $0x528] sm:$0xff]
  %v180 = vld [vmem:[%s0 + $0x530] sm:$0xff]
  %v181 = vld [vmem:[%s0 + $0x538] sm:$0xff]
  %v182 = vld [vmem:[%s0 + $0x540] sm:$0xff]
  %v183 = vld [vmem:[%s0 + $0x548] sm:$0xff]
  %v184 = vld [vmem:[%s0 + $0x550] sm:$0xff]
  %v185 = vld [vmem:[%s0 + $0x558] sm:$0xff]
  %v186 = vld [vmem:[%s0 + $0x560] sm:$0xff]
  %v187 = vld [vmem:[%s0 + $0x568] sm:$0xff]
  %v188 = vld [vmem:[%s0 + $0x570] sm:$0xff]
  %v189 = vld [vmem:[%s0 + $0x578] sm:$0xff]
  %v190 = vld [vmem:[%s0 + $0x580] sm:$0xff]
  %v191 = vld [vmem:[%s0 + $0x588] sm:$0xff]
  %v192 = vld [vmem:[%s0 + $0x590] sm:$0xff]
  %v193 = vld [vmem:[%s0 + $0x598] sm:$0xff]
  %v194 = vld [vmem:[%s0 + $0x5a0] sm:$0xff]
  %v195 = vld [vmem:[%s0 + $0x5a8] sm:$0xff]
  %v196 = vld [vmem:[%s0 + $0x5b0] sm:$0xff]
  %v197 = vld [vmem:[%s0 + $0x5b8] sm:$0xff]
  %v198 = vld [vmem:[%s0 + $0x5c0] sm:$0xff]
  %v199 = vld [vmem:[%s0 + $0x5c8] sm:$0xff]
  %v200 = vld [vmem:[%s0 + $0x5d0] sm:$0xff]
  %v201 = vld [vmem:[%s0 + $0x5d8] sm:$0xff]
  %v202 = vld [vmem:[%s0 + $0x5e0] sm:$0xff]
  %v203 = vld [vmem:[%s0 + $0x5e8] sm:$0xff]
  %v204 = vld [vmem:[%s0 + $0x5f0] sm:$0xff]
  %v205 = vld [vmem:[%s0 + $0x5f8] sm:$0xff]
  %v206 = vld [vmem:[%s0 + $0x600] sm:$0xff]
  %v207 = vld [vmem:[%s0 + $0x608] sm:$0xff]
  %v208 = vld [vmem:[%s0 + $0x610] sm:$0xff]
  %v209 = vld [vmem:[%s0 + $0x618] sm:$0xff]
  %v210 = vld [vmem:[%s0 + $0x620] sm:$0xff]
  %v211 = vld [vmem:[%s0 + $0x628] sm:$0xff]
  %v212 = vld [vmem:[%s0 + $0x630] sm:$0xff]
  %v213 = vld [vmem:[%s0 + $0x638] sm:$0xff]
  %v214 = vld [vmem:[%s0 + $0x640] sm:$0xff]
  %v215 = vld [vmem:[%s0 + $0x648] sm:$0xff]
  %v216 = vld [vmem:[%s0 + $0x650] sm:$0xff]
  %v217 = vld [vmem:[%s0 + $0x658] sm:$0xff]
  %v218 = vld [vmem:[%s0 + $0x660] sm:$0xff]
  %v219 = vld [vmem:[%s0 + $0x668] sm:$0xff]
  %v220 = vld [vmem:[%s0 + $0x670] sm:$0xff]
  %v221 = vld [vmem:[%s0 + $0x678] sm:$0xff]
  %v222 = vld [vmem:[%s0 + $0x680] sm:$0xff]
  %v223 = vld [vmem:[%s0 + $0x688] sm:$0xff]
  %v224 = vld [vmem:[%s0 + $0x690] sm:$0xff]
  %v225 = vld [vmem:[%s0 + $0x698] sm:$0xff]
  %v226 = vld [vmem:[%s0 + $0x6a0] sm:$0xff]
  %v227 = vld [vmem:[%s0 + $0x6a8] sm:$0xff]
  %v228 = vld [vmem:[%s0 + $0x6b0] sm:$0xff]
  %v229 = vld [vmem:[%s0 + $0x6b8] sm:$0xff]
  %v230 = vld [vmem:[%s0 + $0x6c0] sm:$0xff]
  %v231 = vld [vmem:[%s0 + $0x6c8] sm:$0xff]
  %v232 = vld [vmem:[%s0 + $0x6d0] sm:$0xff]
  %v233 = vld [vmem:[%s0 + $0x6d8] sm:$0xff]
  %v234 = vld [vmem:[%s0 + $0x6e0] sm:$0xff]
  %v235 = vld [vmem:[%s0 + $0x6e8] sm:$0xff]
  %v236 = vld [vmem:[%s0 + $0x6f0] sm:$0xff]
  %v237 = vld [vmem:[%s0 + $0x6f8] sm:$0xff]
  %v238 = vld [vmem:[%s0 + $0x700] sm:$0xff]
  %v239 = vld [vmem:[%s0 + $0x708] sm:$0xff]
  %v240 = vld [vmem:[%s0 + $0x710] sm:$0xff]
  %v241 = vld [vmem:[%s0 + $0x718] sm:$0xff]
  %v242 = vld [vmem:[%s0 + $0x720] sm:$0xff]
  %v243 = vld [vmem:[%s0 + $0x728] sm:$0xff]
  %v244 = vld [vmem:[%s0 + $0x730] sm:$0xff]
  %v245 = vld [vmem:[%s0 + $0x738] sm:$0xff]
  %v246 = vld [vmem:[%s0 + $0x740] sm:$0xff]
  %v247 = vld [vmem:[%s0 + $0x748] sm:$0xff]
  %v248 = vld [vmem:[%s0 + $0x750] sm:$0xff]
  %v249 = vld [vmem:[%s0 + $0x758] sm:$0xff]
  %v250 = vld [vmem:[%s0 + $0x760] sm:$0xff]
  %v251 = vld [vmem:[%s0 + $0x768] sm:$0xff]
  %v252 = vld [vmem:[%s0 + $0x770] sm:$0xff]
  %v253 = vld [vmem:[%s0 + $0x778] sm:$0xff]
  %v254 = vld [vmem:[%s0 + $0x780] sm:$0xff]
  %v255 = vld [vmem:[%s0 + $0x788] sm:$0xff]
  %v256 = vld [vmem:[%s0 + $0x790] sm:$0xff]
  %v257 = vld [vmem:[%s0 + $0x798] sm:$0xff]
  %v258 = vld [vmem:[%s0 + $0x7a0] sm:$0xff]
  %v259 = vld [vmem:[%s0 + $0x7a8] sm:$0xff]
  %v260 = vld [vmem:[%s0 + $0x7b0] sm:$0xff]
  %v261 = vld [vmem:[%s0 + $0x7b8] sm:$0xff]
  %v262 = vld [vmem:[%s0 + $0x7c0] sm:$0xff]
  %v263 = vld [vmem:[%s0 + $0x7c8] sm:$0xff]
  %v264 = vld [vmem:[%s0 + $0x7d0] sm:$0xff]
  %v265 = vld [vmem:[%s0 + $0x7d8] sm:$0xff]
  %v266 = vld [vmem:[%s0 + $0x7e0] sm:$0xff]
  %v267 = vld [vmem:[%s0 + $0x7e8] sm:$0xff]
  %v268 = vld [vmem:[%s0 + $0x7f0] sm:$0xff]
  %v269 = vld [vmem:[%s0 + $0x7f8] sm:$0xff]
  %v270 = vld [vmem:[%s0 + $0x800] sm:$0xff]
  %v271 = vld [vmem:[%s0 + $0x808] sm:$0xff]
  %v272 = vld [vmem:[%s0 + $0x810] sm:$0xff]
  %v273 = vld [vmem:[%s0 + $0x818] sm:$0xff]
  %v274 = vld [vmem:[%s0 + $0x820] sm:$0xff]
  %v275 = vld [vmem:[%s0 + $0x828] sm:$0xff]
  %v276 = vld [vmem:[%s0 + $0x830] sm:$0xff]
  %v277 = vld [vmem:[%s0 + $0x838] sm:$0xff]
  %v278 = vld [vmem:[%s0 + $0x840] sm:$0xff]
  %v279 = vld [vmem:[%s0 + $0x848] sm:$0xff]
  %v280 = vld [vmem:[%s0 + $0x850] sm:$0xff]
  %v281 = vld [vmem:[%s0 + $0x858] sm:$0xff]
  %v282 = vld [vmem:[%s0 + $0x860] sm:$0xff]
  %v283 = vld [vmem:[%s0 + $0x868] sm:$0xff]
  %v284 = vld [vmem:[%s0 + $0x870] sm:$0xff]
  %v285 = vld [vmem:[%s0 + $0x878] sm:$0xff]
  %v286 = vld [vmem:[%s0 + $0x880] sm:$0xff]
  %v287 = vld [vmem:[%s0 + $0x888] sm:$0xff]
  %v288 = vld [vmem:[%s0 + $0x890] sm:$0xff]
  %v289 = vld [vmem:[%s0 + $0x898] sm:$0xff]
  %v290 = vld [vmem:[%s0 + $0x8a0] sm:$0xff]
  %v291 = vld [vmem:[%s0 + $0x8a8] sm:$0xff]
  %v292 = vld [vmem:[%s0 + $0x8b0] sm:$0xff]
  %v293 = vld [vmem:[%s0 + $0x8b8] sm:$0xff]
  %v294 = vld [vmem:[%s0 + $0x8c0] sm:$0xff]
  %v295 = vld [vmem:[%s0 + $0x8c8] sm:$0xff]
  %v296 = vld [vmem:[%s0 + $0x8d0] sm:$0xff]
  %v297 = vld [vmem:[%s0 + $0x8d8] sm:$0xff]
  %v298 = vld [vmem:[%s0 + $0x8e0] sm:$0xff]
  %v299 = vld [vmem:[%s0 + $0x8e8] sm:$0xff]
  %v300 = vld [vmem:[%s0 + $0x8f0] sm:$0xff]
  %v301 = vld [vmem:[%s0 + $0x8f8] sm:$0xff]
  %v302 = vld [vmem:[%s1] sm:$0xff]
  %v303 = vld [vmem:[%s1 + $0x8] sm:$0xff]
  %v304 = vld [vmem:[%s1 + $0x10] sm:$0xff]
  %v305 = vld [vmem:[%s1 + $0x18] sm:$0xff]
  %v306 = vld [vmem:[%s1 + $0x20] sm:$0xff]
  %v307 = vld [vmem:[%s1 + $0x28] sm:$0xff]
  %v308 = vld [vmem:[%s1 + $0x30] sm:$0xff]
  %v309 = vld [vmem:[%s1 + $0x38] sm:$0xff]
  %v310 = vld [vmem:[%s1 + $0x40] sm:$0xff]
  %v311 = vld [vmem:[%s1 + $0x48] sm:$0xff]
  %v312 = vld [vmem:[%s1 + $0x50] sm:$0xff]
  %v313 = vld [vmem:[%s1 + $0x58] sm:$0xff]
  %v314 = vld [vmem:[%s1 + $0x60] sm:$0xff]
  %v315 = vld [vmem:[%s1 + $0x68] sm:$0xff]
  %v316 = vld [vmem:[%s1 + $0x70] sm:$0xff]
  %v317 = vld [vmem:[%s1 + $0x78] sm:$0xff]
  %v318 = vld [vmem:[%s1 + $0x80] sm:$0xff]
  %v319 = vld [vmem:[%s1 + $0x88] sm:$0xff]
  %v320 = vld [vmem:[%s1 + $0x90] sm:$0xff]
  %v321 = vld [vmem:[%s1 + $0x98] sm:$0xff]
  %v322 = vld [vmem:[%s1 + $0xa0] sm:$0xff]
  %v323 = vld [vmem:[%s1 + $0xa8] sm:$0xff]
  %v324 = vld [vmem:[%s1 + $0xb0] sm:$0xff]
  %v325 = vld [vmem:[%s1 + $0xb8] sm:$0xff]
  %v326 = vld [vmem:[%s1 + $0xc0] sm:$0xff]
  %v327 = vld [vmem:[%s1 + $0xc8] sm:$0xff]
  %v328 = vld [vmem:[%s1 + $0xd0] sm:$0xff]
  %v329 = vld [vmem:[%s1 + $0xd8] sm:$0xff]
  %v330 = vld [vmem:[%s1 + $0xe0] sm:$0xff]
  %v331 = vld [vmem:[%s1 + $0xe8] sm:$0xff]
  %v332 = vld [vmem:[%s1 + $0xf0] sm:$0xff]
  %v333 = vld [vmem:[%s1 + $0xf8] sm:$0xff]
  %v334 = vld [vmem:[%s1 + $0x100] sm:$0xff]
  %v335 = vld [vmem:[%s1 + $0x108] sm:$0xff]
  %v336 = vld [vmem:[%s1 + $0x110] sm:$0xff]
  %v337 = vld [vmem:[%s1 + $0x118] sm:$0xff]
  %v338 = vld [vmem:[%s1 + $0x120] sm:$0xff]
  %v339 = vld [vmem:[%s1 + $0x128] sm:$0xff]
  %v340 = vld [vmem:[%s1 + $0x130] sm:$0xff]
  %v341 = vld [vmem:[%s1 + $0x138] sm:$0xff]
  %v342 = vld [vmem:[%s1 + $0x140] sm:$0xff]
  %v343 = vld [vmem:[%s1 + $0x148] sm:$0xff]
  %v344 = vld [vmem:[%s1 + $0x150] sm:$0xff]
  %v345 = vld [vmem:[%s1 + $0x158] sm:$0xff]
  %v346 = vld [vmem:[%s1 + $0x160] sm:$0xff]
  %v347 = vld [vmem:[%s1 + $0x168] sm:$0xff]
  %v348 = vld [vmem:[%s1 + $0x170] sm:$0xff]
  %v349 = vld [vmem:[%s1 + $0x178] sm:$0xff]
  %v350 = vld [vmem:[%s1 + $0x180] sm:$0xff]
  %v351 = vld [vmem:[%s1 + $0x188] sm:$0xff]
  %v352 = vld [vmem:[%s1 + $0x190] sm:$0xff]
  %v353 = vld [vmem:[%s1 + $0x198] sm:$0xff]
  %v354 = vld [vmem:[%s1 + $0x1a0] sm:$0xff]
  %v355 = vld [vmem:[%s1 + $0x1a8] sm:$0xff]
  %v356 = vld [vmem:[%s1 + $0x1b0] sm:$0xff]
  %v357 = vld [vmem:[%s1 + $0x1b8] sm:$0xff]
  %v358 = vld [vmem:[%s1 + $0x1c0] sm:$0xff]
  %v359 = vld [vmem:[%s1 + $0x1c8] sm:$0xff]
  %v360 = vld [vmem:[%s1 + $0x1d0] sm:$0xff]
  %v361 = vld [vmem:[%s1 + $0x1d8] sm:$0xff]
  %v362 = vld [vmem:[%s1 + $0x1e0] sm:$0xff]
  %v363 = vld [vmem:[%s1 + $0x1e8] sm:$0xff]
  %v364 = vld [vmem:[%s1 + $0x1f0] sm:$0xff]
  %v365 = vld [vmem:[%s1 + $0x1f8] sm:$0xff]
  %v366 = vld [vmem:[%s1 + $0x200] sm:$0xff]
  %v367 = vld [vmem:[%s1 + $0x208] sm:$0xff]
  %v368 = vld [vmem:[%s1 + $0x210] sm:$0xff]
  %v369 = vld [vmem:[%s1 + $0x218] sm:$0xff]
  %v370 = vld [vmem:[%s1 + $0x220] sm:$0xff]
  %v371 = vld [vmem:[%s1 + $0x228] sm:$0xff]
  %v372 = vld [vmem:[%s1 + $0x230] sm:$0xff]
  %v373 = vld [vmem:[%s1 + $0x238] sm:$0xff]
  %v374 = vld [vmem:[%s1 + $0x240] sm:$0xff]
  %v375 = vld [vmem:[%s1 + $0x248] sm:$0xff]
  %v376 = vld [vmem:[%s1 + $0x250] sm:$0xff]
  %v377 = vld [vmem:[%s1 + $0x258] sm:$0xff]
  %v378 = vld [vmem:[%s1 + $0x260] sm:$0xff]
  %v379 = vld [vmem:[%s1 + $0x268] sm:$0xff]
  %v380 = vld [vmem:[%s1 + $0x270] sm:$0xff]
  %v381 = vld [vmem:[%s1 + $0x278] sm:$0xff]
  %v382 = vld [vmem:[%s1 + $0x280] sm:$0xff]
  %v383 = vld [vmem:[%s1 + $0x288] sm:$0xff]
  %v384 = vld [vmem:[%s1 + $0x290] sm:$0xff]
  %v385 = vld [vmem:[%s1 + $0x298] sm:$0xff]
  %v386 = vld [vmem:[%s1 + $0x2a0] sm:$0xff]
  %v387 = vld [vmem:[%s1 + $0x2a8] sm:$0xff]
  %v388 = vld [vmem:[%s1 + $0x2b0] sm:$0xff]
  %v389 = vld [vmem:[%s1 + $0x2b8] sm:$0xff]
  %v390 = vld [vmem:[%s1 + $0x2c0] sm:$0xff]
  %v391 = vld [vmem:[%s1 + $0x2c8] sm:$0xff]
  %v392 = vld [vmem:[%s1 + $0x2d0] sm:$0xff]
  %v393 = vld [vmem:[%s1 + $0x2d8] sm:$0xff]
  %v394 = vld [vmem:[%s1 + $0x2e0] sm:$0xff]
  %v395 = vld [vmem:[%s1 + $0x2e8] sm:$0xff]
  %v396 = vld [vmem:[%s1 + $0x2f0] sm:$0xff]
  %v397 = vld [vmem:[%s1 + $0x2f8] sm:$0xff]
  %v398 = vld [vmem:[%s1 + $0x300] sm:$0xff]
  %v399 = vld [vmem:[%s1 + $0x308] sm:$0xff]
  %v400 = vld [vmem:[%s1 + $0x310] sm:$0xff]
  %v401 = vld [vmem:[%s1 + $0x318] sm:$0xff]
  %v402 = vld [vmem:[%s1 + $0x320] sm:$0xff]
  %v403 = vld [vmem:[%s1 + $0x328] sm:$0xff]
  %v404 = vld [vmem:[%s1 + $0x330] sm:$0xff]
  %v405 = vld [vmem:[%s1 + $0x338] sm:$0xff]
  %v406 = vld [vmem:[%s1 + $0x340] sm:$0xff]
  %v407 = vld [vmem:[%s1 + $0x348] sm:$0xff]
  %v408 = vld [vmem:[%s1 + $0x350] sm:$0xff]
  %v409 = vld [vmem:[%s1 + $0x358] sm:$0xff]
  %v410 = vld [vmem:[%s1 + $0x360] sm:$0xff]
  %v411 = vld [vmem:[%s1 + $0x368] sm:$0xff]
  %v412 = vld [vmem:[%s1 + $0x370] sm:$0xff]
  %v413 = vld [vmem:[%s1 + $0x378] sm:$0xff]
  %v414 = vld [vmem:[%s1 + $0x380] sm:$0xff]
  %v415 = vld [vmem:[%s1 + $0x388] sm:$0xff]
  %v416 = vld [vmem:[%s1 + $0x390] sm:$0xff]
  %v417 = vld [vmem:[%s1 + $0x398] sm:$0xff]
  %v418 = vld [vmem:[%s1 + $0x3a0] sm:$0xff]
  %v419 = vld [vmem:[%s1 + $0x3a8] sm:$0xff]
  %v420 = vld [vmem:[%s1 + $0x3b0] sm:$0xff]
  %v421 = vld [vmem:[%s1 + $0x3b8] sm:$0xff]
  %v422 = vld [vmem:[%s1 + $0x3c0] sm:$0xff]
  %v423 = vld [vmem:[%s1 + $0x3c8] sm:$0xff]
  %v424 = vld [vmem:[%s1 + $0x3d0] sm:$0xff]
  %v425 = vld [vmem:[%s1 + $0x3d8] sm:$0xff]
  %v426 = vld [vmem:[%s1 + $0x3e0] sm:$0xff]
  %v427 = vld [vmem:[%s1 + $0x3e8] sm:$0xff]
  %v428 = vld [vmem:[%s1 + $0x3f0] sm:$0xff]
  %v429 = vld [vmem:[%s1 + $0x3f8] sm:$0xff]
  %v430 = vld [vmem:[%s1 + $0x400] sm:$0xff]
  %v431 = vld [vmem:[%s1 + $0x408] sm:$0xff]
  %v432 = vld [vmem:[%s1 + $0x410] sm:$0xff]
  %v433 = vld [vmem:[%s1 + $0x418] sm:$0xff]
  %v434 = vld [vmem:[%s1 + $0x420] sm:$0xff]
  %v435 = vld [vmem:[%s1 + $0x428] sm:$0xff]
  %v436 = vld [vmem:[%s1 + $0x430] sm:$0xff]
  %v437 = vld [vmem:[%s1 + $0x438] sm:$0xff]
  %v438 = vld [vmem:[%s1 + $0x440] sm:$0xff]
  %v439 = vld [vmem:[%s1 + $0x448] sm:$0xff]
  %v440 = vld [vmem:[%s1 + $0x450] sm:$0xff]
  %v441 = vld [vmem:[%s1 + $0x458] sm:$0xff]
  %v442 = vld [vmem:[%s1 + $0x460] sm:$0xff]
  %v443 = vld [vmem:[%s1 + $0x468] sm:$0xff]
  %v444 = vld [vmem:[%s1 + $0x470] sm:$0xff]
  %v445 = vld [vmem:[%s1 + $0x478] sm:$0xff]
  %v446 = vld [vmem:[%s1 + $0x480] sm:$0xff]
  %v447 = vld [vmem:[%s1 + $0x488] sm:$0xff]
  %v448 = vld [vmem:[%s1 + $0x490] sm:$0xff]
  %v449 = vld [vmem:[%s1 + $0x498] sm:$0xff]
  %v450 = vld [vmem:[%s1 + $0x4a0] sm:$0xff]
  %v451 = vld [vmem:[%s1 + $0x4a8] sm:$0xff]
  %v452 = vld [vmem:[%s1 + $0x4b0] sm:$0xff]
  %v453 = vld [vmem:[%s1 + $0x4b8] sm:$0xff]
  %v454 = vld [vmem:[%s1 + $0x4c0] sm:$0xff]
  %v455 = vld [vmem:[%s1 + $0x4c8] sm:$0xff]
  %v456 = vld [vmem:[%s1 + $0x4d0] sm:$0xff]
  %v457 = vld [vmem:[%s1 + $0x4d8] sm:$0xff]
  %v458 = vld [vmem:[%s1 + $0x4e0] sm:$0xff]
  %v459 = vld [vmem:[%s1 + $0x4e8] sm:$0xff]
  %v460 = vld [vmem:[%s1 + $0x4f0] sm:$0xff]
  %v461 = vld [vmem:[%s1 + $0x4f8] sm:$0xff]
  %v462 = vld [vmem:[%s1 + $0x500] sm:$0xff]
  %v463 = vld [vmem:[%s1 + $0x508] sm:$0xff]
  %v464 = vld [vmem:[%s1 + $0x510] sm:$0xff]
  %v465 = vld [vmem:[%s1 + $0x518] sm:$0xff]
  %v466 = vld [vmem:[%s1 + $0x520] sm:$0xff]
  %v467 = vld [vmem:[%s1 + $0x528] sm:$0xff]
  %v468 = vld [vmem:[%s1 + $0x530] sm:$0xff]
  %v469 = vld [vmem:[%s1 + $0x538] sm:$0xff]
  %v470 = vld [vmem:[%s1 + $0x540] sm:$0xff]
  %v471 = vld [vmem:[%s1 + $0x548] sm:$0xff]
  %v472 = vld [vmem:[%s1 + $0x550] sm:$0xff]
  %v473 = vld [vmem:[%s1 + $0x558] sm:$0xff]
  %v474 = vld [vmem:[%s1 + $0x560] sm:$0xff]
  %v475 = vld [vmem:[%s1 + $0x568] sm:$0xff]
  %v476 = vld [vmem:[%s1 + $0x570] sm:$0xff]
  %v477 = vld [vmem:[%s1 + $0x578] sm:$0xff]
  %v478 = vld [vmem:[%s1 + $0x580] sm:$0xff]
  %v479 = vld [vmem:[%s1 + $0x588] sm:$0xff]
  %v480 = vld [vmem:[%s1 + $0x590] sm:$0xff]
  %v481 = vld [vmem:[%s1 + $0x598] sm:$0xff]
  %v482 = vld [vmem:[%s1 + $0x5a0] sm:$0xff]
  %v483 = vld [vmem:[%s1 + $0x5a8] sm:$0xff]
  %v484 = vld [vmem:[%s1 + $0x5b0] sm:$0xff]
  %v485 = vld [vmem:[%s1 + $0x5b8] sm:$0xff]
  %v486 = vld [vmem:[%s1 + $0x5c0] sm:$0xff]
  %v487 = vld [vmem:[%s1 + $0x5c8] sm:$0xff]
  %v488 = vld [vmem:[%s1 + $0x5d0] sm:$0xff]
  %v489 = vld [vmem:[%s1 + $0x5d8] sm:$0xff]
  %v490 = vld [vmem:[%s1 + $0x5e0] sm:$0xff]
  %v491 = vld [vmem:[%s1 + $0x5e8] sm:$0xff]
  %v492 = vld [vmem:[%s1 + $0x5f0] sm:$0xff]
  %v493 = vld [vmem:[%s1 + $0x5f8] sm:$0xff]
  %v494 = vld [vmem:[%s1 + $0x600] sm:$0xff]
  %v495 = vld [vmem:[%s1 + $0x608] sm:$0xff]
  %v496 = vld [vmem:[%s1 + $0x610] sm:$0xff]
  %v497 = vld [vmem:[%s1 + $0x618] sm:$0xff]
  %v498 = vld [vmem:[%s1 + $0x620] sm:$0xff]
  %v499 = vld [vmem:[%s1 + $0x628] sm:$0xff]
  %v500 = vld [vmem:[%s1 + $0x630] sm:$0xff]
  %v501 = vld [vmem:[%s1 + $0x638] sm:$0xff]
  %v502 = vld [vmem:[%s1 + $0x640] sm:$0xff]
  %v503 = vld [vmem:[%s1 + $0x648] sm:$0xff]
  %v504 = vld [vmem:[%s1 + $0x650] sm:$0xff]
  %v505 = vld [vmem:[%s1 + $0x658] sm:$0xff]
  %v506 = vld [vmem:[%s1 + $0x660] sm:$0xff]
  %v507 = vld [vmem:[%s1 + $0x668] sm:$0xff]
  %v508 = vld [vmem:[%s1 + $0x670] sm:$0xff]
  %v509 = vld [vmem:[%s1 + $0x678] sm:$0xff]
  %v510 = vld [vmem:[%s1 + $0x680] sm:$0xff]
  %v511 = vld [vmem:[%s1 + $0x688] sm:$0xff]
  %v512 = vld [vmem:[%s1 + $0x690] sm:$0xff]
  %v513 = vld [vmem:[%s1 + $0x698] sm:$0xff]
  %v514 = vld [vmem:[%s1 + $0x6a0] sm:$0xff]
  %v515 = vld [vmem:[%s1 + $0x6a8] sm:$0xff]
  %v516 = vld [vmem:[%s1 + $0x6b0] sm:$0xff]
  %v517 = vld [vmem:[%s1 + $0x6b8] sm:$0xff]
  %v518 = vld [vmem:[%s1 + $0x6c0] sm:$0xff]
  %v519 = vld [vmem:[%s1 + $0x6c8] sm:$0xff]
  %v520 = vld [vmem:[%s1 + $0x6d0] sm:$0xff]
  %v521 = vld [vmem:[%s1 + $0x6d8] sm:$0xff]
  %v522 = vld [vmem:[%s1 + $0x6e0] sm:$0xff]
  %v523 = vld [vmem:[%s1 + $0x6e8] sm:$0xff]
  %v524 = vld [vmem:[%s1 + $0x6f0] sm:$0xff]
  %v525 = vld [vmem:[%s1 + $0x6f8] sm:$0xff]
  %v526 = vld [vmem:[%s1 + $0x700] sm:$0xff]
  %v527 = vld [vmem:[%s1 + $0x708] sm:$0xff]
  %v528 = vld [vmem:[%s1 + $0x710] sm:$0xff]
  %v529 = vld [vmem:[%s1 + $0x718] sm:$0xff]
  %v530 = vld [vmem:[%s1 + $0x720] sm:$0xff]
  %v531 = vld [vmem:[%s1 + $0x728] sm:$0xff]
  %v532 = vld [vmem:[%s1 + $0x730] sm:$0xff]
  %v533 = vld [vmem:[%s1 + $0x738] sm:$0xff]
  %v534 = vld [vmem:[%s1 + $0x740] sm:$0xff]
  %v535 = vld [vmem:[%s1 + $0x748] sm:$0xff]
  %v536 = vld [vmem:[%s1 + $0x750] sm:$0xff]
  %v537 = vld [vmem:[%s1 + $0x758] sm:$0xff]
  %v538 = vld [vmem:[%s1 + $0x760] sm:$0xff]
  %v539 = vld [vmem:[%s1 + $0x768] sm:$0xff]
  %v540 = vld [vmem:[%s1 + $0x770] sm:$0xff]
  %v541 = vld [vmem:[%s1 + $0x778] sm:$0xff]
  %v542 = vld [vmem:[%s1 + $0x780] sm:$0xff]
  %v543 = vld [vmem:[%s1 + $0x788] sm:$0xff]
  %v544 = vld [vmem:[%s1 + $0x790] sm:$0xff]
  %v545 = vld [vmem:[%s1 + $0x798] sm:$0xff]
  %v546 = vld [vmem:[%s1 + $0x7a0] sm:$0xff]
  %v547 = vld [vmem:[%s1 + $0x7a8] sm:$0xff]
  %v548 = vld [vmem:[%s1 + $0x7b0] sm:$0xff]
  %v549 = vld [vmem:[%s1 + $0x7b8] sm:$0xff]
  %v550 = vld [vmem:[%s1 + $0x7c0] sm:$0xff]
  %v551 = vld [vmem:[%s1 + $0x7c8] sm:$0xff]
  %v552 = vld [vmem:[%s1 + $0x7d0] sm:$0xff]
  %v553 = vld [vmem:[%s1 + $0x7d8] sm:$0xff]
  %v554 = vld [vmem:[%s1 + $0x7e0] sm:$0xff]
  %v555 = vld [vmem:[%s1 + $0x7e8] sm:$0xff]
  %v556 = vld [vmem:[%s1 + $0x7f0] sm:$0xff]
  %v557 = vld [vmem:[%s1 + $0x7f8] sm:$0xff]
  %v558 = vld [vmem:[%s1 + $0x800] sm:$0xff]
  %v559 = vld [vmem:[%s1 + $0x808] sm:$0xff]
  %v560 = vld [vmem:[%s1 + $0x810] sm:$0xff]
  %v561 = vld [vmem:[%s1 + $0x818] sm:$0xff]
  %v562 = vld [vmem:[%s1 + $0x820] sm:$0xff]
  %v563 = vld [vmem:[%s1 + $0x828] sm:$0xff]
  %v564 = vld [vmem:[%s1 + $0x830] sm:$0xff]
  %v565 = vld [vmem:[%s1 + $0x838] sm:$0xff]
  %v566 = vld [vmem:[%s1 + $0x840] sm:$0xff]
  %v567 = vld [vmem:[%s1 + $0x848] sm:$0xff]
  %v568 = vld [vmem:[%s1 + $0x850] sm:$0xff]
  %v569 = vld [vmem:[%s1 + $0x858] sm:$0xff]
  %v570 = vld [vmem:[%s1 + $0x860] sm:$0xff]
  %v571 = vld [vmem:[%s1 + $0x868] sm:$0xff]
  %v572 = vld [vmem:[%s1 + $0x870] sm:$0xff]
  %v573 = vld [vmem:[%s1 + $0x878] sm:$0xff]
  %v574 = vld [vmem:[%s1 + $0x880] sm:$0xff]
  %v575 = vld [vmem:[%s1 + $0x888] sm:$0xff]
  %v576 = vld [vmem:[%s1 + $0x890] sm:$0xff]
  %v577 = vld [vmem:[%s1 + $0x898] sm:$0xff]
  %v578 = vld [vmem:[%s1 + $0x8a0] sm:$0xff]
  %v579 = vld [vmem:[%s1 + $0x8a8] sm:$0xff]
  %v580 = vld [vmem:[%s1 + $0x8b0] sm:$0xff]
  %v581 = vld [vmem:[%s1 + $0x8b8] sm:$0xff]
  %v582 = vld [vmem:[%s1 + $0x8c0] sm:$0xff]
  %v583 = vld [vmem:[%s1 + $0x8c8] sm:$0xff]
  %v584 = vld [vmem:[%s1 + $0x8d0] sm:$0xff]
  %v585 = vld [vmem:[%s1 + $0x8d8] sm:$0xff]
  %v586 = vld [vmem:[%s1 + $0x8e0] sm:$0xff]
  %v587 = vld [vmem:[%s1 + $0x8e8] sm:$0xff]
  %v588 = vld [vmem:[%s1 + $0x8f0] sm:$0xff]
  %v589 = vld [vmem:[%s1 + $0x8f8] sm:$0xff]
  %v590 = vld [vmem:[%s1 + $0x900] sm:$0xff]
  %v591 = vld [vmem:[%s1 + $0x908] sm:$0xff]
  %v592 = vld [vmem:[%s1 + $0x910] sm:$0xff]
  %v593 = vld [vmem:[%s1 + $0x918] sm:$0xff]
  %v594 = vld [vmem:[%s1 + $0x920] sm:$0xff]
  %v595 = vld [vmem:[%s1 + $0x928] sm:$0xff]
  %v596 = vld [vmem:[%s1 + $0x930] sm:$0xff]
  %v597 = vld [vmem:[%s1 + $0x938] sm:$0xff]
  %v598 = vld [vmem:[%s1 + $0x940] sm:$0xff]
  %v599 = vld [vmem:[%s1 + $0x948] sm:$0xff]
  %v600 = vld [vmem:[%s1 + $0x950] sm:$0xff]
  %v601 = vld [vmem:[%s1 + $0x958] sm:$0xff]
  %v602 = vld [vmem:[%s1 + $0x960] sm:$0xff]
  %v603 = vld [vmem:[%s1 + $0x968] sm:$0xff]
  %v604 = vld [vmem:[%s1 + $0x970] sm:$0xff]
  %v605 = vld [vmem:[%s1 + $0x978] sm:$0xff]
  %v606 = vld [vmem:[%s1 + $0x980] sm:$0xff]
  %v607 = vld [vmem:[%s1 + $0x988] sm:$0xff]
  %v608 = vld [vmem:[%s1 + $0x990] sm:$0xff]
  %v609 = vld [vmem:[%s1 + $0x998] sm:$0xff]
  %v610 = vld [vmem:[%s1 + $0x9a0] sm:$0xff]
  %v611 = vld [vmem:[%s1 + $0x9a8] sm:$0xff]
  %v612 = vld [vmem:[%s1 + $0x9b0] sm:$0xff]
  %v613 = vld [vmem:[%s1 + $0x9b8] sm:$0xff]
  %v614 = vld [vmem:[%s1 + $0x9c0] sm:$0xff]
  %v615 = vld [vmem:[%s1 + $0x9c8] sm:$0xff]
  %v616 = vld [vmem:[%s1 + $0x9d0] sm:$0xff]
  %v617 = vld [vmem:[%s1 + $0x9d8] sm:$0xff]
  %v618 = vld [vmem:[%s1 + $0x9e0] sm:$0xff]
  %v619 = vld [vmem:[%s1 + $0x9e8] sm:$0xff]
  %v620 = vld [vmem:[%s1 + $0x9f0] sm:$0xff]
  %v621 = vld [vmem:[%s1 + $0x9f8] sm:$0xff]
  %v622 = vld [vmem:[%s1 + $0xa00] sm:$0xff]
  %v623 = vld [vmem:[%s1 + $0xa08] sm:$0xff]
  %v624 = vld [vmem:[%s1 + $0xa10] sm:$0xff]
  %v625 = vld [vmem:[%s1 + $0xa18] sm:$0xff]
  %v626 = vld [vmem:[%s1 + $0xa20] sm:$0xff]
  %v627 = vld [vmem:[%s1 + $0xa28] sm:$0xff]
  %v628 = vld [vmem:[%s1 + $0xa30] sm:$0xff]
  %v629 = vld [vmem:[%s1 + $0xa38] sm:$0xff]
  %v630 = vld [vmem:[%s1 + $0xa40] sm:$0xff]
  %v631 = vld [vmem:[%s1 + $0xa48] sm:$0xff]
  %v632 = vld [vmem:[%s1 + $0xa50] sm:$0xff]
  %v633 = vld [vmem:[%s1 + $0xa58] sm:$0xff]
  %v634 = vld [vmem:[%s1 + $0xa60] sm:$0xff]
  %v635 = vld [vmem:[%s1 + $0xa68] sm:$0xff]
  %v636 = vld [vmem:[%s1 + $0xa70] sm:$0xff]
  %v637 = vld [vmem:[%s1 + $0xa78] sm:$0xff]
  %v638 = vld [vmem:[%s1 + $0xa80] sm:$0xff]
  %v639 = vld [vmem:[%s1 + $0xa88] sm:$0xff]
  %v640 = vld [vmem:[%s1 + $0xa90] sm:$0xff]
  %v641 = vld [vmem:[%s1 + $0xa98] sm:$0xff]
  %v642 = vld [vmem:[%s1 + $0xaa0] sm:$0xff]
  %v643 = vld [vmem:[%s1 + $0xaa8] sm:$0xff]
  %v644 = vld [vmem:[%s1 + $0xab0] sm:$0xff]
  %v645 = vld [vmem:[%s1 + $0xab8] sm:$0xff]
  %v646 = vld [vmem:[%s1 + $0xac0] sm:$0xff]
  %v647 = vld [vmem:[%s1 + $0xac8] sm:$0xff]
  %v648 = vld [vmem:[%s1 + $0xad0] sm:$0xff]
  %v649 = vld [vmem:[%s1 + $0xad8] sm:$0xff]
  %v650 = vld [vmem:[%s1 + $0xae0] sm:$0xff]
  %v651 = vld [vmem:[%s1 + $0xae8] sm:$0xff]
  %v652 = vld [vmem:[%s1 + $0xaf0] sm:$0xff]
  %v653 = vld [vmem:[%s1 + $0xaf8] sm:$0xff]
  %v654 = vld [vmem:[%s1 + $0xb00] sm:$0xff]
  %v655 = vld [vmem:[%s1 + $0xb08] sm:$0xff]
  %v656 = vld [vmem:[%s1 + $0xb10] sm:$0xff]
  %v657 = vld [vmem:[%s1 + $0xb18] sm:$0xff]
  %v658 = vld [vmem:[%s1 + $0xb20] sm:$0xff]
  %v659 = vld [vmem:[%s1 + $0xb28] sm:$0xff]
  %v660 = vld [vmem:[%s1 + $0xb30] sm:$0xff]
  %v661 = vld [vmem:[%s1 + $0xb38] sm:$0xff]
  %v662 = vld [vmem:[%s1 + $0xb40] sm:$0xff]
  %v663 = vld [vmem:[%s1 + $0xb48] sm:$0xff]
  %v664 = vld [vmem:[%s1 + $0xb50] sm:$0xff]
  %v665 = vld [vmem:[%s1 + $0xb58] sm:$0xff]
  %v666 = vld [vmem:[%s1 + $0xb60] sm:$0xff]
  %v667 = vld [vmem:[%s1 + $0xb68] sm:$0xff]
  %v668 = vld [vmem:[%s1 + $0xb70] sm:$0xff]
  %v669 = vld [vmem:[%s1 + $0xb78] sm:$0xff]
  %v670 = vld [vmem:[%s1 + $0xb80] sm:$0xff]
  %v671 = vld [vmem:[%s1 + $0xb88] sm:$0xff]
  %v672 = vld [vmem:[%s1 + $0xb90] sm:$0xff]
  %v673 = vld [vmem:[%s1 + $0xb98] sm:$0xff]
  %v674 = vld [vmem:[%s1 + $0xba0] sm:$0xff]
  %v675 = vld [vmem:[%s1 + $0xba8] sm:$0xff]
  %v676 = vld [vmem:[%s1 + $0xbb0] sm:$0xff]
  %v677 = vld [vmem:[%s1 + $0xbb8] sm:$0xff]
  %v678 = vld [vmem:[%s1 + $0xbc0] sm:$0xff]
  %v679 = vld [vmem:[%s1 + $0xbc8] sm:$0xff]
  %v680 = vld [vmem:[%s1 + $0xbd0] sm:$0xff]
  %v681 = vld [vmem:[%s1 + $0xbd8] sm:$0xff]
  %v682 = vld [vmem:[%s1 + $0xbe0] sm:$0xff]
  %v683 = vld [vmem:[%s1 + $0xbe8] sm:$0xff]
  %v684 = vld [vmem:[%s1 + $0xbf0] sm:$0xff]
  %v685 = vld [vmem:[%s1 + $0xbf8] sm:$0xff]
  %v686 = vld [vmem:[%s1 + $0xc00] sm:$0xff]
  %v687 = vld [vmem:[%s1 + $0xc08] sm:$0xff]
  %v688 = vld [vmem:[%s1 + $0xc10] sm:$0xff]
  %v689 = vld [vmem:[%s1 + $0xc18] sm:$0xff]
  %v690 = vld [vmem:[%s1 + $0xc20] sm:$0xff]
  %v691 = vld [vmem:[%s1 + $0xc28] sm:$0xff]
  %v692 = vld [vmem:[%s1 + $0xc30] sm:$0xff]
  %v693 = vld [vmem:[%s1 + $0xc38] sm:$0xff]
  %v694 = vld [vmem:[%s1 + $0xc40] sm:$0xff]
  %v695 = vld [vmem:[%s1 + $0xc48] sm:$0xff]
  %v696 = vld [vmem:[%s1 + $0xc50] sm:$0xff]
  %v697 = vld [vmem:[%s1 + $0xc58] sm:$0xff]
  %v698 = vld [vmem:[%s1 + $0xc60] sm:$0xff]
  %v699 = vld [vmem:[%s1 + $0xc68] sm:$0xff]
  %v700 = vld [vmem:[%s1 + $0xc70] sm:$0xff]
  %v701 = vld [vmem:[%s1 + $0xc78] sm:$0xff]
  %v702 = vld [vmem:[%s1 + $0xc80] sm:$0xff]
  %v703 = vld [vmem:[%s1 + $0xc88] sm:$0xff]
  %v704 = vld [vmem:[%s1 + $0xc90] sm:$0xff]
  %v705 = vld [vmem:[%s1 + $0xc98] sm:$0xff]
  %v706 = vld [vmem:[%s1 + $0xca0] sm:$0xff]
  %v707 = vld [vmem:[%s1 + $0xca8] sm:$0xff]
  %v708 = vld [vmem:[%s1 + $0xcb0] sm:$0xff]
  %v709 = vld [vmem:[%s1 + $0xcb8] sm:$0xff]
  %v710 = vld [vmem:[%s1 + $0xcc0] sm:$0xff]
  %v711 = vld [vmem:[%s1 + $0xcc8] sm:$0xff]
  %v712 = vld [vmem:[%s1 + $0xcd0] sm:$0xff]
  %v713 = vld [vmem:[%s1 + $0xcd8] sm:$0xff]
  %v714 = vld [vmem:[%s1 + $0xce0] sm:$0xff]
  %v715 = vld [vmem:[%s1 + $0xce8] sm:$0xff]
  %v716 = vld [vmem:[%s1 + $0xcf0] sm:$0xff]
  %v717 = vld [vmem:[%s1 + $0xcf8] sm:$0xff]
  %v718 = vld [vmem:[%s1 + $0xd00] sm:$0xff]
  %v719 = vld [vmem:[%s1 + $0xd08] sm:$0xff]
  %v720 = vld [vmem:[%s1 + $0xd10] sm:$0xff]
  %v721 = vld [vmem:[%s1 + $0xd18] sm:$0xff]
  %v722 = vld [vmem:[%s1 + $0xd20] sm:$0xff]
  %v723 = vld [vmem:[%s1 + $0xd28] sm:$0xff]
  %v724 = vld [vmem:[%s1 + $0xd30] sm:$0xff]
  %v725 = vld [vmem:[%s1 + $0xd38] sm:$0xff]
  %v726 = vld [vmem:[%s1 + $0xd40] sm:$0xff]
  %v727 = vld [vmem:[%s1 + $0xd48] sm:$0xff]
  %v728 = vld [vmem:[%s1 + $0xd50] sm:$0xff]
  %v729 = vld [vmem:[%s1 + $0xd58] sm:$0xff]
  %v730 = vld [vmem:[%s1 + $0xd60] sm:$0xff]
  %v731 = vld [vmem:[%s1 + $0xd68] sm:$0xff]
  %v732 = vld [vmem:[%s1 + $0xd70] sm:$0xff]
  %v733 = vld [vmem:[%s1 + $0xd78] sm:$0xff]
  %v734 = vld [vmem:[%s1 + $0xd80] sm:$0xff]
  %v735 = vld [vmem:[%s1 + $0xd88] sm:$0xff]
  %v736 = vld [vmem:[%s1 + $0xd90] sm:$0xff]
  %v737 = vld [vmem:[%s1 + $0xd98] sm:$0xff]
  %v738 = vld [vmem:[%s1 + $0xda0] sm:$0xff]
  %v739 = vld [vmem:[%s1 + $0xda8] sm:$0xff]
  %v740 = vld [vmem:[%s1 + $0xdb0] sm:$0xff]
  %v741 = vld [vmem:[%s1 + $0xdb8] sm:$0xff]
  %v742 = vld [vmem:[%s1 + $0xdc0] sm:$0xff]
  %v743 = vld [vmem:[%s1 + $0xdc8] sm:$0xff]
  %v744 = vld [vmem:[%s1 + $0xdd0] sm:$0xff]
  %v745 = vld [vmem:[%s1 + $0xdd8] sm:$0xff]
  %v746 = vld [vmem:[%s1 + $0xde0] sm:$0xff]
  %v747 = vld [vmem:[%s1 + $0xde8] sm:$0xff]
  %v748 = vld [vmem:[%s1 + $0xdf0] sm:$0xff]
  %v749 = vld [vmem:[%s1 + $0xdf8] sm:$0xff]
  %v750 = vld [vmem:[%s1 + $0xe00] sm:$0xff]
  %v751 = vld [vmem:[%s1 + $0xe08] sm:$0xff]
  %v752 = vld [vmem:[%s1 + $0xe10] sm:$0xff]
  %v753 = vld [vmem:[%s1 + $0xe18] sm:$0xff]
  %v754 = vld [vmem:[%s1 + $0xe20] sm:$0xff]
  %v755 = vld [vmem:[%s1 + $0xe28] sm:$0xff]
  %v756 = vld [vmem:[%s1 + $0xe30] sm:$0xff]
  %v757 = vld [vmem:[%s1 + $0xe38] sm:$0xff]
  %v758 = vld [vmem:[%s1 + $0xe40] sm:$0xff]
  %v759 = vld [vmem:[%s1 + $0xe48] sm:$0xff]
  %v760 = vld [vmem:[%s1 + $0xe50] sm:$0xff]
  %v761 = vld [vmem:[%s1 + $0xe58] sm:$0xff]
  %v762 = vld [vmem:[%s1 + $0xe60] sm:$0xff]
  %v763 = vld [vmem:[%s1 + $0xe68] sm:$0xff]
  %v764 = vld [vmem:[%s1 + $0xe70] sm:$0xff]
  %v765 = vld [vmem:[%s1 + $0xe78] sm:$0xff]
  %v766 = vld [vmem:[%s1 + $0xe80] sm:$0xff]
  %v767 = vld [vmem:[%s1 + $0xe88] sm:$0xff]
  %v768 = vld [vmem:[%s1 + $0xe90] sm:$0xff]
  %v769 = vld [vmem:[%s1 + $0xe98] sm:$0xff]
  %v770 = vld [vmem:[%s1 + $0xea0] sm:$0xff]
  %v771 = vld [vmem:[%s1 + $0xea8] sm:$0xff]
  %v772 = vld [vmem:[%s1 + $0xeb0] sm:$0xff]
  %v773 = vld [vmem:[%s1 + $0xeb8] sm:$0xff]
  %v774 = vld [vmem:[%s1 + $0xec0] sm:$0xff]
  %v775 = vld [vmem:[%s1 + $0xec8] sm:$0xff]
  %v776 = vld [vmem:[%s1 + $0xed0] sm:$0xff]
  %v777 = vld [vmem:[%s1 + $0xed8] sm:$0xff]
  %v778 = vld [vmem:[%s1 + $0xee0] sm:$0xff]
  %v779 = vld [vmem:[%s1 + $0xee8] sm:$0xff]
  %v780 = vld [vmem:[%s1 + $0xef0] sm:$0xff]
  %v781 = vld [vmem:[%s1 + $0xef8] sm:$0xff]
  %v782 = vld [vmem:[%s1 + $0xf00] sm:$0xff]
  %v783 = vld [vmem:[%s1 + $0xf08] sm:$0xff]
  %v784 = vld [vmem:[%s1 + $0xf10] sm:$0xff]
  %v785 = vld [vmem:[%s1 + $0xf18] sm:$0xff]
  %v786 = vld [vmem:[%s1 + $0xf20] sm:$0xff]
  %v787 = vld [vmem:[%s1 + $0xf28] sm:$0xff]
  %v788 = vld [vmem:[%s1 + $0xf30] sm:$0xff]
  %v789 = vld [vmem:[%s1 + $0xf38] sm:$0xff]
  %v790 = vld [vmem:[%s1 + $0xf40] sm:$0xff]
  %v791 = vld [vmem:[%s1 + $0xf48] sm:$0xff]
  %v792 = vld [vmem:[%s1 + $0xf50] sm:$0xff]
  %v793 = vld [vmem:[%s1 + $0xf58] sm:$0xff]
  %v794 = vld [vmem:[%s1 + $0xf60] sm:$0xff]
  %v795 = vld [vmem:[%s1 + $0xf68] sm:$0xff]
  %v796 = vld [vmem:[%s1 + $0xf70] sm:$0xff]
  %v797 = vld [vmem:[%s1 + $0xf78] sm:$0xff]
  %v798 = vld [vmem:[%s1 + $0xf80] sm:$0xff]
  %v799 = vld [vmem:[%s1 + $0xf88] sm:$0xff]
  %v800 = vld [vmem:[%s1 + $0xf90] sm:$0xff]
  %v801 = vld [vmem:[%s1 + $0xf98] sm:$0xff]
  %v802 = vld [vmem:[%s1 + $0xfa0] sm:$0xff]
  %v803 = vld [vmem:[%s1 + $0xfa8] sm:$0xff]
  %v804 = vld [vmem:[%s1 + $0xfb0] sm:$0xff]
  %v805 = vld [vmem:[%s1 + $0xfb8] sm:$0xff]
  %v806 = vld [vmem:[%s1 + $0xfc0] sm:$0xff]
  %v807 = vld [vmem:[%s1 + $0xfc8] sm:$0xff]
  %v808 = vld [vmem:[%s1 + $0xfd0] sm:$0xff]
  %v809 = vld [vmem:[%s1 + $0xfd8] sm:$0xff]
  %v810 = vld [vmem:[%s1 + $0xfe0] sm:$0xff]
  %v811 = vld [vmem:[%s1 + $0xfe8] sm:$0xff]
  %v812 = vld [vmem:[%s1 + $0xff0] sm:$0xff]
  %v813 = vld [vmem:[%s1 + $0xff8] sm:$0xff]
  %v814 = vld [vmem:[%s1 + $0x1000] sm:$0xff]
  %v815 = vld [vmem:[%s1 + $0x1008] sm:$0xff]
  %v816 = vld [vmem:[%s1 + $0x1010] sm:$0xff]
  %v817 = vld [vmem:[%s1 + $0x1018] sm:$0xff]
  %v818 = vld [vmem:[%s1 + $0x1020] sm:$0xff]
  %v819 = vld [vmem:[%s1 + $0x1028] sm:$0xff]
  %v820 = vld [vmem:[%s1 + $0x1030] sm:$0xff]
  %v821 = vld [vmem:[%s1 + $0x1038] sm:$0xff]
  %v822 = vld [vmem:[%s1 + $0x1040] sm:$0xff]
  %v823 = vld [vmem:[%s1 + $0x1048] sm:$0xff]
  %v824 = vld [vmem:[%s1 + $0x1050] sm:$0xff]
  %v825 = vld [vmem:[%s1 + $0x1058] sm:$0xff]
  %v826 = vld [vmem:[%s1 + $0x1060] sm:$0xff]
  %v827 = vld [vmem:[%s1 + $0x1068] sm:$0xff]
  %v828 = vld [vmem:[%s1 + $0x1070] sm:$0xff]
  %v829 = vld [vmem:[%s1 + $0x1078] sm:$0xff]
  %v830 = vld [vmem:[%s1 + $0x1080] sm:$0xff]
  %v831 = vld [vmem:[%s1 + $0x1088] sm:$0xff]
  %v832 = vld [vmem:[%s1 + $0x1090] sm:$0xff]
  %v833 = vld [vmem:[%s1 + $0x1098] sm:$0xff]
  %v834 = vld [vmem:[%s1 + $0x10a0] sm:$0xff]
  %v835 = vld [vmem:[%s1 + $0x10a8] sm:$0xff]
  %v836 = vld [vmem:[%s1 + $0x10b0] sm:$0xff]
  %v837 = vld [vmem:[%s1 + $0x10b8] sm:$0xff]
  %v838 = vld [vmem:[%s1 + $0x10c0] sm:$0xff]
  %v839 = vld [vmem:[%s1 + $0x10c8] sm:$0xff]
  %v840 = vld [vmem:[%s1 + $0x10d0] sm:$0xff]
  %v841 = vld [vmem:[%s1 + $0x10d8] sm:$0xff]
  %v842 = vld [vmem:[%s1 + $0x10e0] sm:$0xff]
  %v843 = vld [vmem:[%s1 + $0x10e8] sm:$0xff]
  %v844 = vld [vmem:[%s1 + $0x10f0] sm:$0xff]
  %v845 = vld [vmem:[%s1 + $0x10f8] sm:$0xff]
  %v846 = vld [vmem:[%s1 + $0x1100] sm:$0xff]
  %v847 = vld [vmem:[%s1 + $0x1108] sm:$0xff]
  %v848 = vld [vmem:[%s1 + $0x1110] sm:$0xff]
  %v849 = vld [vmem:[%s1 + $0x1118] sm:$0xff]
  %v850 = vld [vmem:[%s1 + $0x1120] sm:$0xff]
  %v851 = vld [vmem:[%s1 + $0x1128] sm:$0xff]
  %v852 = vld [vmem:[%s1 + $0x1130] sm:$0xff]
  %v853 = vld [vmem:[%s1 + $0x1138] sm:$0xff]
  %v854 = vld [vmem:[%s1 + $0x1140] sm:$0xff]
  %v855 = vld [vmem:[%s1 + $0x1148] sm:$0xff]
  %v856 = vld [vmem:[%s1 + $0x1150] sm:$0xff]
  %v857 = vld [vmem:[%s1 + $0x1158] sm:$0xff]
  %v858 = vld [vmem:[%s1 + $0x1160] sm:$0xff]
  %v859 = vld [vmem:[%s1 + $0x1168] sm:$0xff]
  %v860 = vld [vmem:[%s1 + $0x1170] sm:$0xff]
  %v861 = vld [vmem:[%s1 + $0x1178] sm:$0xff]
  %v862 = vld [vmem:[%s1 + $0x1180] sm:$0xff]
  %v863 = vld [vmem:[%s1 + $0x1188] sm:$0xff]
  %v864 = vld [vmem:[%s1 + $0x1190] sm:$0xff]
  %v865 = vld [vmem:[%s1 + $0x1198] sm:$0xff]
  %v866 = vld [vmem:[%s1 + $0x11a0] sm:$0xff]
  %v867 = vld [vmem:[%s1 + $0x11a8] sm:$0xff]
  %v868 = vld [vmem:[%s1 + $0x11b0] sm:$0xff]
  %v869 = vld [vmem:[%s1 + $0x11b8] sm:$0xff]
  %v870 = vld [vmem:[%s1 + $0x11c0] sm:$0xff]
  %v871 = vld [vmem:[%s1 + $0x11c8] sm:$0xff]
  %v872 = vld [vmem:[%s1 + $0x11d0] sm:$0xff]
  %v873 = vld [vmem:[%s1 + $0x11d8] sm:$0xff]
  %v874 = vld [vmem:[%s1 + $0x11e0] sm:$0xff]
  %v875 = vld [vmem:[%s1 + $0x11e8] sm:$0xff]
  %v876 = vld [vmem:[%s1 + $0x11f0] sm:$0xff]
  %v877 = vld [vmem:[%s1 + $0x11f8] sm:$0xff]
  %v878 = vld [vmem:[%s2] sm:$0x3]
  %v880 = vlaneseq
  %v881 = vshrl.u32 %v880, 7
  %v882 = vsub.s32 0, %v881
  %v883 = vrot.slane %v878, %v882
  %v884 = vlaneseq
  %v885 = vshrl.u32 %v884, 7
  %v886 = vsub.s32 1, %v885
  %v887 = vrot.slane %v878, %v886
  %890 = vmatprep.subr.mxu0 %v303
  %891 = vmatpush1.msra.mxu0 %v302
  %892 = vmatprep.subr.mxu0 %v305
  %893 = vmatpush1.msra.mxu0 %v304
  %894 = vmatprep.subr.mxu0 %v307
  %895 = vmatpush1.msra.mxu0 %v306
  %896 = vmatprep.subr.mxu0 %v309
  %897 = vmatpush1.msra.mxu0 %v308
  %898 = vmatprep.subr.mxu0 %v311
  %899 = vmatpush1.msra.mxu0 %v310
  %900 = vmatprep.subr.mxu0 %v313
  %901 = vmatpush1.msra.mxu0 %v312
  %902 = vmatprep.subr.mxu0 %v315
  %903 = vmatpush1.msra.mxu0 %v314
  %904 = vmatprep.subr.mxu0 %v317
  %905 = vmatpush1.msra.mxu0 %v316
  %906 = vmatprep.subr.mxu0 %v319
  %907 = vmatpush1.msra.mxu0 %v318
  %908 = vmatprep.subr.mxu0 %v321
  %909 = vmatpush1.msra.mxu0 %v320
  %910 = vmatprep.subr.mxu0 %v323
  %911 = vmatpush1.msra.mxu0 %v322
  %912 = vmatprep.subr.mxu0 %v325
  %913 = vmatpush1.msra.mxu0 %v324
  %914 = vmatprep.subr.mxu0 %v327
  %915 = vmatpush1.msra.mxu0 %v326
  %916 = vmatprep.subr.mxu0 %v329
  %917 = vmatpush1.msra.mxu0 %v328
  %918 = vmatprep.subr.mxu0 %v331
  %919 = vmatpush1.msra.mxu0 %v330
  %920 = vmatprep.subr.mxu0 %v333
  %921 = vmatpush1.msra.mxu0 %v332
  %922 = vmatprep.subr.mxu0 %v335
  %923 = vmatpush1.msra.mxu0 %v334
  %924 = vmatprep.subr.mxu0 %v337
  %925 = vmatpush1.msra.mxu0 %v336
  %926 = vmatprep.subr.mxu0 %v339
  %927 = vmatpush1.msra.mxu0 %v338
  %928 = vmatprep.subr.mxu0 %v341
  %929 = vmatpush1.msra.mxu0 %v340
  %930 = vmatprep.subr.mxu0 %v343
  %931 = vmatpush1.msra.mxu0 %v342
  %932 = vmatprep.subr.mxu0 %v345
  %933 = vmatpush1.msra.mxu0 %v344
  %934 = vmatprep.subr.mxu0 %v347
  %935 = vmatpush1.msra.mxu0 %v346
  %936 = vmatprep.subr.mxu0 %v349
  %937 = vmatpush1.msra.mxu0 %v348
  %938 = vmatprep.subr.mxu0 %v351
  %939 = vmatpush1.msra.mxu0 %v350
  %940 = vmatprep.subr.mxu0 %v353
  %941 = vmatpush1.msra.mxu0 %v352
  %942 = vmatprep.subr.mxu0 %v355
  %943 = vmatpush1.msra.mxu0 %v354
  %944 = vmatprep.subr.mxu0 %v357
  %945 = vmatpush1.msra.mxu0 %v356
  %946 = vmatprep.subr.mxu0 %v359
  %947 = vmatpush1.msra.mxu0 %v358
  %948 = vmatprep.subr.mxu0 %v361
  %949 = vmatpush1.msra.mxu0 %v360
  %950 = vmatprep.subr.mxu0 %v363
  %951 = vmatpush1.msra.mxu0 %v362
  %952 = vmatprep.subr.mxu0 %v365
  %953 = vmatpush1.msra.mxu0 %v364
  %954 = vmatprep.mubr.f32.mxu0 %v15
  %955 = vmatmul.mubr.f32.gmra.mrb[0].mxu0 %v14
  %v956 = vpop.f32.mrb[0].mxu0
  %v957 = vadd.f32 %v883, %v956
  %v958 = vpop.f32.mrb[0].mxu0
  %v959 = vadd.f32 %v887, %v958
  %960 = vmatprep.mubr.f32.mxu0 %v33
  %961 = vmatmul.mubr.f32.gmra.mrb[0].mxu0 %v32
  %v962 = vpop.f32.mrb[0].mxu0
  %v963 = vadd.f32 %v883, %v962
  %v964 = vpop.f32.mrb[0].mxu0
  %v965 = vadd.f32 %v887, %v964
  %966 = vmatprep.mubr.f32.mxu0 %v51
  %967 = vmatmul.mubr.f32.gmra.mrb[0].mxu0 %v50
  %v968 = vpop.f32.mrb[0].mxu0
  %v969 = vadd.f32 %v883, %v968
  %v970 = vpop.f32.mrb[0].mxu0
  %v971 = vadd.f32 %v887, %v970
  %972 = vmatprep.mubr.f32.mxu0 %v69
  %973 = vmatmul.mubr.f32.gmra.mrb[0].mxu0 %v68
  %v974 = vpop.f32.mrb[0].mxu0
  %v975 = vadd.f32 %v883, %v974
  %v976 = vpop.f32.mrb[0].mxu0
  %v977 = vadd.f32 %v887, %v976
  %978 = vmatprep.mubr.f32.mxu0 %v87
  %979 = vmatmul.mubr.f32.gmra.mrb[0].mxu0 %v86
  %v980 = vpop.f32.mrb[0].mxu0
  %v981 = vadd.f32 %v883, %v980
  %v982 = vpop.f32.mrb[0].mxu0
  %v983 = vadd.f32 %v887, %v982
  %984 = vmatprep.mubr.f32.mxu0 %v105
  %985 = vmatmul.mubr.f32.gmra.mrb[0].mxu0 %v104
  %v986 = vpop.f32.mrb[0].mxu0
  %v987 = vadd.f32 %v883, %v986
  %v988 = vpop.f32.mrb[0].mxu0
  %v989 = vadd.f32 %v887, %v988
  %990 = vmatprep.mubr.f32.mxu0 %v123
  %991 = vmatmul.mubr.f32.gmra.mrb[0].mxu0 %v122
  %v992 = vpop.f32.mrb[0].mxu0
  %v993 = vadd.f32 %v883, %v992
  %v994 = vpop.f32.mrb[0].mxu0
  %v995 = vadd.f32 %v887, %v994
  %996 = vmatprep.mubr.f32.mxu0 %v141
  %997 = vmatmul.mubr.f32.gmra.mrb[0].mxu0 %v140
  %v998 = vpop.f32.mrb[0].mxu0
  %v999 = vadd.f32 %v883, %v998
  %v1000 = vpop.f32.mrb[0].mxu0
  %v1001 = vadd.f32 %v887, %v1000
  %1002 = vmatprep.mubr.f32.mxu0 %v159
  %1003 = vmatmul.mubr.f32.gmra.mrb[0].mxu0 %v158
  %v1004 = vpop.f32.mrb[0].mxu0
  %v1005 = vadd.f32 %v883, %v1004
  %v1006 = vpop.f32.mrb[0].mxu0
  %v1007 = vadd.f32 %v887, %v1006
  %1008 = vmatprep.mubr.f32.mxu0 %v177
  %1009 = vmatmul.mubr.f32.gmra.mrb[0].mxu0 %v176
  %v1010 = vpop.f32.mrb[0].mxu0
  %v1011 = vadd.f32 %v883, %v1010
  %v1012 = vpop.f32.mrb[0].mxu0
  %v1013 = vadd.f32 %v887, %v1012
  %1014 = vmatprep.mubr.f32.mxu0 %v195
  %1015 = vmatmul.mubr.f32.gmra.mrb[0].mxu0 %v194
  %v1016 = vpop.f32.mrb[0].mxu0
  %v1017 = vadd.f32 %v883, %v1016
  %v1018 = vpop.f32.mrb[0].mxu0
  %v1019 = vadd.f32 %v887, %v1018
  %1020 = vmatprep.mubr.f32.mxu0 %v213
  %1021 = vmatmul.mubr.f32.gmra.mrb[0].mxu0 %v212
  %v1022 = vpop.f32.mrb[0].mxu0
  %v1023 = vadd.f32 %v883, %v1022
  %v1024 = vpop.f32.mrb[0].mxu0
  %v1025 = vadd.f32 %v887, %v1024
  %1026 = vmatprep.mubr.f32.mxu0 %v231
  %1027 = vmatmul.mubr.f32.gmra.mrb[0].mxu0 %v230
  %v1028 = vpop.f32.mrb[0].mxu0
  %v1029 = vadd.f32 %v883, %v1028
  %v1030 = vpop.f32.mrb[0].mxu0
  %v1031 = vadd.f32 %v887, %v1030
  %1032 = vmatprep.mubr.f32.mxu0 %v249
  %1033 = vmatmul.mubr.f32.gmra.mrb[0].mxu0 %v248
  %v1034 = vpop.f32.mrb[0].mxu0
  %v1035 = vadd.f32 %v883, %v1034
  %v1036 = vpop.f32.mrb[0].mxu0
  %v1037 = vadd.f32 %v887, %v1036
  %1038 = vmatprep.mubr.f32.mxu0 %v267
  %1039 = vmatmul.mubr.f32.gmra.mrb[0].mxu0 %v266
  %v1040 = vpop.f32.mrb[0].mxu0
  %v1041 = vadd.f32 %v883, %v1040
  %v1042 = vpop.f32.mrb[0].mxu0
  %v1043 = vadd.f32 %v887, %v1042
  %1044 = vmatprep.mubr.f32.mxu0 %v285
  %1045 = vmatmul.mubr.f32.gmra.mrb[0].mxu0 %v284
  %v1046 = vpop.f32.mrb[0].mxu0
  %v1047 = vadd.f32 %v883, %v1046
  %v1048 = vpop.f32.mrb[0].mxu0
  %v1049 = vadd.f32 %v887, %v1048
  %1050 = vdwg.mxu0
  %1051 = vmatprep.subr.mxu0 %v367
  %1052 = vmatpush1.msra.mxu0 %v366
  %1053 = vmatprep.subr.mxu0 %v369
  %1054 = vmatpush1.msra.mxu0 %v368
  %1055 = vmatprep.subr.mxu0 %v371
  %1056 = vmatpush1.msra.mxu0 %v370
  %1057 = vmatprep.subr.mxu0 %v373
  %1058 = vmatpush1.msra.mxu0 %v372
  %1059 = vmatprep.subr.mxu0 %v375
  %1060 = vmatpush1.msra.mxu0 %v374
  %1061 = vmatprep.subr.mxu0 %v377
  %1062 = vmatpush1.msra.mxu0 %v376
  %1063 = vmatprep.subr.mxu0 %v379
  %1064 = vmatpush1.msra.mxu0 %v378
  %1065 = vmatprep.subr.mxu0 %v381
  %1066 = vmatpush1.msra.mxu0 %v380
  %1067 = vmatprep.subr.mxu0 %v383
  %1068 = vmatpush1.msra.mxu0 %v382
  %1069 = vmatprep.subr.mxu0 %v385
  %1070 = vmatpush1.msra.mxu0 %v384
  %1071 = vmatprep.subr.mxu0 %v387
  %1072 = vmatpush1.msra.mxu0 %v386
  %1073 = vmatprep.subr.mxu0 %v389
  %1074 = vmatpush1.msra.mxu0 %v388
  %1075 = vmatprep.subr.mxu0 %v391
  %1076 = vmatpush1.msra.mxu0 %v390
  %1077 = vmatprep.subr.mxu0 %v393
  %1078 = vmatpush1.msra.mxu0 %v392
  %1079 = vmatprep.subr.mxu0 %v395
  %1080 = vmatpush1.msra.mxu0 %v394
  %1081 = vmatprep.subr.mxu0 %v397
  %1082 = vmatpush1.msra.mxu0 %v396
  %1083 = vmatprep.subr.mxu0 %v399
  %1084 = vmatpush1.msra.mxu0 %v398
  %1085 = vmatprep.subr.mxu0 %v401
  %1086 = vmatpush1.msra.mxu0 %v400
  %1087 = vmatprep.subr.mxu0 %v403
  %1088 = vmatpush1.msra.mxu0 %v402
  %1089 = vmatprep.subr.mxu0 %v405
  %1090 = vmatpush1.msra.mxu0 %v404
  %1091 = vmatprep.subr.mxu0 %v407
  %1092 = vmatpush1.msra.mxu0 %v406
  %1093 = vmatprep.subr.mxu0 %v409
  %1094 = vmatpush1.msra.mxu0 %v408
  %1095 = vmatprep.subr.mxu0 %v411
  %1096 = vmatpush1.msra.mxu0 %v410
  %1097 = vmatprep.subr.mxu0 %v413
  %1098 = vmatpush1.msra.mxu0 %v412
  %1099 = vmatprep.subr.mxu0 %v415
  %1100 = vmatpush1.msra.mxu0 %v414
  %1101 = vmatprep.subr.mxu0 %v417
  %1102 = vmatpush1.msra.mxu0 %v416
  %1103 = vmatprep.subr.mxu0 %v419
  %1104 = vmatpush1.msra.mxu0 %v418
  %1105 = vmatprep.subr.mxu0 %v421
  %1106 = vmatpush1.msra.mxu0 %v420
  %1107 = vmatprep.subr.mxu0 %v423
  %1108 = vmatpush1.msra.mxu0 %v422
  %1109 = vmatprep.subr.mxu0 %v425
  %1110 = vmatpush1.msra.mxu0 %v424
  %1111 = vmatprep.subr.mxu0 %v427
  %1112 = vmatpush1.msra.mxu0 %v426
  %1113 = vmatprep.subr.mxu0 %v429
  %1114 = vmatpush1.msra.mxu0 %v428
  %1115 = vmatprep.mubr.f32.mxu0 %v17
  %1116 = vmatmul.mubr.f32.gmra.mrb[0].mxu0 %v16
  %v1117 = vpop.f32.mrb[0].mxu0
  %v1118 = vadd.f32 %v957, %v1117
  %v1119 = vpop.f32.mrb[0].mxu0
  %v1120 = vadd.f32 %v959, %v1119
  %1121 = vmatprep.mubr.f32.mxu0 %v35
  %1122 = vmatmul.mubr.f32.gmra.mrb[0].mxu0 %v34
  %v1123 = vpop.f32.mrb[0].mxu0
  %v1124 = vadd.f32 %v963, %v1123
  %v1125 = vpop.f32.mrb[0].mxu0
  %v1126 = vadd.f32 %v965, %v1125
  %1127 = vmatprep.mubr.f32.mxu0 %v53
  %1128 = vmatmul.mubr.f32.gmra.mrb[0].mxu0 %v52
  %v1129 = vpop.f32.mrb[0].mxu0
  %v1130 = vadd.f32 %v969, %v1129
  %v1131 = vpop.f32.mrb[0].mxu0
  %v1132 = vadd.f32 %v971, %v1131
  %1133 = vmatprep.mubr.f32.mxu0 %v71
  %1134 = vmatmul.mubr.f32.gmra.mrb[0].mxu0 %v70
  %v1135 = vpop.f32.mrb[0].mxu0
  %v1136 = vadd.f32 %v975, %v1135
  %v1137 = vpop.f32.mrb[0].mxu0
  %v1138 = vadd.f32 %v977, %v1137
  %1139 = vmatprep.mubr.f32.mxu0 %v89
  %1140 = vmatmul.mubr.f32.gmra.mrb[0].mxu0 %v88
  %v1141 = vpop.f32.mrb[0].mxu0
  %v1142 = vadd.f32 %v981, %v1141
  %v1143 = vpop.f32.mrb[0].mxu0
  %v1144 = vadd.f32 %v983, %v1143
  %1145 = vmatprep.mubr.f32.mxu0 %v107
  %1146 = vmatmul.mubr.f32.gmra.mrb[0].mxu0 %v106
  %v1147 = vpop.f32.mrb[0].mxu0
  %v1148 = vadd.f32 %v987, %v1147
  %v1149 = vpop.f32.mrb[0].mxu0
  %v1150 = vadd.f32 %v989, %v1149
  %1151 = vmatprep.mubr.f32.mxu0 %v125
  %1152 = vmatmul.mubr.f32.gmra.mrb[0].mxu0 %v124
  %v1153 = vpop.f32.mrb[0].mxu0
  %v1154 = vadd.f32 %v993, %v1153
  %v1155 = vpop.f32.mrb[0].mxu0
  %v1156 = vadd.f32 %v995, %v1155
  %1157 = vmatprep.mubr.f32.mxu0 %v143
  %1158 = vmatmul.mubr.f32.gmra.mrb[0].mxu0 %v142
  %v1159 = vpop.f32.mrb[0].mxu0
  %v1160 = vadd.f32 %v999, %v1159
  %v1161 = vpop.f32.mrb[0].mxu0
  %v1162 = vadd.f32 %v1001, %v1161
  %1163 = vmatprep.mubr.f32.mxu0 %v161
  %1164 = vmatmul.mubr.f32.gmra.mrb[0].mxu0 %v160
  %v1165 = vpop.f32.mrb[0].mxu0
  %v1166 = vadd.f32 %v1005, %v1165
  %v1167 = vpop.f32.mrb[0].mxu0
  %v1168 = vadd.f32 %v1007, %v1167
  %1169 = vmatprep.mubr.f32.mxu0 %v179
  %1170 = vmatmul.mubr.f32.gmra.mrb[0].mxu0 %v178
  %v1171 = vpop.f32.mrb[0].mxu0
  %v1172 = vadd.f32 %v1011, %v1171
  %v1173 = vpop.f32.mrb[0].mxu0
  %v1174 = vadd.f32 %v1013, %v1173
  %1175 = vmatprep.mubr.f32.mxu0 %v197
  %1176 = vmatmul.mubr.f32.gmra.mrb[0].mxu0 %v196
  %v1177 = vpop.f32.mrb[0].mxu0
  %v1178 = vadd.f32 %v1017, %v1177
  %v1179 = vpop.f32.mrb[0].mxu0
  %v1180 = vadd.f32 %v1019, %v1179
  %1181 = vmatprep.mubr.f32.mxu0 %v215
  %1182 = vmatmul.mubr.f32.gmra.mrb[0].mxu0 %v214
  %v1183 = vpop.f32.mrb[0].mxu0
  %v1184 = vadd.f32 %v1023, %v1183
  %v1185 = vpop.f32.mrb[0].mxu0
  %v1186 = vadd.f32 %v1025, %v1185
  %1187 = vmatprep.mubr.f32.mxu0 %v233
  %1188 = vmatmul.mubr.f32.gmra.mrb[0].mxu0 %v232
  %v1189 = vpop.f32.mrb[0].mxu0
  %v1190 = vadd.f32 %v1029, %v1189
  %v1191 = vpop.f32.mrb[0].mxu0
  %v1192 = vadd.f32 %v1031, %v1191
  %1193 = vmatprep.mubr.f32.mxu0 %v251
  %1194 = vmatmul.mubr.f32.gmra.mrb[0].mxu0 %v250
  %v1195 = vpop.f32.mrb[0].mxu0
  %v1196 = vadd.f32 %v1035, %v1195
  %v1197 = vpop.f32.mrb[0].mxu0
  %v1198 = vadd.f32 %v1037, %v1197
  %1199 = vmatprep.mubr.f32.mxu0 %v269
  %1200 = vmatmul.mubr.f32.gmra.mrb[0].mxu0 %v268
  %v1201 = vpop.f32.mrb[0].mxu0
  %v1202 = vadd.f32 %v1041, %v1201
  %v1203 = vpop.f32.mrb[0].mxu0
  %v1204 = vadd.f32 %v1043, %v1203
  %1205 = vmatprep.mubr.f32.mxu0 %v287
  %1206 = vmatmul.mubr.f32.gmra.mrb[0].mxu0 %v286
  %v1207 = vpop.f32.mrb[0].mxu0
  %v1208 = vadd.f32 %v1047, %v1207
  %v1209 = vpop.f32.mrb[0].mxu0
  %v1210 = vadd.f32 %v1049, %v1209
  %1211 = vdwg.mxu0
  %1212 = vmatprep.subr.mxu0 %v431
  %1213 = vmatpush1.msra.mxu0 %v430
  %1214 = vmatprep.subr.mxu0 %v433
  %1215 = vmatpush1.msra.mxu0 %v432
  %1216 = vmatprep.subr.mxu0 %v435
  %1217 = vmatpush1.msra.mxu0 %v434
  %1218 = vmatprep.subr.mxu0 %v437
  %1219 = vmatpush1.msra.mxu0 %v436
  %1220 = vmatprep.subr.mxu0 %v439
  %1221 = vmatpush1.msra.mxu0 %v438
  %1222 = vmatprep.subr.mxu0 %v441
  %1223 = vmatpush1.msra.mxu0 %v440
  %1224 = vmatprep.subr.mxu0 %v443
  %1225 = vmatpush1.msra.mxu0 %v442
  %1226 = vmatprep.subr.mxu0 %v445
  %1227 = vmatpush1.msra.mxu0 %v444
  %1228 = vmatprep.subr.mxu0 %v447
  %1229 = vmatpush1.msra.mxu0 %v446
  %1230 = vmatprep.subr.mxu0 %v449
  %1231 = vmatpush1.msra.mxu0 %v448
  %1232 = vmatprep.subr.mxu0 %v451
  %1233 = vmatpush1.msra.mxu0 %v450
  %1234 = vmatprep.subr.mxu0 %v453
  %1235 = vmatpush1.msra.mxu0 %v452
  %1236 = vmatprep.subr.mxu0 %v455
  %1237 = vmatpush1.msra.mxu0 %v454
  %1238 = vmatprep.subr.mxu0 %v457
  %1239 = vmatpush1.msra.mxu0 %v456
  %1240 = vmatprep.subr.mxu0 %v459
  %1241 = vmatpush1.msra.mxu0 %v458
  %1242 = vmatprep.subr.mxu0 %v461
  %1243 = vmatpush1.msra.mxu0 %v460
  %1244 = vmatprep.subr.mxu0 %v463
  %1245 = vmatpush1.msra.mxu0 %v462
  %1246 = vmatprep.subr.mxu0 %v465
  %1247 = vmatpush1.msra.mxu0 %v464
  %1248 = vmatprep.subr.mxu0 %v467
  %1249 = vmatpush1.msra.mxu0 %v466
  %1250 = vmatprep.subr.mxu0 %v469
  %1251 = vmatpush1.msra.mxu0 %v468
  %1252 = vmatprep.subr.mxu0 %v471
  %1253 = vmatpush1.msra.mxu0 %v470
  %1254 = vmatprep.subr.mxu0 %v473
  %1255 = vmatpush1.msra.mxu0 %v472
  %1256 = vmatprep.subr.mxu0 %v475
  %1257 = vmatpush1.msra.mxu0 %v474
  %1258 = vmatprep.subr.mxu0 %v477
  %1259 = vmatpush1.msra.mxu0 %v476
  %1260 = vmatprep.subr.mxu0 %v479
  %1261 = vmatpush1.msra.mxu0 %v478
  %1262 = vmatprep.subr.mxu0 %v481
  %1263 = vmatpush1.msra.mxu0 %v480
  %1264 = vmatprep.subr.mxu0 %v483
  %1265 = vmatpush1.msra.mxu0 %v482
  %1266 = vmatprep.subr.mxu0 %v485
  %1267 = vmatpush1.msra.mxu0 %v484
  %1268 = vmatprep.subr.mxu0 %v487
  %1269 = vmatpush1.msra.mxu0 %v486
  %1270 = vmatprep.subr.mxu0 %v489
  %1271 = vmatpush1.msra.mxu0 %v488
  %1272 = vmatprep.subr.mxu0 %v491
  %1273 = vmatpush1.msra.mxu0 %v490
  %1274 = vmatprep.subr.mxu0 %v493
  %1275 = vmatpush1.msra.mxu0 %v492
  %1276 = vmatprep.mubr.f32.mxu0 %v19
  %1277 = vmatmul.mubr.f32.gmra.mrb[0].mxu0 %v18
  %v1278 = vpop.f32.mrb[0].mxu0
  %v1279 = vadd.f32 %v1118, %v1278
  %v1280 = vpop.f32.mrb[0].mxu0
  %v1281 = vadd.f32 %v1120, %v1280
  %1282 = vmatprep.mubr.f32.mxu0 %v37
  %1283 = vmatmul.mubr.f32.gmra.mrb[0].mxu0 %v36
  %v1284 = vpop.f32.mrb[0].mxu0
  %v1285 = vadd.f32 %v1124, %v1284
  %v1286 = vpop.f32.mrb[0].mxu0
  %v1287 = vadd.f32 %v1126, %v1286
  %1288 = vmatprep.mubr.f32.mxu0 %v55
  %1289 = vmatmul.mubr.f32.gmra.mrb[0].mxu0 %v54
  %v1290 = vpop.f32.mrb[0].mxu0
  %v1291 = vadd.f32 %v1130, %v1290
  %v1292 = vpop.f32.mrb[0].mxu0
  %v1293 = vadd.f32 %v1132, %v1292
  %1294 = vmatprep.mubr.f32.mxu0 %v73
  %1295 = vmatmul.mubr.f32.gmra.mrb[0].mxu0 %v72
  %v1296 = vpop.f32.mrb[0].mxu0
  %v1297 = vadd.f32 %v1136, %v1296
  %v1298 = vpop.f32.mrb[0].mxu0
  %v1299 = vadd.f32 %v1138, %v1298
  %1300 = vmatprep.mubr.f32.mxu0 %v91
  %1301 = vmatmul.mubr.f32.gmra.mrb[0].mxu0 %v90
  %v1302 = vpop.f32.mrb[0].mxu0
  %v1303 = vadd.f32 %v1142, %v1302
  %v1304 = vpop.f32.mrb[0].mxu0
  %v1305 = vadd.f32 %v1144, %v1304
  %1306 = vmatprep.mubr.f32.mxu0 %v109
  %1307 = vmatmul.mubr.f32.gmra.mrb[0].mxu0 %v108
  %v1308 = vpop.f32.mrb[0].mxu0
  %v1309 = vadd.f32 %v1148, %v1308
  %v1310 = vpop.f32.mrb[0].mxu0
  %v1311 = vadd.f32 %v1150, %v1310
  %1312 = vmatprep.mubr.f32.mxu0 %v127
  %1313 = vmatmul.mubr.f32.gmra.mrb[0].mxu0 %v126
  %v1314 = vpop.f32.mrb[0].mxu0
  %v1315 = vadd.f32 %v1154, %v1314
  %v1316 = vpop.f32.mrb[0].mxu0
  %v1317 = vadd.f32 %v1156, %v1316
  %1318 = vmatprep.mubr.f32.mxu0 %v145
  %1319 = vmatmul.mubr.f32.gmra.mrb[0].mxu0 %v144
  %v1320 = vpop.f32.mrb[0].mxu0
  %v1321 = vadd.f32 %v1160, %v1320
  %v1322 = vpop.f32.mrb[0].mxu0
  %v1323 = vadd.f32 %v1162, %v1322
  %1324 = vmatprep.mubr.f32.mxu0 %v163
  %1325 = vmatmul.mubr.f32.gmra.mrb[0].mxu0 %v162
  %v1326 = vpop.f32.mrb[0].mxu0
  %v1327 = vadd.f32 %v1166, %v1326
  %v1328 = vpop.f32.mrb[0].mxu0
  %v1329 = vadd.f32 %v1168, %v1328
  %1330 = vmatprep.mubr.f32.mxu0 %v181
  %1331 = vmatmul.mubr.f32.gmra.mrb[0].mxu0 %v180
  %v1332 = vpop.f32.mrb[0].mxu0
  %v1333 = vadd.f32 %v1172, %v1332
  %v1334 = vpop.f32.mrb[0].mxu0
  %v1335 = vadd.f32 %v1174, %v1334
  %1336 = vmatprep.mubr.f32.mxu0 %v199
  %1337 = vmatmul.mubr.f32.gmra.mrb[0].mxu0 %v198
  %v1338 = vpop.f32.mrb[0].mxu0
  %v1339 = vadd.f32 %v1178, %v1338
  %v1340 = vpop.f32.mrb[0].mxu0
  %v1341 = vadd.f32 %v1180, %v1340
  %1342 = vmatprep.mubr.f32.mxu0 %v217
  %1343 = vmatmul.mubr.f32.gmra.mrb[0].mxu0 %v216
  %v1344 = vpop.f32.mrb[0].mxu0
  %v1345 = vadd.f32 %v1184, %v1344
  %v1346 = vpop.f32.mrb[0].mxu0
  %v1347 = vadd.f32 %v1186, %v1346
  %1348 = vmatprep.mubr.f32.mxu0 %v235
  %1349 = vmatmul.mubr.f32.gmra.mrb[0].mxu0 %v234
  %v1350 = vpop.f32.mrb[0].mxu0
  %v1351 = vadd.f32 %v1190, %v1350
  %v1352 = vpop.f32.mrb[0].mxu0
  %v1353 = vadd.f32 %v1192, %v1352
  %1354 = vmatprep.mubr.f32.mxu0 %v253
  %1355 = vmatmul.mubr.f32.gmra.mrb[0].mxu0 %v252
  %v1356 = vpop.f32.mrb[0].mxu0
  %v1357 = vadd.f32 %v1196, %v1356
  %v1358 = vpop.f32.mrb[0].mxu0
  %v1359 = vadd.f32 %v1198, %v1358
  %1360 = vmatprep.mubr.f32.mxu0 %v271
  %1361 = vmatmul.mubr.f32.gmra.mrb[0].mxu0 %v270
  %v1362 = vpop.f32.mrb[0].mxu0
  %v1363 = vadd.f32 %v1202, %v1362
  %v1364 = vpop.f32.mrb[0].mxu0
  %v1365 = vadd.f32 %v1204, %v1364
  %1366 = vmatprep.mubr.f32.mxu0 %v289
  %1367 = vmatmul.mubr.f32.gmra.mrb[0].mxu0 %v288
  %v1368 = vpop.f32.mrb[0].mxu0
  %v1369 = vadd.f32 %v1208, %v1368
  %v1370 = vpop.f32.mrb[0].mxu0
  %v1371 = vadd.f32 %v1210, %v1370
  %1372 = vdwg.mxu0
  %1373 = vmatprep.subr.mxu0 %v495
  %1374 = vmatpush1.msra.mxu0 %v494
  %1375 = vmatprep.subr.mxu0 %v497
  %1376 = vmatpush1.msra.mxu0 %v496
  %1377 = vmatprep.subr.mxu0 %v499
  %1378 = vmatpush1.msra.mxu0 %v498
  %1379 = vmatprep.subr.mxu0 %v501
  %1380 = vmatpush1.msra.mxu0 %v500
  %1381 = vmatprep.subr.mxu0 %v503
  %1382 = vmatpush1.msra.mxu0 %v502
  %1383 = vmatprep.subr.mxu0 %v505
  %1384 = vmatpush1.msra.mxu0 %v504
  %1385 = vmatprep.subr.mxu0 %v507
  %1386 = vmatpush1.msra.mxu0 %v506
  %1387 = vmatprep.subr.mxu0 %v509
  %1388 = vmatpush1.msra.mxu0 %v508
  %1389 = vmatprep.subr.mxu0 %v511
  %1390 = vmatpush1.msra.mxu0 %v510
  %1391 = vmatprep.subr.mxu0 %v513
  %1392 = vmatpush1.msra.mxu0 %v512
  %1393 = vmatprep.subr.mxu0 %v515
  %1394 = vmatpush1.msra.mxu0 %v514
  %1395 = vmatprep.subr.mxu0 %v517
  %1396 = vmatpush1.msra.mxu0 %v516
  %1397 = vmatprep.subr.mxu0 %v519
  %1398 = vmatpush1.msra.mxu0 %v518
  %1399 = vmatprep.subr.mxu0 %v521
  %1400 = vmatpush1.msra.mxu0 %v520
  %1401 = vmatprep.subr.mxu0 %v523
  %1402 = vmatpush1.msra.mxu0 %v522
  %1403 = vmatprep.subr.mxu0 %v525
  %1404 = vmatpush1.msra.mxu0 %v524
  %1405 = vmatprep.subr.mxu0 %v527
  %1406 = vmatpush1.msra.mxu0 %v526
  %1407 = vmatprep.subr.mxu0 %v529
  %1408 = vmatpush1.msra.mxu0 %v528
  %1409 = vmatprep.subr.mxu0 %v531
  %1410 = vmatpush1.msra.mxu0 %v530
  %1411 = vmatprep.subr.mxu0 %v533
  %1412 = vmatpush1.msra.mxu0 %v532
  %1413 = vmatprep.subr.mxu0 %v535
  %1414 = vmatpush1.msra.mxu0 %v534
  %1415 = vmatprep.subr.mxu0 %v537
  %1416 = vmatpush1.msra.mxu0 %v536
  %1417 = vmatprep.subr.mxu0 %v539
  %1418 = vmatpush1.msra.mxu0 %v538
  %1419 = vmatprep.subr.mxu0 %v541
  %1420 = vmatpush1.msra.mxu0 %v540
  %1421 = vmatprep.subr.mxu0 %v543
  %1422 = vmatpush1.msra.mxu0 %v542
  %1423 = vmatprep.subr.mxu0 %v545
  %1424 = vmatpush1.msra.mxu0 %v544
  %1425 = vmatprep.subr.mxu0 %v547
  %1426 = vmatpush1.msra.mxu0 %v546
  %1427 = vmatprep.subr.mxu0 %v549
  %1428 = vmatpush1.msra.mxu0 %v548
  %1429 = vmatprep.subr.mxu0 %v551
  %1430 = vmatpush1.msra.mxu0 %v550
  %1431 = vmatprep.subr.mxu0 %v553
  %1432 = vmatpush1.msra.mxu0 %v552
  %1433 = vmatprep.subr.mxu0 %v555
  %1434 = vmatpush1.msra.mxu0 %v554
  %1435 = vmatprep.subr.mxu0 %v557
  %1436 = vmatpush1.msra.mxu0 %v556
  %1437 = vmatprep.mubr.f32.mxu0 %v21
  %1438 = vmatmul.mubr.f32.gmra.mrb[0].mxu0 %v20
  %v1439 = vpop.f32.mrb[0].mxu0
  %v1440 = vadd.f32 %v1279, %v1439
  %v1441 = vpop.f32.mrb[0].mxu0
  %v1442 = vadd.f32 %v1281, %v1441
  %1443 = vmatprep.mubr.f32.mxu0 %v39
  %1444 = vmatmul.mubr.f32.gmra.mrb[0].mxu0 %v38
  %v1445 = vpop.f32.mrb[0].mxu0
  %v1446 = vadd.f32 %v1285, %v1445
  %v1447 = vpop.f32.mrb[0].mxu0
  %v1448 = vadd.f32 %v1287, %v1447
  %1449 = vmatprep.mubr.f32.mxu0 %v57
  %1450 = vmatmul.mubr.f32.gmra.mrb[0].mxu0 %v56
  %v1451 = vpop.f32.mrb[0].mxu0
  %v1452 = vadd.f32 %v1291, %v1451
  %v1453 = vpop.f32.mrb[0].mxu0
  %v1454 = vadd.f32 %v1293, %v1453
  %1455 = vmatprep.mubr.f32.mxu0 %v75
  %1456 = vmatmul.mubr.f32.gmra.mrb[0].mxu0 %v74
  %v1457 = vpop.f32.mrb[0].mxu0
  %v1458 = vadd.f32 %v1297, %v1457
  %v1459 = vpop.f32.mrb[0].mxu0
  %v1460 = vadd.f32 %v1299, %v1459
  %1461 = vmatprep.mubr.f32.mxu0 %v93
  %1462 = vmatmul.mubr.f32.gmra.mrb[0].mxu0 %v92
  %v1463 = vpop.f32.mrb[0].mxu0
  %v1464 = vadd.f32 %v1303, %v1463
  %v1465 = vpop.f32.mrb[0].mxu0
  %v1466 = vadd.f32 %v1305, %v1465
  %1467 = vmatprep.mubr.f32.mxu0 %v111
  %1468 = vmatmul.mubr.f32.gmra.mrb[0].mxu0 %v110
  %v1469 = vpop.f32.mrb[0].mxu0
  %v1470 = vadd.f32 %v1309, %v1469
  %v1471 = vpop.f32.mrb[0].mxu0
  %v1472 = vadd.f32 %v1311, %v1471
  %1473 = vmatprep.mubr.f32.mxu0 %v129
  %1474 = vmatmul.mubr.f32.gmra.mrb[0].mxu0 %v128
  %v1475 = vpop.f32.mrb[0].mxu0
  %v1476 = vadd.f32 %v1315, %v1475
  %v1477 = vpop.f32.mrb[0].mxu0
  %v1478 = vadd.f32 %v1317, %v1477
  %1479 = vmatprep.mubr.f32.mxu0 %v147
  %1480 = vmatmul.mubr.f32.gmra.mrb[0].mxu0 %v146
  %v1481 = vpop.f32.mrb[0].mxu0
  %v1482 = vadd.f32 %v1321, %v1481
  %v1483 = vpop.f32.mrb[0].mxu0
  %v1484 = vadd.f32 %v1323, %v1483
  %1485 = vmatprep.mubr.f32.mxu0 %v165
  %1486 = vmatmul.mubr.f32.gmra.mrb[0].mxu0 %v164
  %v1487 = vpop.f32.mrb[0].mxu0
  %v1488 = vadd.f32 %v1327, %v1487
  %v1489 = vpop.f32.mrb[0].mxu0
  %v1490 = vadd.f32 %v1329, %v1489
  %1491 = vmatprep.mubr.f32.mxu0 %v183
  %1492 = vmatmul.mubr.f32.gmra.mrb[0].mxu0 %v182
  %v1493 = vpop.f32.mrb[0].mxu0
  %v1494 = vadd.f32 %v1333, %v1493
  %v1495 = vpop.f32.mrb[0].mxu0
  %v1496 = vadd.f32 %v1335, %v1495
  %1497 = vmatprep.mubr.f32.mxu0 %v201
  %1498 = vmatmul.mubr.f32.gmra.mrb[0].mxu0 %v200
  %v1499 = vpop.f32.mrb[0].mxu0
  %v1500 = vadd.f32 %v1339, %v1499
  %v1501 = vpop.f32.mrb[0].mxu0
  %v1502 = vadd.f32 %v1341, %v1501
  %1503 = vmatprep.mubr.f32.mxu0 %v219
  %1504 = vmatmul.mubr.f32.gmra.mrb[0].mxu0 %v218
  %v1505 = vpop.f32.mrb[0].mxu0
  %v1506 = vadd.f32 %v1345, %v1505
  %v1507 = vpop.f32.mrb[0].mxu0
  %v1508 = vadd.f32 %v1347, %v1507
  %1509 = vmatprep.mubr.f32.mxu0 %v237
  %1510 = vmatmul.mubr.f32.gmra.mrb[0].mxu0 %v236
  %v1511 = vpop.f32.mrb[0].mxu0
  %v1512 = vadd.f32 %v1351, %v1511
  %v1513 = vpop.f32.mrb[0].mxu0
  %v1514 = vadd.f32 %v1353, %v1513
  %1515 = vmatprep.mubr.f32.mxu0 %v255
  %1516 = vmatmul.mubr.f32.gmra.mrb[0].mxu0 %v254
  %v1517 = vpop.f32.mrb[0].mxu0
  %v1518 = vadd.f32 %v1357, %v1517
  %v1519 = vpop.f32.mrb[0].mxu0
  %v1520 = vadd.f32 %v1359, %v1519
  %1521 = vmatprep.mubr.f32.mxu0 %v273
  %1522 = vmatmul.mubr.f32.gmra.mrb[0].mxu0 %v272
  %v1523 = vpop.f32.mrb[0].mxu0
  %v1524 = vadd.f32 %v1363, %v1523
  %v1525 = vpop.f32.mrb[0].mxu0
  %v1526 = vadd.f32 %v1365, %v1525
  %1527 = vmatprep.mubr.f32.mxu0 %v291
  %1528 = vmatmul.mubr.f32.gmra.mrb[0].mxu0 %v290
  %v1529 = vpop.f32.mrb[0].mxu0
  %v1530 = vadd.f32 %v1369, %v1529
  %v1531 = vpop.f32.mrb[0].mxu0
  %v1532 = vadd.f32 %v1371, %v1531
  %1533 = vdwg.mxu0
  %1534 = vmatprep.subr.mxu0 %v559
  %1535 = vmatpush1.msra.mxu0 %v558
  %1536 = vmatprep.subr.mxu0 %v561
  %1537 = vmatpush1.msra.mxu0 %v560
  %1538 = vmatprep.subr.mxu0 %v563
  %1539 = vmatpush1.msra.mxu0 %v562
  %1540 = vmatprep.subr.mxu0 %v565
  %1541 = vmatpush1.msra.mxu0 %v564
  %1542 = vmatprep.subr.mxu0 %v567
  %1543 = vmatpush1.msra.mxu0 %v566
  %1544 = vmatprep.subr.mxu0 %v569
  %1545 = vmatpush1.msra.mxu0 %v568
  %1546 = vmatprep.subr.mxu0 %v571
  %1547 = vmatpush1.msra.mxu0 %v570
  %1548 = vmatprep.subr.mxu0 %v573
  %1549 = vmatpush1.msra.mxu0 %v572
  %1550 = vmatprep.subr.mxu0 %v575
  %1551 = vmatpush1.msra.mxu0 %v574
  %1552 = vmatprep.subr.mxu0 %v577
  %1553 = vmatpush1.msra.mxu0 %v576
  %1554 = vmatprep.subr.mxu0 %v579
  %1555 = vmatpush1.msra.mxu0 %v578
  %1556 = vmatprep.subr.mxu0 %v581
  %1557 = vmatpush1.msra.mxu0 %v580
  %1558 = vmatprep.subr.mxu0 %v583
  %1559 = vmatpush1.msra.mxu0 %v582
  %1560 = vmatprep.subr.mxu0 %v585
  %1561 = vmatpush1.msra.mxu0 %v584
  %1562 = vmatprep.subr.mxu0 %v587
  %1563 = vmatpush1.msra.mxu0 %v586
  %1564 = vmatprep.subr.mxu0 %v589
  %1565 = vmatpush1.msra.mxu0 %v588
  %1566 = vmatprep.subr.mxu0 %v591
  %1567 = vmatpush1.msra.mxu0 %v590
  %1568 = vmatprep.subr.mxu0 %v593
  %1569 = vmatpush1.msra.mxu0 %v592
  %1570 = vmatprep.subr.mxu0 %v595
  %1571 = vmatpush1.msra.mxu0 %v594
  %1572 = vmatprep.subr.mxu0 %v597
  %1573 = vmatpush1.msra.mxu0 %v596
  %1574 = vmatprep.subr.mxu0 %v599
  %1575 = vmatpush1.msra.mxu0 %v598
  %1576 = vmatprep.subr.mxu0 %v601
  %1577 = vmatpush1.msra.mxu0 %v600
  %1578 = vmatprep.subr.mxu0 %v603
  %1579 = vmatpush1.msra.mxu0 %v602
  %1580 = vmatprep.subr.mxu0 %v605
  %1581 = vmatpush1.msra.mxu0 %v604
  %1582 = vmatprep.subr.mxu0 %v607
  %1583 = vmatpush1.msra.mxu0 %v606
  %1584 = vmatprep.subr.mxu0 %v609
  %1585 = vmatpush1.msra.mxu0 %v608
  %1586 = vmatprep.subr.mxu0 %v611
  %1587 = vmatpush1.msra.mxu0 %v610
  %1588 = vmatprep.subr.mxu0 %v613
  %1589 = vmatpush1.msra.mxu0 %v612
  %1590 = vmatprep.subr.mxu0 %v615
  %1591 = vmatpush1.msra.mxu0 %v614
  %1592 = vmatprep.subr.mxu0 %v617
  %1593 = vmatpush1.msra.mxu0 %v616
  %1594 = vmatprep.subr.mxu0 %v619
  %1595 = vmatpush1.msra.mxu0 %v618
  %1596 = vmatprep.subr.mxu0 %v621
  %1597 = vmatpush1.msra.mxu0 %v620
  %1598 = vmatprep.mubr.f32.mxu0 %v23
  %1599 = vmatmul.mubr.f32.gmra.mrb[0].mxu0 %v22
  %v1600 = vpop.f32.mrb[0].mxu0
  %v1601 = vadd.f32 %v1440, %v1600
  %v1602 = vpop.f32.mrb[0].mxu0
  %v1603 = vadd.f32 %v1442, %v1602
  %1604 = vmatprep.mubr.f32.mxu0 %v41
  %1605 = vmatmul.mubr.f32.gmra.mrb[0].mxu0 %v40
  %v1606 = vpop.f32.mrb[0].mxu0
  %v1607 = vadd.f32 %v1446, %v1606
  %v1608 = vpop.f32.mrb[0].mxu0
  %v1609 = vadd.f32 %v1448, %v1608
  %1610 = vmatprep.mubr.f32.mxu0 %v59
  %1611 = vmatmul.mubr.f32.gmra.mrb[0].mxu0 %v58
  %v1612 = vpop.f32.mrb[0].mxu0
  %v1613 = vadd.f32 %v1452, %v1612
  %v1614 = vpop.f32.mrb[0].mxu0
  %v1615 = vadd.f32 %v1454, %v1614
  %1616 = vmatprep.mubr.f32.mxu0 %v77
  %1617 = vmatmul.mubr.f32.gmra.mrb[0].mxu0 %v76
  %v1618 = vpop.f32.mrb[0].mxu0
  %v1619 = vadd.f32 %v1458, %v1618
  %v1620 = vpop.f32.mrb[0].mxu0
  %v1621 = vadd.f32 %v1460, %v1620
  %1622 = vmatprep.mubr.f32.mxu0 %v95
  %1623 = vmatmul.mubr.f32.gmra.mrb[0].mxu0 %v94
  %v1624 = vpop.f32.mrb[0].mxu0
  %v1625 = vadd.f32 %v1464, %v1624
  %v1626 = vpop.f32.mrb[0].mxu0
  %v1627 = vadd.f32 %v1466, %v1626
  %1628 = vmatprep.mubr.f32.mxu0 %v113
  %1629 = vmatmul.mubr.f32.gmra.mrb[0].mxu0 %v112
  %v1630 = vpop.f32.mrb[0].mxu0
  %v1631 = vadd.f32 %v1470, %v1630
  %v1632 = vpop.f32.mrb[0].mxu0
  %v1633 = vadd.f32 %v1472, %v1632
  %1634 = vmatprep.mubr.f32.mxu0 %v131
  %1635 = vmatmul.mubr.f32.gmra.mrb[0].mxu0 %v130
  %v1636 = vpop.f32.mrb[0].mxu0
  %v1637 = vadd.f32 %v1476, %v1636
  %v1638 = vpop.f32.mrb[0].mxu0
  %v1639 = vadd.f32 %v1478, %v1638
  %1640 = vmatprep.mubr.f32.mxu0 %v149
  %1641 = vmatmul.mubr.f32.gmra.mrb[0].mxu0 %v148
  %v1642 = vpop.f32.mrb[0].mxu0
  %v1643 = vadd.f32 %v1482, %v1642
  %v1644 = vpop.f32.mrb[0].mxu0
  %v1645 = vadd.f32 %v1484, %v1644
  %1646 = vmatprep.mubr.f32.mxu0 %v167
  %1647 = vmatmul.mubr.f32.gmra.mrb[0].mxu0 %v166
  %v1648 = vpop.f32.mrb[0].mxu0
  %v1649 = vadd.f32 %v1488, %v1648
  %v1650 = vpop.f32.mrb[0].mxu0
  %v1651 = vadd.f32 %v1490, %v1650
  %1652 = vmatprep.mubr.f32.mxu0 %v185
  %1653 = vmatmul.mubr.f32.gmra.mrb[0].mxu0 %v184
  %v1654 = vpop.f32.mrb[0].mxu0
  %v1655 = vadd.f32 %v1494, %v1654
  %v1656 = vpop.f32.mrb[0].mxu0
  %v1657 = vadd.f32 %v1496, %v1656
  %1658 = vmatprep.mubr.f32.mxu0 %v203
  %1659 = vmatmul.mubr.f32.gmra.mrb[0].mxu0 %v202
  %v1660 = vpop.f32.mrb[0].mxu0
  %v1661 = vadd.f32 %v1500, %v1660
  %v1662 = vpop.f32.mrb[0].mxu0
  %v1663 = vadd.f32 %v1502, %v1662
  %1664 = vmatprep.mubr.f32.mxu0 %v221
  %1665 = vmatmul.mubr.f32.gmra.mrb[0].mxu0 %v220
  %v1666 = vpop.f32.mrb[0].mxu0
  %v1667 = vadd.f32 %v1506, %v1666
  %v1668 = vpop.f32.mrb[0].mxu0
  %v1669 = vadd.f32 %v1508, %v1668
  %1670 = vmatprep.mubr.f32.mxu0 %v239
  %1671 = vmatmul.mubr.f32.gmra.mrb[0].mxu0 %v238
  %v1672 = vpop.f32.mrb[0].mxu0
  %v1673 = vadd.f32 %v1512, %v1672
  %v1674 = vpop.f32.mrb[0].mxu0
  %v1675 = vadd.f32 %v1514, %v1674
  %1676 = vmatprep.mubr.f32.mxu0 %v257
  %1677 = vmatmul.mubr.f32.gmra.mrb[0].mxu0 %v256
  %v1678 = vpop.f32.mrb[0].mxu0
  %v1679 = vadd.f32 %v1518, %v1678
  %v1680 = vpop.f32.mrb[0].mxu0
  %v1681 = vadd.f32 %v1520, %v1680
  %1682 = vmatprep.mubr.f32.mxu0 %v275
  %1683 = vmatmul.mubr.f32.gmra.mrb[0].mxu0 %v274
  %v1684 = vpop.f32.mrb[0].mxu0
  %v1685 = vadd.f32 %v1524, %v1684
  %v1686 = vpop.f32.mrb[0].mxu0
  %v1687 = vadd.f32 %v1526, %v1686
  %1688 = vmatprep.mubr.f32.mxu0 %v293
  %1689 = vmatmul.mubr.f32.gmra.mrb[0].mxu0 %v292
  %v1690 = vpop.f32.mrb[0].mxu0
  %v1691 = vadd.f32 %v1530, %v1690
  %v1692 = vpop.f32.mrb[0].mxu0
  %v1693 = vadd.f32 %v1532, %v1692
  %1694 = vdwg.mxu0
  %1695 = vmatprep.subr.mxu0 %v623
  %1696 = vmatpush1.msra.mxu0 %v622
  %1697 = vmatprep.subr.mxu0 %v625
  %1698 = vmatpush1.msra.mxu0 %v624
  %1699 = vmatprep.subr.mxu0 %v627
  %1700 = vmatpush1.msra.mxu0 %v626
  %1701 = vmatprep.subr.mxu0 %v629
  %1702 = vmatpush1.msra.mxu0 %v628
  %1703 = vmatprep.subr.mxu0 %v631
  %1704 = vmatpush1.msra.mxu0 %v630
  %1705 = vmatprep.subr.mxu0 %v633
  %1706 = vmatpush1.msra.mxu0 %v632
  %1707 = vmatprep.subr.mxu0 %v635
  %1708 = vmatpush1.msra.mxu0 %v634
  %1709 = vmatprep.subr.mxu0 %v637
  %1710 = vmatpush1.msra.mxu0 %v636
  %1711 = vmatprep.subr.mxu0 %v639
  %1712 = vmatpush1.msra.mxu0 %v638
  %1713 = vmatprep.subr.mxu0 %v641
  %1714 = vmatpush1.msra.mxu0 %v640
  %1715 = vmatprep.subr.mxu0 %v643
  %1716 = vmatpush1.msra.mxu0 %v642
  %1717 = vmatprep.subr.mxu0 %v645
  %1718 = vmatpush1.msra.mxu0 %v644
  %1719 = vmatprep.subr.mxu0 %v647
  %1720 = vmatpush1.msra.mxu0 %v646
  %1721 = vmatprep.subr.mxu0 %v649
  %1722 = vmatpush1.msra.mxu0 %v648
  %1723 = vmatprep.subr.mxu0 %v651
  %1724 = vmatpush1.msra.mxu0 %v650
  %1725 = vmatprep.subr.mxu0 %v653
  %1726 = vmatpush1.msra.mxu0 %v652
  %1727 = vmatprep.subr.mxu0 %v655
  %1728 = vmatpush1.msra.mxu0 %v654
  %1729 = vmatprep.subr.mxu0 %v657
  %1730 = vmatpush1.msra.mxu0 %v656
  %1731 = vmatprep.subr.mxu0 %v659
  %1732 = vmatpush1.msra.mxu0 %v658
  %1733 = vmatprep.subr.mxu0 %v661
  %1734 = vmatpush1.msra.mxu0 %v660
  %1735 = vmatprep.subr.mxu0 %v663
  %1736 = vmatpush1.msra.mxu0 %v662
  %1737 = vmatprep.subr.mxu0 %v665
  %1738 = vmatpush1.msra.mxu0 %v664
  %1739 = vmatprep.subr.mxu0 %v667
  %1740 = vmatpush1.msra.mxu0 %v666
  %1741 = vmatprep.subr.mxu0 %v669
  %1742 = vmatpush1.msra.mxu0 %v668
  %1743 = vmatprep.subr.mxu0 %v671
  %1744 = vmatpush1.msra.mxu0 %v670
  %1745 = vmatprep.subr.mxu0 %v673
  %1746 = vmatpush1.msra.mxu0 %v672
  %1747 = vmatprep.subr.mxu0 %v675
  %1748 = vmatpush1.msra.mxu0 %v674
  %1749 = vmatprep.subr.mxu0 %v677
  %1750 = vmatpush1.msra.mxu0 %v676
  %1751 = vmatprep.subr.mxu0 %v679
  %1752 = vmatpush1.msra.mxu0 %v678
  %1753 = vmatprep.subr.mxu0 %v681
  %1754 = vmatpush1.msra.mxu0 %v680
  %1755 = vmatprep.subr.mxu0 %v683
  %1756 = vmatpush1.msra.mxu0 %v682
  %1757 = vmatprep.subr.mxu0 %v685
  %1758 = vmatpush1.msra.mxu0 %v684
  %1759 = vmatprep.mubr.f32.mxu0 %v25
  %1760 = vmatmul.mubr.f32.gmra.mrb[0].mxu0 %v24
  %v1761 = vpop.f32.mrb[0].mxu0
  %v1762 = vadd.f32 %v1601, %v1761
  %v1763 = vpop.f32.mrb[0].mxu0
  %v1764 = vadd.f32 %v1603, %v1763
  %1765 = vmatprep.mubr.f32.mxu0 %v43
  %1766 = vmatmul.mubr.f32.gmra.mrb[0].mxu0 %v42
  %v1767 = vpop.f32.mrb[0].mxu0
  %v1768 = vadd.f32 %v1607, %v1767
  %v1769 = vpop.f32.mrb[0].mxu0
  %v1770 = vadd.f32 %v1609, %v1769
  %1771 = vmatprep.mubr.f32.mxu0 %v61
  %1772 = vmatmul.mubr.f32.gmra.mrb[0].mxu0 %v60
  %v1773 = vpop.f32.mrb[0].mxu0
  %v1774 = vadd.f32 %v1613, %v1773
  %v1775 = vpop.f32.mrb[0].mxu0
  %v1776 = vadd.f32 %v1615, %v1775
  %1777 = vmatprep.mubr.f32.mxu0 %v79
  %1778 = vmatmul.mubr.f32.gmra.mrb[0].mxu0 %v78
  %v1779 = vpop.f32.mrb[0].mxu0
  %v1780 = vadd.f32 %v1619, %v1779
  %v1781 = vpop.f32.mrb[0].mxu0
  %v1782 = vadd.f32 %v1621, %v1781
  %1783 = vmatprep.mubr.f32.mxu0 %v97
  %1784 = vmatmul.mubr.f32.gmra.mrb[0].mxu0 %v96
  %v1785 = vpop.f32.mrb[0].mxu0
  %v1786 = vadd.f32 %v1625, %v1785
  %v1787 = vpop.f32.mrb[0].mxu0
  %v1788 = vadd.f32 %v1627, %v1787
  %1789 = vmatprep.mubr.f32.mxu0 %v115
  %1790 = vmatmul.mubr.f32.gmra.mrb[0].mxu0 %v114
  %v1791 = vpop.f32.mrb[0].mxu0
  %v1792 = vadd.f32 %v1631, %v1791
  %v1793 = vpop.f32.mrb[0].mxu0
  %v1794 = vadd.f32 %v1633, %v1793
  %1795 = vmatprep.mubr.f32.mxu0 %v133
  %1796 = vmatmul.mubr.f32.gmra.mrb[0].mxu0 %v132
  %v1797 = vpop.f32.mrb[0].mxu0
  %v1798 = vadd.f32 %v1637, %v1797
  %v1799 = vpop.f32.mrb[0].mxu0
  %v1800 = vadd.f32 %v1639, %v1799
  %1801 = vmatprep.mubr.f32.mxu0 %v151
  %1802 = vmatmul.mubr.f32.gmra.mrb[0].mxu0 %v150
  %v1803 = vpop.f32.mrb[0].mxu0
  %v1804 = vadd.f32 %v1643, %v1803
  %v1805 = vpop.f32.mrb[0].mxu0
  %v1806 = vadd.f32 %v1645, %v1805
  %1807 = vmatprep.mubr.f32.mxu0 %v169
  %1808 = vmatmul.mubr.f32.gmra.mrb[0].mxu0 %v168
  %v1809 = vpop.f32.mrb[0].mxu0
  %v1810 = vadd.f32 %v1649, %v1809
  %v1811 = vpop.f32.mrb[0].mxu0
  %v1812 = vadd.f32 %v1651, %v1811
  %1813 = vmatprep.mubr.f32.mxu0 %v187
  %1814 = vmatmul.mubr.f32.gmra.mrb[0].mxu0 %v186
  %v1815 = vpop.f32.mrb[0].mxu0
  %v1816 = vadd.f32 %v1655, %v1815
  %v1817 = vpop.f32.mrb[0].mxu0
  %v1818 = vadd.f32 %v1657, %v1817
  %1819 = vmatprep.mubr.f32.mxu0 %v205
  %1820 = vmatmul.mubr.f32.gmra.mrb[0].mxu0 %v204
  %v1821 = vpop.f32.mrb[0].mxu0
  %v1822 = vadd.f32 %v1661, %v1821
  %v1823 = vpop.f32.mrb[0].mxu0
  %v1824 = vadd.f32 %v1663, %v1823
  %1825 = vmatprep.mubr.f32.mxu0 %v223
  %1826 = vmatmul.mubr.f32.gmra.mrb[0].mxu0 %v222
  %v1827 = vpop.f32.mrb[0].mxu0
  %v1828 = vadd.f32 %v1667, %v1827
  %v1829 = vpop.f32.mrb[0].mxu0
  %v1830 = vadd.f32 %v1669, %v1829
  %1831 = vmatprep.mubr.f32.mxu0 %v241
  %1832 = vmatmul.mubr.f32.gmra.mrb[0].mxu0 %v240
  %v1833 = vpop.f32.mrb[0].mxu0
  %v1834 = vadd.f32 %v1673, %v1833
  %v1835 = vpop.f32.mrb[0].mxu0
  %v1836 = vadd.f32 %v1675, %v1835
  %1837 = vmatprep.mubr.f32.mxu0 %v259
  %1838 = vmatmul.mubr.f32.gmra.mrb[0].mxu0 %v258
  %v1839 = vpop.f32.mrb[0].mxu0
  %v1840 = vadd.f32 %v1679, %v1839
  %v1841 = vpop.f32.mrb[0].mxu0
  %v1842 = vadd.f32 %v1681, %v1841
  %1843 = vmatprep.mubr.f32.mxu0 %v277
  %1844 = vmatmul.mubr.f32.gmra.mrb[0].mxu0 %v276
  %v1845 = vpop.f32.mrb[0].mxu0
  %v1846 = vadd.f32 %v1685, %v1845
  %v1847 = vpop.f32.mrb[0].mxu0
  %v1848 = vadd.f32 %v1687, %v1847
  %1849 = vmatprep.mubr.f32.mxu0 %v295
  %1850 = vmatmul.mubr.f32.gmra.mrb[0].mxu0 %v294
  %v1851 = vpop.f32.mrb[0].mxu0
  %v1852 = vadd.f32 %v1691, %v1851
  %v1853 = vpop.f32.mrb[0].mxu0
  %v1854 = vadd.f32 %v1693, %v1853
  %1855 = vdwg.mxu0
  %1856 = vmatprep.subr.mxu0 %v687
  %1857 = vmatpush1.msra.mxu0 %v686
  %1858 = vmatprep.subr.mxu0 %v689
  %1859 = vmatpush1.msra.mxu0 %v688
  %1860 = vmatprep.subr.mxu0 %v691
  %1861 = vmatpush1.msra.mxu0 %v690
  %1862 = vmatprep.subr.mxu0 %v693
  %1863 = vmatpush1.msra.mxu0 %v692
  %1864 = vmatprep.subr.mxu0 %v695
  %1865 = vmatpush1.msra.mxu0 %v694
  %1866 = vmatprep.subr.mxu0 %v697
  %1867 = vmatpush1.msra.mxu0 %v696
  %1868 = vmatprep.subr.mxu0 %v699
  %1869 = vmatpush1.msra.mxu0 %v698
  %1870 = vmatprep.subr.mxu0 %v701
  %1871 = vmatpush1.msra.mxu0 %v700
  %1872 = vmatprep.subr.mxu0 %v703
  %1873 = vmatpush1.msra.mxu0 %v702
  %1874 = vmatprep.subr.mxu0 %v705
  %1875 = vmatpush1.msra.mxu0 %v704
  %1876 = vmatprep.subr.mxu0 %v707
  %1877 = vmatpush1.msra.mxu0 %v706
  %1878 = vmatprep.subr.mxu0 %v709
  %1879 = vmatpush1.msra.mxu0 %v708
  %1880 = vmatprep.subr.mxu0 %v711
  %1881 = vmatpush1.msra.mxu0 %v710
  %1882 = vmatprep.subr.mxu0 %v713
  %1883 = vmatpush1.msra.mxu0 %v712
  %1884 = vmatprep.subr.mxu0 %v715
  %1885 = vmatpush1.msra.mxu0 %v714
  %1886 = vmatprep.subr.mxu0 %v717
  %1887 = vmatpush1.msra.mxu0 %v716
  %1888 = vmatprep.subr.mxu0 %v719
  %1889 = vmatpush1.msra.mxu0 %v718
  %1890 = vmatprep.subr.mxu0 %v721
  %1891 = vmatpush1.msra.mxu0 %v720
  %1892 = vmatprep.subr.mxu0 %v723
  %1893 = vmatpush1.msra.mxu0 %v722
  %1894 = vmatprep.subr.mxu0 %v725
  %1895 = vmatpush1.msra.mxu0 %v724
  %1896 = vmatprep.subr.mxu0 %v727
  %1897 = vmatpush1.msra.mxu0 %v726
  %1898 = vmatprep.subr.mxu0 %v729
  %1899 = vmatpush1.msra.mxu0 %v728
  %1900 = vmatprep.subr.mxu0 %v731
  %1901 = vmatpush1.msra.mxu0 %v730
  %1902 = vmatprep.subr.mxu0 %v733
  %1903 = vmatpush1.msra.mxu0 %v732
  %1904 = vmatprep.subr.mxu0 %v735
  %1905 = vmatpush1.msra.mxu0 %v734
  %1906 = vmatprep.subr.mxu0 %v737
  %1907 = vmatpush1.msra.mxu0 %v736
  %1908 = vmatprep.subr.mxu0 %v739
  %1909 = vmatpush1.msra.mxu0 %v738
  %1910 = vmatprep.subr.mxu0 %v741
  %1911 = vmatpush1.msra.mxu0 %v740
  %1912 = vmatprep.subr.mxu0 %v743
  %1913 = vmatpush1.msra.mxu0 %v742
  %1914 = vmatprep.subr.mxu0 %v745
  %1915 = vmatpush1.msra.mxu0 %v744
  %1916 = vmatprep.subr.mxu0 %v747
  %1917 = vmatpush1.msra.mxu0 %v746
  %1918 = vmatprep.subr.mxu0 %v749
  %1919 = vmatpush1.msra.mxu0 %v748
  %1920 = vmatprep.mubr.f32.mxu0 %v27
  %1921 = vmatmul.mubr.f32.gmra.mrb[0].mxu0 %v26
  %v1922 = vpop.f32.mrb[0].mxu0
  %v1923 = vadd.f32 %v1762, %v1922
  %v1924 = vpop.f32.mrb[0].mxu0
  %v1925 = vadd.f32 %v1764, %v1924
  %1926 = vmatprep.mubr.f32.mxu0 %v45
  %1927 = vmatmul.mubr.f32.gmra.mrb[0].mxu0 %v44
  %v1928 = vpop.f32.mrb[0].mxu0
  %v1929 = vadd.f32 %v1768, %v1928
  %v1930 = vpop.f32.mrb[0].mxu0
  %v1931 = vadd.f32 %v1770, %v1930
  %1932 = vmatprep.mubr.f32.mxu0 %v63
  %1933 = vmatmul.mubr.f32.gmra.mrb[0].mxu0 %v62
  %v1934 = vpop.f32.mrb[0].mxu0
  %v1935 = vadd.f32 %v1774, %v1934
  %v1936 = vpop.f32.mrb[0].mxu0
  %v1937 = vadd.f32 %v1776, %v1936
  %1938 = vmatprep.mubr.f32.mxu0 %v81
  %1939 = vmatmul.mubr.f32.gmra.mrb[0].mxu0 %v80
  %v1940 = vpop.f32.mrb[0].mxu0
  %v1941 = vadd.f32 %v1780, %v1940
  %v1942 = vpop.f32.mrb[0].mxu0
  %v1943 = vadd.f32 %v1782, %v1942
  %1944 = vmatprep.mubr.f32.mxu0 %v99
  %1945 = vmatmul.mubr.f32.gmra.mrb[0].mxu0 %v98
  %v1946 = vpop.f32.mrb[0].mxu0
  %v1947 = vadd.f32 %v1786, %v1946
  %v1948 = vpop.f32.mrb[0].mxu0
  %v1949 = vadd.f32 %v1788, %v1948
  %1950 = vmatprep.mubr.f32.mxu0 %v117
  %1951 = vmatmul.mubr.f32.gmra.mrb[0].mxu0 %v116
  %v1952 = vpop.f32.mrb[0].mxu0
  %v1953 = vadd.f32 %v1792, %v1952
  %v1954 = vpop.f32.mrb[0].mxu0
  %v1955 = vadd.f32 %v1794, %v1954
  %1956 = vmatprep.mubr.f32.mxu0 %v135
  %1957 = vmatmul.mubr.f32.gmra.mrb[0].mxu0 %v134
  %v1958 = vpop.f32.mrb[0].mxu0
  %v1959 = vadd.f32 %v1798, %v1958
  %v1960 = vpop.f32.mrb[0].mxu0
  %v1961 = vadd.f32 %v1800, %v1960
  %1962 = vmatprep.mubr.f32.mxu0 %v153
  %1963 = vmatmul.mubr.f32.gmra.mrb[0].mxu0 %v152
  %v1964 = vpop.f32.mrb[0].mxu0
  %v1965 = vadd.f32 %v1804, %v1964
  %v1966 = vpop.f32.mrb[0].mxu0
  %v1967 = vadd.f32 %v1806, %v1966
  %1968 = vmatprep.mubr.f32.mxu0 %v171
  %1969 = vmatmul.mubr.f32.gmra.mrb[0].mxu0 %v170
  %v1970 = vpop.f32.mrb[0].mxu0
  %v1971 = vadd.f32 %v1810, %v1970
  %v1972 = vpop.f32.mrb[0].mxu0
  %v1973 = vadd.f32 %v1812, %v1972
  %1974 = vmatprep.mubr.f32.mxu0 %v189
  %1975 = vmatmul.mubr.f32.gmra.mrb[0].mxu0 %v188
  %v1976 = vpop.f32.mrb[0].mxu0
  %v1977 = vadd.f32 %v1816, %v1976
  %v1978 = vpop.f32.mrb[0].mxu0
  %v1979 = vadd.f32 %v1818, %v1978
  %1980 = vmatprep.mubr.f32.mxu0 %v207
  %1981 = vmatmul.mubr.f32.gmra.mrb[0].mxu0 %v206
  %v1982 = vpop.f32.mrb[0].mxu0
  %v1983 = vadd.f32 %v1822, %v1982
  %v1984 = vpop.f32.mrb[0].mxu0
  %v1985 = vadd.f32 %v1824, %v1984
  %1986 = vmatprep.mubr.f32.mxu0 %v225
  %1987 = vmatmul.mubr.f32.gmra.mrb[0].mxu0 %v224
  %v1988 = vpop.f32.mrb[0].mxu0
  %v1989 = vadd.f32 %v1828, %v1988
  %v1990 = vpop.f32.mrb[0].mxu0
  %v1991 = vadd.f32 %v1830, %v1990
  %1992 = vmatprep.mubr.f32.mxu0 %v243
  %1993 = vmatmul.mubr.f32.gmra.mrb[0].mxu0 %v242
  %v1994 = vpop.f32.mrb[0].mxu0
  %v1995 = vadd.f32 %v1834, %v1994
  %v1996 = vpop.f32.mrb[0].mxu0
  %v1997 = vadd.f32 %v1836, %v1996
  %1998 = vmatprep.mubr.f32.mxu0 %v261
  %1999 = vmatmul.mubr.f32.gmra.mrb[0].mxu0 %v260
  %v2000 = vpop.f32.mrb[0].mxu0
  %v2001 = vadd.f32 %v1840, %v2000
  %v2002 = vpop.f32.mrb[0].mxu0
  %v2003 = vadd.f32 %v1842, %v2002
  %2004 = vmatprep.mubr.f32.mxu0 %v279
  %2005 = vmatmul.mubr.f32.gmra.mrb[0].mxu0 %v278
  %v2006 = vpop.f32.mrb[0].mxu0
  %v2007 = vadd.f32 %v1846, %v2006
  %v2008 = vpop.f32.mrb[0].mxu0
  %v2009 = vadd.f32 %v1848, %v2008
  %2010 = vmatprep.mubr.f32.mxu0 %v297
  %2011 = vmatmul.mubr.f32.gmra.mrb[0].mxu0 %v296
  %v2012 = vpop.f32.mrb[0].mxu0
  %v2013 = vadd.f32 %v1852, %v2012
  %v2014 = vpop.f32.mrb[0].mxu0
  %v2015 = vadd.f32 %v1854, %v2014
  %2016 = vdwg.mxu0
  %2017 = vmatprep.subr.mxu0 %v751
  %2018 = vmatpush1.msra.mxu0 %v750
  %2019 = vmatprep.subr.mxu0 %v753
  %2020 = vmatpush1.msra.mxu0 %v752
  %2021 = vmatprep.subr.mxu0 %v755
  %2022 = vmatpush1.msra.mxu0 %v754
  %2023 = vmatprep.subr.mxu0 %v757
  %2024 = vmatpush1.msra.mxu0 %v756
  %2025 = vmatprep.subr.mxu0 %v759
  %2026 = vmatpush1.msra.mxu0 %v758
  %2027 = vmatprep.subr.mxu0 %v761
  %2028 = vmatpush1.msra.mxu0 %v760
  %2029 = vmatprep.subr.mxu0 %v763
  %2030 = vmatpush1.msra.mxu0 %v762
  %2031 = vmatprep.subr.mxu0 %v765
  %2032 = vmatpush1.msra.mxu0 %v764
  %2033 = vmatprep.subr.mxu0 %v767
  %2034 = vmatpush1.msra.mxu0 %v766
  %2035 = vmatprep.subr.mxu0 %v769
  %2036 = vmatpush1.msra.mxu0 %v768
  %2037 = vmatprep.subr.mxu0 %v771
  %2038 = vmatpush1.msra.mxu0 %v770
  %2039 = vmatprep.subr.mxu0 %v773
  %2040 = vmatpush1.msra.mxu0 %v772
  %2041 = vmatprep.subr.mxu0 %v775
  %2042 = vmatpush1.msra.mxu0 %v774
  %2043 = vmatprep.subr.mxu0 %v777
  %2044 = vmatpush1.msra.mxu0 %v776
  %2045 = vmatprep.subr.mxu0 %v779
  %2046 = vmatpush1.msra.mxu0 %v778
  %2047 = vmatprep.subr.mxu0 %v781
  %2048 = vmatpush1.msra.mxu0 %v780
  %2049 = vmatprep.subr.mxu0 %v783
  %2050 = vmatpush1.msra.mxu0 %v782
  %2051 = vmatprep.subr.mxu0 %v785
  %2052 = vmatpush1.msra.mxu0 %v784
  %2053 = vmatprep.subr.mxu0 %v787
  %2054 = vmatpush1.msra.mxu0 %v786
  %2055 = vmatprep.subr.mxu0 %v789
  %2056 = vmatpush1.msra.mxu0 %v788
  %2057 = vmatprep.subr.mxu0 %v791
  %2058 = vmatpush1.msra.mxu0 %v790
  %2059 = vmatprep.subr.mxu0 %v793
  %2060 = vmatpush1.msra.mxu0 %v792
  %2061 = vmatprep.subr.mxu0 %v795
  %2062 = vmatpush1.msra.mxu0 %v794
  %2063 = vmatprep.subr.mxu0 %v797
  %2064 = vmatpush1.msra.mxu0 %v796
  %2065 = vmatprep.subr.mxu0 %v799
  %2066 = vmatpush1.msra.mxu0 %v798
  %2067 = vmatprep.subr.mxu0 %v801
  %2068 = vmatpush1.msra.mxu0 %v800
  %2069 = vmatprep.subr.mxu0 %v803
  %2070 = vmatpush1.msra.mxu0 %v802
  %2071 = vmatprep.subr.mxu0 %v805
  %2072 = vmatpush1.msra.mxu0 %v804
  %2073 = vmatprep.subr.mxu0 %v807
  %2074 = vmatpush1.msra.mxu0 %v806
  %2075 = vmatprep.subr.mxu0 %v809
  %2076 = vmatpush1.msra.mxu0 %v808
  %2077 = vmatprep.subr.mxu0 %v811
  %2078 = vmatpush1.msra.mxu0 %v810
  %2079 = vmatprep.subr.mxu0 %v813
  %2080 = vmatpush1.msra.mxu0 %v812
  %2081 = vmatprep.mubr.f32.mxu0 %v29
  %2082 = vmatmul.mubr.f32.gmra.mrb[0].mxu0 %v28
  %v2083 = vpop.f32.mrb[0].mxu0
  %v2084 = vadd.f32 %v1923, %v2083
  %v2085 = vpop.f32.mrb[0].mxu0
  %v2086 = vadd.f32 %v1925, %v2085
  %2087 = vmatprep.mubr.f32.mxu0 %v47
  %2088 = vmatmul.mubr.f32.gmra.mrb[0].mxu0 %v46
  %v2089 = vpop.f32.mrb[0].mxu0
  %v2090 = vadd.f32 %v1929, %v2089
  %v2091 = vpop.f32.mrb[0].mxu0
  %v2092 = vadd.f32 %v1931, %v2091
  %2093 = vmatprep.mubr.f32.mxu0 %v65
  %2094 = vmatmul.mubr.f32.gmra.mrb[0].mxu0 %v64
  %v2095 = vpop.f32.mrb[0].mxu0
  %v2096 = vadd.f32 %v1935, %v2095
  %v2097 = vpop.f32.mrb[0].mxu0
  %v2098 = vadd.f32 %v1937, %v2097
  %2099 = vmatprep.mubr.f32.mxu0 %v83
  %2100 = vmatmul.mubr.f32.gmra.mrb[0].mxu0 %v82
  %v2101 = vpop.f32.mrb[0].mxu0
  %v2102 = vadd.f32 %v1941, %v2101
  %v2103 = vpop.f32.mrb[0].mxu0
  %v2104 = vadd.f32 %v1943, %v2103
  %2105 = vmatprep.mubr.f32.mxu0 %v101
  %2106 = vmatmul.mubr.f32.gmra.mrb[0].mxu0 %v100
  %v2107 = vpop.f32.mrb[0].mxu0
  %v2108 = vadd.f32 %v1947, %v2107
  %v2109 = vpop.f32.mrb[0].mxu0
  %v2110 = vadd.f32 %v1949, %v2109
  %2111 = vmatprep.mubr.f32.mxu0 %v119
  %2112 = vmatmul.mubr.f32.gmra.mrb[0].mxu0 %v118
  %v2113 = vpop.f32.mrb[0].mxu0
  %v2114 = vadd.f32 %v1953, %v2113
  %v2115 = vpop.f32.mrb[0].mxu0
  %v2116 = vadd.f32 %v1955, %v2115
  %2117 = vmatprep.mubr.f32.mxu0 %v137
  %2118 = vmatmul.mubr.f32.gmra.mrb[0].mxu0 %v136
  %v2119 = vpop.f32.mrb[0].mxu0
  %v2120 = vadd.f32 %v1959, %v2119
  %v2121 = vpop.f32.mrb[0].mxu0
  %v2122 = vadd.f32 %v1961, %v2121
  %2123 = vmatprep.mubr.f32.mxu0 %v155
  %2124 = vmatmul.mubr.f32.gmra.mrb[0].mxu0 %v154
  %v2125 = vpop.f32.mrb[0].mxu0
  %v2126 = vadd.f32 %v1965, %v2125
  %v2127 = vpop.f32.mrb[0].mxu0
  %v2128 = vadd.f32 %v1967, %v2127
  %2129 = vmatprep.mubr.f32.mxu0 %v173
  %2130 = vmatmul.mubr.f32.gmra.mrb[0].mxu0 %v172
  %v2131 = vpop.f32.mrb[0].mxu0
  %v2132 = vadd.f32 %v1971, %v2131
  %v2133 = vpop.f32.mrb[0].mxu0
  %v2134 = vadd.f32 %v1973, %v2133
  %2135 = vmatprep.mubr.f32.mxu0 %v191
  %2136 = vmatmul.mubr.f32.gmra.mrb[0].mxu0 %v190
  %v2137 = vpop.f32.mrb[0].mxu0
  %v2138 = vadd.f32 %v1977, %v2137
  %v2139 = vpop.f32.mrb[0].mxu0
  %v2140 = vadd.f32 %v1979, %v2139
  %2141 = vmatprep.mubr.f32.mxu0 %v209
  %2142 = vmatmul.mubr.f32.gmra.mrb[0].mxu0 %v208
  %v2143 = vpop.f32.mrb[0].mxu0
  %v2144 = vadd.f32 %v1983, %v2143
  %v2145 = vpop.f32.mrb[0].mxu0
  %v2146 = vadd.f32 %v1985, %v2145
  %2147 = vmatprep.mubr.f32.mxu0 %v227
  %2148 = vmatmul.mubr.f32.gmra.mrb[0].mxu0 %v226
  %v2149 = vpop.f32.mrb[0].mxu0
  %v2150 = vadd.f32 %v1989, %v2149
  %v2151 = vpop.f32.mrb[0].mxu0
  %v2152 = vadd.f32 %v1991, %v2151
  %2153 = vmatprep.mubr.f32.mxu0 %v245
  %2154 = vmatmul.mubr.f32.gmra.mrb[0].mxu0 %v244
  %v2155 = vpop.f32.mrb[0].mxu0
  %v2156 = vadd.f32 %v1995, %v2155
  %v2157 = vpop.f32.mrb[0].mxu0
  %v2158 = vadd.f32 %v1997, %v2157
  %2159 = vmatprep.mubr.f32.mxu0 %v263
  %2160 = vmatmul.mubr.f32.gmra.mrb[0].mxu0 %v262
  %v2161 = vpop.f32.mrb[0].mxu0
  %v2162 = vadd.f32 %v2001, %v2161
  %v2163 = vpop.f32.mrb[0].mxu0
  %v2164 = vadd.f32 %v2003, %v2163
  %2165 = vmatprep.mubr.f32.mxu0 %v281
  %2166 = vmatmul.mubr.f32.gmra.mrb[0].mxu0 %v280
  %v2167 = vpop.f32.mrb[0].mxu0
  %v2168 = vadd.f32 %v2007, %v2167
  %v2169 = vpop.f32.mrb[0].mxu0
  %v2170 = vadd.f32 %v2009, %v2169
  %2171 = vmatprep.mubr.f32.mxu0 %v299
  %2172 = vmatmul.mubr.f32.gmra.mrb[0].mxu0 %v298
  %v2173 = vpop.f32.mrb[0].mxu0
  %v2174 = vadd.f32 %v2013, %v2173
  %v2175 = vpop.f32.mrb[0].mxu0
  %v2176 = vadd.f32 %v2015, %v2175
  %2177 = vdwg.mxu0
  %2178 = vmatprep.subr.mxu0 %v815
  %2179 = vmatpush1.msra.mxu0 %v814
  %2180 = vmatprep.subr.mxu0 %v817
  %2181 = vmatpush1.msra.mxu0 %v816
  %2182 = vmatprep.subr.mxu0 %v819
  %2183 = vmatpush1.msra.mxu0 %v818
  %2184 = vmatprep.subr.mxu0 %v821
  %2185 = vmatpush1.msra.mxu0 %v820
  %2186 = vmatprep.subr.mxu0 %v823
  %2187 = vmatpush1.msra.mxu0 %v822
  %2188 = vmatprep.subr.mxu0 %v825
  %2189 = vmatpush1.msra.mxu0 %v824
  %2190 = vmatprep.subr.mxu0 %v827
  %2191 = vmatpush1.msra.mxu0 %v826
  %2192 = vmatprep.subr.mxu0 %v829
  %2193 = vmatpush1.msra.mxu0 %v828
  %2194 = vmatprep.subr.mxu0 %v831
  %2195 = vmatpush1.msra.mxu0 %v830
  %2196 = vmatprep.subr.mxu0 %v833
  %2197 = vmatpush1.msra.mxu0 %v832
  %2198 = vmatprep.subr.mxu0 %v835
  %2199 = vmatpush1.msra.mxu0 %v834
  %2200 = vmatprep.subr.mxu0 %v837
  %2201 = vmatpush1.msra.mxu0 %v836
  %2202 = vmatprep.subr.mxu0 %v839
  %2203 = vmatpush1.msra.mxu0 %v838
  %2204 = vmatprep.subr.mxu0 %v841
  %2205 = vmatpush1.msra.mxu0 %v840
  %2206 = vmatprep.subr.mxu0 %v843
  %2207 = vmatpush1.msra.mxu0 %v842
  %2208 = vmatprep.subr.mxu0 %v845
  %2209 = vmatpush1.msra.mxu0 %v844
  %2210 = vmatprep.subr.mxu0 %v847
  %2211 = vmatpush1.msra.mxu0 %v846
  %2212 = vmatprep.subr.mxu0 %v849
  %2213 = vmatpush1.msra.mxu0 %v848
  %2214 = vmatprep.subr.mxu0 %v851
  %2215 = vmatpush1.msra.mxu0 %v850
  %2216 = vmatprep.subr.mxu0 %v853
  %2217 = vmatpush1.msra.mxu0 %v852
  %2218 = vmatprep.subr.mxu0 %v855
  %2219 = vmatpush1.msra.mxu0 %v854
  %2220 = vmatprep.subr.mxu0 %v857
  %2221 = vmatpush1.msra.mxu0 %v856
  %2222 = vmatprep.subr.mxu0 %v859
  %2223 = vmatpush1.msra.mxu0 %v858
  %2224 = vmatprep.subr.mxu0 %v861
  %2225 = vmatpush1.msra.mxu0 %v860
  %2226 = vmatprep.subr.mxu0 %v863
  %2227 = vmatpush1.msra.mxu0 %v862
  %2228 = vmatprep.subr.mxu0 %v865
  %2229 = vmatpush1.msra.mxu0 %v864
  %2230 = vmatprep.subr.mxu0 %v867
  %2231 = vmatpush1.msra.mxu0 %v866
  %2232 = vmatprep.subr.mxu0 %v869
  %2233 = vmatpush1.msra.mxu0 %v868
  %2234 = vmatprep.subr.mxu0 %v871
  %2235 = vmatpush1.msra.mxu0 %v870
  %2236 = vmatprep.subr.mxu0 %v873
  %2237 = vmatpush1.msra.mxu0 %v872
  %2238 = vmatprep.subr.mxu0 %v875
  %2239 = vmatpush1.msra.mxu0 %v874
  %2240 = vmatprep.subr.mxu0 %v877
  %2241 = vmatpush1.msra.mxu0 %v876
  %2242 = vmatprep.mubr.f32.mxu0 %v31
  %2243 = vmatmul.mubr.f32.gmra.mrb[0].mxu0 %v30
  %v2244 = vpop.f32.mrb[0].mxu0
  %v2245 = vadd.f32 %v2084, %v2244
  %v2246 = vpop.f32.mrb[0].mxu0
  %v2247 = vadd.f32 %v2086, %v2246
  %2248 = vmatprep.mubr.f32.mxu0 %v49
  %2249 = vmatmul.mubr.f32.gmra.mrb[0].mxu0 %v48
  %v2250 = vpop.f32.mrb[0].mxu0
  %v2251 = vadd.f32 %v2090, %v2250
  %v2252 = vpop.f32.mrb[0].mxu0
  %v2253 = vadd.f32 %v2092, %v2252
  %2254 = vmatprep.mubr.f32.mxu0 %v67
  %2255 = vmatmul.mubr.f32.gmra.mrb[0].mxu0 %v66
  %v2256 = vpop.f32.mrb[0].mxu0
  %v2257 = vadd.f32 %v2096, %v2256
  %v2258 = vpop.f32.mrb[0].mxu0
  %v2259 = vadd.f32 %v2098, %v2258
  %2260 = vmatprep.mubr.f32.mxu0 %v85
  %2261 = vmatmul.mubr.f32.gmra.mrb[0].mxu0 %v84
  %v2262 = vpop.f32.mrb[0].mxu0
  %v2263 = vadd.f32 %v2102, %v2262
  %v2264 = vpop.f32.mrb[0].mxu0
  %v2265 = vadd.f32 %v2104, %v2264
  %2266 = vmatprep.mubr.f32.mxu0 %v103
  %2267 = vmatmul.mubr.f32.gmra.mrb[0].mxu0 %v102
  %v2268 = vpop.f32.mrb[0].mxu0
  %v2269 = vadd.f32 %v2108, %v2268
  %v2270 = vpop.f32.mrb[0].mxu0
  %v2271 = vadd.f32 %v2110, %v2270
  %2272 = vmatprep.mubr.f32.mxu0 %v121
  %2273 = vmatmul.mubr.f32.gmra.mrb[0].mxu0 %v120
  %v2274 = vpop.f32.mrb[0].mxu0
  %v2275 = vadd.f32 %v2114, %v2274
  %v2276 = vpop.f32.mrb[0].mxu0
  %v2277 = vadd.f32 %v2116, %v2276
  %2278 = vmatprep.mubr.f32.mxu0 %v139
  %2279 = vmatmul.mubr.f32.gmra.mrb[0].mxu0 %v138
  %v2280 = vpop.f32.mrb[0].mxu0
  %v2281 = vadd.f32 %v2120, %v2280
  %v2282 = vpop.f32.mrb[0].mxu0
  %v2283 = vadd.f32 %v2122, %v2282
  %2284 = vmatprep.mubr.f32.mxu0 %v157
  %2285 = vmatmul.mubr.f32.gmra.mrb[0].mxu0 %v156
  %v2286 = vpop.f32.mrb[0].mxu0
  %v2287 = vadd.f32 %v2126, %v2286
  %v2288 = vpop.f32.mrb[0].mxu0
  %v2289 = vadd.f32 %v2128, %v2288
  %2290 = vmatprep.mubr.f32.mxu0 %v175
  %2291 = vmatmul.mubr.f32.gmra.mrb[0].mxu0 %v174
  %v2292 = vpop.f32.mrb[0].mxu0
  %v2293 = vadd.f32 %v2132, %v2292
  %v2294 = vpop.f32.mrb[0].mxu0
  %v2295 = vadd.f32 %v2134, %v2294
  %2296 = vmatprep.mubr.f32.mxu0 %v193
  %2297 = vmatmul.mubr.f32.gmra.mrb[0].mxu0 %v192
  %v2298 = vpop.f32.mrb[0].mxu0
  %v2299 = vadd.f32 %v2138, %v2298
  %v2300 = vpop.f32.mrb[0].mxu0
  %v2301 = vadd.f32 %v2140, %v2300
  %2302 = vmatprep.mubr.f32.mxu0 %v211
  %2303 = vmatmul.mubr.f32.gmra.mrb[0].mxu0 %v210
  %v2304 = vpop.f32.mrb[0].mxu0
  %v2305 = vadd.f32 %v2144, %v2304
  %v2306 = vpop.f32.mrb[0].mxu0
  %v2307 = vadd.f32 %v2146, %v2306
  %2308 = vmatprep.mubr.f32.mxu0 %v229
  %2309 = vmatmul.mubr.f32.gmra.mrb[0].mxu0 %v228
  %v2310 = vpop.f32.mrb[0].mxu0
  %v2311 = vadd.f32 %v2150, %v2310
  %v2312 = vpop.f32.mrb[0].mxu0
  %v2313 = vadd.f32 %v2152, %v2312
  %2314 = vmatprep.mubr.f32.mxu0 %v247
  %2315 = vmatmul.mubr.f32.gmra.mrb[0].mxu0 %v246
  %v2316 = vpop.f32.mrb[0].mxu0
  %v2317 = vadd.f32 %v2156, %v2316
  %v2318 = vpop.f32.mrb[0].mxu0
  %v2319 = vadd.f32 %v2158, %v2318
  %2320 = vmatprep.mubr.f32.mxu0 %v265
  %2321 = vmatmul.mubr.f32.gmra.mrb[0].mxu0 %v264
  %v2322 = vpop.f32.mrb[0].mxu0
  %v2323 = vadd.f32 %v2162, %v2322
  %v2324 = vpop.f32.mrb[0].mxu0
  %v2325 = vadd.f32 %v2164, %v2324
  %2326 = vmatprep.mubr.f32.mxu0 %v283
  %2327 = vmatmul.mubr.f32.gmra.mrb[0].mxu0 %v282
  %v2328 = vpop.f32.mrb[0].mxu0
  %v2329 = vadd.f32 %v2168, %v2328
  %v2330 = vpop.f32.mrb[0].mxu0
  %v2331 = vadd.f32 %v2170, %v2330
  %2332 = vmatprep.mubr.f32.mxu0 %v301
  %2333 = vmatmul.mubr.f32.gmra.mrb[0].mxu0 %v300
  %v2334 = vpop.f32.mrb[0].mxu0
  %v2335 = vadd.f32 %v2174, %v2334
  %v2336 = vpop.f32.mrb[0].mxu0
  %v2337 = vadd.f32 %v2176, %v2336
  %2338 = vdwg.mxu0
  %v2339 = vmax.f32 %v2245, 0.0
  %v2340 = vmax.f32 %v2247, 0.0
  %v2341 = vmax.f32 %v2251, 0.0
  %v2342 = vmax.f32 %v2253, 0.0
  %v2343 = vmax.f32 %v2257, 0.0
  %v2344 = vmax.f32 %v2259, 0.0
  %v2345 = vmax.f32 %v2263, 0.0
  %v2346 = vmax.f32 %v2265, 0.0
  %v2347 = vmax.f32 %v2269, 0.0
  %v2348 = vmax.f32 %v2271, 0.0
  %v2349 = vmax.f32 %v2275, 0.0
  %v2350 = vmax.f32 %v2277, 0.0
  %v2351 = vmax.f32 %v2281, 0.0
  %v2352 = vmax.f32 %v2283, 0.0
  %v2353 = vmax.f32 %v2287, 0.0
  %v2354 = vmax.f32 %v2289, 0.0
  %v2355 = vmax.f32 %v2293, 0.0
  %v2356 = vmax.f32 %v2295, 0.0
  %v2357 = vmax.f32 %v2299, 0.0
  %v2358 = vmax.f32 %v2301, 0.0
  %v2359 = vmax.f32 %v2305, 0.0
  %v2360 = vmax.f32 %v2307, 0.0
  %v2361 = vmax.f32 %v2311, 0.0
  %v2362 = vmax.f32 %v2313, 0.0
  %v2363 = vmax.f32 %v2317, 0.0
  %v2364 = vmax.f32 %v2319, 0.0
  %v2365 = vmax.f32 %v2323, 0.0
  %v2366 = vmax.f32 %v2325, 0.0
  %v2367 = vmax.f32 %v2329, 0.0
  %v2368 = vmax.f32 %v2331, 0.0
  %v2369 = vmax.f32 %v2335, 0.0
  %v2370 = vmax.f32 %v2337, 0.0
  %2371 = vst [vmem:[%s3] sm:$0xff] %v2339
  %2372 = vst [vmem:[%s3 + $0x8] sm:$0xff] %v2340
  %2373 = vst [vmem:[%s3 + $0x10] sm:$0xff] %v2341
  %2374 = vst [vmem:[%s3 + $0x18] sm:$0xff] %v2342
  %2375 = vst [vmem:[%s3 + $0x20] sm:$0xff] %v2343
  %2376 = vst [vmem:[%s3 + $0x28] sm:$0xff] %v2344
  %2377 = vst [vmem:[%s3 + $0x30] sm:$0xff] %v2345
  %2378 = vst [vmem:[%s3 + $0x38] sm:$0xff] %v2346
  %2379 = vst [vmem:[%s3 + $0x40] sm:$0xff] %v2347
  %2380 = vst [vmem:[%s3 + $0x48] sm:$0xff] %v2348
  %2381 = vst [vmem:[%s3 + $0x50] sm:$0xff] %v2349
  %2382 = vst [vmem:[%s3 + $0x58] sm:$0xff] %v2350
  %2383 = vst [vmem:[%s3 + $0x60] sm:$0xff] %v2351
  %2384 = vst [vmem:[%s3 + $0x68] sm:$0xff] %v2352
  %2385 = vst [vmem:[%s3 + $0x70] sm:$0xff] %v2353
  %2386 = vst [vmem:[%s3 + $0x78] sm:$0xff] %v2354
  %2387 = vst [vmem:[%s3 + $0x80] sm:$0xff] %v2355
  %2388 = vst [vmem:[%s3 + $0x88] sm:$0xff] %v2356
  %2389 = vst [vmem:[%s3 + $0x90] sm:$0xff] %v2357
  %2390 = vst [vmem:[%s3 + $0x98] sm:$0xff] %v2358
  %2391 = vst [vmem:[%s3 + $0xa0] sm:$0xff] %v2359
  %2392 = vst [vmem:[%s3 + $0xa8] sm:$0xff] %v2360
  %2393 = vst [vmem:[%s3 + $0xb0] sm:$0xff] %v2361
  %2394 = vst [vmem:[%s3 + $0xb8] sm:$0xff] %v2362
  %2395 = vst [vmem:[%s3 + $0xc0] sm:$0xff] %v2363
  %2396 = vst [vmem:[%s3 + $0xc8] sm:$0xff] %v2364
  %2397 = vst [vmem:[%s3 + $0xd0] sm:$0xff] %v2365
  %2398 = vst [vmem:[%s3 + $0xd8] sm:$0xff] %v2366
  %2399 = vst [vmem:[%s3 + $0xe0] sm:$0xff] %v2367
  %2400 = vst [vmem:[%s3 + $0xe8] sm:$0xff] %v2368
  %2401 = vst [vmem:[%s3 + $0xf0] sm:$0xff] %v2369
  %2402 = vst [vmem:[%s3 + $0xf8] sm:$0xff] %v2370
  // Predicated region
  $region14: #{encoder_forward_pallas.5} parent=0 // pred_check
    _
  $region15: #{encoder_forward_pallas.5} parent=0 // pred_check_branch
    %2404 = sbr.rel (0) target = $region17
  $region16: #{encoder_forward_pallas.5} parent=0 // pred_region
    _
  $region17: #{encoder_forward_pallas.5} parent=0 // pred_fallthru
    _
  // Predicated region
  $region18: #{encoder_forward_pallas.5} parent=0 // pred_check
    _
  $region19: #{encoder_forward_pallas.5} parent=0 // pred_check_branch
    %2406 = sbr.rel (0) target = $region21
  $region20: #{encoder_forward_pallas.5} parent=0 // pred_region
    _
  $region21: #{encoder_forward_pallas.5} parent=0 // pred_fallthru
    _

// kernel: encoder_forward_pallas.6
$region0: #{encoder_forward_pallas.6}
  #allocation0 [shape = 'u32[]', space=smem, size = 0x4, offset = 0x4, fixed_abs, tag = 'smem constant byte address 0x4 - core index']
  #allocation1 [shape = 'u32[144,128]{1,0:T(1,128)}', space=vmem, size = 0x12000, scoped, tag = 'internal scratch']
  %s0 = inlined_call_operand.vmem [shape: f32[32,2304], index: 0, kind: input, shape index: {}]
  %s1 = inlined_call_operand.vmem [shape: f32[2304,256], index: 1, kind: input, shape index: {}]
  %s2 = inlined_call_operand.vmem [shape: f32[1,256], index: 2, kind: input, shape index: {}]
  %s3 = inlined_call_operand.vmem [shape: f32[32,256], index: 3, kind: output, shape index: {}]
  %s4 = sld [smem:[#allocation0]]
  $region22: #{encoder_forward_pallas.6} parent=0
    _
  %s6 = ssub.s32 1, %s4
  %s7 = scalar_select 0, %s6, %s4
  // Predicated region
  $region2: #{encoder_forward_pallas.6} parent=0 // pred_check
    _
  $region3: #{encoder_forward_pallas.6} parent=0 // pred_check_branch
    %9 = sbr.rel (0) target = $region5
  $region4: #{encoder_forward_pallas.6} parent=0 // pred_region
    _
  $region5: #{encoder_forward_pallas.6} parent=0 // pred_fallthru
    _
  // Predicated region
  $region6: #{encoder_forward_pallas.6} parent=0 // pred_check
    _
  $region7: #{encoder_forward_pallas.6} parent=0 // pred_check_branch
    %11 = sbr.rel (0) target = $region9
  $region8: #{encoder_forward_pallas.6} parent=0 // pred_region
    _
  $region9: #{encoder_forward_pallas.6} parent=0 // pred_fallthru
    _
  // Predicated region
  $region10: #{encoder_forward_pallas.6} parent=0 // pred_check
    _
  $region11: #{encoder_forward_pallas.6} parent=0 // pred_check_branch
    %13 = sbr.rel (0) target = $region13
  $region12: #{encoder_forward_pallas.6} parent=0 // pred_region
    _
  $region13: #{encoder_forward_pallas.6} parent=0 // pred_fallthru
    _
  %v14 = vld [vmem:[%s0] sm:$0xff]
  %v15 = vld [vmem:[%s0 + $0x8] sm:$0xff]
  %v16 = vld [vmem:[%s0 + $0x10] sm:$0xff]
  %v17 = vld [vmem:[%s0 + $0x18] sm:$0xff]
  %v18 = vld [vmem:[%s0 + $0x20] sm:$0xff]
  %v19 = vld [vmem:[%s0 + $0x28] sm:$0xff]
  %v20 = vld [vmem:[%s0 + $0x30] sm:$0xff]
  %v21 = vld [vmem:[%s0 + $0x38] sm:$0xff]
  %v22 = vld [vmem:[%s0 + $0x40] sm:$0xff]
  %v23 = vld [vmem:[%s0 + $0x48] sm:$0xff]
  %v24 = vld [vmem:[%s0 + $0x50] sm:$0xff]
  %v25 = vld [vmem:[%s0 + $0x58] sm:$0xff]
  %v26 = vld [vmem:[%s0 + $0x60] sm:$0xff]
  %v27 = vld [vmem:[%s0 + $0x68] sm:$0xff]
  %v28 = vld [vmem:[%s0 + $0x70] sm:$0xff]
  %v29 = vld [vmem:[%s0 + $0x78] sm:$0xff]
  %v30 = vld [vmem:[%s0 + $0x80] sm:$0xff]
  %v31 = vld [vmem:[%s0 + $0x88] sm:$0xff]
  %v32 = vld [vmem:[%s0 + $0x90] sm:$0xff]
  %v33 = vld [vmem:[%s0 + $0x98] sm:$0xff]
  %v34 = vld [vmem:[%s0 + $0xa0] sm:$0xff]
  %v35 = vld [vmem:[%s0 + $0xa8] sm:$0xff]
  %v36 = vld [vmem:[%s0 + $0xb0] sm:$0xff]
  %v37 = vld [vmem:[%s0 + $0xb8] sm:$0xff]
  %v38 = vld [vmem:[%s0 + $0xc0] sm:$0xff]
  %v39 = vld [vmem:[%s0 + $0xc8] sm:$0xff]
  %v40 = vld [vmem:[%s0 + $0xd0] sm:$0xff]
  %v41 = vld [vmem:[%s0 + $0xd8] sm:$0xff]
  %v42 = vld [vmem:[%s0 + $0xe0] sm:$0xff]
  %v43 = vld [vmem:[%s0 + $0xe8] sm:$0xff]
  %v44 = vld [vmem:[%s0 + $0xf0] sm:$0xff]
  %v45 = vld [vmem:[%s0 + $0xf8] sm:$0xff]
  %v46 = vld [vmem:[%s0 + $0x100] sm:$0xff]
  %v47 = vld [vmem:[%s0 + $0x108] sm:$0xff]
  %v48 = vld [vmem:[%s0 + $0x110] sm:$0xff]
  %v49 = vld [vmem:[%s0 + $0x118] sm:$0xff]
  %v50 = vld [vmem:[%s0 + $0x120] sm:$0xff]
  %v51 = vld [vmem:[%s0 + $0x128] sm:$0xff]
  %v52 = vld [vmem:[%s0 + $0x130] sm:$0xff]
  %v53 = vld [vmem:[%s0 + $0x138] sm:$0xff]
  %v54 = vld [vmem:[%s0 + $0x140] sm:$0xff]
  %v55 = vld [vmem:[%s0 + $0x148] sm:$0xff]
  %v56 = vld [vmem:[%s0 + $0x150] sm:$0xff]
  %v57 = vld [vmem:[%s0 + $0x158] sm:$0xff]
  %v58 = vld [vmem:[%s0 + $0x160] sm:$0xff]
  %v59 = vld [vmem:[%s0 + $0x168] sm:$0xff]
  %v60 = vld [vmem:[%s0 + $0x170] sm:$0xff]
  %v61 = vld [vmem:[%s0 + $0x178] sm:$0xff]
  %v62 = vld [vmem:[%s0 + $0x180] sm:$0xff]
  %v63 = vld [vmem:[%s0 + $0x188] sm:$0xff]
  %v64 = vld [vmem:[%s0 + $0x190] sm:$0xff]
  %v65 = vld [vmem:[%s0 + $0x198] sm:$0xff]
  %v66 = vld [vmem:[%s0 + $0x1a0] sm:$0xff]
  %v67 = vld [vmem:[%s0 + $0x1a8] sm:$0xff]
  %v68 = vld [vmem:[%s0 + $0x1b0] sm:$0xff]
  %v69 = vld [vmem:[%s0 + $0x1b8] sm:$0xff]
  %v70 = vld [vmem:[%s0 + $0x1c0] sm:$0xff]
  %v71 = vld [vmem:[%s0 + $0x1c8] sm:$0xff]
  %v72 = vld [vmem:[%s0 + $0x1d0] sm:$0xff]
  %v73 = vld [vmem:[%s0 + $0x1d8] sm:$0xff]
  %v74 = vld [vmem:[%s0 + $0x1e0] sm:$0xff]
  %v75 = vld [vmem:[%s0 + $0x1e8] sm:$0xff]
  %v76 = vld [vmem:[%s0 + $0x1f0] sm:$0xff]
  %v77 = vld [vmem:[%s0 + $0x1f8] sm:$0xff]
  %v78 = vld [vmem:[%s0 + $0x200] sm:$0xff]
  %v79 = vld [vmem:[%s0 + $0x208] sm:$0xff]
  %v80 = vld [vmem:[%s0 + $0x210] sm:$0xff]
  %v81 = vld [vmem:[%s0 + $0x218] sm:$0xff]
  %v82 = vld [vmem:[%s0 + $0x220] sm:$0xff]
  %v83 = vld [vmem:[%s0 + $0x228] sm:$0xff]
  %v84 = vld [vmem:[%s0 + $0x230] sm:$0xff]
  %v85 = vld [vmem:[%s0 + $0x238] sm:$0xff]
  %v86 = vld [vmem:[%s1] sm:$0xff]
  %v87 = vld [vmem:[%s1 + $0x8] sm:$0xff]
  %v88 = vld [vmem:[%s1 + $0x10] sm:$0xff]
  %v89 = vld [vmem:[%s1 + $0x18] sm:$0xff]
  %v90 = vld [vmem:[%s1 + $0x20] sm:$0xff]
  %v91 = vld [vmem:[%s1 + $0x28] sm:$0xff]
  %v92 = vld [vmem:[%s1 + $0x30] sm:$0xff]
  %v93 = vld [vmem:[%s1 + $0x38] sm:$0xff]
  %v94 = vld [vmem:[%s1 + $0x40] sm:$0xff]
  %v95 = vld [vmem:[%s1 + $0x48] sm:$0xff]
  %v96 = vld [vmem:[%s1 + $0x50] sm:$0xff]
  %v97 = vld [vmem:[%s1 + $0x58] sm:$0xff]
  %v98 = vld [vmem:[%s1 + $0x60] sm:$0xff]
  %v99 = vld [vmem:[%s1 + $0x68] sm:$0xff]
  %v100 = vld [vmem:[%s1 + $0x70] sm:$0xff]
  %v101 = vld [vmem:[%s1 + $0x78] sm:$0xff]
  %v102 = vld [vmem:[%s1 + $0x80] sm:$0xff]
  %v103 = vld [vmem:[%s1 + $0x88] sm:$0xff]
  %v104 = vld [vmem:[%s1 + $0x90] sm:$0xff]
  %v105 = vld [vmem:[%s1 + $0x98] sm:$0xff]
  %v106 = vld [vmem:[%s1 + $0xa0] sm:$0xff]
  %v107 = vld [vmem:[%s1 + $0xa8] sm:$0xff]
  %v108 = vld [vmem:[%s1 + $0xb0] sm:$0xff]
  %v109 = vld [vmem:[%s1 + $0xb8] sm:$0xff]
  %v110 = vld [vmem:[%s1 + $0xc0] sm:$0xff]
  %v111 = vld [vmem:[%s1 + $0xc8] sm:$0xff]
  %v112 = vld [vmem:[%s1 + $0xd0] sm:$0xff]
  %v113 = vld [vmem:[%s1 + $0xd8] sm:$0xff]
  %v114 = vld [vmem:[%s1 + $0xe0] sm:$0xff]
  %v115 = vld [vmem:[%s1 + $0xe8] sm:$0xff]
  %v116 = vld [vmem:[%s1 + $0xf0] sm:$0xff]
  %v117 = vld [vmem:[%s1 + $0xf8] sm:$0xff]
  %v118 = vld [vmem:[%s1 + $0x100] sm:$0xff]
  %v119 = vld [vmem:[%s1 + $0x108] sm:$0xff]
  %v120 = vld [vmem:[%s1 + $0x110] sm:$0xff]
  %v121 = vld [vmem:[%s1 + $0x118] sm:$0xff]
  %v122 = vld [vmem:[%s1 + $0x120] sm:$0xff]
  %v123 = vld [vmem:[%s1 + $0x128] sm:$0xff]
  %v124 = vld [vmem:[%s1 + $0x130] sm:$0xff]
  %v125 = vld [vmem:[%s1 + $0x138] sm:$0xff]
  %v126 = vld [vmem:[%s1 + $0x140] sm:$0xff]
  %v127 = vld [vmem:[%s1 + $0x148] sm:$0xff]
  %v128 = vld [vmem:[%s1 + $0x150] sm:$0xff]
  %v129 = vld [vmem:[%s1 + $0x158] sm:$0xff]
  %v130 = vld [vmem:[%s1 + $0x160] sm:$0xff]
  %v131 = vld [vmem:[%s1 + $0x168] sm:$0xff]
  %v132 = vld [vmem:[%s1 + $0x170] sm:$0xff]
  %v133 = vld [vmem:[%s1 + $0x178] sm:$0xff]
  %v134 = vld [vmem:[%s1 + $0x180] sm:$0xff]
  %v135 = vld [vmem:[%s1 + $0x188] sm:$0xff]
  %v136 = vld [vmem:[%s1 + $0x190] sm:$0xff]
  %v137 = vld [vmem:[%s1 + $0x198] sm:$0xff]
  %v138 = vld [vmem:[%s1 + $0x1a0] sm:$0xff]
  %v139 = vld [vmem:[%s1 + $0x1a8] sm:$0xff]
  %v140 = vld [vmem:[%s1 + $0x1b0] sm:$0xff]
  %v141 = vld [vmem:[%s1 + $0x1b8] sm:$0xff]
  %v142 = vld [vmem:[%s1 + $0x1c0] sm:$0xff]
  %v143 = vld [vmem:[%s1 + $0x1c8] sm:$0xff]
  %v144 = vld [vmem:[%s1 + $0x1d0] sm:$0xff]
  %v145 = vld [vmem:[%s1 + $0x1d8] sm:$0xff]
  %v146 = vld [vmem:[%s1 + $0x1e0] sm:$0xff]
  %v147 = vld [vmem:[%s1 + $0x1e8] sm:$0xff]
  %v148 = vld [vmem:[%s1 + $0x1f0] sm:$0xff]
  %v149 = vld [vmem:[%s1 + $0x1f8] sm:$0xff]
  %v150 = vld [vmem:[%s1 + $0x200] sm:$0xff]
  %v151 = vld [vmem:[%s1 + $0x208] sm:$0xff]
  %v152 = vld [vmem:[%s1 + $0x210] sm:$0xff]
  %v153 = vld [vmem:[%s1 + $0x218] sm:$0xff]
  %v154 = vld [vmem:[%s1 + $0x220] sm:$0xff]
  %v155 = vld [vmem:[%s1 + $0x228] sm:$0xff]
  %v156 = vld [vmem:[%s1 + $0x230] sm:$0xff]
  %v157 = vld [vmem:[%s1 + $0x238] sm:$0xff]
  %v158 = vld [vmem:[%s1 + $0x240] sm:$0xff]
  %v159 = vld [vmem:[%s1 + $0x248] sm:$0xff]
  %v160 = vld [vmem:[%s1 + $0x250] sm:$0xff]
  %v161 = vld [vmem:[%s1 + $0x258] sm:$0xff]
  %v162 = vld [vmem:[%s1 + $0x260] sm:$0xff]
  %v163 = vld [vmem:[%s1 + $0x268] sm:$0xff]
  %v164 = vld [vmem:[%s1 + $0x270] sm:$0xff]
  %v165 = vld [vmem:[%s1 + $0x278] sm:$0xff]
  %v166 = vld [vmem:[%s1 + $0x280] sm:$0xff]
  %v167 = vld [vmem:[%s1 + $0x288] sm:$0xff]
  %v168 = vld [vmem:[%s1 + $0x290] sm:$0xff]
  %v169 = vld [vmem:[%s1 + $0x298] sm:$0xff]
  %v170 = vld [vmem:[%s1 + $0x2a0] sm:$0xff]
  %v171 = vld [vmem:[%s1 + $0x2a8] sm:$0xff]
  %v172 = vld [vmem:[%s1 + $0x2b0] sm:$0xff]
  %v173 = vld [vmem:[%s1 + $0x2b8] sm:$0xff]
  %v174 = vld [vmem:[%s1 + $0x2c0] sm:$0xff]
  %v175 = vld [vmem:[%s1 + $0x2c8] sm:$0xff]
  %v176 = vld [vmem:[%s1 + $0x2d0] sm:$0xff]
  %v177 = vld [vmem:[%s1 + $0x2d8] sm:$0xff]
  %v178 = vld [vmem:[%s1 + $0x2e0] sm:$0xff]
  %v179 = vld [vmem:[%s1 + $0x2e8] sm:$0xff]
  %v180 = vld [vmem:[%s1 + $0x2f0] sm:$0xff]
  %v181 = vld [vmem:[%s1 + $0x2f8] sm:$0xff]
  %v182 = vld [vmem:[%s1 + $0x300] sm:$0xff]
  %v183 = vld [vmem:[%s1 + $0x308] sm:$0xff]
  %v184 = vld [vmem:[%s1 + $0x310] sm:$0xff]
  %v185 = vld [vmem:[%s1 + $0x318] sm:$0xff]
  %v186 = vld [vmem:[%s1 + $0x320] sm:$0xff]
  %v187 = vld [vmem:[%s1 + $0x328] sm:$0xff]
  %v188 = vld [vmem:[%s1 + $0x330] sm:$0xff]
  %v189 = vld [vmem:[%s1 + $0x338] sm:$0xff]
  %v190 = vld [vmem:[%s1 + $0x340] sm:$0xff]
  %v191 = vld [vmem:[%s1 + $0x348] sm:$0xff]
  %v192 = vld [vmem:[%s1 + $0x350] sm:$0xff]
  %v193 = vld [vmem:[%s1 + $0x358] sm:$0xff]
  %v194 = vld [vmem:[%s1 + $0x360] sm:$0xff]
  %v195 = vld [vmem:[%s1 + $0x368] sm:$0xff]
  %v196 = vld [vmem:[%s1 + $0x370] sm:$0xff]
  %v197 = vld [vmem:[%s1 + $0x378] sm:$0xff]
  %v198 = vld [vmem:[%s1 + $0x380] sm:$0xff]
  %v199 = vld [vmem:[%s1 + $0x388] sm:$0xff]
  %v200 = vld [vmem:[%s1 + $0x390] sm:$0xff]
  %v201 = vld [vmem:[%s1 + $0x398] sm:$0xff]
  %v202 = vld [vmem:[%s1 + $0x3a0] sm:$0xff]
  %v203 = vld [vmem:[%s1 + $0x3a8] sm:$0xff]
  %v204 = vld [vmem:[%s1 + $0x3b0] sm:$0xff]
  %v205 = vld [vmem:[%s1 + $0x3b8] sm:$0xff]
  %v206 = vld [vmem:[%s1 + $0x3c0] sm:$0xff]
  %v207 = vld [vmem:[%s1 + $0x3c8] sm:$0xff]
  %v208 = vld [vmem:[%s1 + $0x3d0] sm:$0xff]
  %v209 = vld [vmem:[%s1 + $0x3d8] sm:$0xff]
  %v210 = vld [vmem:[%s1 + $0x3e0] sm:$0xff]
  %v211 = vld [vmem:[%s1 + $0x3e8] sm:$0xff]
  %v212 = vld [vmem:[%s1 + $0x3f0] sm:$0xff]
  %v213 = vld [vmem:[%s1 + $0x3f8] sm:$0xff]
  %v214 = vld [vmem:[%s1 + $0x400] sm:$0xff]
  %v215 = vld [vmem:[%s1 + $0x408] sm:$0xff]
  %v216 = vld [vmem:[%s1 + $0x410] sm:$0xff]
  %v217 = vld [vmem:[%s1 + $0x418] sm:$0xff]
  %v218 = vld [vmem:[%s1 + $0x420] sm:$0xff]
  %v219 = vld [vmem:[%s1 + $0x428] sm:$0xff]
  %v220 = vld [vmem:[%s1 + $0x430] sm:$0xff]
  %v221 = vld [vmem:[%s1 + $0x438] sm:$0xff]
  %v222 = vld [vmem:[%s1 + $0x440] sm:$0xff]
  %v223 = vld [vmem:[%s1 + $0x448] sm:$0xff]
  %v224 = vld [vmem:[%s1 + $0x450] sm:$0xff]
  %v225 = vld [vmem:[%s1 + $0x458] sm:$0xff]
  %v226 = vld [vmem:[%s1 + $0x460] sm:$0xff]
  %v227 = vld [vmem:[%s1 + $0x468] sm:$0xff]
  %v228 = vld [vmem:[%s1 + $0x470] sm:$0xff]
  %v229 = vld [vmem:[%s1 + $0x478] sm:$0xff]
  %v230 = vld [vmem:[%s1 + $0x480] sm:$0xff]
  %v231 = vld [vmem:[%s1 + $0x488] sm:$0xff]
  %v232 = vld [vmem:[%s1 + $0x490] sm:$0xff]
  %v233 = vld [vmem:[%s1 + $0x498] sm:$0xff]
  %v234 = vld [vmem:[%s1 + $0x4a0] sm:$0xff]
  %v235 = vld [vmem:[%s1 + $0x4a8] sm:$0xff]
  %v236 = vld [vmem:[%s1 + $0x4b0] sm:$0xff]
  %v237 = vld [vmem:[%s1 + $0x4b8] sm:$0xff]
  %v238 = vld [vmem:[%s1 + $0x4c0] sm:$0xff]
  %v239 = vld [vmem:[%s1 + $0x4c8] sm:$0xff]
  %v240 = vld [vmem:[%s1 + $0x4d0] sm:$0xff]
  %v241 = vld [vmem:[%s1 + $0x4d8] sm:$0xff]
  %v242 = vld [vmem:[%s1 + $0x4e0] sm:$0xff]
  %v243 = vld [vmem:[%s1 + $0x4e8] sm:$0xff]
  %v244 = vld [vmem:[%s1 + $0x4f0] sm:$0xff]
  %v245 = vld [vmem:[%s1 + $0x4f8] sm:$0xff]
  %v246 = vld [vmem:[%s1 + $0x500] sm:$0xff]
  %v247 = vld [vmem:[%s1 + $0x508] sm:$0xff]
  %v248 = vld [vmem:[%s1 + $0x510] sm:$0xff]
  %v249 = vld [vmem:[%s1 + $0x518] sm:$0xff]
  %v250 = vld [vmem:[%s1 + $0x520] sm:$0xff]
  %v251 = vld [vmem:[%s1 + $0x528] sm:$0xff]
  %v252 = vld [vmem:[%s1 + $0x530] sm:$0xff]
  %v253 = vld [vmem:[%s1 + $0x538] sm:$0xff]
  %v254 = vld [vmem:[%s1 + $0x540] sm:$0xff]
  %v255 = vld [vmem:[%s1 + $0x548] sm:$0xff]
  %v256 = vld [vmem:[%s1 + $0x550] sm:$0xff]
  %v257 = vld [vmem:[%s1 + $0x558] sm:$0xff]
  %v258 = vld [vmem:[%s1 + $0x560] sm:$0xff]
  %v259 = vld [vmem:[%s1 + $0x568] sm:$0xff]
  %v260 = vld [vmem:[%s1 + $0x570] sm:$0xff]
  %v261 = vld [vmem:[%s1 + $0x578] sm:$0xff]
  %v262 = vld [vmem:[%s1 + $0x580] sm:$0xff]
  %v263 = vld [vmem:[%s1 + $0x588] sm:$0xff]
  %v264 = vld [vmem:[%s1 + $0x590] sm:$0xff]
  %v265 = vld [vmem:[%s1 + $0x598] sm:$0xff]
  %v266 = vld [vmem:[%s1 + $0x5a0] sm:$0xff]
  %v267 = vld [vmem:[%s1 + $0x5a8] sm:$0xff]
  %v268 = vld [vmem:[%s1 + $0x5b0] sm:$0xff]
  %v269 = vld [vmem:[%s1 + $0x5b8] sm:$0xff]
  %v270 = vld [vmem:[%s1 + $0x5c0] sm:$0xff]
  %v271 = vld [vmem:[%s1 + $0x5c8] sm:$0xff]
  %v272 = vld [vmem:[%s1 + $0x5d0] sm:$0xff]
  %v273 = vld [vmem:[%s1 + $0x5d8] sm:$0xff]
  %v274 = vld [vmem:[%s1 + $0x5e0] sm:$0xff]
  %v275 = vld [vmem:[%s1 + $0x5e8] sm:$0xff]
  %v276 = vld [vmem:[%s1 + $0x5f0] sm:$0xff]
  %v277 = vld [vmem:[%s1 + $0x5f8] sm:$0xff]
  %v278 = vld [vmem:[%s1 + $0x600] sm:$0xff]
  %v279 = vld [vmem:[%s1 + $0x608] sm:$0xff]
  %v280 = vld [vmem:[%s1 + $0x610] sm:$0xff]
  %v281 = vld [vmem:[%s1 + $0x618] sm:$0xff]
  %v282 = vld [vmem:[%s1 + $0x620] sm:$0xff]
  %v283 = vld [vmem:[%s1 + $0x628] sm:$0xff]
  %v284 = vld [vmem:[%s1 + $0x630] sm:$0xff]
  %v285 = vld [vmem:[%s1 + $0x638] sm:$0xff]
  %v286 = vld [vmem:[%s1 + $0x640] sm:$0xff]
  %v287 = vld [vmem:[%s1 + $0x648] sm:$0xff]
  %v288 = vld [vmem:[%s1 + $0x650] sm:$0xff]
  %v289 = vld [vmem:[%s1 + $0x658] sm:$0xff]
  %v290 = vld [vmem:[%s1 + $0x660] sm:$0xff]
  %v291 = vld [vmem:[%s1 + $0x668] sm:$0xff]
  %v292 = vld [vmem:[%s1 + $0x670] sm:$0xff]
  %v293 = vld [vmem:[%s1 + $0x678] sm:$0xff]
  %v294 = vld [vmem:[%s1 + $0x680] sm:$0xff]
  %v295 = vld [vmem:[%s1 + $0x688] sm:$0xff]
  %v296 = vld [vmem:[%s1 + $0x690] sm:$0xff]
  %v297 = vld [vmem:[%s1 + $0x698] sm:$0xff]
  %v298 = vld [vmem:[%s1 + $0x6a0] sm:$0xff]
  %v299 = vld [vmem:[%s1 + $0x6a8] sm:$0xff]
  %v300 = vld [vmem:[%s1 + $0x6b0] sm:$0xff]
  %v301 = vld [vmem:[%s1 + $0x6b8] sm:$0xff]
  %v302 = vld [vmem:[%s1 + $0x6c0] sm:$0xff]
  %v303 = vld [vmem:[%s1 + $0x6c8] sm:$0xff]
  %v304 = vld [vmem:[%s1 + $0x6d0] sm:$0xff]
  %v305 = vld [vmem:[%s1 + $0x6d8] sm:$0xff]
  %v306 = vld [vmem:[%s1 + $0x6e0] sm:$0xff]
  %v307 = vld [vmem:[%s1 + $0x6e8] sm:$0xff]
  %v308 = vld [vmem:[%s1 + $0x6f0] sm:$0xff]
  %v309 = vld [vmem:[%s1 + $0x6f8] sm:$0xff]
  %v310 = vld [vmem:[%s1 + $0x700] sm:$0xff]
  %v311 = vld [vmem:[%s1 + $0x708] sm:$0xff]
  %v312 = vld [vmem:[%s1 + $0x710] sm:$0xff]
  %v313 = vld [vmem:[%s1 + $0x718] sm:$0xff]
  %v314 = vld [vmem:[%s1 + $0x720] sm:$0xff]
  %v315 = vld [vmem:[%s1 + $0x728] sm:$0xff]
  %v316 = vld [vmem:[%s1 + $0x730] sm:$0xff]
  %v317 = vld [vmem:[%s1 + $0x738] sm:$0xff]
  %v318 = vld [vmem:[%s1 + $0x740] sm:$0xff]
  %v319 = vld [vmem:[%s1 + $0x748] sm:$0xff]
  %v320 = vld [vmem:[%s1 + $0x750] sm:$0xff]
  %v321 = vld [vmem:[%s1 + $0x758] sm:$0xff]
  %v322 = vld [vmem:[%s1 + $0x760] sm:$0xff]
  %v323 = vld [vmem:[%s1 + $0x768] sm:$0xff]
  %v324 = vld [vmem:[%s1 + $0x770] sm:$0xff]
  %v325 = vld [vmem:[%s1 + $0x778] sm:$0xff]
  %v326 = vld [vmem:[%s1 + $0x780] sm:$0xff]
  %v327 = vld [vmem:[%s1 + $0x788] sm:$0xff]
  %v328 = vld [vmem:[%s1 + $0x790] sm:$0xff]
  %v329 = vld [vmem:[%s1 + $0x798] sm:$0xff]
  %v330 = vld [vmem:[%s1 + $0x7a0] sm:$0xff]
  %v331 = vld [vmem:[%s1 + $0x7a8] sm:$0xff]
  %v332 = vld [vmem:[%s1 + $0x7b0] sm:$0xff]
  %v333 = vld [vmem:[%s1 + $0x7b8] sm:$0xff]
  %v334 = vld [vmem:[%s1 + $0x7c0] sm:$0xff]
  %v335 = vld [vmem:[%s1 + $0x7c8] sm:$0xff]
  %v336 = vld [vmem:[%s1 + $0x7d0] sm:$0xff]
  %v337 = vld [vmem:[%s1 + $0x7d8] sm:$0xff]
  %v338 = vld [vmem:[%s1 + $0x7e0] sm:$0xff]
  %v339 = vld [vmem:[%s1 + $0x7e8] sm:$0xff]
  %v340 = vld [vmem:[%s1 + $0x7f0] sm:$0xff]
  %v341 = vld [vmem:[%s1 + $0x7f8] sm:$0xff]
  %v342 = vld [vmem:[%s1 + $0x800] sm:$0xff]
  %v343 = vld [vmem:[%s1 + $0x808] sm:$0xff]
  %v344 = vld [vmem:[%s1 + $0x810] sm:$0xff]
  %v345 = vld [vmem:[%s1 + $0x818] sm:$0xff]
  %v346 = vld [vmem:[%s1 + $0x820] sm:$0xff]
  %v347 = vld [vmem:[%s1 + $0x828] sm:$0xff]
  %v348 = vld [vmem:[%s1 + $0x830] sm:$0xff]
  %v349 = vld [vmem:[%s1 + $0x838] sm:$0xff]
  %v350 = vld [vmem:[%s1 + $0x840] sm:$0xff]
  %v351 = vld [vmem:[%s1 + $0x848] sm:$0xff]
  %v352 = vld [vmem:[%s1 + $0x850] sm:$0xff]
  %v353 = vld [vmem:[%s1 + $0x858] sm:$0xff]
  %v354 = vld [vmem:[%s1 + $0x860] sm:$0xff]
  %v355 = vld [vmem:[%s1 + $0x868] sm:$0xff]
  %v356 = vld [vmem:[%s1 + $0x870] sm:$0xff]
  %v357 = vld [vmem:[%s1 + $0x878] sm:$0xff]
  %v358 = vld [vmem:[%s1 + $0x880] sm:$0xff]
  %v359 = vld [vmem:[%s1 + $0x888] sm:$0xff]
  %v360 = vld [vmem:[%s1 + $0x890] sm:$0xff]
  %v361 = vld [vmem:[%s1 + $0x898] sm:$0xff]
  %v362 = vld [vmem:[%s1 + $0x8a0] sm:$0xff]
  %v363 = vld [vmem:[%s1 + $0x8a8] sm:$0xff]
  %v364 = vld [vmem:[%s1 + $0x8b0] sm:$0xff]
  %v365 = vld [vmem:[%s1 + $0x8b8] sm:$0xff]
  %v366 = vld [vmem:[%s1 + $0x8c0] sm:$0xff]
  %v367 = vld [vmem:[%s1 + $0x8c8] sm:$0xff]
  %v368 = vld [vmem:[%s1 + $0x8d0] sm:$0xff]
  %v369 = vld [vmem:[%s1 + $0x8d8] sm:$0xff]
  %v370 = vld [vmem:[%s1 + $0x8e0] sm:$0xff]
  %v371 = vld [vmem:[%s1 + $0x8e8] sm:$0xff]
  %v372 = vld [vmem:[%s1 + $0x8f0] sm:$0xff]
  %v373 = vld [vmem:[%s1 + $0x8f8] sm:$0xff]
  %v374 = vld [vmem:[%s1 + $0x900] sm:$0xff]
  %v375 = vld [vmem:[%s1 + $0x908] sm:$0xff]
  %v376 = vld [vmem:[%s1 + $0x910] sm:$0xff]
  %v377 = vld [vmem:[%s1 + $0x918] sm:$0xff]
  %v378 = vld [vmem:[%s1 + $0x920] sm:$0xff]
  %v379 = vld [vmem:[%s1 + $0x928] sm:$0xff]
  %v380 = vld [vmem:[%s1 + $0x930] sm:$0xff]
  %v381 = vld [vmem:[%s1 + $0x938] sm:$0xff]
  %v382 = vld [vmem:[%s1 + $0x940] sm:$0xff]
  %v383 = vld [vmem:[%s1 + $0x948] sm:$0xff]
  %v384 = vld [vmem:[%s1 + $0x950] sm:$0xff]
  %v385 = vld [vmem:[%s1 + $0x958] sm:$0xff]
  %v386 = vld [vmem:[%s1 + $0x960] sm:$0xff]
  %v387 = vld [vmem:[%s1 + $0x968] sm:$0xff]
  %v388 = vld [vmem:[%s1 + $0x970] sm:$0xff]
  %v389 = vld [vmem:[%s1 + $0x978] sm:$0xff]
  %v390 = vld [vmem:[%s1 + $0x980] sm:$0xff]
  %v391 = vld [vmem:[%s1 + $0x988] sm:$0xff]
  %v392 = vld [vmem:[%s1 + $0x990] sm:$0xff]
  %v393 = vld [vmem:[%s1 + $0x998] sm:$0xff]
  %v394 = vld [vmem:[%s1 + $0x9a0] sm:$0xff]
  %v395 = vld [vmem:[%s1 + $0x9a8] sm:$0xff]
  %v396 = vld [vmem:[%s1 + $0x9b0] sm:$0xff]
  %v397 = vld [vmem:[%s1 + $0x9b8] sm:$0xff]
  %v398 = vld [vmem:[%s1 + $0x9c0] sm:$0xff]
  %v399 = vld [vmem:[%s1 + $0x9c8] sm:$0xff]
  %v400 = vld [vmem:[%s1 + $0x9d0] sm:$0xff]
  %v401 = vld [vmem:[%s1 + $0x9d8] sm:$0xff]
  %v402 = vld [vmem:[%s1 + $0x9e0] sm:$0xff]
  %v403 = vld [vmem:[%s1 + $0x9e8] sm:$0xff]
  %v404 = vld [vmem:[%s1 + $0x9f0] sm:$0xff]
  %v405 = vld [vmem:[%s1 + $0x9f8] sm:$0xff]
  %v406 = vld [vmem:[%s1 + $0xa00] sm:$0xff]
  %v407 = vld [vmem:[%s1 + $0xa08] sm:$0xff]
  %v408 = vld [vmem:[%s1 + $0xa10] sm:$0xff]
  %v409 = vld [vmem:[%s1 + $0xa18] sm:$0xff]
  %v410 = vld [vmem:[%s1 + $0xa20] sm:$0xff]
  %v411 = vld [vmem:[%s1 + $0xa28] sm:$0xff]
  %v412 = vld [vmem:[%s1 + $0xa30] sm:$0xff]
  %v413 = vld [vmem:[%s1 + $0xa38] sm:$0xff]
  %v414 = vld [vmem:[%s1 + $0xa40] sm:$0xff]
  %v415 = vld [vmem:[%s1 + $0xa48] sm:$0xff]
  %v416 = vld [vmem:[%s1 + $0xa50] sm:$0xff]
  %v417 = vld [vmem:[%s1 + $0xa58] sm:$0xff]
  %v418 = vld [vmem:[%s1 + $0xa60] sm:$0xff]
  %v419 = vld [vmem:[%s1 + $0xa68] sm:$0xff]
  %v420 = vld [vmem:[%s1 + $0xa70] sm:$0xff]
  %v421 = vld [vmem:[%s1 + $0xa78] sm:$0xff]
  %v422 = vld [vmem:[%s1 + $0xa80] sm:$0xff]
  %v423 = vld [vmem:[%s1 + $0xa88] sm:$0xff]
  %v424 = vld [vmem:[%s1 + $0xa90] sm:$0xff]
  %v425 = vld [vmem:[%s1 + $0xa98] sm:$0xff]
  %v426 = vld [vmem:[%s1 + $0xaa0] sm:$0xff]
  %v427 = vld [vmem:[%s1 + $0xaa8] sm:$0xff]
  %v428 = vld [vmem:[%s1 + $0xab0] sm:$0xff]
  %v429 = vld [vmem:[%s1 + $0xab8] sm:$0xff]
  %v430 = vld [vmem:[%s1 + $0xac0] sm:$0xff]
  %v431 = vld [vmem:[%s1 + $0xac8] sm:$0xff]
  %v432 = vld [vmem:[%s1 + $0xad0] sm:$0xff]
  %v433 = vld [vmem:[%s1 + $0xad8] sm:$0xff]
  %v434 = vld [vmem:[%s1 + $0xae0] sm:$0xff]
  %v435 = vld [vmem:[%s1 + $0xae8] sm:$0xff]
  %v436 = vld [vmem:[%s1 + $0xaf0] sm:$0xff]
  %v437 = vld [vmem:[%s1 + $0xaf8] sm:$0xff]
  %v438 = vld [vmem:[%s1 + $0xb00] sm:$0xff]
  %v439 = vld [vmem:[%s1 + $0xb08] sm:$0xff]
  %v440 = vld [vmem:[%s1 + $0xb10] sm:$0xff]
  %v441 = vld [vmem:[%s1 + $0xb18] sm:$0xff]
  %v442 = vld [vmem:[%s1 + $0xb20] sm:$0xff]
  %v443 = vld [vmem:[%s1 + $0xb28] sm:$0xff]
  %v444 = vld [vmem:[%s1 + $0xb30] sm:$0xff]
  %v445 = vld [vmem:[%s1 + $0xb38] sm:$0xff]
  %v446 = vld [vmem:[%s1 + $0xb40] sm:$0xff]
  %v447 = vld [vmem:[%s1 + $0xb48] sm:$0xff]
  %v448 = vld [vmem:[%s1 + $0xb50] sm:$0xff]
  %v449 = vld [vmem:[%s1 + $0xb58] sm:$0xff]
  %v450 = vld [vmem:[%s1 + $0xb60] sm:$0xff]
  %v451 = vld [vmem:[%s1 + $0xb68] sm:$0xff]
  %v452 = vld [vmem:[%s1 + $0xb70] sm:$0xff]
  %v453 = vld [vmem:[%s1 + $0xb78] sm:$0xff]
  %v454 = vld [vmem:[%s1 + $0xb80] sm:$0xff]
  %v455 = vld [vmem:[%s1 + $0xb88] sm:$0xff]
  %v456 = vld [vmem:[%s1 + $0xb90] sm:$0xff]
  %v457 = vld [vmem:[%s1 + $0xb98] sm:$0xff]
  %v458 = vld [vmem:[%s1 + $0xba0] sm:$0xff]
  %v459 = vld [vmem:[%s1 + $0xba8] sm:$0xff]
  %v460 = vld [vmem:[%s1 + $0xbb0] sm:$0xff]
  %v461 = vld [vmem:[%s1 + $0xbb8] sm:$0xff]
  %v462 = vld [vmem:[%s1 + $0xbc0] sm:$0xff]
  %v463 = vld [vmem:[%s1 + $0xbc8] sm:$0xff]
  %v464 = vld [vmem:[%s1 + $0xbd0] sm:$0xff]
  %v465 = vld [vmem:[%s1 + $0xbd8] sm:$0xff]
  %v466 = vld [vmem:[%s1 + $0xbe0] sm:$0xff]
  %v467 = vld [vmem:[%s1 + $0xbe8] sm:$0xff]
  %v468 = vld [vmem:[%s1 + $0xbf0] sm:$0xff]
  %v469 = vld [vmem:[%s1 + $0xbf8] sm:$0xff]
  %v470 = vld [vmem:[%s1 + $0xc00] sm:$0xff]
  %v471 = vld [vmem:[%s1 + $0xc08] sm:$0xff]
  %v472 = vld [vmem:[%s1 + $0xc10] sm:$0xff]
  %v473 = vld [vmem:[%s1 + $0xc18] sm:$0xff]
  %v474 = vld [vmem:[%s1 + $0xc20] sm:$0xff]
  %v475 = vld [vmem:[%s1 + $0xc28] sm:$0xff]
  %v476 = vld [vmem:[%s1 + $0xc30] sm:$0xff]
  %v477 = vld [vmem:[%s1 + $0xc38] sm:$0xff]
  %v478 = vld [vmem:[%s1 + $0xc40] sm:$0xff]
  %v479 = vld [vmem:[%s1 + $0xc48] sm:$0xff]
  %v480 = vld [vmem:[%s1 + $0xc50] sm:$0xff]
  %v481 = vld [vmem:[%s1 + $0xc58] sm:$0xff]
  %v482 = vld [vmem:[%s1 + $0xc60] sm:$0xff]
  %v483 = vld [vmem:[%s1 + $0xc68] sm:$0xff]
  %v484 = vld [vmem:[%s1 + $0xc70] sm:$0xff]
  %v485 = vld [vmem:[%s1 + $0xc78] sm:$0xff]
  %v486 = vld [vmem:[%s1 + $0xc80] sm:$0xff]
  %v487 = vld [vmem:[%s1 + $0xc88] sm:$0xff]
  %v488 = vld [vmem:[%s1 + $0xc90] sm:$0xff]
  %v489 = vld [vmem:[%s1 + $0xc98] sm:$0xff]
  %v490 = vld [vmem:[%s1 + $0xca0] sm:$0xff]
  %v491 = vld [vmem:[%s1 + $0xca8] sm:$0xff]
  %v492 = vld [vmem:[%s1 + $0xcb0] sm:$0xff]
  %v493 = vld [vmem:[%s1 + $0xcb8] sm:$0xff]
  %v494 = vld [vmem:[%s1 + $0xcc0] sm:$0xff]
  %v495 = vld [vmem:[%s1 + $0xcc8] sm:$0xff]
  %v496 = vld [vmem:[%s1 + $0xcd0] sm:$0xff]
  %v497 = vld [vmem:[%s1 + $0xcd8] sm:$0xff]
  %v498 = vld [vmem:[%s1 + $0xce0] sm:$0xff]
  %v499 = vld [vmem:[%s1 + $0xce8] sm:$0xff]
  %v500 = vld [vmem:[%s1 + $0xcf0] sm:$0xff]
  %v501 = vld [vmem:[%s1 + $0xcf8] sm:$0xff]
  %v502 = vld [vmem:[%s1 + $0xd00] sm:$0xff]
  %v503 = vld [vmem:[%s1 + $0xd08] sm:$0xff]
  %v504 = vld [vmem:[%s1 + $0xd10] sm:$0xff]
  %v505 = vld [vmem:[%s1 + $0xd18] sm:$0xff]
  %v506 = vld [vmem:[%s1 + $0xd20] sm:$0xff]
  %v507 = vld [vmem:[%s1 + $0xd28] sm:$0xff]
  %v508 = vld [vmem:[%s1 + $0xd30] sm:$0xff]
  %v509 = vld [vmem:[%s1 + $0xd38] sm:$0xff]
  %v510 = vld [vmem:[%s1 + $0xd40] sm:$0xff]
  %v511 = vld [vmem:[%s1 + $0xd48] sm:$0xff]
  %v512 = vld [vmem:[%s1 + $0xd50] sm:$0xff]
  %v513 = vld [vmem:[%s1 + $0xd58] sm:$0xff]
  %v514 = vld [vmem:[%s1 + $0xd60] sm:$0xff]
  %v515 = vld [vmem:[%s1 + $0xd68] sm:$0xff]
  %v516 = vld [vmem:[%s1 + $0xd70] sm:$0xff]
  %v517 = vld [vmem:[%s1 + $0xd78] sm:$0xff]
  %v518 = vld [vmem:[%s1 + $0xd80] sm:$0xff]
  %v519 = vld [vmem:[%s1 + $0xd88] sm:$0xff]
  %v520 = vld [vmem:[%s1 + $0xd90] sm:$0xff]
  %v521 = vld [vmem:[%s1 + $0xd98] sm:$0xff]
  %v522 = vld [vmem:[%s1 + $0xda0] sm:$0xff]
  %v523 = vld [vmem:[%s1 + $0xda8] sm:$0xff]
  %v524 = vld [vmem:[%s1 + $0xdb0] sm:$0xff]
  %v525 = vld [vmem:[%s1 + $0xdb8] sm:$0xff]
  %v526 = vld [vmem:[%s1 + $0xdc0] sm:$0xff]
  %v527 = vld [vmem:[%s1 + $0xdc8] sm:$0xff]
  %v528 = vld [vmem:[%s1 + $0xdd0] sm:$0xff]
  %v529 = vld [vmem:[%s1 + $0xdd8] sm:$0xff]
  %v530 = vld [vmem:[%s1 + $0xde0] sm:$0xff]
  %v531 = vld [vmem:[%s1 + $0xde8] sm:$0xff]
  %v532 = vld [vmem:[%s1 + $0xdf0] sm:$0xff]
  %v533 = vld [vmem:[%s1 + $0xdf8] sm:$0xff]
  %v534 = vld [vmem:[%s1 + $0xe00] sm:$0xff]
  %v535 = vld [vmem:[%s1 + $0xe08] sm:$0xff]
  %v536 = vld [vmem:[%s1 + $0xe10] sm:$0xff]
  %v537 = vld [vmem:[%s1 + $0xe18] sm:$0xff]
  %v538 = vld [vmem:[%s1 + $0xe20] sm:$0xff]
  %v539 = vld [vmem:[%s1 + $0xe28] sm:$0xff]
  %v540 = vld [vmem:[%s1 + $0xe30] sm:$0xff]
  %v541 = vld [vmem:[%s1 + $0xe38] sm:$0xff]
  %v542 = vld [vmem:[%s1 + $0xe40] sm:$0xff]
  %v543 = vld [vmem:[%s1 + $0xe48] sm:$0xff]
  %v544 = vld [vmem:[%s1 + $0xe50] sm:$0xff]
  %v545 = vld [vmem:[%s1 + $0xe58] sm:$0xff]
  %v546 = vld [vmem:[%s1 + $0xe60] sm:$0xff]
  %v547 = vld [vmem:[%s1 + $0xe68] sm:$0xff]
  %v548 = vld [vmem:[%s1 + $0xe70] sm:$0xff]
  %v549 = vld [vmem:[%s1 + $0xe78] sm:$0xff]
  %v550 = vld [vmem:[%s1 + $0xe80] sm:$0xff]
  %v551 = vld [vmem:[%s1 + $0xe88] sm:$0xff]
  %v552 = vld [vmem:[%s1 + $0xe90] sm:$0xff]
  %v553 = vld [vmem:[%s1 + $0xe98] sm:$0xff]
  %v554 = vld [vmem:[%s1 + $0xea0] sm:$0xff]
  %v555 = vld [vmem:[%s1 + $0xea8] sm:$0xff]
  %v556 = vld [vmem:[%s1 + $0xeb0] sm:$0xff]
  %v557 = vld [vmem:[%s1 + $0xeb8] sm:$0xff]
  %v558 = vld [vmem:[%s1 + $0xec0] sm:$0xff]
  %v559 = vld [vmem:[%s1 + $0xec8] sm:$0xff]
  %v560 = vld [vmem:[%s1 + $0xed0] sm:$0xff]
  %v561 = vld [vmem:[%s1 + $0xed8] sm:$0xff]
  %v562 = vld [vmem:[%s1 + $0xee0] sm:$0xff]
  %v563 = vld [vmem:[%s1 + $0xee8] sm:$0xff]
  %v564 = vld [vmem:[%s1 + $0xef0] sm:$0xff]
  %v565 = vld [vmem:[%s1 + $0xef8] sm:$0xff]
  %v566 = vld [vmem:[%s1 + $0xf00] sm:$0xff]
  %v567 = vld [vmem:[%s1 + $0xf08] sm:$0xff]
  %v568 = vld [vmem:[%s1 + $0xf10] sm:$0xff]
  %v569 = vld [vmem:[%s1 + $0xf18] sm:$0xff]
  %v570 = vld [vmem:[%s1 + $0xf20] sm:$0xff]
  %v571 = vld [vmem:[%s1 + $0xf28] sm:$0xff]
  %v572 = vld [vmem:[%s1 + $0xf30] sm:$0xff]
  %v573 = vld [vmem:[%s1 + $0xf38] sm:$0xff]
  %v574 = vld [vmem:[%s1 + $0xf40] sm:$0xff]
  %v575 = vld [vmem:[%s1 + $0xf48] sm:$0xff]
  %v576 = vld [vmem:[%s1 + $0xf50] sm:$0xff]
  %v577 = vld [vmem:[%s1 + $0xf58] sm:$0xff]
  %v578 = vld [vmem:[%s1 + $0xf60] sm:$0xff]
  %v579 = vld [vmem:[%s1 + $0xf68] sm:$0xff]
  %v580 = vld [vmem:[%s1 + $0xf70] sm:$0xff]
  %v581 = vld [vmem:[%s1 + $0xf78] sm:$0xff]
  %v582 = vld [vmem:[%s1 + $0xf80] sm:$0xff]
  %v583 = vld [vmem:[%s1 + $0xf88] sm:$0xff]
  %v584 = vld [vmem:[%s1 + $0xf90] sm:$0xff]
  %v585 = vld [vmem:[%s1 + $0xf98] sm:$0xff]
  %v586 = vld [vmem:[%s1 + $0xfa0] sm:$0xff]
  %v587 = vld [vmem:[%s1 + $0xfa8] sm:$0xff]
  %v588 = vld [vmem:[%s1 + $0xfb0] sm:$0xff]
  %v589 = vld [vmem:[%s1 + $0xfb8] sm:$0xff]
  %v590 = vld [vmem:[%s1 + $0xfc0] sm:$0xff]
  %v591 = vld [vmem:[%s1 + $0xfc8] sm:$0xff]
  %v592 = vld [vmem:[%s1 + $0xfd0] sm:$0xff]
  %v593 = vld [vmem:[%s1 + $0xfd8] sm:$0xff]
  %v594 = vld [vmem:[%s1 + $0xfe0] sm:$0xff]
  %v595 = vld [vmem:[%s1 + $0xfe8] sm:$0xff]
  %v596 = vld [vmem:[%s1 + $0xff0] sm:$0xff]
  %v597 = vld [vmem:[%s1 + $0xff8] sm:$0xff]
  %v598 = vld [vmem:[%s1 + $0x1000] sm:$0xff]
  %v599 = vld [vmem:[%s1 + $0x1008] sm:$0xff]
  %v600 = vld [vmem:[%s1 + $0x1010] sm:$0xff]
  %v601 = vld [vmem:[%s1 + $0x1018] sm:$0xff]
  %v602 = vld [vmem:[%s1 + $0x1020] sm:$0xff]
  %v603 = vld [vmem:[%s1 + $0x1028] sm:$0xff]
  %v604 = vld [vmem:[%s1 + $0x1030] sm:$0xff]
  %v605 = vld [vmem:[%s1 + $0x1038] sm:$0xff]
  %v606 = vld [vmem:[%s1 + $0x1040] sm:$0xff]
  %v607 = vld [vmem:[%s1 + $0x1048] sm:$0xff]
  %v608 = vld [vmem:[%s1 + $0x1050] sm:$0xff]
  %v609 = vld [vmem:[%s1 + $0x1058] sm:$0xff]
  %v610 = vld [vmem:[%s1 + $0x1060] sm:$0xff]
  %v611 = vld [vmem:[%s1 + $0x1068] sm:$0xff]
  %v612 = vld [vmem:[%s1 + $0x1070] sm:$0xff]
  %v613 = vld [vmem:[%s1 + $0x1078] sm:$0xff]
  %v614 = vld [vmem:[%s1 + $0x1080] sm:$0xff]
  %v615 = vld [vmem:[%s1 + $0x1088] sm:$0xff]
  %v616 = vld [vmem:[%s1 + $0x1090] sm:$0xff]
  %v617 = vld [vmem:[%s1 + $0x1098] sm:$0xff]
  %v618 = vld [vmem:[%s1 + $0x10a0] sm:$0xff]
  %v619 = vld [vmem:[%s1 + $0x10a8] sm:$0xff]
  %v620 = vld [vmem:[%s1 + $0x10b0] sm:$0xff]
  %v621 = vld [vmem:[%s1 + $0x10b8] sm:$0xff]
  %v622 = vld [vmem:[%s1 + $0x10c0] sm:$0xff]
  %v623 = vld [vmem:[%s1 + $0x10c8] sm:$0xff]
  %v624 = vld [vmem:[%s1 + $0x10d0] sm:$0xff]
  %v625 = vld [vmem:[%s1 + $0x10d8] sm:$0xff]
  %v626 = vld [vmem:[%s1 + $0x10e0] sm:$0xff]
  %v627 = vld [vmem:[%s1 + $0x10e8] sm:$0xff]
  %v628 = vld [vmem:[%s1 + $0x10f0] sm:$0xff]
  %v629 = vld [vmem:[%s1 + $0x10f8] sm:$0xff]
  %v630 = vld [vmem:[%s1 + $0x1100] sm:$0xff]
  %v631 = vld [vmem:[%s1 + $0x1108] sm:$0xff]
  %v632 = vld [vmem:[%s1 + $0x1110] sm:$0xff]
  %v633 = vld [vmem:[%s1 + $0x1118] sm:$0xff]
  %v634 = vld [vmem:[%s1 + $0x1120] sm:$0xff]
  %v635 = vld [vmem:[%s1 + $0x1128] sm:$0xff]
  %v636 = vld [vmem:[%s1 + $0x1130] sm:$0xff]
  %v637 = vld [vmem:[%s1 + $0x1138] sm:$0xff]
  %v638 = vld [vmem:[%s1 + $0x1140] sm:$0xff]
  %v639 = vld [vmem:[%s1 + $0x1148] sm:$0xff]
  %v640 = vld [vmem:[%s1 + $0x1150] sm:$0xff]
  %v641 = vld [vmem:[%s1 + $0x1158] sm:$0xff]
  %v642 = vld [vmem:[%s1 + $0x1160] sm:$0xff]
  %v643 = vld [vmem:[%s1 + $0x1168] sm:$0xff]
  %v644 = vld [vmem:[%s1 + $0x1170] sm:$0xff]
  %v645 = vld [vmem:[%s1 + $0x1178] sm:$0xff]
  %v646 = vld [vmem:[%s1 + $0x1180] sm:$0xff]
  %v647 = vld [vmem:[%s1 + $0x1188] sm:$0xff]
  %v648 = vld [vmem:[%s1 + $0x1190] sm:$0xff]
  %v649 = vld [vmem:[%s1 + $0x1198] sm:$0xff]
  %v650 = vld [vmem:[%s1 + $0x11a0] sm:$0xff]
  %v651 = vld [vmem:[%s1 + $0x11a8] sm:$0xff]
  %v652 = vld [vmem:[%s1 + $0x11b0] sm:$0xff]
  %v653 = vld [vmem:[%s1 + $0x11b8] sm:$0xff]
  %v654 = vld [vmem:[%s1 + $0x11c0] sm:$0xff]
  %v655 = vld [vmem:[%s1 + $0x11c8] sm:$0xff]
  %v656 = vld [vmem:[%s1 + $0x11d0] sm:$0xff]
  %v657 = vld [vmem:[%s1 + $0x11d8] sm:$0xff]
  %v658 = vld [vmem:[%s1 + $0x11e0] sm:$0xff]
  %v659 = vld [vmem:[%s1 + $0x11e8] sm:$0xff]
  %v660 = vld [vmem:[%s1 + $0x11f0] sm:$0xff]
  %v661 = vld [vmem:[%s1 + $0x11f8] sm:$0xff]
  %v662 = vld [vmem:[%s2] sm:$0x3]
  %v664 = vlaneseq
  %v665 = vshrl.u32 %v664, 7
  %v666 = vsub.s32 0, %v665
  %v667 = vrot.slane %v662, %v666
  %v668 = vlaneseq
  %v669 = vshrl.u32 %v668, 7
  %v670 = vsub.s32 1, %v669
  %v671 = vrot.slane %v662, %v670
  %674 = vmatprep.subr.mxu0 %v87
  %675 = vmatpush1.msra.mxu0 %v86
  %676 = vmatprep.subr.mxu0 %v89
  %677 = vmatpush1.msra.mxu0 %v88
  %678 = vmatprep.subr.mxu0 %v91
  %679 = vmatpush1.msra.mxu0 %v90
  %680 = vmatprep.subr.mxu0 %v93
  %681 = vmatpush1.msra.mxu0 %v92
  %682 = vmatprep.subr.mxu0 %v95
  %683 = vmatpush1.msra.mxu0 %v94
  %684 = vmatprep.subr.mxu0 %v97
  %685 = vmatpush1.msra.mxu0 %v96
  %686 = vmatprep.subr.mxu0 %v99
  %687 = vmatpush1.msra.mxu0 %v98
  %688 = vmatprep.subr.mxu0 %v101
  %689 = vmatpush1.msra.mxu0 %v100
  %690 = vmatprep.subr.mxu0 %v103
  %691 = vmatpush1.msra.mxu0 %v102
  %692 = vmatprep.subr.mxu0 %v105
  %693 = vmatpush1.msra.mxu0 %v104
  %694 = vmatprep.subr.mxu0 %v107
  %695 = vmatpush1.msra.mxu0 %v106
  %696 = vmatprep.subr.mxu0 %v109
  %697 = vmatpush1.msra.mxu0 %v108
  %698 = vmatprep.subr.mxu0 %v111
  %699 = vmatpush1.msra.mxu0 %v110
  %700 = vmatprep.subr.mxu0 %v113
  %701 = vmatpush1.msra.mxu0 %v112
  %702 = vmatprep.subr.mxu0 %v115
  %703 = vmatpush1.msra.mxu0 %v114
  %704 = vmatprep.subr.mxu0 %v117
  %705 = vmatpush1.msra.mxu0 %v116
  %706 = vmatprep.subr.mxu0 %v119
  %707 = vmatpush1.msra.mxu0 %v118
  %708 = vmatprep.subr.mxu0 %v121
  %709 = vmatpush1.msra.mxu0 %v120
  %710 = vmatprep.subr.mxu0 %v123
  %711 = vmatpush1.msra.mxu0 %v122
  %712 = vmatprep.subr.mxu0 %v125
  %713 = vmatpush1.msra.mxu0 %v124
  %714 = vmatprep.subr.mxu0 %v127
  %715 = vmatpush1.msra.mxu0 %v126
  %716 = vmatprep.subr.mxu0 %v129
  %717 = vmatpush1.msra.mxu0 %v128
  %718 = vmatprep.subr.mxu0 %v131
  %719 = vmatpush1.msra.mxu0 %v130
  %720 = vmatprep.subr.mxu0 %v133
  %721 = vmatpush1.msra.mxu0 %v132
  %722 = vmatprep.subr.mxu0 %v135
  %723 = vmatpush1.msra.mxu0 %v134
  %724 = vmatprep.subr.mxu0 %v137
  %725 = vmatpush1.msra.mxu0 %v136
  %726 = vmatprep.subr.mxu0 %v139
  %727 = vmatpush1.msra.mxu0 %v138
  %728 = vmatprep.subr.mxu0 %v141
  %729 = vmatpush1.msra.mxu0 %v140
  %730 = vmatprep.subr.mxu0 %v143
  %731 = vmatpush1.msra.mxu0 %v142
  %732 = vmatprep.subr.mxu0 %v145
  %733 = vmatpush1.msra.mxu0 %v144
  %734 = vmatprep.subr.mxu0 %v147
  %735 = vmatpush1.msra.mxu0 %v146
  %736 = vmatprep.subr.mxu0 %v149
  %737 = vmatpush1.msra.mxu0 %v148
  %738 = vmatprep.mubr.f32.mxu0 %v15
  %739 = vmatmul.mubr.f32.gmra.mrb[0].mxu0 %v14
  %v740 = vpop.f32.mrb[0].mxu0
  %v741 = vadd.f32 %v667, %v740
  %v742 = vpop.f32.mrb[0].mxu0
  %v743 = vadd.f32 %v671, %v742
  %744 = vmatprep.mubr.f32.mxu0 %v33
  %745 = vmatmul.mubr.f32.gmra.mrb[0].mxu0 %v32
  %v746 = vpop.f32.mrb[0].mxu0
  %v747 = vadd.f32 %v667, %v746
  %v748 = vpop.f32.mrb[0].mxu0
  %v749 = vadd.f32 %v671, %v748
  %750 = vmatprep.mubr.f32.mxu0 %v51
  %751 = vmatmul.mubr.f32.gmra.mrb[0].mxu0 %v50
  %v752 = vpop.f32.mrb[0].mxu0
  %v753 = vadd.f32 %v667, %v752
  %v754 = vpop.f32.mrb[0].mxu0
  %v755 = vadd.f32 %v671, %v754
  %756 = vmatprep.mubr.f32.mxu0 %v69
  %757 = vmatmul.mubr.f32.gmra.mrb[0].mxu0 %v68
  %v758 = vpop.f32.mrb[0].mxu0
  %v759 = vadd.f32 %v667, %v758
  %v760 = vpop.f32.mrb[0].mxu0
  %v761 = vadd.f32 %v671, %v760
  %762 = vdwg.mxu0
  %763 = vmatprep.subr.mxu0 %v151
  %764 = vmatpush1.msra.mxu0 %v150
  %765 = vmatprep.subr.mxu0 %v153
  %766 = vmatpush1.msra.mxu0 %v152
  %767 = vmatprep.subr.mxu0 %v155
  %768 = vmatpush1.msra.mxu0 %v154
  %769 = vmatprep.subr.mxu0 %v157
  %770 = vmatpush1.msra.mxu0 %v156
  %771 = vmatprep.subr.mxu0 %v159
  %772 = vmatpush1.msra.mxu0 %v158
  %773 = vmatprep.subr.mxu0 %v161
  %774 = vmatpush1.msra.mxu0 %v160
  %775 = vmatprep.subr.mxu0 %v163
  %776 = vmatpush1.msra.mxu0 %v162
  %777 = vmatprep.subr.mxu0 %v165
  %778 = vmatpush1.msra.mxu0 %v164
  %779 = vmatprep.subr.mxu0 %v167
  %780 = vmatpush1.msra.mxu0 %v166
  %781 = vmatprep.subr.mxu0 %v169
  %782 = vmatpush1.msra.mxu0 %v168
  %783 = vmatprep.subr.mxu0 %v171
  %784 = vmatpush1.msra.mxu0 %v170
  %785 = vmatprep.subr.mxu0 %v173
  %786 = vmatpush1.msra.mxu0 %v172
  %787 = vmatprep.subr.mxu0 %v175
  %788 = vmatpush1.msra.mxu0 %v174
  %789 = vmatprep.subr.mxu0 %v177
  %790 = vmatpush1.msra.mxu0 %v176
  %791 = vmatprep.subr.mxu0 %v179
  %792 = vmatpush1.msra.mxu0 %v178
  %793 = vmatprep.subr.mxu0 %v181
  %794 = vmatpush1.msra.mxu0 %v180
  %795 = vmatprep.subr.mxu0 %v183
  %796 = vmatpush1.msra.mxu0 %v182
  %797 = vmatprep.subr.mxu0 %v185
  %798 = vmatpush1.msra.mxu0 %v184
  %799 = vmatprep.subr.mxu0 %v187
  %800 = vmatpush1.msra.mxu0 %v186
  %801 = vmatprep.subr.mxu0 %v189
  %802 = vmatpush1.msra.mxu0 %v188
  %803 = vmatprep.subr.mxu0 %v191
  %804 = vmatpush1.msra.mxu0 %v190
  %805 = vmatprep.subr.mxu0 %v193
  %806 = vmatpush1.msra.mxu0 %v192
  %807 = vmatprep.subr.mxu0 %v195
  %808 = vmatpush1.msra.mxu0 %v194
  %809 = vmatprep.subr.mxu0 %v197
  %810 = vmatpush1.msra.mxu0 %v196
  %811 = vmatprep.subr.mxu0 %v199
  %812 = vmatpush1.msra.mxu0 %v198
  %813 = vmatprep.subr.mxu0 %v201
  %814 = vmatpush1.msra.mxu0 %v200
  %815 = vmatprep.subr.mxu0 %v203
  %816 = vmatpush1.msra.mxu0 %v202
  %817 = vmatprep.subr.mxu0 %v205
  %818 = vmatpush1.msra.mxu0 %v204
  %819 = vmatprep.subr.mxu0 %v207
  %820 = vmatpush1.msra.mxu0 %v206
  %821 = vmatprep.subr.mxu0 %v209
  %822 = vmatpush1.msra.mxu0 %v208
  %823 = vmatprep.subr.mxu0 %v211
  %824 = vmatpush1.msra.mxu0 %v210
  %825 = vmatprep.subr.mxu0 %v213
  %826 = vmatpush1.msra.mxu0 %v212
  %827 = vmatprep.mubr.f32.mxu0 %v17
  %828 = vmatmul.mubr.f32.gmra.mrb[0].mxu0 %v16
  %v829 = vpop.f32.mrb[0].mxu0
  %v830 = vadd.f32 %v741, %v829
  %v831 = vpop.f32.mrb[0].mxu0
  %v832 = vadd.f32 %v743, %v831
  %833 = vmatprep.mubr.f32.mxu0 %v35
  %834 = vmatmul.mubr.f32.gmra.mrb[0].mxu0 %v34
  %v835 = vpop.f32.mrb[0].mxu0
  %v836 = vadd.f32 %v747, %v835
  %v837 = vpop.f32.mrb[0].mxu0
  %v838 = vadd.f32 %v749, %v837
  %839 = vmatprep.mubr.f32.mxu0 %v53
  %840 = vmatmul.mubr.f32.gmra.mrb[0].mxu0 %v52
  %v841 = vpop.f32.mrb[0].mxu0
  %v842 = vadd.f32 %v753, %v841
  %v843 = vpop.f32.mrb[0].mxu0
  %v844 = vadd.f32 %v755, %v843
  %845 = vmatprep.mubr.f32.mxu0 %v71
  %846 = vmatmul.mubr.f32.gmra.mrb[0].mxu0 %v70
  %v847 = vpop.f32.mrb[0].mxu0
  %v848 = vadd.f32 %v759, %v847
  %v849 = vpop.f32.mrb[0].mxu0
  %v850 = vadd.f32 %v761, %v849
  %851 = vdwg.mxu0
  %852 = vmatprep.subr.mxu0 %v215
  %853 = vmatpush1.msra.mxu0 %v214
  %854 = vmatprep.subr.mxu0 %v217
  %855 = vmatpush1.msra.mxu0 %v216
  %856 = vmatprep.subr.mxu0 %v219
  %857 = vmatpush1.msra.mxu0 %v218
  %858 = vmatprep.subr.mxu0 %v221
  %859 = vmatpush1.msra.mxu0 %v220
  %860 = vmatprep.subr.mxu0 %v223
  %861 = vmatpush1.msra.mxu0 %v222
  %862 = vmatprep.subr.mxu0 %v225
  %863 = vmatpush1.msra.mxu0 %v224
  %864 = vmatprep.subr.mxu0 %v227
  %865 = vmatpush1.msra.mxu0 %v226
  %866 = vmatprep.subr.mxu0 %v229
  %867 = vmatpush1.msra.mxu0 %v228
  %868 = vmatprep.subr.mxu0 %v231
  %869 = vmatpush1.msra.mxu0 %v230
  %870 = vmatprep.subr.mxu0 %v233
  %871 = vmatpush1.msra.mxu0 %v232
  %872 = vmatprep.subr.mxu0 %v235
  %873 = vmatpush1.msra.mxu0 %v234
  %874 = vmatprep.subr.mxu0 %v237
  %875 = vmatpush1.msra.mxu0 %v236
  %876 = vmatprep.subr.mxu0 %v239
  %877 = vmatpush1.msra.mxu0 %v238
  %878 = vmatprep.subr.mxu0 %v241
  %879 = vmatpush1.msra.mxu0 %v240
  %880 = vmatprep.subr.mxu0 %v243
  %881 = vmatpush1.msra.mxu0 %v242
  %882 = vmatprep.subr.mxu0 %v245
  %883 = vmatpush1.msra.mxu0 %v244
  %884 = vmatprep.subr.mxu0 %v247
  %885 = vmatpush1.msra.mxu0 %v246
  %886 = vmatprep.subr.mxu0 %v249
  %887 = vmatpush1.msra.mxu0 %v248
  %888 = vmatprep.subr.mxu0 %v251
  %889 = vmatpush1.msra.mxu0 %v250
  %890 = vmatprep.subr.mxu0 %v253
  %891 = vmatpush1.msra.mxu0 %v252
  %892 = vmatprep.subr.mxu0 %v255
  %893 = vmatpush1.msra.mxu0 %v254
  %894 = vmatprep.subr.mxu0 %v257
  %895 = vmatpush1.msra.mxu0 %v256
  %896 = vmatprep.subr.mxu0 %v259
  %897 = vmatpush1.msra.mxu0 %v258
  %898 = vmatprep.subr.mxu0 %v261
  %899 = vmatpush1.msra.mxu0 %v260
  %900 = vmatprep.subr.mxu0 %v263
  %901 = vmatpush1.msra.mxu0 %v262
  %902 = vmatprep.subr.mxu0 %v265
  %903 = vmatpush1.msra.mxu0 %v264
  %904 = vmatprep.subr.mxu0 %v267
  %905 = vmatpush1.msra.mxu0 %v266
  %906 = vmatprep.subr.mxu0 %v269
  %907 = vmatpush1.msra.mxu0 %v268
  %908 = vmatprep.subr.mxu0 %v271
  %909 = vmatpush1.msra.mxu0 %v270
  %910 = vmatprep.subr.mxu0 %v273
  %911 = vmatpush1.msra.mxu0 %v272
  %912 = vmatprep.subr.mxu0 %v275
  %913 = vmatpush1.msra.mxu0 %v274
  %914 = vmatprep.subr.mxu0 %v277
  %915 = vmatpush1.msra.mxu0 %v276
  %916 = vmatprep.mubr.f32.mxu0 %v19
  %917 = vmatmul.mubr.f32.gmra.mrb[0].mxu0 %v18
  %v918 = vpop.f32.mrb[0].mxu0
  %v919 = vadd.f32 %v830, %v918
  %v920 = vpop.f32.mrb[0].mxu0
  %v921 = vadd.f32 %v832, %v920
  %922 = vmatprep.mubr.f32.mxu0 %v37
  %923 = vmatmul.mubr.f32.gmra.mrb[0].mxu0 %v36
  %v924 = vpop.f32.mrb[0].mxu0
  %v925 = vadd.f32 %v836, %v924
  %v926 = vpop.f32.mrb[0].mxu0
  %v927 = vadd.f32 %v838, %v926
  %928 = vmatprep.mubr.f32.mxu0 %v55
  %929 = vmatmul.mubr.f32.gmra.mrb[0].mxu0 %v54
  %v930 = vpop.f32.mrb[0].mxu0
  %v931 = vadd.f32 %v842, %v930
  %v932 = vpop.f32.mrb[0].mxu0
  %v933 = vadd.f32 %v844, %v932
  %934 = vmatprep.mubr.f32.mxu0 %v73
  %935 = vmatmul.mubr.f32.gmra.mrb[0].mxu0 %v72
  %v936 = vpop.f32.mrb[0].mxu0
  %v937 = vadd.f32 %v848, %v936
  %v938 = vpop.f32.mrb[0].mxu0
  %v939 = vadd.f32 %v850, %v938
  %940 = vdwg.mxu0
  %941 = vmatprep.subr.mxu0 %v279
  %942 = vmatpush1.msra.mxu0 %v278
  %943 = vmatprep.subr.mxu0 %v281
  %944 = vmatpush1.msra.mxu0 %v280
  %945 = vmatprep.subr.mxu0 %v283
  %946 = vmatpush1.msra.mxu0 %v282
  %947 = vmatprep.subr.mxu0 %v285
  %948 = vmatpush1.msra.mxu0 %v284
  %949 = vmatprep.subr.mxu0 %v287
  %950 = vmatpush1.msra.mxu0 %v286
  %951 = vmatprep.subr.mxu0 %v289
  %952 = vmatpush1.msra.mxu0 %v288
  %953 = vmatprep.subr.mxu0 %v291
  %954 = vmatpush1.msra.mxu0 %v290
  %955 = vmatprep.subr.mxu0 %v293
  %956 = vmatpush1.msra.mxu0 %v292
  %957 = vmatprep.subr.mxu0 %v295
  %958 = vmatpush1.msra.mxu0 %v294
  %959 = vmatprep.subr.mxu0 %v297
  %960 = vmatpush1.msra.mxu0 %v296
  %961 = vmatprep.subr.mxu0 %v299
  %962 = vmatpush1.msra.mxu0 %v298
  %963 = vmatprep.subr.mxu0 %v301
  %964 = vmatpush1.msra.mxu0 %v300
  %965 = vmatprep.subr.mxu0 %v303
  %966 = vmatpush1.msra.mxu0 %v302
  %967 = vmatprep.subr.mxu0 %v305
  %968 = vmatpush1.msra.mxu0 %v304
  %969 = vmatprep.subr.mxu0 %v307
  %970 = vmatpush1.msra.mxu0 %v306
  %971 = vmatprep.subr.mxu0 %v309
  %972 = vmatpush1.msra.mxu0 %v308
  %973 = vmatprep.subr.mxu0 %v311
  %974 = vmatpush1.msra.mxu0 %v310
  %975 = vmatprep.subr.mxu0 %v313
  %976 = vmatpush1.msra.mxu0 %v312
  %977 = vmatprep.subr.mxu0 %v315
  %978 = vmatpush1.msra.mxu0 %v314
  %979 = vmatprep.subr.mxu0 %v317
  %980 = vmatpush1.msra.mxu0 %v316
  %981 = vmatprep.subr.mxu0 %v319
  %982 = vmatpush1.msra.mxu0 %v318
  %983 = vmatprep.subr.mxu0 %v321
  %984 = vmatpush1.msra.mxu0 %v320
  %985 = vmatprep.subr.mxu0 %v323
  %986 = vmatpush1.msra.mxu0 %v322
  %987 = vmatprep.subr.mxu0 %v325
  %988 = vmatpush1.msra.mxu0 %v324
  %989 = vmatprep.subr.mxu0 %v327
  %990 = vmatpush1.msra.mxu0 %v326
  %991 = vmatprep.subr.mxu0 %v329
  %992 = vmatpush1.msra.mxu0 %v328
  %993 = vmatprep.subr.mxu0 %v331
  %994 = vmatpush1.msra.mxu0 %v330
  %995 = vmatprep.subr.mxu0 %v333
  %996 = vmatpush1.msra.mxu0 %v332
  %997 = vmatprep.subr.mxu0 %v335
  %998 = vmatpush1.msra.mxu0 %v334
  %999 = vmatprep.subr.mxu0 %v337
  %1000 = vmatpush1.msra.mxu0 %v336
  %1001 = vmatprep.subr.mxu0 %v339
  %1002 = vmatpush1.msra.mxu0 %v338
  %1003 = vmatprep.subr.mxu0 %v341
  %1004 = vmatpush1.msra.mxu0 %v340
  %1005 = vmatprep.mubr.f32.mxu0 %v21
  %1006 = vmatmul.mubr.f32.gmra.mrb[0].mxu0 %v20
  %v1007 = vpop.f32.mrb[0].mxu0
  %v1008 = vadd.f32 %v919, %v1007
  %v1009 = vpop.f32.mrb[0].mxu0
  %v1010 = vadd.f32 %v921, %v1009
  %1011 = vmatprep.mubr.f32.mxu0 %v39
  %1012 = vmatmul.mubr.f32.gmra.mrb[0].mxu0 %v38
  %v1013 = vpop.f32.mrb[0].mxu0
  %v1014 = vadd.f32 %v925, %v1013
  %v1015 = vpop.f32.mrb[0].mxu0
  %v1016 = vadd.f32 %v927, %v1015
  %1017 = vmatprep.mubr.f32.mxu0 %v57
  %1018 = vmatmul.mubr.f32.gmra.mrb[0].mxu0 %v56
  %v1019 = vpop.f32.mrb[0].mxu0
  %v1020 = vadd.f32 %v931, %v1019
  %v1021 = vpop.f32.mrb[0].mxu0
  %v1022 = vadd.f32 %v933, %v1021
  %1023 = vmatprep.mubr.f32.mxu0 %v75
  %1024 = vmatmul.mubr.f32.gmra.mrb[0].mxu0 %v74
  %v1025 = vpop.f32.mrb[0].mxu0
  %v1026 = vadd.f32 %v937, %v1025
  %v1027 = vpop.f32.mrb[0].mxu0
  %v1028 = vadd.f32 %v939, %v1027
  %1029 = vdwg.mxu0
  %1030 = vmatprep.subr.mxu0 %v343
  %1031 = vmatpush1.msra.mxu0 %v342
  %1032 = vmatprep.subr.mxu0 %v345
  %1033 = vmatpush1.msra.mxu0 %v344
  %1034 = vmatprep.subr.mxu0 %v347
  %1035 = vmatpush1.msra.mxu0 %v346
  %1036 = vmatprep.subr.mxu0 %v349
  %1037 = vmatpush1.msra.mxu0 %v348
  %1038 = vmatprep.subr.mxu0 %v351
  %1039 = vmatpush1.msra.mxu0 %v350
  %1040 = vmatprep.subr.mxu0 %v353
  %1041 = vmatpush1.msra.mxu0 %v352
  %1042 = vmatprep.subr.mxu0 %v355
  %1043 = vmatpush1.msra.mxu0 %v354
  %1044 = vmatprep.subr.mxu0 %v357
  %1045 = vmatpush1.msra.mxu0 %v356
  %1046 = vmatprep.subr.mxu0 %v359
  %1047 = vmatpush1.msra.mxu0 %v358
  %1048 = vmatprep.subr.mxu0 %v361
  %1049 = vmatpush1.msra.mxu0 %v360
  %1050 = vmatprep.subr.mxu0 %v363
  %1051 = vmatpush1.msra.mxu0 %v362
  %1052 = vmatprep.subr.mxu0 %v365
  %1053 = vmatpush1.msra.mxu0 %v364
  %1054 = vmatprep.subr.mxu0 %v367
  %1055 = vmatpush1.msra.mxu0 %v366
  %1056 = vmatprep.subr.mxu0 %v369
  %1057 = vmatpush1.msra.mxu0 %v368
  %1058 = vmatprep.subr.mxu0 %v371
  %1059 = vmatpush1.msra.mxu0 %v370
  %1060 = vmatprep.subr.mxu0 %v373
  %1061 = vmatpush1.msra.mxu0 %v372
  %1062 = vmatprep.subr.mxu0 %v375
  %1063 = vmatpush1.msra.mxu0 %v374
  %1064 = vmatprep.subr.mxu0 %v377
  %1065 = vmatpush1.msra.mxu0 %v376
  %1066 = vmatprep.subr.mxu0 %v379
  %1067 = vmatpush1.msra.mxu0 %v378
  %1068 = vmatprep.subr.mxu0 %v381
  %1069 = vmatpush1.msra.mxu0 %v380
  %1070 = vmatprep.subr.mxu0 %v383
  %1071 = vmatpush1.msra.mxu0 %v382
  %1072 = vmatprep.subr.mxu0 %v385
  %1073 = vmatpush1.msra.mxu0 %v384
  %1074 = vmatprep.subr.mxu0 %v387
  %1075 = vmatpush1.msra.mxu0 %v386
  %1076 = vmatprep.subr.mxu0 %v389
  %1077 = vmatpush1.msra.mxu0 %v388
  %1078 = vmatprep.subr.mxu0 %v391
  %1079 = vmatpush1.msra.mxu0 %v390
  %1080 = vmatprep.subr.mxu0 %v393
  %1081 = vmatpush1.msra.mxu0 %v392
  %1082 = vmatprep.subr.mxu0 %v395
  %1083 = vmatpush1.msra.mxu0 %v394
  %1084 = vmatprep.subr.mxu0 %v397
  %1085 = vmatpush1.msra.mxu0 %v396
  %1086 = vmatprep.subr.mxu0 %v399
  %1087 = vmatpush1.msra.mxu0 %v398
  %1088 = vmatprep.subr.mxu0 %v401
  %1089 = vmatpush1.msra.mxu0 %v400
  %1090 = vmatprep.subr.mxu0 %v403
  %1091 = vmatpush1.msra.mxu0 %v402
  %1092 = vmatprep.subr.mxu0 %v405
  %1093 = vmatpush1.msra.mxu0 %v404
  %1094 = vmatprep.mubr.f32.mxu0 %v23
  %1095 = vmatmul.mubr.f32.gmra.mrb[0].mxu0 %v22
  %v1096 = vpop.f32.mrb[0].mxu0
  %v1097 = vadd.f32 %v1008, %v1096
  %v1098 = vpop.f32.mrb[0].mxu0
  %v1099 = vadd.f32 %v1010, %v1098
  %1100 = vmatprep.mubr.f32.mxu0 %v41
  %1101 = vmatmul.mubr.f32.gmra.mrb[0].mxu0 %v40
  %v1102 = vpop.f32.mrb[0].mxu0
  %v1103 = vadd.f32 %v1014, %v1102
  %v1104 = vpop.f32.mrb[0].mxu0
  %v1105 = vadd.f32 %v1016, %v1104
  %1106 = vmatprep.mubr.f32.mxu0 %v59
  %1107 = vmatmul.mubr.f32.gmra.mrb[0].mxu0 %v58
  %v1108 = vpop.f32.mrb[0].mxu0
  %v1109 = vadd.f32 %v1020, %v1108
  %v1110 = vpop.f32.mrb[0].mxu0
  %v1111 = vadd.f32 %v1022, %v1110
  %1112 = vmatprep.mubr.f32.mxu0 %v77
  %1113 = vmatmul.mubr.f32.gmra.mrb[0].mxu0 %v76
  %v1114 = vpop.f32.mrb[0].mxu0
  %v1115 = vadd.f32 %v1026, %v1114
  %v1116 = vpop.f32.mrb[0].mxu0
  %v1117 = vadd.f32 %v1028, %v1116
  %1118 = vdwg.mxu0
  %1119 = vmatprep.subr.mxu0 %v407
  %1120 = vmatpush1.msra.mxu0 %v406
  %1121 = vmatprep.subr.mxu0 %v409
  %1122 = vmatpush1.msra.mxu0 %v408
  %1123 = vmatprep.subr.mxu0 %v411
  %1124 = vmatpush1.msra.mxu0 %v410
  %1125 = vmatprep.subr.mxu0 %v413
  %1126 = vmatpush1.msra.mxu0 %v412
  %1127 = vmatprep.subr.mxu0 %v415
  %1128 = vmatpush1.msra.mxu0 %v414
  %1129 = vmatprep.subr.mxu0 %v417
  %1130 = vmatpush1.msra.mxu0 %v416
  %1131 = vmatprep.subr.mxu0 %v419
  %1132 = vmatpush1.msra.mxu0 %v418
  %1133 = vmatprep.subr.mxu0 %v421
  %1134 = vmatpush1.msra.mxu0 %v420
  %1135 = vmatprep.subr.mxu0 %v423
  %1136 = vmatpush1.msra.mxu0 %v422
  %1137 = vmatprep.subr.mxu0 %v425
  %1138 = vmatpush1.msra.mxu0 %v424
  %1139 = vmatprep.subr.mxu0 %v427
  %1140 = vmatpush1.msra.mxu0 %v426
  %1141 = vmatprep.subr.mxu0 %v429
  %1142 = vmatpush1.msra.mxu0 %v428
  %1143 = vmatprep.subr.mxu0 %v431
  %1144 = vmatpush1.msra.mxu0 %v430
  %1145 = vmatprep.subr.mxu0 %v433
  %1146 = vmatpush1.msra.mxu0 %v432
  %1147 = vmatprep.subr.mxu0 %v435
  %1148 = vmatpush1.msra.mxu0 %v434
  %1149 = vmatprep.subr.mxu0 %v437
  %1150 = vmatpush1.msra.mxu0 %v436
  %1151 = vmatprep.subr.mxu0 %v439
  %1152 = vmatpush1.msra.mxu0 %v438
  %1153 = vmatprep.subr.mxu0 %v441
  %1154 = vmatpush1.msra.mxu0 %v440
  %1155 = vmatprep.subr.mxu0 %v443
  %1156 = vmatpush1.msra.mxu0 %v442
  %1157 = vmatprep.subr.mxu0 %v445
  %1158 = vmatpush1.msra.mxu0 %v444
  %1159 = vmatprep.subr.mxu0 %v447
  %1160 = vmatpush1.msra.mxu0 %v446
  %1161 = vmatprep.subr.mxu0 %v449
  %1162 = vmatpush1.msra.mxu0 %v448
  %1163 = vmatprep.subr.mxu0 %v451
  %1164 = vmatpush1.msra.mxu0 %v450
  %1165 = vmatprep.subr.mxu0 %v453
  %1166 = vmatpush1.msra.mxu0 %v452
  %1167 = vmatprep.subr.mxu0 %v455
  %1168 = vmatpush1.msra.mxu0 %v454
  %1169 = vmatprep.subr.mxu0 %v457
  %1170 = vmatpush1.msra.mxu0 %v456
  %1171 = vmatprep.subr.mxu0 %v459
  %1172 = vmatpush1.msra.mxu0 %v458
  %1173 = vmatprep.subr.mxu0 %v461
  %1174 = vmatpush1.msra.mxu0 %v460
  %1175 = vmatprep.subr.mxu0 %v463
  %1176 = vmatpush1.msra.mxu0 %v462
  %1177 = vmatprep.subr.mxu0 %v465
  %1178 = vmatpush1.msra.mxu0 %v464
  %1179 = vmatprep.subr.mxu0 %v467
  %1180 = vmatpush1.msra.mxu0 %v466
  %1181 = vmatprep.subr.mxu0 %v469
  %1182 = vmatpush1.msra.mxu0 %v468
  %1183 = vmatprep.mubr.f32.mxu0 %v25
  %1184 = vmatmul.mubr.f32.gmra.mrb[0].mxu0 %v24
  %v1185 = vpop.f32.mrb[0].mxu0
  %v1186 = vadd.f32 %v1097, %v1185
  %v1187 = vpop.f32.mrb[0].mxu0
  %v1188 = vadd.f32 %v1099, %v1187
  %1189 = vmatprep.mubr.f32.mxu0 %v43
  %1190 = vmatmul.mubr.f32.gmra.mrb[0].mxu0 %v42
  %v1191 = vpop.f32.mrb[0].mxu0
  %v1192 = vadd.f32 %v1103, %v1191
  %v1193 = vpop.f32.mrb[0].mxu0
  %v1194 = vadd.f32 %v1105, %v1193
  %1195 = vmatprep.mubr.f32.mxu0 %v61
  %1196 = vmatmul.mubr.f32.gmra.mrb[0].mxu0 %v60
  %v1197 = vpop.f32.mrb[0].mxu0
  %v1198 = vadd.f32 %v1109, %v1197
  %v1199 = vpop.f32.mrb[0].mxu0
  %v1200 = vadd.f32 %v1111, %v1199
  %1201 = vmatprep.mubr.f32.mxu0 %v79
  %1202 = vmatmul.mubr.f32.gmra.mrb[0].mxu0 %v78
  %v1203 = vpop.f32.mrb[0].mxu0
  %v1204 = vadd.f32 %v1115, %v1203
  %v1205 = vpop.f32.mrb[0].mxu0
  %v1206 = vadd.f32 %v1117, %v1205
  %1207 = vdwg.mxu0
  %1208 = vmatprep.subr.mxu0 %v471
  %1209 = vmatpush1.msra.mxu0 %v470
  %1210 = vmatprep.subr.mxu0 %v473
  %1211 = vmatpush1.msra.mxu0 %v472
  %1212 = vmatprep.subr.mxu0 %v475
  %1213 = vmatpush1.msra.mxu0 %v474
  %1214 = vmatprep.subr.mxu0 %v477
  %1215 = vmatpush1.msra.mxu0 %v476
  %1216 = vmatprep.subr.mxu0 %v479
  %1217 = vmatpush1.msra.mxu0 %v478
  %1218 = vmatprep.subr.mxu0 %v481
  %1219 = vmatpush1.msra.mxu0 %v480
  %1220 = vmatprep.subr.mxu0 %v483
  %1221 = vmatpush1.msra.mxu0 %v482
  %1222 = vmatprep.subr.mxu0 %v485
  %1223 = vmatpush1.msra.mxu0 %v484
  %1224 = vmatprep.subr.mxu0 %v487
  %1225 = vmatpush1.msra.mxu0 %v486
  %1226 = vmatprep.subr.mxu0 %v489
  %1227 = vmatpush1.msra.mxu0 %v488
  %1228 = vmatprep.subr.mxu0 %v491
  %1229 = vmatpush1.msra.mxu0 %v490
  %1230 = vmatprep.subr.mxu0 %v493
  %1231 = vmatpush1.msra.mxu0 %v492
  %1232 = vmatprep.subr.mxu0 %v495
  %1233 = vmatpush1.msra.mxu0 %v494
  %1234 = vmatprep.subr.mxu0 %v497
  %1235 = vmatpush1.msra.mxu0 %v496
  %1236 = vmatprep.subr.mxu0 %v499
  %1237 = vmatpush1.msra.mxu0 %v498
  %1238 = vmatprep.subr.mxu0 %v501
  %1239 = vmatpush1.msra.mxu0 %v500
  %1240 = vmatprep.subr.mxu0 %v503
  %1241 = vmatpush1.msra.mxu0 %v502
  %1242 = vmatprep.subr.mxu0 %v505
  %1243 = vmatpush1.msra.mxu0 %v504
  %1244 = vmatprep.subr.mxu0 %v507
  %1245 = vmatpush1.msra.mxu0 %v506
  %1246 = vmatprep.subr.mxu0 %v509
  %1247 = vmatpush1.msra.mxu0 %v508
  %1248 = vmatprep.subr.mxu0 %v511
  %1249 = vmatpush1.msra.mxu0 %v510
  %1250 = vmatprep.subr.mxu0 %v513
  %1251 = vmatpush1.msra.mxu0 %v512
  %1252 = vmatprep.subr.mxu0 %v515
  %1253 = vmatpush1.msra.mxu0 %v514
  %1254 = vmatprep.subr.mxu0 %v517
  %1255 = vmatpush1.msra.mxu0 %v516
  %1256 = vmatprep.subr.mxu0 %v519
  %1257 = vmatpush1.msra.mxu0 %v518
  %1258 = vmatprep.subr.mxu0 %v521
  %1259 = vmatpush1.msra.mxu0 %v520
  %1260 = vmatprep.subr.mxu0 %v523
  %1261 = vmatpush1.msra.mxu0 %v522
  %1262 = vmatprep.subr.mxu0 %v525
  %1263 = vmatpush1.msra.mxu0 %v524
  %1264 = vmatprep.subr.mxu0 %v527
  %1265 = vmatpush1.msra.mxu0 %v526
  %1266 = vmatprep.subr.mxu0 %v529
  %1267 = vmatpush1.msra.mxu0 %v528
  %1268 = vmatprep.subr.mxu0 %v531
  %1269 = vmatpush1.msra.mxu0 %v530
  %1270 = vmatprep.subr.mxu0 %v533
  %1271 = vmatpush1.msra.mxu0 %v532
  %1272 = vmatprep.mubr.f32.mxu0 %v27
  %1273 = vmatmul.mubr.f32.gmra.mrb[0].mxu0 %v26
  %v1274 = vpop.f32.mrb[0].mxu0
  %v1275 = vadd.f32 %v1186, %v1274
  %v1276 = vpop.f32.mrb[0].mxu0
  %v1277 = vadd.f32 %v1188, %v1276
  %1278 = vmatprep.mubr.f32.mxu0 %v45
  %1279 = vmatmul.mubr.f32.gmra.mrb[0].mxu0 %v44
  %v1280 = vpop.f32.mrb[0].mxu0
  %v1281 = vadd.f32 %v1192, %v1280
  %v1282 = vpop.f32.mrb[0].mxu0
  %v1283 = vadd.f32 %v1194, %v1282
  %1284 = vmatprep.mubr.f32.mxu0 %v63
  %1285 = vmatmul.mubr.f32.gmra.mrb[0].mxu0 %v62
  %v1286 = vpop.f32.mrb[0].mxu0
  %v1287 = vadd.f32 %v1198, %v1286
  %v1288 = vpop.f32.mrb[0].mxu0
  %v1289 = vadd.f32 %v1200, %v1288
  %1290 = vmatprep.mubr.f32.mxu0 %v81
  %1291 = vmatmul.mubr.f32.gmra.mrb[0].mxu0 %v80
  %v1292 = vpop.f32.mrb[0].mxu0
  %v1293 = vadd.f32 %v1204, %v1292
  %v1294 = vpop.f32.mrb[0].mxu0
  %v1295 = vadd.f32 %v1206, %v1294
  %1296 = vdwg.mxu0
  %1297 = vmatprep.subr.mxu0 %v535
  %1298 = vmatpush1.msra.mxu0 %v534
  %1299 = vmatprep.subr.mxu0 %v537
  %1300 = vmatpush1.msra.mxu0 %v536
  %1301 = vmatprep.subr.mxu0 %v539
  %1302 = vmatpush1.msra.mxu0 %v538
  %1303 = vmatprep.subr.mxu0 %v541
  %1304 = vmatpush1.msra.mxu0 %v540
  %1305 = vmatprep.subr.mxu0 %v543
  %1306 = vmatpush1.msra.mxu0 %v542
  %1307 = vmatprep.subr.mxu0 %v545
  %1308 = vmatpush1.msra.mxu0 %v544
  %1309 = vmatprep.subr.mxu0 %v547
  %1310 = vmatpush1.msra.mxu0 %v546
  %1311 = vmatprep.subr.mxu0 %v549
  %1312 = vmatpush1.msra.mxu0 %v548
  %1313 = vmatprep.subr.mxu0 %v551
  %1314 = vmatpush1.msra.mxu0 %v550
  %1315 = vmatprep.subr.mxu0 %v553
  %1316 = vmatpush1.msra.mxu0 %v552
  %1317 = vmatprep.subr.mxu0 %v555
  %1318 = vmatpush1.msra.mxu0 %v554
  %1319 = vmatprep.subr.mxu0 %v557
  %1320 = vmatpush1.msra.mxu0 %v556
  %1321 = vmatprep.subr.mxu0 %v559
  %1322 = vmatpush1.msra.mxu0 %v558
  %1323 = vmatprep.subr.mxu0 %v561
  %1324 = vmatpush1.msra.mxu0 %v560
  %1325 = vmatprep.subr.mxu0 %v563
  %1326 = vmatpush1.msra.mxu0 %v562
  %1327 = vmatprep.subr.mxu0 %v565
  %1328 = vmatpush1.msra.mxu0 %v564
  %1329 = vmatprep.subr.mxu0 %v567
  %1330 = vmatpush1.msra.mxu0 %v566
  %1331 = vmatprep.subr.mxu0 %v569
  %1332 = vmatpush1.msra.mxu0 %v568
  %1333 = vmatprep.subr.mxu0 %v571
  %1334 = vmatpush1.msra.mxu0 %v570
  %1335 = vmatprep.subr.mxu0 %v573
  %1336 = vmatpush1.msra.mxu0 %v572
  %1337 = vmatprep.subr.mxu0 %v575
  %1338 = vmatpush1.msra.mxu0 %v574
  %1339 = vmatprep.subr.mxu0 %v577
  %1340 = vmatpush1.msra.mxu0 %v576
  %1341 = vmatprep.subr.mxu0 %v579
  %1342 = vmatpush1.msra.mxu0 %v578
  %1343 = vmatprep.subr.mxu0 %v581
  %1344 = vmatpush1.msra.mxu0 %v580
  %1345 = vmatprep.subr.mxu0 %v583
  %1346 = vmatpush1.msra.mxu0 %v582
  %1347 = vmatprep.subr.mxu0 %v585
  %1348 = vmatpush1.msra.mxu0 %v584
  %1349 = vmatprep.subr.mxu0 %v587
  %1350 = vmatpush1.msra.mxu0 %v586
  %1351 = vmatprep.subr.mxu0 %v589
  %1352 = vmatpush1.msra.mxu0 %v588
  %1353 = vmatprep.subr.mxu0 %v591
  %1354 = vmatpush1.msra.mxu0 %v590
  %1355 = vmatprep.subr.mxu0 %v593
  %1356 = vmatpush1.msra.mxu0 %v592
  %1357 = vmatprep.subr.mxu0 %v595
  %1358 = vmatpush1.msra.mxu0 %v594
  %1359 = vmatprep.subr.mxu0 %v597
  %1360 = vmatpush1.msra.mxu0 %v596
  %1361 = vmatprep.mubr.f32.mxu0 %v29
  %1362 = vmatmul.mubr.f32.gmra.mrb[0].mxu0 %v28
  %v1363 = vpop.f32.mrb[0].mxu0
  %v1364 = vadd.f32 %v1275, %v1363
  %v1365 = vpop.f32.mrb[0].mxu0
  %v1366 = vadd.f32 %v1277, %v1365
  %1367 = vmatprep.mubr.f32.mxu0 %v47
  %1368 = vmatmul.mubr.f32.gmra.mrb[0].mxu0 %v46
  %v1369 = vpop.f32.mrb[0].mxu0
  %v1370 = vadd.f32 %v1281, %v1369
  %v1371 = vpop.f32.mrb[0].mxu0
  %v1372 = vadd.f32 %v1283, %v1371
  %1373 = vmatprep.mubr.f32.mxu0 %v65
  %1374 = vmatmul.mubr.f32.gmra.mrb[0].mxu0 %v64
  %v1375 = vpop.f32.mrb[0].mxu0
  %v1376 = vadd.f32 %v1287, %v1375
  %v1377 = vpop.f32.mrb[0].mxu0
  %v1378 = vadd.f32 %v1289, %v1377
  %1379 = vmatprep.mubr.f32.mxu0 %v83
  %1380 = vmatmul.mubr.f32.gmra.mrb[0].mxu0 %v82
  %v1381 = vpop.f32.mrb[0].mxu0
  %v1382 = vadd.f32 %v1293, %v1381
  %v1383 = vpop.f32.mrb[0].mxu0
  %v1384 = vadd.f32 %v1295, %v1383
  %1385 = vdwg.mxu0
  %1386 = vmatprep.subr.mxu0 %v599
  %1387 = vmatpush1.msra.mxu0 %v598
  %1388 = vmatprep.subr.mxu0 %v601
  %1389 = vmatpush1.msra.mxu0 %v600
  %1390 = vmatprep.subr.mxu0 %v603
  %1391 = vmatpush1.msra.mxu0 %v602
  %1392 = vmatprep.subr.mxu0 %v605
  %1393 = vmatpush1.msra.mxu0 %v604
  %1394 = vmatprep.subr.mxu0 %v607
  %1395 = vmatpush1.msra.mxu0 %v606
  %1396 = vmatprep.subr.mxu0 %v609
  %1397 = vmatpush1.msra.mxu0 %v608
  %1398 = vmatprep.subr.mxu0 %v611
  %1399 = vmatpush1.msra.mxu0 %v610
  %1400 = vmatprep.subr.mxu0 %v613
  %1401 = vmatpush1.msra.mxu0 %v612
  %1402 = vmatprep.subr.mxu0 %v615
  %1403 = vmatpush1.msra.mxu0 %v614
  %1404 = vmatprep.subr.mxu0 %v617
  %1405 = vmatpush1.msra.mxu0 %v616
  %1406 = vmatprep.subr.mxu0 %v619
  %1407 = vmatpush1.msra.mxu0 %v618
  %1408 = vmatprep.subr.mxu0 %v621
  %1409 = vmatpush1.msra.mxu0 %v620
  %1410 = vmatprep.subr.mxu0 %v623
  %1411 = vmatpush1.msra.mxu0 %v622
  %1412 = vmatprep.subr.mxu0 %v625
  %1413 = vmatpush1.msra.mxu0 %v624
  %1414 = vmatprep.subr.mxu0 %v627
  %1415 = vmatpush1.msra.mxu0 %v626
  %1416 = vmatprep.subr.mxu0 %v629
  %1417 = vmatpush1.msra.mxu0 %v628
  %1418 = vmatprep.subr.mxu0 %v631
  %1419 = vmatpush1.msra.mxu0 %v630
  %1420 = vmatprep.subr.mxu0 %v633
  %1421 = vmatpush1.msra.mxu0 %v632
  %1422 = vmatprep.subr.mxu0 %v635
  %1423 = vmatpush1.msra.mxu0 %v634
  %1424 = vmatprep.subr.mxu0 %v637
  %1425 = vmatpush1.msra.mxu0 %v636
  %1426 = vmatprep.subr.mxu0 %v639
  %1427 = vmatpush1.msra.mxu0 %v638
  %1428 = vmatprep.subr.mxu0 %v641
  %1429 = vmatpush1.msra.mxu0 %v640
  %1430 = vmatprep.subr.mxu0 %v643
  %1431 = vmatpush1.msra.mxu0 %v642
  %1432 = vmatprep.subr.mxu0 %v645
  %1433 = vmatpush1.msra.mxu0 %v644
  %1434 = vmatprep.subr.mxu0 %v647
  %1435 = vmatpush1.msra.mxu0 %v646
  %1436 = vmatprep.subr.mxu0 %v649
  %1437 = vmatpush1.msra.mxu0 %v648
  %1438 = vmatprep.subr.mxu0 %v651
  %1439 = vmatpush1.msra.mxu0 %v650
  %1440 = vmatprep.subr.mxu0 %v653
  %1441 = vmatpush1.msra.mxu0 %v652
  %1442 = vmatprep.subr.mxu0 %v655
  %1443 = vmatpush1.msra.mxu0 %v654
  %1444 = vmatprep.subr.mxu0 %v657
  %1445 = vmatpush1.msra.mxu0 %v656
  %1446 = vmatprep.subr.mxu0 %v659
  %1447 = vmatpush1.msra.mxu0 %v658
  %1448 = vmatprep.subr.mxu0 %v661
  %1449 = vmatpush1.msra.mxu0 %v660
  %1450 = vmatprep.mubr.f32.mxu0 %v31
  %1451 = vmatmul.mubr.f32.gmra.mrb[0].mxu0 %v30
  %v1452 = vpop.f32.mrb[0].mxu0
  %v1453 = vadd.f32 %v1364, %v1452
  %v1454 = vpop.f32.mrb[0].mxu0
  %v1455 = vadd.f32 %v1366, %v1454
  %1456 = vmatprep.mubr.f32.mxu0 %v49
  %1457 = vmatmul.mubr.f32.gmra.mrb[0].mxu0 %v48
  %v1458 = vpop.f32.mrb[0].mxu0
  %v1459 = vadd.f32 %v1370, %v1458
  %v1460 = vpop.f32.mrb[0].mxu0
  %v1461 = vadd.f32 %v1372, %v1460
  %1462 = vmatprep.mubr.f32.mxu0 %v67
  %1463 = vmatmul.mubr.f32.gmra.mrb[0].mxu0 %v66
  %v1464 = vpop.f32.mrb[0].mxu0
  %v1465 = vadd.f32 %v1376, %v1464
  %v1466 = vpop.f32.mrb[0].mxu0
  %v1467 = vadd.f32 %v1378, %v1466
  %1468 = vmatprep.mubr.f32.mxu0 %v85
  %1469 = vmatmul.mubr.f32.gmra.mrb[0].mxu0 %v84
  %v1470 = vpop.f32.mrb[0].mxu0
  %v1471 = vadd.f32 %v1382, %v1470
  %v1472 = vpop.f32.mrb[0].mxu0
  %v1473 = vadd.f32 %v1384, %v1472
  %1474 = vdwg.mxu0
  %v1475 = vmax.f32 %v1453, 0.0
  %v1476 = vmax.f32 %v1455, 0.0
  %v1477 = vmax.f32 %v1459, 0.0
  %v1478 = vmax.f32 %v1461, 0.0
  %v1479 = vmax.f32 %v1465, 0.0
  %v1480 = vmax.f32 %v1467, 0.0
  %v1481 = vmax.f32 %v1471, 0.0
  %v1482 = vmax.f32 %v1473, 0.0
  %1483 = vst [vmem:[%s3] sm:$0xff] %v1475
  %1484 = vst [vmem:[%s3 + $0x8] sm:$0xff] %v1476
  %1485 = vst [vmem:[%s3 + $0x10] sm:$0xff] %v1477
  %1486 = vst [vmem:[%s3 + $0x18] sm:$0xff] %v1478
  %1487 = vst [vmem:[%s3 + $0x20] sm:$0xff] %v1479
  %1488 = vst [vmem:[%s3 + $0x28] sm:$0xff] %v1480
  %1489 = vst [vmem:[%s3 + $0x30] sm:$0xff] %v1481
  %1490 = vst [vmem:[%s3 + $0x38] sm:$0xff] %v1482
  // Predicated region
  $region14: #{encoder_forward_pallas.6} parent=0 // pred_check
    _
  $region15: #{encoder_forward_pallas.6} parent=0 // pred_check_branch
    %1492 = sbr.rel (0) target = $region17
  $region16: #{encoder_forward_pallas.6} parent=0 // pred_region
    _
  $region17: #{encoder_forward_pallas.6} parent=0 // pred_fallthru
    _
  // Predicated region
  $region18: #{encoder_forward_pallas.6} parent=0 // pred_check
    _
  $region19: #{encoder_forward_pallas.6} parent=0 // pred_check_branch
    %1494 = sbr.rel (0) target = $region21
  $region20: #{encoder_forward_pallas.6} parent=0 // pred_region
    _
  $region21: #{encoder_forward_pallas.6} parent=0 // pred_fallthru
    _

// kernel: encoder_forward_pallas.7
$region0: #{encoder_forward_pallas.7}
  #allocation0 [shape = 'u32[]', space=smem, size = 0x4, offset = 0x4, fixed_abs, tag = 'smem constant byte address 0x4 - core index']
  #allocation1 [shape = 'u32[144,128]{1,0:T(1,128)}', space=vmem, size = 0x12000, scoped, tag = 'internal scratch']
  %s0 = inlined_call_operand.vmem [shape: f32[2,4096], index: 0, kind: input, shape index: {}]
  %s1 = inlined_call_operand.vmem [shape: f32[4096,128], index: 1, kind: input, shape index: {}]
  %s2 = inlined_call_operand.vmem [shape: f32[1,128], index: 2, kind: input, shape index: {}]
  %s3 = inlined_call_operand.vmem [shape: f32[128,256], index: 3, kind: input, shape index: {}]
  %s4 = inlined_call_operand.vmem [shape: f32[1,256], index: 4, kind: input, shape index: {}]
  %s5 = inlined_call_operand.vmem [shape: f32[256,256], index: 5, kind: input, shape index: {}]
  %s6 = inlined_call_operand.vmem [shape: f32[1,256], index: 6, kind: input, shape index: {}]
  %s7 = inlined_call_operand.vmem [shape: f32[256,128], index: 7, kind: input, shape index: {}]
  %s8 = inlined_call_operand.vmem [shape: f32[1,128], index: 8, kind: input, shape index: {}]
  %s9 = inlined_call_operand.hbm [shape: f32[2,128], index: 9, kind: output, shape index: {0}]
  %s10 = inlined_call_operand.hbm [shape: f32[2,128], index: 10, kind: output, shape index: {1}]
  %11 = xla_tuple %s9, %s10
  %s12 = sld [smem:[#allocation0]]
  $region54: #{encoder_forward_pallas.7} parent=0
    _
  %s14 = ssub.s32 1, %s12
  %s15 = scalar_select 0, %s14, %s12
  $region1: #{encoder_forward_pallas.7} parent=0
    #allocation2 [shape = 'u8[1024]{0}', space=vmem, size = 0x400, scoped, tag = 'output window, operand 0, single buffered']
    #allocation3 [shape = 's32[1]{0}', space=sflag, size = 0x4, scoped, tag = 'scoped memory for encoder_forward_pallas.7']
    #allocation4 [shape = 'u8[1024]{0}', space=vmem, size = 0x400, scoped, tag = 'output window, operand 1, single buffered']
    #allocation5 [shape = 's32[1]{0}', space=sflag, size = 0x4, scoped, tag = 'scoped memory for encoder_forward_pallas.7']
    %16 = vsyncpa [#allocation3], 0
    %17 = vsyncpa [#allocation5], 0
    // Predicated region
    $region2: #{encoder_forward_pallas.7} parent=1 // pred_check
      _
    $region3: #{encoder_forward_pallas.7} parent=1 // pred_check_branch
      %19 = sbr.rel (0) target = $region5
    $region4: #{encoder_forward_pallas.7} parent=1 // pred_region
      _
    $region5: #{encoder_forward_pallas.7} parent=1 // pred_fallthru
      _
    // Predicated region
    $region6: #{encoder_forward_pallas.7} parent=1 // pred_check
      _
    $region7: #{encoder_forward_pallas.7} parent=1 // pred_check_branch
      %21 = sbr.rel (0) target = $region9
    $region8: #{encoder_forward_pallas.7} parent=1 // pred_region
      _
    $region9: #{encoder_forward_pallas.7} parent=1 // pred_fallthru
      _
    // Predicated region
    $region10: #{encoder_forward_pallas.7} parent=1 // pred_check
      _
    $region11: #{encoder_forward_pallas.7} parent=1 // pred_check_branch
      %23 = sbr.rel (0) target = $region13
    $region12: #{encoder_forward_pallas.7} parent=1 // pred_region
      _
    $region13: #{encoder_forward_pallas.7} parent=1 // pred_fallthru
      _
    // Predicated region
    $region14: #{encoder_forward_pallas.7} parent=1 // pred_check
      _
    $region15: #{encoder_forward_pallas.7} parent=1 // pred_check_branch
      %25 = sbr.rel (0) target = $region17
    $region16: #{encoder_forward_pallas.7} parent=1 // pred_region
      _
    $region17: #{encoder_forward_pallas.7} parent=1 // pred_fallthru
      _
    // Predicated region
    $region18: #{encoder_forward_pallas.7} parent=1 // pred_check
      _
    $region19: #{encoder_forward_pallas.7} parent=1 // pred_check_branch
      %27 = sbr.rel (0) target = $region21
    $region20: #{encoder_forward_pallas.7} parent=1 // pred_region
      _
    $region21: #{encoder_forward_pallas.7} parent=1 // pred_fallthru
      _
    // Predicated region
    $region22: #{encoder_forward_pallas.7} parent=1 // pred_check
      _
    $region23: #{encoder_forward_pallas.7} parent=1 // pred_check_branch
      %29 = sbr.rel (0) target = $region25
    $region24: #{encoder_forward_pallas.7} parent=1 // pred_region
      _
    $region25: #{encoder_forward_pallas.7} parent=1 // pred_fallthru
      _
    // Predicated region
    $region26: #{encoder_forward_pallas.7} parent=1 // pred_check
      _
    $region27: #{encoder_forward_pallas.7} parent=1 // pred_check_branch
      %31 = sbr.rel (0) target = $region29
    $region28: #{encoder_forward_pallas.7} parent=1 // pred_region
      _
    $region29: #{encoder_forward_pallas.7} parent=1 // pred_fallthru
      _
    // Predicated region
    $region30: #{encoder_forward_pallas.7} parent=1 // pred_check
      _
    $region31: #{encoder_forward_pallas.7} parent=1 // pred_check_branch
      %33 = sbr.rel (0) target = $region33
    $region32: #{encoder_forward_pallas.7} parent=1 // pred_region
      _
    $region33: #{encoder_forward_pallas.7} parent=1 // pred_fallthru
      _
    // Predicated region
    $region34: #{encoder_forward_pallas.7} parent=1 // pred_check
      _
    $region35: #{encoder_forward_pallas.7} parent=1 // pred_check_branch
      %35 = sbr.rel (0) target = $region37
    $region36: #{encoder_forward_pallas.7} parent=1 // pred_region
      _
    $region37: #{encoder_forward_pallas.7} parent=1 // pred_fallthru
      _
    %v36 = vld [vmem:[%s0] sm:$0xff]
    %v37 = vld [vmem:[%s0 + $0x8] sm:$0xff]
    %v38 = vld [vmem:[%s0 + $0x10] sm:$0xff]
    %v39 = vld [vmem:[%s0 + $0x18] sm:$0xff]
    %v40 = vld [vmem:[%s0 + $0x20] sm:$0xff]
    %v41 = vld [vmem:[%s0 + $0x28] sm:$0xff]
    %v42 = vld [vmem:[%s0 + $0x30] sm:$0xff]
    %v43 = vld [vmem:[%s0 + $0x38] sm:$0xff]
    %v44 = vld [vmem:[%s1] sm:$0xff]
    %v45 = vld [vmem:[%s1 + $0x8] sm:$0xff]
    %v46 = vld [vmem:[%s1 + $0x10] sm:$0xff]
    %v47 = vld [vmem:[%s1 + $0x18] sm:$0xff]
    %v48 = vld [vmem:[%s1 + $0x20] sm:$0xff]
    %v49 = vld [vmem:[%s1 + $0x28] sm:$0xff]
    %v50 = vld [vmem:[%s1 + $0x30] sm:$0xff]
    %v51 = vld [vmem:[%s1 + $0x38] sm:$0xff]
    %v52 = vld [vmem:[%s1 + $0x40] sm:$0xff]
    %v53 = vld [vmem:[%s1 + $0x48] sm:$0xff]
    %v54 = vld [vmem:[%s1 + $0x50] sm:$0xff]
    %v55 = vld [vmem:[%s1 + $0x58] sm:$0xff]
    %v56 = vld [vmem:[%s1 + $0x60] sm:$0xff]
    %v57 = vld [vmem:[%s1 + $0x68] sm:$0xff]
    %v58 = vld [vmem:[%s1 + $0x70] sm:$0xff]
    %v59 = vld [vmem:[%s1 + $0x78] sm:$0xff]
    %v60 = vld [vmem:[%s1 + $0x80] sm:$0xff]
    %v61 = vld [vmem:[%s1 + $0x88] sm:$0xff]
    %v62 = vld [vmem:[%s1 + $0x90] sm:$0xff]
    %v63 = vld [vmem:[%s1 + $0x98] sm:$0xff]
    %v64 = vld [vmem:[%s1 + $0xa0] sm:$0xff]
    %v65 = vld [vmem:[%s1 + $0xa8] sm:$0xff]
    %v66 = vld [vmem:[%s1 + $0xb0] sm:$0xff]
    %v67 = vld [vmem:[%s1 + $0xb8] sm:$0xff]
    %v68 = vld [vmem:[%s1 + $0xc0] sm:$0xff]
    %v69 = vld [vmem:[%s1 + $0xc8] sm:$0xff]
    %v70 = vld [vmem:[%s1 + $0xd0] sm:$0xff]
    %v71 = vld [vmem:[%s1 + $0xd8] sm:$0xff]
    %v72 = vld [vmem:[%s1 + $0xe0] sm:$0xff]
    %v73 = vld [vmem:[%s1 + $0xe8] sm:$0xff]
    %v74 = vld [vmem:[%s1 + $0xf0] sm:$0xff]
    %v75 = vld [vmem:[%s1 + $0xf8] sm:$0xff]
    %v76 = vld [vmem:[%s1 + $0x100] sm:$0xff]
    %v77 = vld [vmem:[%s1 + $0x108] sm:$0xff]
    %v78 = vld [vmem:[%s1 + $0x110] sm:$0xff]
    %v79 = vld [vmem:[%s1 + $0x118] sm:$0xff]
    %v80 = vld [vmem:[%s1 + $0x120] sm:$0xff]
    %v81 = vld [vmem:[%s1 + $0x128] sm:$0xff]
    %v82 = vld [vmem:[%s1 + $0x130] sm:$0xff]
    %v83 = vld [vmem:[%s1 + $0x138] sm:$0xff]
    %v84 = vld [vmem:[%s1 + $0x140] sm:$0xff]
    %v85 = vld [vmem:[%s1 + $0x148] sm:$0xff]
    %v86 = vld [vmem:[%s1 + $0x150] sm:$0xff]
    %v87 = vld [vmem:[%s1 + $0x158] sm:$0xff]
    %v88 = vld [vmem:[%s1 + $0x160] sm:$0xff]
    %v89 = vld [vmem:[%s1 + $0x168] sm:$0xff]
    %v90 = vld [vmem:[%s1 + $0x170] sm:$0xff]
    %v91 = vld [vmem:[%s1 + $0x178] sm:$0xff]
    %v92 = vld [vmem:[%s1 + $0x180] sm:$0xff]
    %v93 = vld [vmem:[%s1 + $0x188] sm:$0xff]
    %v94 = vld [vmem:[%s1 + $0x190] sm:$0xff]
    %v95 = vld [vmem:[%s1 + $0x198] sm:$0xff]
    %v96 = vld [vmem:[%s1 + $0x1a0] sm:$0xff]
    %v97 = vld [vmem:[%s1 + $0x1a8] sm:$0xff]
    %v98 = vld [vmem:[%s1 + $0x1b0] sm:$0xff]
    %v99 = vld [vmem:[%s1 + $0x1b8] sm:$0xff]
    %v100 = vld [vmem:[%s1 + $0x1c0] sm:$0xff]
    %v101 = vld [vmem:[%s1 + $0x1c8] sm:$0xff]
    %v102 = vld [vmem:[%s1 + $0x1d0] sm:$0xff]
    %v103 = vld [vmem:[%s1 + $0x1d8] sm:$0xff]
    %v104 = vld [vmem:[%s1 + $0x1e0] sm:$0xff]
    %v105 = vld [vmem:[%s1 + $0x1e8] sm:$0xff]
    %v106 = vld [vmem:[%s1 + $0x1f0] sm:$0xff]
    %v107 = vld [vmem:[%s1 + $0x1f8] sm:$0xff]
    %v108 = vld [vmem:[%s1 + $0x200] sm:$0xff]
    %v109 = vld [vmem:[%s1 + $0x208] sm:$0xff]
    %v110 = vld [vmem:[%s1 + $0x210] sm:$0xff]
    %v111 = vld [vmem:[%s1 + $0x218] sm:$0xff]
    %v112 = vld [vmem:[%s1 + $0x220] sm:$0xff]
    %v113 = vld [vmem:[%s1 + $0x228] sm:$0xff]
    %v114 = vld [vmem:[%s1 + $0x230] sm:$0xff]
    %v115 = vld [vmem:[%s1 + $0x238] sm:$0xff]
    %v116 = vld [vmem:[%s1 + $0x240] sm:$0xff]
    %v117 = vld [vmem:[%s1 + $0x248] sm:$0xff]
    %v118 = vld [vmem:[%s1 + $0x250] sm:$0xff]
    %v119 = vld [vmem:[%s1 + $0x258] sm:$0xff]
    %v120 = vld [vmem:[%s1 + $0x260] sm:$0xff]
    %v121 = vld [vmem:[%s1 + $0x268] sm:$0xff]
    %v122 = vld [vmem:[%s1 + $0x270] sm:$0xff]
    %v123 = vld [vmem:[%s1 + $0x278] sm:$0xff]
    %v124 = vld [vmem:[%s1 + $0x280] sm:$0xff]
    %v125 = vld [vmem:[%s1 + $0x288] sm:$0xff]
    %v126 = vld [vmem:[%s1 + $0x290] sm:$0xff]
    %v127 = vld [vmem:[%s1 + $0x298] sm:$0xff]
    %v128 = vld [vmem:[%s1 + $0x2a0] sm:$0xff]
    %v129 = vld [vmem:[%s1 + $0x2a8] sm:$0xff]
    %v130 = vld [vmem:[%s1 + $0x2b0] sm:$0xff]
    %v131 = vld [vmem:[%s1 + $0x2b8] sm:$0xff]
    %v132 = vld [vmem:[%s1 + $0x2c0] sm:$0xff]
    %v133 = vld [vmem:[%s1 + $0x2c8] sm:$0xff]
    %v134 = vld [vmem:[%s1 + $0x2d0] sm:$0xff]
    %v135 = vld [vmem:[%s1 + $0x2d8] sm:$0xff]
    %v136 = vld [vmem:[%s1 + $0x2e0] sm:$0xff]
    %v137 = vld [vmem:[%s1 + $0x2e8] sm:$0xff]
    %v138 = vld [vmem:[%s1 + $0x2f0] sm:$0xff]
    %v139 = vld [vmem:[%s1 + $0x2f8] sm:$0xff]
    %v140 = vld [vmem:[%s1 + $0x300] sm:$0xff]
    %v141 = vld [vmem:[%s1 + $0x308] sm:$0xff]
    %v142 = vld [vmem:[%s1 + $0x310] sm:$0xff]
    %v143 = vld [vmem:[%s1 + $0x318] sm:$0xff]
    %v144 = vld [vmem:[%s1 + $0x320] sm:$0xff]
    %v145 = vld [vmem:[%s1 + $0x328] sm:$0xff]
    %v146 = vld [vmem:[%s1 + $0x330] sm:$0xff]
    %v147 = vld [vmem:[%s1 + $0x338] sm:$0xff]
    %v148 = vld [vmem:[%s1 + $0x340] sm:$0xff]
    %v149 = vld [vmem:[%s1 + $0x348] sm:$0xff]
    %v150 = vld [vmem:[%s1 + $0x350] sm:$0xff]
    %v151 = vld [vmem:[%s1 + $0x358] sm:$0xff]
    %v152 = vld [vmem:[%s1 + $0x360] sm:$0xff]
    %v153 = vld [vmem:[%s1 + $0x368] sm:$0xff]
    %v154 = vld [vmem:[%s1 + $0x370] sm:$0xff]
    %v155 = vld [vmem:[%s1 + $0x378] sm:$0xff]
    %v156 = vld [vmem:[%s1 + $0x380] sm:$0xff]
    %v157 = vld [vmem:[%s1 + $0x388] sm:$0xff]
    %v158 = vld [vmem:[%s1 + $0x390] sm:$0xff]
    %v159 = vld [vmem:[%s1 + $0x398] sm:$0xff]
    %v160 = vld [vmem:[%s1 + $0x3a0] sm:$0xff]
    %v161 = vld [vmem:[%s1 + $0x3a8] sm:$0xff]
    %v162 = vld [vmem:[%s1 + $0x3b0] sm:$0xff]
    %v163 = vld [vmem:[%s1 + $0x3b8] sm:$0xff]
    %v164 = vld [vmem:[%s1 + $0x3c0] sm:$0xff]
    %v165 = vld [vmem:[%s1 + $0x3c8] sm:$0xff]
    %v166 = vld [vmem:[%s1 + $0x3d0] sm:$0xff]
    %v167 = vld [vmem:[%s1 + $0x3d8] sm:$0xff]
    %v168 = vld [vmem:[%s1 + $0x3e0] sm:$0xff]
    %v169 = vld [vmem:[%s1 + $0x3e8] sm:$0xff]
    %v170 = vld [vmem:[%s1 + $0x3f0] sm:$0xff]
    %v171 = vld [vmem:[%s1 + $0x3f8] sm:$0xff]
    %v172 = vld [vmem:[%s1 + $0x400] sm:$0xff]
    %v173 = vld [vmem:[%s1 + $0x408] sm:$0xff]
    %v174 = vld [vmem:[%s1 + $0x410] sm:$0xff]
    %v175 = vld [vmem:[%s1 + $0x418] sm:$0xff]
    %v176 = vld [vmem:[%s1 + $0x420] sm:$0xff]
    %v177 = vld [vmem:[%s1 + $0x428] sm:$0xff]
    %v178 = vld [vmem:[%s1 + $0x430] sm:$0xff]
    %v179 = vld [vmem:[%s1 + $0x438] sm:$0xff]
    %v180 = vld [vmem:[%s1 + $0x440] sm:$0xff]
    %v181 = vld [vmem:[%s1 + $0x448] sm:$0xff]
    %v182 = vld [vmem:[%s1 + $0x450] sm:$0xff]
    %v183 = vld [vmem:[%s1 + $0x458] sm:$0xff]
    %v184 = vld [vmem:[%s1 + $0x460] sm:$0xff]
    %v185 = vld [vmem:[%s1 + $0x468] sm:$0xff]
    %v186 = vld [vmem:[%s1 + $0x470] sm:$0xff]
    %v187 = vld [vmem:[%s1 + $0x478] sm:$0xff]
    %v188 = vld [vmem:[%s1 + $0x480] sm:$0xff]
    %v189 = vld [vmem:[%s1 + $0x488] sm:$0xff]
    %v190 = vld [vmem:[%s1 + $0x490] sm:$0xff]
    %v191 = vld [vmem:[%s1 + $0x498] sm:$0xff]
    %v192 = vld [vmem:[%s1 + $0x4a0] sm:$0xff]
    %v193 = vld [vmem:[%s1 + $0x4a8] sm:$0xff]
    %v194 = vld [vmem:[%s1 + $0x4b0] sm:$0xff]
    %v195 = vld [vmem:[%s1 + $0x4b8] sm:$0xff]
    %v196 = vld [vmem:[%s1 + $0x4c0] sm:$0xff]
    %v197 = vld [vmem:[%s1 + $0x4c8] sm:$0xff]
    %v198 = vld [vmem:[%s1 + $0x4d0] sm:$0xff]
    %v199 = vld [vmem:[%s1 + $0x4d8] sm:$0xff]
    %v200 = vld [vmem:[%s1 + $0x4e0] sm:$0xff]
    %v201 = vld [vmem:[%s1 + $0x4e8] sm:$0xff]
    %v202 = vld [vmem:[%s1 + $0x4f0] sm:$0xff]
    %v203 = vld [vmem:[%s1 + $0x4f8] sm:$0xff]
    %v204 = vld [vmem:[%s1 + $0x500] sm:$0xff]
    %v205 = vld [vmem:[%s1 + $0x508] sm:$0xff]
    %v206 = vld [vmem:[%s1 + $0x510] sm:$0xff]
    %v207 = vld [vmem:[%s1 + $0x518] sm:$0xff]
    %v208 = vld [vmem:[%s1 + $0x520] sm:$0xff]
    %v209 = vld [vmem:[%s1 + $0x528] sm:$0xff]
    %v210 = vld [vmem:[%s1 + $0x530] sm:$0xff]
    %v211 = vld [vmem:[%s1 + $0x538] sm:$0xff]
    %v212 = vld [vmem:[%s1 + $0x540] sm:$0xff]
    %v213 = vld [vmem:[%s1 + $0x548] sm:$0xff]
    %v214 = vld [vmem:[%s1 + $0x550] sm:$0xff]
    %v215 = vld [vmem:[%s1 + $0x558] sm:$0xff]
    %v216 = vld [vmem:[%s1 + $0x560] sm:$0xff]
    %v217 = vld [vmem:[%s1 + $0x568] sm:$0xff]
    %v218 = vld [vmem:[%s1 + $0x570] sm:$0xff]
    %v219 = vld [vmem:[%s1 + $0x578] sm:$0xff]
    %v220 = vld [vmem:[%s1 + $0x580] sm:$0xff]
    %v221 = vld [vmem:[%s1 + $0x588] sm:$0xff]
    %v222 = vld [vmem:[%s1 + $0x590] sm:$0xff]
    %v223 = vld [vmem:[%s1 + $0x598] sm:$0xff]
    %v224 = vld [vmem:[%s1 + $0x5a0] sm:$0xff]
    %v225 = vld [vmem:[%s1 + $0x5a8] sm:$0xff]
    %v226 = vld [vmem:[%s1 + $0x5b0] sm:$0xff]
    %v227 = vld [vmem:[%s1 + $0x5b8] sm:$0xff]
    %v228 = vld [vmem:[%s1 + $0x5c0] sm:$0xff]
    %v229 = vld [vmem:[%s1 + $0x5c8] sm:$0xff]
    %v230 = vld [vmem:[%s1 + $0x5d0] sm:$0xff]
    %v231 = vld [vmem:[%s1 + $0x5d8] sm:$0xff]
    %v232 = vld [vmem:[%s1 + $0x5e0] sm:$0xff]
    %v233 = vld [vmem:[%s1 + $0x5e8] sm:$0xff]
    %v234 = vld [vmem:[%s1 + $0x5f0] sm:$0xff]
    %v235 = vld [vmem:[%s1 + $0x5f8] sm:$0xff]
    %v236 = vld [vmem:[%s1 + $0x600] sm:$0xff]
    %v237 = vld [vmem:[%s1 + $0x608] sm:$0xff]
    %v238 = vld [vmem:[%s1 + $0x610] sm:$0xff]
    %v239 = vld [vmem:[%s1 + $0x618] sm:$0xff]
    %v240 = vld [vmem:[%s1 + $0x620] sm:$0xff]
    %v241 = vld [vmem:[%s1 + $0x628] sm:$0xff]
    %v242 = vld [vmem:[%s1 + $0x630] sm:$0xff]
    %v243 = vld [vmem:[%s1 + $0x638] sm:$0xff]
    %v244 = vld [vmem:[%s1 + $0x640] sm:$0xff]
    %v245 = vld [vmem:[%s1 + $0x648] sm:$0xff]
    %v246 = vld [vmem:[%s1 + $0x650] sm:$0xff]
    %v247 = vld [vmem:[%s1 + $0x658] sm:$0xff]
    %v248 = vld [vmem:[%s1 + $0x660] sm:$0xff]
    %v249 = vld [vmem:[%s1 + $0x668] sm:$0xff]
    %v250 = vld [vmem:[%s1 + $0x670] sm:$0xff]
    %v251 = vld [vmem:[%s1 + $0x678] sm:$0xff]
    %v252 = vld [vmem:[%s1 + $0x680] sm:$0xff]
    %v253 = vld [vmem:[%s1 + $0x688] sm:$0xff]
    %v254 = vld [vmem:[%s1 + $0x690] sm:$0xff]
    %v255 = vld [vmem:[%s1 + $0x698] sm:$0xff]
    %v256 = vld [vmem:[%s1 + $0x6a0] sm:$0xff]
    %v257 = vld [vmem:[%s1 + $0x6a8] sm:$0xff]
    %v258 = vld [vmem:[%s1 + $0x6b0] sm:$0xff]
    %v259 = vld [vmem:[%s1 + $0x6b8] sm:$0xff]
    %v260 = vld [vmem:[%s1 + $0x6c0] sm:$0xff]
    %v261 = vld [vmem:[%s1 + $0x6c8] sm:$0xff]
    %v262 = vld [vmem:[%s1 + $0x6d0] sm:$0xff]
    %v263 = vld [vmem:[%s1 + $0x6d8] sm:$0xff]
    %v264 = vld [vmem:[%s1 + $0x6e0] sm:$0xff]
    %v265 = vld [vmem:[%s1 + $0x6e8] sm:$0xff]
    %v266 = vld [vmem:[%s1 + $0x6f0] sm:$0xff]
    %v267 = vld [vmem:[%s1 + $0x6f8] sm:$0xff]
    %v268 = vld [vmem:[%s1 + $0x700] sm:$0xff]
    %v269 = vld [vmem:[%s1 + $0x708] sm:$0xff]
    %v270 = vld [vmem:[%s1 + $0x710] sm:$0xff]
    %v271 = vld [vmem:[%s1 + $0x718] sm:$0xff]
    %v272 = vld [vmem:[%s1 + $0x720] sm:$0xff]
    %v273 = vld [vmem:[%s1 + $0x728] sm:$0xff]
    %v274 = vld [vmem:[%s1 + $0x730] sm:$0xff]
    %v275 = vld [vmem:[%s1 + $0x738] sm:$0xff]
    %v276 = vld [vmem:[%s1 + $0x740] sm:$0xff]
    %v277 = vld [vmem:[%s1 + $0x748] sm:$0xff]
    %v278 = vld [vmem:[%s1 + $0x750] sm:$0xff]
    %v279 = vld [vmem:[%s1 + $0x758] sm:$0xff]
    %v280 = vld [vmem:[%s1 + $0x760] sm:$0xff]
    %v281 = vld [vmem:[%s1 + $0x768] sm:$0xff]
    %v282 = vld [vmem:[%s1 + $0x770] sm:$0xff]
    %v283 = vld [vmem:[%s1 + $0x778] sm:$0xff]
    %v284 = vld [vmem:[%s1 + $0x780] sm:$0xff]
    %v285 = vld [vmem:[%s1 + $0x788] sm:$0xff]
    %v286 = vld [vmem:[%s1 + $0x790] sm:$0xff]
    %v287 = vld [vmem:[%s1 + $0x798] sm:$0xff]
    %v288 = vld [vmem:[%s1 + $0x7a0] sm:$0xff]
    %v289 = vld [vmem:[%s1 + $0x7a8] sm:$0xff]
    %v290 = vld [vmem:[%s1 + $0x7b0] sm:$0xff]
    %v291 = vld [vmem:[%s1 + $0x7b8] sm:$0xff]
    %v292 = vld [vmem:[%s1 + $0x7c0] sm:$0xff]
    %v293 = vld [vmem:[%s1 + $0x7c8] sm:$0xff]
    %v294 = vld [vmem:[%s1 + $0x7d0] sm:$0xff]
    %v295 = vld [vmem:[%s1 + $0x7d8] sm:$0xff]
    %v296 = vld [vmem:[%s1 + $0x7e0] sm:$0xff]
    %v297 = vld [vmem:[%s1 + $0x7e8] sm:$0xff]
    %v298 = vld [vmem:[%s1 + $0x7f0] sm:$0xff]
    %v299 = vld [vmem:[%s1 + $0x7f8] sm:$0xff]
    %v300 = vld [vmem:[%s1 + $0x800] sm:$0xff]
    %v301 = vld [vmem:[%s1 + $0x808] sm:$0xff]
    %v302 = vld [vmem:[%s1 + $0x810] sm:$0xff]
    %v303 = vld [vmem:[%s1 + $0x818] sm:$0xff]
    %v304 = vld [vmem:[%s1 + $0x820] sm:$0xff]
    %v305 = vld [vmem:[%s1 + $0x828] sm:$0xff]
    %v306 = vld [vmem:[%s1 + $0x830] sm:$0xff]
    %v307 = vld [vmem:[%s1 + $0x838] sm:$0xff]
    %v308 = vld [vmem:[%s1 + $0x840] sm:$0xff]
    %v309 = vld [vmem:[%s1 + $0x848] sm:$0xff]
    %v310 = vld [vmem:[%s1 + $0x850] sm:$0xff]
    %v311 = vld [vmem:[%s1 + $0x858] sm:$0xff]
    %v312 = vld [vmem:[%s1 + $0x860] sm:$0xff]
    %v313 = vld [vmem:[%s1 + $0x868] sm:$0xff]
    %v314 = vld [vmem:[%s1 + $0x870] sm:$0xff]
    %v315 = vld [vmem:[%s1 + $0x878] sm:$0xff]
    %v316 = vld [vmem:[%s1 + $0x880] sm:$0xff]
    %v317 = vld [vmem:[%s1 + $0x888] sm:$0xff]
    %v318 = vld [vmem:[%s1 + $0x890] sm:$0xff]
    %v319 = vld [vmem:[%s1 + $0x898] sm:$0xff]
    %v320 = vld [vmem:[%s1 + $0x8a0] sm:$0xff]
    %v321 = vld [vmem:[%s1 + $0x8a8] sm:$0xff]
    %v322 = vld [vmem:[%s1 + $0x8b0] sm:$0xff]
    %v323 = vld [vmem:[%s1 + $0x8b8] sm:$0xff]
    %v324 = vld [vmem:[%s1 + $0x8c0] sm:$0xff]
    %v325 = vld [vmem:[%s1 + $0x8c8] sm:$0xff]
    %v326 = vld [vmem:[%s1 + $0x8d0] sm:$0xff]
    %v327 = vld [vmem:[%s1 + $0x8d8] sm:$0xff]
    %v328 = vld [vmem:[%s1 + $0x8e0] sm:$0xff]
    %v329 = vld [vmem:[%s1 + $0x8e8] sm:$0xff]
    %v330 = vld [vmem:[%s1 + $0x8f0] sm:$0xff]
    %v331 = vld [vmem:[%s1 + $0x8f8] sm:$0xff]
    %v332 = vld [vmem:[%s1 + $0x900] sm:$0xff]
    %v333 = vld [vmem:[%s1 + $0x908] sm:$0xff]
    %v334 = vld [vmem:[%s1 + $0x910] sm:$0xff]
    %v335 = vld [vmem:[%s1 + $0x918] sm:$0xff]
    %v336 = vld [vmem:[%s1 + $0x920] sm:$0xff]
    %v337 = vld [vmem:[%s1 + $0x928] sm:$0xff]
    %v338 = vld [vmem:[%s1 + $0x930] sm:$0xff]
    %v339 = vld [vmem:[%s1 + $0x938] sm:$0xff]
    %v340 = vld [vmem:[%s1 + $0x940] sm:$0xff]
    %v341 = vld [vmem:[%s1 + $0x948] sm:$0xff]
    %v342 = vld [vmem:[%s1 + $0x950] sm:$0xff]
    %v343 = vld [vmem:[%s1 + $0x958] sm:$0xff]
    %v344 = vld [vmem:[%s1 + $0x960] sm:$0xff]
    %v345 = vld [vmem:[%s1 + $0x968] sm:$0xff]
    %v346 = vld [vmem:[%s1 + $0x970] sm:$0xff]
    %v347 = vld [vmem:[%s1 + $0x978] sm:$0xff]
    %v348 = vld [vmem:[%s1 + $0x980] sm:$0xff]
    %v349 = vld [vmem:[%s1 + $0x988] sm:$0xff]
    %v350 = vld [vmem:[%s1 + $0x990] sm:$0xff]
    %v351 = vld [vmem:[%s1 + $0x998] sm:$0xff]
    %v352 = vld [vmem:[%s1 + $0x9a0] sm:$0xff]
    %v353 = vld [vmem:[%s1 + $0x9a8] sm:$0xff]
    %v354 = vld [vmem:[%s1 + $0x9b0] sm:$0xff]
    %v355 = vld [vmem:[%s1 + $0x9b8] sm:$0xff]
    %v356 = vld [vmem:[%s1 + $0x9c0] sm:$0xff]
    %v357 = vld [vmem:[%s1 + $0x9c8] sm:$0xff]
    %v358 = vld [vmem:[%s1 + $0x9d0] sm:$0xff]
    %v359 = vld [vmem:[%s1 + $0x9d8] sm:$0xff]
    %v360 = vld [vmem:[%s1 + $0x9e0] sm:$0xff]
    %v361 = vld [vmem:[%s1 + $0x9e8] sm:$0xff]
    %v362 = vld [vmem:[%s1 + $0x9f0] sm:$0xff]
    %v363 = vld [vmem:[%s1 + $0x9f8] sm:$0xff]
    %v364 = vld [vmem:[%s1 + $0xa00] sm:$0xff]
    %v365 = vld [vmem:[%s1 + $0xa08] sm:$0xff]
    %v366 = vld [vmem:[%s1 + $0xa10] sm:$0xff]
    %v367 = vld [vmem:[%s1 + $0xa18] sm:$0xff]
    %v368 = vld [vmem:[%s1 + $0xa20] sm:$0xff]
    %v369 = vld [vmem:[%s1 + $0xa28] sm:$0xff]
    %v370 = vld [vmem:[%s1 + $0xa30] sm:$0xff]
    %v371 = vld [vmem:[%s1 + $0xa38] sm:$0xff]
    %v372 = vld [vmem:[%s1 + $0xa40] sm:$0xff]
    %v373 = vld [vmem:[%s1 + $0xa48] sm:$0xff]
    %v374 = vld [vmem:[%s1 + $0xa50] sm:$0xff]
    %v375 = vld [vmem:[%s1 + $0xa58] sm:$0xff]
    %v376 = vld [vmem:[%s1 + $0xa60] sm:$0xff]
    %v377 = vld [vmem:[%s1 + $0xa68] sm:$0xff]
    %v378 = vld [vmem:[%s1 + $0xa70] sm:$0xff]
    %v379 = vld [vmem:[%s1 + $0xa78] sm:$0xff]
    %v380 = vld [vmem:[%s1 + $0xa80] sm:$0xff]
    %v381 = vld [vmem:[%s1 + $0xa88] sm:$0xff]
    %v382 = vld [vmem:[%s1 + $0xa90] sm:$0xff]
    %v383 = vld [vmem:[%s1 + $0xa98] sm:$0xff]
    %v384 = vld [vmem:[%s1 + $0xaa0] sm:$0xff]
    %v385 = vld [vmem:[%s1 + $0xaa8] sm:$0xff]
    %v386 = vld [vmem:[%s1 + $0xab0] sm:$0xff]
    %v387 = vld [vmem:[%s1 + $0xab8] sm:$0xff]
    %v388 = vld [vmem:[%s1 + $0xac0] sm:$0xff]
    %v389 = vld [vmem:[%s1 + $0xac8] sm:$0xff]
    %v390 = vld [vmem:[%s1 + $0xad0] sm:$0xff]
    %v391 = vld [vmem:[%s1 + $0xad8] sm:$0xff]
    %v392 = vld [vmem:[%s1 + $0xae0] sm:$0xff]
    %v393 = vld [vmem:[%s1 + $0xae8] sm:$0xff]
    %v394 = vld [vmem:[%s1 + $0xaf0] sm:$0xff]
    %v395 = vld [vmem:[%s1 + $0xaf8] sm:$0xff]
    %v396 = vld [vmem:[%s1 + $0xb00] sm:$0xff]
    %v397 = vld [vmem:[%s1 + $0xb08] sm:$0xff]
    %v398 = vld [vmem:[%s1 + $0xb10] sm:$0xff]
    %v399 = vld [vmem:[%s1 + $0xb18] sm:$0xff]
    %v400 = vld [vmem:[%s1 + $0xb20] sm:$0xff]
    %v401 = vld [vmem:[%s1 + $0xb28] sm:$0xff]
    %v402 = vld [vmem:[%s1 + $0xb30] sm:$0xff]
    %v403 = vld [vmem:[%s1 + $0xb38] sm:$0xff]
    %v404 = vld [vmem:[%s1 + $0xb40] sm:$0xff]
    %v405 = vld [vmem:[%s1 + $0xb48] sm:$0xff]
    %v406 = vld [vmem:[%s1 + $0xb50] sm:$0xff]
    %v407 = vld [vmem:[%s1 + $0xb58] sm:$0xff]
    %v408 = vld [vmem:[%s1 + $0xb60] sm:$0xff]
    %v409 = vld [vmem:[%s1 + $0xb68] sm:$0xff]
    %v410 = vld [vmem:[%s1 + $0xb70] sm:$0xff]
    %v411 = vld [vmem:[%s1 + $0xb78] sm:$0xff]
    %v412 = vld [vmem:[%s1 + $0xb80] sm:$0xff]
    %v413 = vld [vmem:[%s1 + $0xb88] sm:$0xff]
    %v414 = vld [vmem:[%s1 + $0xb90] sm:$0xff]
    %v415 = vld [vmem:[%s1 + $0xb98] sm:$0xff]
    %v416 = vld [vmem:[%s1 + $0xba0] sm:$0xff]
    %v417 = vld [vmem:[%s1 + $0xba8] sm:$0xff]
    %v418 = vld [vmem:[%s1 + $0xbb0] sm:$0xff]
    %v419 = vld [vmem:[%s1 + $0xbb8] sm:$0xff]
    %v420 = vld [vmem:[%s1 + $0xbc0] sm:$0xff]
    %v421 = vld [vmem:[%s1 + $0xbc8] sm:$0xff]
    %v422 = vld [vmem:[%s1 + $0xbd0] sm:$0xff]
    %v423 = vld [vmem:[%s1 + $0xbd8] sm:$0xff]
    %v424 = vld [vmem:[%s1 + $0xbe0] sm:$0xff]
    %v425 = vld [vmem:[%s1 + $0xbe8] sm:$0xff]
    %v426 = vld [vmem:[%s1 + $0xbf0] sm:$0xff]
    %v427 = vld [vmem:[%s1 + $0xbf8] sm:$0xff]
    %v428 = vld [vmem:[%s1 + $0xc00] sm:$0xff]
    %v429 = vld [vmem:[%s1 + $0xc08] sm:$0xff]
    %v430 = vld [vmem:[%s1 + $0xc10] sm:$0xff]
    %v431 = vld [vmem:[%s1 + $0xc18] sm:$0xff]
    %v432 = vld [vmem:[%s1 + $0xc20] sm:$0xff]
    %v433 = vld [vmem:[%s1 + $0xc28] sm:$0xff]
    %v434 = vld [vmem:[%s1 + $0xc30] sm:$0xff]
    %v435 = vld [vmem:[%s1 + $0xc38] sm:$0xff]
    %v436 = vld [vmem:[%s1 + $0xc40] sm:$0xff]
    %v437 = vld [vmem:[%s1 + $0xc48] sm:$0xff]
    %v438 = vld [vmem:[%s1 + $0xc50] sm:$0xff]
    %v439 = vld [vmem:[%s1 + $0xc58] sm:$0xff]
    %v440 = vld [vmem:[%s1 + $0xc60] sm:$0xff]
    %v441 = vld [vmem:[%s1 + $0xc68] sm:$0xff]
    %v442 = vld [vmem:[%s1 + $0xc70] sm:$0xff]
    %v443 = vld [vmem:[%s1 + $0xc78] sm:$0xff]
    %v444 = vld [vmem:[%s1 + $0xc80] sm:$0xff]
    %v445 = vld [vmem:[%s1 + $0xc88] sm:$0xff]
    %v446 = vld [vmem:[%s1 + $0xc90] sm:$0xff]
    %v447 = vld [vmem:[%s1 + $0xc98] sm:$0xff]
    %v448 = vld [vmem:[%s1 + $0xca0] sm:$0xff]
    %v449 = vld [vmem:[%s1 + $0xca8] sm:$0xff]
    %v450 = vld [vmem:[%s1 + $0xcb0] sm:$0xff]
    %v451 = vld [vmem:[%s1 + $0xcb8] sm:$0xff]
    %v452 = vld [vmem:[%s1 + $0xcc0] sm:$0xff]
    %v453 = vld [vmem:[%s1 + $0xcc8] sm:$0xff]
    %v454 = vld [vmem:[%s1 + $0xcd0] sm:$0xff]
    %v455 = vld [vmem:[%s1 + $0xcd8] sm:$0xff]
    %v456 = vld [vmem:[%s1 + $0xce0] sm:$0xff]
    %v457 = vld [vmem:[%s1 + $0xce8] sm:$0xff]
    %v458 = vld [vmem:[%s1 + $0xcf0] sm:$0xff]
    %v459 = vld [vmem:[%s1 + $0xcf8] sm:$0xff]
    %v460 = vld [vmem:[%s1 + $0xd00] sm:$0xff]
    %v461 = vld [vmem:[%s1 + $0xd08] sm:$0xff]
    %v462 = vld [vmem:[%s1 + $0xd10] sm:$0xff]
    %v463 = vld [vmem:[%s1 + $0xd18] sm:$0xff]
    %v464 = vld [vmem:[%s1 + $0xd20] sm:$0xff]
    %v465 = vld [vmem:[%s1 + $0xd28] sm:$0xff]
    %v466 = vld [vmem:[%s1 + $0xd30] sm:$0xff]
    %v467 = vld [vmem:[%s1 + $0xd38] sm:$0xff]
    %v468 = vld [vmem:[%s1 + $0xd40] sm:$0xff]
    %v469 = vld [vmem:[%s1 + $0xd48] sm:$0xff]
    %v470 = vld [vmem:[%s1 + $0xd50] sm:$0xff]
    %v471 = vld [vmem:[%s1 + $0xd58] sm:$0xff]
    %v472 = vld [vmem:[%s1 + $0xd60] sm:$0xff]
    %v473 = vld [vmem:[%s1 + $0xd68] sm:$0xff]
    %v474 = vld [vmem:[%s1 + $0xd70] sm:$0xff]
    %v475 = vld [vmem:[%s1 + $0xd78] sm:$0xff]
    %v476 = vld [vmem:[%s1 + $0xd80] sm:$0xff]
    %v477 = vld [vmem:[%s1 + $0xd88] sm:$0xff]
    %v478 = vld [vmem:[%s1 + $0xd90] sm:$0xff]
    %v479 = vld [vmem:[%s1 + $0xd98] sm:$0xff]
    %v480 = vld [vmem:[%s1 + $0xda0] sm:$0xff]
    %v481 = vld [vmem:[%s1 + $0xda8] sm:$0xff]
    %v482 = vld [vmem:[%s1 + $0xdb0] sm:$0xff]
    %v483 = vld [vmem:[%s1 + $0xdb8] sm:$0xff]
    %v484 = vld [vmem:[%s1 + $0xdc0] sm:$0xff]
    %v485 = vld [vmem:[%s1 + $0xdc8] sm:$0xff]
    %v486 = vld [vmem:[%s1 + $0xdd0] sm:$0xff]
    %v487 = vld [vmem:[%s1 + $0xdd8] sm:$0xff]
    %v488 = vld [vmem:[%s1 + $0xde0] sm:$0xff]
    %v489 = vld [vmem:[%s1 + $0xde8] sm:$0xff]
    %v490 = vld [vmem:[%s1 + $0xdf0] sm:$0xff]
    %v491 = vld [vmem:[%s1 + $0xdf8] sm:$0xff]
    %v492 = vld [vmem:[%s1 + $0xe00] sm:$0xff]
    %v493 = vld [vmem:[%s1 + $0xe08] sm:$0xff]
    %v494 = vld [vmem:[%s1 + $0xe10] sm:$0xff]
    %v495 = vld [vmem:[%s1 + $0xe18] sm:$0xff]
    %v496 = vld [vmem:[%s1 + $0xe20] sm:$0xff]
    %v497 = vld [vmem:[%s1 + $0xe28] sm:$0xff]
    %v498 = vld [vmem:[%s1 + $0xe30] sm:$0xff]
    %v499 = vld [vmem:[%s1 + $0xe38] sm:$0xff]
    %v500 = vld [vmem:[%s1 + $0xe40] sm:$0xff]
    %v501 = vld [vmem:[%s1 + $0xe48] sm:$0xff]
    %v502 = vld [vmem:[%s1 + $0xe50] sm:$0xff]
    %v503 = vld [vmem:[%s1 + $0xe58] sm:$0xff]
    %v504 = vld [vmem:[%s1 + $0xe60] sm:$0xff]
    %v505 = vld [vmem:[%s1 + $0xe68] sm:$0xff]
    %v506 = vld [vmem:[%s1 + $0xe70] sm:$0xff]
    %v507 = vld [vmem:[%s1 + $0xe78] sm:$0xff]
    %v508 = vld [vmem:[%s1 + $0xe80] sm:$0xff]
    %v509 = vld [vmem:[%s1 + $0xe88] sm:$0xff]
    %v510 = vld [vmem:[%s1 + $0xe90] sm:$0xff]
    %v511 = vld [vmem:[%s1 + $0xe98] sm:$0xff]
    %v512 = vld [vmem:[%s1 + $0xea0] sm:$0xff]
    %v513 = vld [vmem:[%s1 + $0xea8] sm:$0xff]
    %v514 = vld [vmem:[%s1 + $0xeb0] sm:$0xff]
    %v515 = vld [vmem:[%s1 + $0xeb8] sm:$0xff]
    %v516 = vld [vmem:[%s1 + $0xec0] sm:$0xff]
    %v517 = vld [vmem:[%s1 + $0xec8] sm:$0xff]
    %v518 = vld [vmem:[%s1 + $0xed0] sm:$0xff]
    %v519 = vld [vmem:[%s1 + $0xed8] sm:$0xff]
    %v520 = vld [vmem:[%s1 + $0xee0] sm:$0xff]
    %v521 = vld [vmem:[%s1 + $0xee8] sm:$0xff]
    %v522 = vld [vmem:[%s1 + $0xef0] sm:$0xff]
    %v523 = vld [vmem:[%s1 + $0xef8] sm:$0xff]
    %v524 = vld [vmem:[%s1 + $0xf00] sm:$0xff]
    %v525 = vld [vmem:[%s1 + $0xf08] sm:$0xff]
    %v526 = vld [vmem:[%s1 + $0xf10] sm:$0xff]
    %v527 = vld [vmem:[%s1 + $0xf18] sm:$0xff]
    %v528 = vld [vmem:[%s1 + $0xf20] sm:$0xff]
    %v529 = vld [vmem:[%s1 + $0xf28] sm:$0xff]
    %v530 = vld [vmem:[%s1 + $0xf30] sm:$0xff]
    %v531 = vld [vmem:[%s1 + $0xf38] sm:$0xff]
    %v532 = vld [vmem:[%s1 + $0xf40] sm:$0xff]
    %v533 = vld [vmem:[%s1 + $0xf48] sm:$0xff]
    %v534 = vld [vmem:[%s1 + $0xf50] sm:$0xff]
    %v535 = vld [vmem:[%s1 + $0xf58] sm:$0xff]
    %v536 = vld [vmem:[%s1 + $0xf60] sm:$0xff]
    %v537 = vld [vmem:[%s1 + $0xf68] sm:$0xff]
    %v538 = vld [vmem:[%s1 + $0xf70] sm:$0xff]
    %v539 = vld [vmem:[%s1 + $0xf78] sm:$0xff]
    %v540 = vld [vmem:[%s1 + $0xf80] sm:$0xff]
    %v541 = vld [vmem:[%s1 + $0xf88] sm:$0xff]
    %v542 = vld [vmem:[%s1 + $0xf90] sm:$0xff]
    %v543 = vld [vmem:[%s1 + $0xf98] sm:$0xff]
    %v544 = vld [vmem:[%s1 + $0xfa0] sm:$0xff]
    %v545 = vld [vmem:[%s1 + $0xfa8] sm:$0xff]
    %v546 = vld [vmem:[%s1 + $0xfb0] sm:$0xff]
    %v547 = vld [vmem:[%s1 + $0xfb8] sm:$0xff]
    %v548 = vld [vmem:[%s1 + $0xfc0] sm:$0xff]
    %v549 = vld [vmem:[%s1 + $0xfc8] sm:$0xff]
    %v550 = vld [vmem:[%s1 + $0xfd0] sm:$0xff]
    %v551 = vld [vmem:[%s1 + $0xfd8] sm:$0xff]
    %v552 = vld [vmem:[%s1 + $0xfe0] sm:$0xff]
    %v553 = vld [vmem:[%s1 + $0xfe8] sm:$0xff]
    %v554 = vld [vmem:[%s1 + $0xff0] sm:$0xff]
    %v555 = vld [vmem:[%s1 + $0xff8] sm:$0xff]
    %v556 = vld [vmem:[%s2] sm:$0x1]
    %v558 = vlaneseq
    %v559 = vshrl.u32 %v558, 7
    %v560 = vsub.s32 0, %v559
    %v561 = vrot.slane %v556, %v560
    %v571 = vcombine.high %v36, %v36
    %v573 = vunpack.c.l.s4 1983009808
    %v574 = vunpack.c.0.s8 %v573
    %v575 = vlaneseq
    %v576 = vshrl.u32 %v575, 7
    %v577 = vsub.s32 %v574, %v576
    %v578 = vrot.slane %v36, %v577
    %v580 = vunpack.c.l.s4 1983009808
    %v581 = vunpack.c.0.s8 %v580
    %v582 = vlaneseq
    %v583 = vshrl.u32 %v582, 7
    %v584 = vsub.s32 %v581, %v583
    %v585 = vrot.slane %v571, %v584
    %v586 = vcombine.high %v578, %v578
    %v587 = vcombine.high %v585, %v585
    %v588 = vcombine.high %v37, %v37
    %v590 = vunpack.c.l.s4 1983009808
    %v591 = vunpack.c.0.s8 %v590
    %v592 = vlaneseq
    %v593 = vshrl.u32 %v592, 7
    %v594 = vsub.s32 %v591, %v593
    %v595 = vrot.slane %v37, %v594
    %v597 = vunpack.c.l.s4 1983009808
    %v598 = vunpack.c.0.s8 %v597
    %v599 = vlaneseq
    %v600 = vshrl.u32 %v599, 7
    %v601 = vsub.s32 %v598, %v600
    %v602 = vrot.slane %v588, %v601
    %v603 = vcombine.high %v595, %v595
    %v604 = vcombine.high %v602, %v602
    %v605 = vcombine.high %v38, %v38
    %v607 = vunpack.c.l.s4 1983009808
    %v608 = vunpack.c.0.s8 %v607
    %v609 = vlaneseq
    %v610 = vshrl.u32 %v609, 7
    %v611 = vsub.s32 %v608, %v610
    %v612 = vrot.slane %v38, %v611
    %v614 = vunpack.c.l.s4 1983009808
    %v615 = vunpack.c.0.s8 %v614
    %v616 = vlaneseq
    %v617 = vshrl.u32 %v616, 7
    %v618 = vsub.s32 %v615, %v617
    %v619 = vrot.slane %v605, %v618
    %v620 = vcombine.high %v612, %v612
    %v621 = vcombine.high %v619, %v619
    %v622 = vcombine.high %v39, %v39
    %v624 = vunpack.c.l.s4 1983009808
    %v625 = vunpack.c.0.s8 %v624
    %v626 = vlaneseq
    %v627 = vshrl.u32 %v626, 7
    %v628 = vsub.s32 %v625, %v627
    %v629 = vrot.slane %v39, %v628
    %v631 = vunpack.c.l.s4 1983009808
    %v632 = vunpack.c.0.s8 %v631
    %v633 = vlaneseq
    %v634 = vshrl.u32 %v633, 7
    %v635 = vsub.s32 %v632, %v634
    %v636 = vrot.slane %v622, %v635
    %v637 = vcombine.high %v629, %v629
    %v638 = vcombine.high %v636, %v636
    %v639 = vcombine.high %v40, %v40
    %v641 = vunpack.c.l.s4 1983009808
    %v642 = vunpack.c.0.s8 %v641
    %v643 = vlaneseq
    %v644 = vshrl.u32 %v643, 7
    %v645 = vsub.s32 %v642, %v644
    %v646 = vrot.slane %v40, %v645
    %v648 = vunpack.c.l.s4 1983009808
    %v649 = vunpack.c.0.s8 %v648
    %v650 = vlaneseq
    %v651 = vshrl.u32 %v650, 7
    %v652 = vsub.s32 %v649, %v651
    %v653 = vrot.slane %v639, %v652
    %v654 = vcombine.high %v646, %v646
    %v655 = vcombine.high %v653, %v653
    %v656 = vcombine.high %v41, %v41
    %v658 = vunpack.c.l.s4 1983009808
    %v659 = vunpack.c.0.s8 %v658
    %v660 = vlaneseq
    %v661 = vshrl.u32 %v660, 7
    %v662 = vsub.s32 %v659, %v661
    %v663 = vrot.slane %v41, %v662
    %v665 = vunpack.c.l.s4 1983009808
    %v666 = vunpack.c.0.s8 %v665
    %v667 = vlaneseq
    %v668 = vshrl.u32 %v667, 7
    %v669 = vsub.s32 %v666, %v668
    %v670 = vrot.slane %v656, %v669
    %v671 = vcombine.high %v663, %v663
    %v672 = vcombine.high %v670, %v670
    %v673 = vcombine.high %v42, %v42
    %v675 = vunpack.c.l.s4 1983009808
    %v676 = vunpack.c.0.s8 %v675
    %v677 = vlaneseq
    %v678 = vshrl.u32 %v677, 7
    %v679 = vsub.s32 %v676, %v678
    %v680 = vrot.slane %v42, %v679
    %v682 = vunpack.c.l.s4 1983009808
    %v683 = vunpack.c.0.s8 %v682
    %v684 = vlaneseq
    %v685 = vshrl.u32 %v684, 7
    %v686 = vsub.s32 %v683, %v685
    %v687 = vrot.slane %v673, %v686
    %v688 = vcombine.high %v680, %v680
    %v689 = vcombine.high %v687, %v687
    %v690 = vcombine.high %v43, %v43
    %v692 = vunpack.c.l.s4 1983009808
    %v693 = vunpack.c.0.s8 %v692
    %v694 = vlaneseq
    %v695 = vshrl.u32 %v694, 7
    %v696 = vsub.s32 %v693, %v695
    %v697 = vrot.slane %v43, %v696
    %v699 = vunpack.c.l.s4 1983009808
    %v700 = vunpack.c.0.s8 %v699
    %v701 = vlaneseq
    %v702 = vshrl.u32 %v701, 7
    %v703 = vsub.s32 %v700, %v702
    %v704 = vrot.slane %v690, %v703
    %v705 = vcombine.high %v697, %v697
    %v706 = vcombine.high %v704, %v704
    %739 = vmatprep.subr.mxu0 0.0
    %740 = vmatpush1.msra.mxu0 %v44
    %741 = vmatprep.subr.mxu0 0.0
    %742 = vmatpush1.msra.mxu0 %v45
    %743 = vmatprep.subr.mxu0 0.0
    %744 = vmatpush1.msra.mxu0 %v46
    %745 = vmatprep.subr.mxu0 0.0
    %746 = vmatpush1.msra.mxu0 %v47
    %747 = vmatprep.subr.mxu0 0.0
    %748 = vmatpush1.msra.mxu0 %v48
    %749 = vmatprep.subr.mxu0 0.0
    %750 = vmatpush1.msra.mxu0 %v49
    %751 = vmatprep.subr.mxu0 0.0
    %752 = vmatpush1.msra.mxu0 %v50
    %753 = vmatprep.subr.mxu0 0.0
    %754 = vmatpush1.msra.mxu0 %v51
    %755 = vmatprep.subr.mxu0 0.0
    %756 = vmatpush1.msra.mxu0 %v52
    %757 = vmatprep.subr.mxu0 0.0
    %758 = vmatpush1.msra.mxu0 %v53
    %759 = vmatprep.subr.mxu0 0.0
    %760 = vmatpush1.msra.mxu0 %v54
    %761 = vmatprep.subr.mxu0 0.0
    %762 = vmatpush1.msra.mxu0 %v55
    %763 = vmatprep.subr.mxu0 0.0
    %764 = vmatpush1.msra.mxu0 %v56
    %765 = vmatprep.subr.mxu0 0.0
    %766 = vmatpush1.msra.mxu0 %v57
    %767 = vmatprep.subr.mxu0 0.0
    %768 = vmatpush1.msra.mxu0 %v58
    %769 = vmatprep.subr.mxu0 0.0
    %770 = vmatpush1.msra.mxu0 %v59
    %771 = vmatprep.subr.mxu0 0.0
    %772 = vmatpush1.msra.mxu0 %v60
    %773 = vmatprep.subr.mxu0 0.0
    %774 = vmatpush1.msra.mxu0 %v61
    %775 = vmatprep.subr.mxu0 0.0
    %776 = vmatpush1.msra.mxu0 %v62
    %777 = vmatprep.subr.mxu0 0.0
    %778 = vmatpush1.msra.mxu0 %v63
    %779 = vmatprep.subr.mxu0 0.0
    %780 = vmatpush1.msra.mxu0 %v64
    %781 = vmatprep.subr.mxu0 0.0
    %782 = vmatpush1.msra.mxu0 %v65
    %783 = vmatprep.subr.mxu0 0.0
    %784 = vmatpush1.msra.mxu0 %v66
    %785 = vmatprep.subr.mxu0 0.0
    %786 = vmatpush1.msra.mxu0 %v67
    %787 = vmatprep.subr.mxu0 0.0
    %788 = vmatpush1.msra.mxu0 %v68
    %789 = vmatprep.subr.mxu0 0.0
    %790 = vmatpush1.msra.mxu0 %v69
    %791 = vmatprep.subr.mxu0 0.0
    %792 = vmatpush1.msra.mxu0 %v70
    %793 = vmatprep.subr.mxu0 0.0
    %794 = vmatpush1.msra.mxu0 %v71
    %795 = vmatprep.subr.mxu0 0.0
    %796 = vmatpush1.msra.mxu0 %v72
    %797 = vmatprep.subr.mxu0 0.0
    %798 = vmatpush1.msra.mxu0 %v73
    %799 = vmatprep.subr.mxu0 0.0
    %800 = vmatpush1.msra.mxu0 %v74
    %801 = vmatprep.subr.mxu0 0.0
    %802 = vmatpush1.msra.mxu0 %v75
    %803 = vmatprep.mubr.f32.mxu0 %v586
    %804 = vmatmul.mubr.f32.gmra.mrb[0].mxu0 %v578
    %v805 = vpop.f32.mrb[0].mxu0
    %v806 = vadd.f32 %v561, %v805
    %v807 = vpop.f32.mrb[0].mxu0
    %808 = vdwg.mxu0
    %809 = vmatprep.subr.mxu0 0.0
    %810 = vmatpush1.msra.mxu0 %v76
    %811 = vmatprep.subr.mxu0 0.0
    %812 = vmatpush1.msra.mxu0 %v77
    %813 = vmatprep.subr.mxu0 0.0
    %814 = vmatpush1.msra.mxu0 %v78
    %815 = vmatprep.subr.mxu0 0.0
    %816 = vmatpush1.msra.mxu0 %v79
    %817 = vmatprep.subr.mxu0 0.0
    %818 = vmatpush1.msra.mxu0 %v80
    %819 = vmatprep.subr.mxu0 0.0
    %820 = vmatpush1.msra.mxu0 %v81
    %821 = vmatprep.subr.mxu0 0.0
    %822 = vmatpush1.msra.mxu0 %v82
    %823 = vmatprep.subr.mxu0 0.0
    %824 = vmatpush1.msra.mxu0 %v83
    %825 = vmatprep.subr.mxu0 0.0
    %826 = vmatpush1.msra.mxu0 %v84
    %827 = vmatprep.subr.mxu0 0.0
    %828 = vmatpush1.msra.mxu0 %v85
    %829 = vmatprep.subr.mxu0 0.0
    %830 = vmatpush1.msra.mxu0 %v86
    %831 = vmatprep.subr.mxu0 0.0
    %832 = vmatpush1.msra.mxu0 %v87
    %833 = vmatprep.subr.mxu0 0.0
    %834 = vmatpush1.msra.mxu0 %v88
    %835 = vmatprep.subr.mxu0 0.0
    %836 = vmatpush1.msra.mxu0 %v89
    %837 = vmatprep.subr.mxu0 0.0
    %838 = vmatpush1.msra.mxu0 %v90
    %839 = vmatprep.subr.mxu0 0.0
    %840 = vmatpush1.msra.mxu0 %v91
    %841 = vmatprep.subr.mxu0 0.0
    %842 = vmatpush1.msra.mxu0 %v92
    %843 = vmatprep.subr.mxu0 0.0
    %844 = vmatpush1.msra.mxu0 %v93
    %845 = vmatprep.subr.mxu0 0.0
    %846 = vmatpush1.msra.mxu0 %v94
    %847 = vmatprep.subr.mxu0 0.0
    %848 = vmatpush1.msra.mxu0 %v95
    %849 = vmatprep.subr.mxu0 0.0
    %850 = vmatpush1.msra.mxu0 %v96
    %851 = vmatprep.subr.mxu0 0.0
    %852 = vmatpush1.msra.mxu0 %v97
    %853 = vmatprep.subr.mxu0 0.0
    %854 = vmatpush1.msra.mxu0 %v98
    %855 = vmatprep.subr.mxu0 0.0
    %856 = vmatpush1.msra.mxu0 %v99
    %857 = vmatprep.subr.mxu0 0.0
    %858 = vmatpush1.msra.mxu0 %v100
    %859 = vmatprep.subr.mxu0 0.0
    %860 = vmatpush1.msra.mxu0 %v101
    %861 = vmatprep.subr.mxu0 0.0
    %862 = vmatpush1.msra.mxu0 %v102
    %863 = vmatprep.subr.mxu0 0.0
    %864 = vmatpush1.msra.mxu0 %v103
    %865 = vmatprep.subr.mxu0 0.0
    %866 = vmatpush1.msra.mxu0 %v104
    %867 = vmatprep.subr.mxu0 0.0
    %868 = vmatpush1.msra.mxu0 %v105
    %869 = vmatprep.subr.mxu0 0.0
    %870 = vmatpush1.msra.mxu0 %v106
    %871 = vmatprep.subr.mxu0 0.0
    %872 = vmatpush1.msra.mxu0 %v107
    %873 = vmatprep.mubr.f32.mxu0 %v587
    %874 = vmatmul.mubr.f32.gmra.mrb[0].mxu0 %v585
    %v875 = vpop.f32.mrb[0].mxu0
    %v876 = vadd.f32 %v806, %v875
    %v877 = vpop.f32.mrb[0].mxu0
    %878 = vdwg.mxu0
    %879 = vmatprep.subr.mxu0 0.0
    %880 = vmatpush1.msra.mxu0 %v108
    %881 = vmatprep.subr.mxu0 0.0
    %882 = vmatpush1.msra.mxu0 %v109
    %883 = vmatprep.subr.mxu0 0.0
    %884 = vmatpush1.msra.mxu0 %v110
    %885 = vmatprep.subr.mxu0 0.0
    %886 = vmatpush1.msra.mxu0 %v111
    %887 = vmatprep.subr.mxu0 0.0
    %888 = vmatpush1.msra.mxu0 %v112
    %889 = vmatprep.subr.mxu0 0.0
    %890 = vmatpush1.msra.mxu0 %v113
    %891 = vmatprep.subr.mxu0 0.0
    %892 = vmatpush1.msra.mxu0 %v114
    %893 = vmatprep.subr.mxu0 0.0
    %894 = vmatpush1.msra.mxu0 %v115
    %895 = vmatprep.subr.mxu0 0.0
    %896 = vmatpush1.msra.mxu0 %v116
    %897 = vmatprep.subr.mxu0 0.0
    %898 = vmatpush1.msra.mxu0 %v117
    %899 = vmatprep.subr.mxu0 0.0
    %900 = vmatpush1.msra.mxu0 %v118
    %901 = vmatprep.subr.mxu0 0.0
    %902 = vmatpush1.msra.mxu0 %v119
    %903 = vmatprep.subr.mxu0 0.0
    %904 = vmatpush1.msra.mxu0 %v120
    %905 = vmatprep.subr.mxu0 0.0
    %906 = vmatpush1.msra.mxu0 %v121
    %907 = vmatprep.subr.mxu0 0.0
    %908 = vmatpush1.msra.mxu0 %v122
    %909 = vmatprep.subr.mxu0 0.0
    %910 = vmatpush1.msra.mxu0 %v123
    %911 = vmatprep.subr.mxu0 0.0
    %912 = vmatpush1.msra.mxu0 %v124
    %913 = vmatprep.subr.mxu0 0.0
    %914 = vmatpush1.msra.mxu0 %v125
    %915 = vmatprep.subr.mxu0 0.0
    %916 = vmatpush1.msra.mxu0 %v126
    %917 = vmatprep.subr.mxu0 0.0
    %918 = vmatpush1.msra.mxu0 %v127
    %919 = vmatprep.subr.mxu0 0.0
    %920 = vmatpush1.msra.mxu0 %v128
    %921 = vmatprep.subr.mxu0 0.0
    %922 = vmatpush1.msra.mxu0 %v129
    %923 = vmatprep.subr.mxu0 0.0
    %924 = vmatpush1.msra.mxu0 %v130
    %925 = vmatprep.subr.mxu0 0.0
    %926 = vmatpush1.msra.mxu0 %v131
    %927 = vmatprep.subr.mxu0 0.0
    %928 = vmatpush1.msra.mxu0 %v132
    %929 = vmatprep.subr.mxu0 0.0
    %930 = vmatpush1.msra.mxu0 %v133
    %931 = vmatprep.subr.mxu0 0.0
    %932 = vmatpush1.msra.mxu0 %v134
    %933 = vmatprep.subr.mxu0 0.0
    %934 = vmatpush1.msra.mxu0 %v135
    %935 = vmatprep.subr.mxu0 0.0
    %936 = vmatpush1.msra.mxu0 %v136
    %937 = vmatprep.subr.mxu0 0.0
    %938 = vmatpush1.msra.mxu0 %v137
    %939 = vmatprep.subr.mxu0 0.0
    %940 = vmatpush1.msra.mxu0 %v138
    %941 = vmatprep.subr.mxu0 0.0
    %942 = vmatpush1.msra.mxu0 %v139
    %943 = vmatprep.mubr.f32.mxu0 %v603
    %944 = vmatmul.mubr.f32.gmra.mrb[0].mxu0 %v595
    %v945 = vpop.f32.mrb[0].mxu0
    %v946 = vadd.f32 %v876, %v945
    %v947 = vpop.f32.mrb[0].mxu0
    %948 = vdwg.mxu0
    %949 = vmatprep.subr.mxu0 0.0
    %950 = vmatpush1.msra.mxu0 %v140
    %951 = vmatprep.subr.mxu0 0.0
    %952 = vmatpush1.msra.mxu0 %v141
    %953 = vmatprep.subr.mxu0 0.0
    %954 = vmatpush1.msra.mxu0 %v142
    %955 = vmatprep.subr.mxu0 0.0
    %956 = vmatpush1.msra.mxu0 %v143
    %957 = vmatprep.subr.mxu0 0.0
    %958 = vmatpush1.msra.mxu0 %v144
    %959 = vmatprep.subr.mxu0 0.0
    %960 = vmatpush1.msra.mxu0 %v145
    %961 = vmatprep.subr.mxu0 0.0
    %962 = vmatpush1.msra.mxu0 %v146
    %963 = vmatprep.subr.mxu0 0.0
    %964 = vmatpush1.msra.mxu0 %v147
    %965 = vmatprep.subr.mxu0 0.0
    %966 = vmatpush1.msra.mxu0 %v148
    %967 = vmatprep.subr.mxu0 0.0
    %968 = vmatpush1.msra.mxu0 %v149
    %969 = vmatprep.subr.mxu0 0.0
    %970 = vmatpush1.msra.mxu0 %v150
    %971 = vmatprep.subr.mxu0 0.0
    %972 = vmatpush1.msra.mxu0 %v151
    %973 = vmatprep.subr.mxu0 0.0
    %974 = vmatpush1.msra.mxu0 %v152
    %975 = vmatprep.subr.mxu0 0.0
    %976 = vmatpush1.msra.mxu0 %v153
    %977 = vmatprep.subr.mxu0 0.0
    %978 = vmatpush1.msra.mxu0 %v154
    %979 = vmatprep.subr.mxu0 0.0
    %980 = vmatpush1.msra.mxu0 %v155
    %981 = vmatprep.subr.mxu0 0.0
    %982 = vmatpush1.msra.mxu0 %v156
    %983 = vmatprep.subr.mxu0 0.0
    %984 = vmatpush1.msra.mxu0 %v157
    %985 = vmatprep.subr.mxu0 0.0
    %986 = vmatpush1.msra.mxu0 %v158
    %987 = vmatprep.subr.mxu0 0.0
    %988 = vmatpush1.msra.mxu0 %v159
    %989 = vmatprep.subr.mxu0 0.0
    %990 = vmatpush1.msra.mxu0 %v160
    %991 = vmatprep.subr.mxu0 0.0
    %992 = vmatpush1.msra.mxu0 %v161
    %993 = vmatprep.subr.mxu0 0.0
    %994 = vmatpush1.msra.mxu0 %v162
    %995 = vmatprep.subr.mxu0 0.0
    %996 = vmatpush1.msra.mxu0 %v163
    %997 = vmatprep.subr.mxu0 0.0
    %998 = vmatpush1.msra.mxu0 %v164
    %999 = vmatprep.subr.mxu0 0.0
    %1000 = vmatpush1.msra.mxu0 %v165
    %1001 = vmatprep.subr.mxu0 0.0
    %1002 = vmatpush1.msra.mxu0 %v166
    %1003 = vmatprep.subr.mxu0 0.0
    %1004 = vmatpush1.msra.mxu0 %v167
    %1005 = vmatprep.subr.mxu0 0.0
    %1006 = vmatpush1.msra.mxu0 %v168
    %1007 = vmatprep.subr.mxu0 0.0
    %1008 = vmatpush1.msra.mxu0 %v169
    %1009 = vmatprep.subr.mxu0 0.0
    %1010 = vmatpush1.msra.mxu0 %v170
    %1011 = vmatprep.subr.mxu0 0.0
    %1012 = vmatpush1.msra.mxu0 %v171
    %1013 = vmatprep.mubr.f32.mxu0 %v604
    %1014 = vmatmul.mubr.f32.gmra.mrb[0].mxu0 %v602
    %v1015 = vpop.f32.mrb[0].mxu0
    %v1016 = vadd.f32 %v946, %v1015
    %v1017 = vpop.f32.mrb[0].mxu0
    %1018 = vdwg.mxu0
    %1019 = vmatprep.subr.mxu0 0.0
    %1020 = vmatpush1.msra.mxu0 %v172
    %1021 = vmatprep.subr.mxu0 0.0
    %1022 = vmatpush1.msra.mxu0 %v173
    %1023 = vmatprep.subr.mxu0 0.0
    %1024 = vmatpush1.msra.mxu0 %v174
    %1025 = vmatprep.subr.mxu0 0.0
    %1026 = vmatpush1.msra.mxu0 %v175
    %1027 = vmatprep.subr.mxu0 0.0
    %1028 = vmatpush1.msra.mxu0 %v176
    %1029 = vmatprep.subr.mxu0 0.0
    %1030 = vmatpush1.msra.mxu0 %v177
    %1031 = vmatprep.subr.mxu0 0.0
    %1032 = vmatpush1.msra.mxu0 %v178
    %1033 = vmatprep.subr.mxu0 0.0
    %1034 = vmatpush1.msra.mxu0 %v179
    %1035 = vmatprep.subr.mxu0 0.0
    %1036 = vmatpush1.msra.mxu0 %v180
    %1037 = vmatprep.subr.mxu0 0.0
    %1038 = vmatpush1.msra.mxu0 %v181
    %1039 = vmatprep.subr.mxu0 0.0
    %1040 = vmatpush1.msra.mxu0 %v182
    %1041 = vmatprep.subr.mxu0 0.0
    %1042 = vmatpush1.msra.mxu0 %v183
    %1043 = vmatprep.subr.mxu0 0.0
    %1044 = vmatpush1.msra.mxu0 %v184
    %1045 = vmatprep.subr.mxu0 0.0
    %1046 = vmatpush1.msra.mxu0 %v185
    %1047 = vmatprep.subr.mxu0 0.0
    %1048 = vmatpush1.msra.mxu0 %v186
    %1049 = vmatprep.subr.mxu0 0.0
    %1050 = vmatpush1.msra.mxu0 %v187
    %1051 = vmatprep.subr.mxu0 0.0
    %1052 = vmatpush1.msra.mxu0 %v188
    %1053 = vmatprep.subr.mxu0 0.0
    %1054 = vmatpush1.msra.mxu0 %v189
    %1055 = vmatprep.subr.mxu0 0.0
    %1056 = vmatpush1.msra.mxu0 %v190
    %1057 = vmatprep.subr.mxu0 0.0
    %1058 = vmatpush1.msra.mxu0 %v191
    %1059 = vmatprep.subr.mxu0 0.0
    %1060 = vmatpush1.msra.mxu0 %v192
    %1061 = vmatprep.subr.mxu0 0.0
    %1062 = vmatpush1.msra.mxu0 %v193
    %1063 = vmatprep.subr.mxu0 0.0
    %1064 = vmatpush1.msra.mxu0 %v194
    %1065 = vmatprep.subr.mxu0 0.0
    %1066 = vmatpush1.msra.mxu0 %v195
    %1067 = vmatprep.subr.mxu0 0.0
    %1068 = vmatpush1.msra.mxu0 %v196
    %1069 = vmatprep.subr.mxu0 0.0
    %1070 = vmatpush1.msra.mxu0 %v197
    %1071 = vmatprep.subr.mxu0 0.0
    %1072 = vmatpush1.msra.mxu0 %v198
    %1073 = vmatprep.subr.mxu0 0.0
    %1074 = vmatpush1.msra.mxu0 %v199
    %1075 = vmatprep.subr.mxu0 0.0
    %1076 = vmatpush1.msra.mxu0 %v200
    %1077 = vmatprep.subr.mxu0 0.0
    %1078 = vmatpush1.msra.mxu0 %v201
    %1079 = vmatprep.subr.mxu0 0.0
    %1080 = vmatpush1.msra.mxu0 %v202
    %1081 = vmatprep.subr.mxu0 0.0
    %1082 = vmatpush1.msra.mxu0 %v203
    %1083 = vmatprep.mubr.f32.mxu0 %v620
    %1084 = vmatmul.mubr.f32.gmra.mrb[0].mxu0 %v612
    %v1085 = vpop.f32.mrb[0].mxu0
    %v1086 = vadd.f32 %v1016, %v1085
    %v1087 = vpop.f32.mrb[0].mxu0
    %1088 = vdwg.mxu0
    %1089 = vmatprep.subr.mxu0 0.0
    %1090 = vmatpush1.msra.mxu0 %v204
    %1091 = vmatprep.subr.mxu0 0.0
    %1092 = vmatpush1.msra.mxu0 %v205
    %1093 = vmatprep.subr.mxu0 0.0
    %1094 = vmatpush1.msra.mxu0 %v206
    %1095 = vmatprep.subr.mxu0 0.0
    %1096 = vmatpush1.msra.mxu0 %v207
    %1097 = vmatprep.subr.mxu0 0.0
    %1098 = vmatpush1.msra.mxu0 %v208
    %1099 = vmatprep.subr.mxu0 0.0
    %1100 = vmatpush1.msra.mxu0 %v209
    %1101 = vmatprep.subr.mxu0 0.0
    %1102 = vmatpush1.msra.mxu0 %v210
    %1103 = vmatprep.subr.mxu0 0.0
    %1104 = vmatpush1.msra.mxu0 %v211
    %1105 = vmatprep.subr.mxu0 0.0
    %1106 = vmatpush1.msra.mxu0 %v212
    %1107 = vmatprep.subr.mxu0 0.0
    %1108 = vmatpush1.msra.mxu0 %v213
    %1109 = vmatprep.subr.mxu0 0.0
    %1110 = vmatpush1.msra.mxu0 %v214
    %1111 = vmatprep.subr.mxu0 0.0
    %1112 = vmatpush1.msra.mxu0 %v215
    %1113 = vmatprep.subr.mxu0 0.0
    %1114 = vmatpush1.msra.mxu0 %v216
    %1115 = vmatprep.subr.mxu0 0.0
    %1116 = vmatpush1.msra.mxu0 %v217
    %1117 = vmatprep.subr.mxu0 0.0
    %1118 = vmatpush1.msra.mxu0 %v218
    %1119 = vmatprep.subr.mxu0 0.0
    %1120 = vmatpush1.msra.mxu0 %v219
    %1121 = vmatprep.subr.mxu0 0.0
    %1122 = vmatpush1.msra.mxu0 %v220
    %1123 = vmatprep.subr.mxu0 0.0
    %1124 = vmatpush1.msra.mxu0 %v221
    %1125 = vmatprep.subr.mxu0 0.0
    %1126 = vmatpush1.msra.mxu0 %v222
    %1127 = vmatprep.subr.mxu0 0.0
    %1128 = vmatpush1.msra.mxu0 %v223
    %1129 = vmatprep.subr.mxu0 0.0
    %1130 = vmatpush1.msra.mxu0 %v224
    %1131 = vmatprep.subr.mxu0 0.0
    %1132 = vmatpush1.msra.mxu0 %v225
    %1133 = vmatprep.subr.mxu0 0.0
    %1134 = vmatpush1.msra.mxu0 %v226
    %1135 = vmatprep.subr.mxu0 0.0
    %1136 = vmatpush1.msra.mxu0 %v227
    %1137 = vmatprep.subr.mxu0 0.0
    %1138 = vmatpush1.msra.mxu0 %v228
    %1139 = vmatprep.subr.mxu0 0.0
    %1140 = vmatpush1.msra.mxu0 %v229
    %1141 = vmatprep.subr.mxu0 0.0
    %1142 = vmatpush1.msra.mxu0 %v230
    %1143 = vmatprep.subr.mxu0 0.0
    %1144 = vmatpush1.msra.mxu0 %v231
    %1145 = vmatprep.subr.mxu0 0.0
    %1146 = vmatpush1.msra.mxu0 %v232
    %1147 = vmatprep.subr.mxu0 0.0
    %1148 = vmatpush1.msra.mxu0 %v233
    %1149 = vmatprep.subr.mxu0 0.0
    %1150 = vmatpush1.msra.mxu0 %v234
    %1151 = vmatprep.subr.mxu0 0.0
    %1152 = vmatpush1.msra.mxu0 %v235
    %1153 = vmatprep.mubr.f32.mxu0 %v621
    %1154 = vmatmul.mubr.f32.gmra.mrb[0].mxu0 %v619
    %v1155 = vpop.f32.mrb[0].mxu0
    %v1156 = vadd.f32 %v1086, %v1155
    %v1157 = vpop.f32.mrb[0].mxu0
    %1158 = vdwg.mxu0
    %1159 = vmatprep.subr.mxu0 0.0
    %1160 = vmatpush1.msra.mxu0 %v236
    %1161 = vmatprep.subr.mxu0 0.0
    %1162 = vmatpush1.msra.mxu0 %v237
    %1163 = vmatprep.subr.mxu0 0.0
    %1164 = vmatpush1.msra.mxu0 %v238
    %1165 = vmatprep.subr.mxu0 0.0
    %1166 = vmatpush1.msra.mxu0 %v239
    %1167 = vmatprep.subr.mxu0 0.0
    %1168 = vmatpush1.msra.mxu0 %v240
    %1169 = vmatprep.subr.mxu0 0.0
    %1170 = vmatpush1.msra.mxu0 %v241
    %1171 = vmatprep.subr.mxu0 0.0
    %1172 = vmatpush1.msra.mxu0 %v242
    %1173 = vmatprep.subr.mxu0 0.0
    %1174 = vmatpush1.msra.mxu0 %v243
    %1175 = vmatprep.subr.mxu0 0.0
    %1176 = vmatpush1.msra.mxu0 %v244
    %1177 = vmatprep.subr.mxu0 0.0
    %1178 = vmatpush1.msra.mxu0 %v245
    %1179 = vmatprep.subr.mxu0 0.0
    %1180 = vmatpush1.msra.mxu0 %v246
    %1181 = vmatprep.subr.mxu0 0.0
    %1182 = vmatpush1.msra.mxu0 %v247
    %1183 = vmatprep.subr.mxu0 0.0
    %1184 = vmatpush1.msra.mxu0 %v248
    %1185 = vmatprep.subr.mxu0 0.0
    %1186 = vmatpush1.msra.mxu0 %v249
    %1187 = vmatprep.subr.mxu0 0.0
    %1188 = vmatpush1.msra.mxu0 %v250
    %1189 = vmatprep.subr.mxu0 0.0
    %1190 = vmatpush1.msra.mxu0 %v251
    %1191 = vmatprep.subr.mxu0 0.0
    %1192 = vmatpush1.msra.mxu0 %v252
    %1193 = vmatprep.subr.mxu0 0.0
    %1194 = vmatpush1.msra.mxu0 %v253
    %1195 = vmatprep.subr.mxu0 0.0
    %1196 = vmatpush1.msra.mxu0 %v254
    %1197 = vmatprep.subr.mxu0 0.0
    %1198 = vmatpush1.msra.mxu0 %v255
    %1199 = vmatprep.subr.mxu0 0.0
    %1200 = vmatpush1.msra.mxu0 %v256
    %1201 = vmatprep.subr.mxu0 0.0
    %1202 = vmatpush1.msra.mxu0 %v257
    %1203 = vmatprep.subr.mxu0 0.0
    %1204 = vmatpush1.msra.mxu0 %v258
    %1205 = vmatprep.subr.mxu0 0.0
    %1206 = vmatpush1.msra.mxu0 %v259
    %1207 = vmatprep.subr.mxu0 0.0
    %1208 = vmatpush1.msra.mxu0 %v260
    %1209 = vmatprep.subr.mxu0 0.0
    %1210 = vmatpush1.msra.mxu0 %v261
    %1211 = vmatprep.subr.mxu0 0.0
    %1212 = vmatpush1.msra.mxu0 %v262
    %1213 = vmatprep.subr.mxu0 0.0
    %1214 = vmatpush1.msra.mxu0 %v263
    %1215 = vmatprep.subr.mxu0 0.0
    %1216 = vmatpush1.msra.mxu0 %v264
    %1217 = vmatprep.subr.mxu0 0.0
    %1218 = vmatpush1.msra.mxu0 %v265
    %1219 = vmatprep.subr.mxu0 0.0
    %1220 = vmatpush1.msra.mxu0 %v266
    %1221 = vmatprep.subr.mxu0 0.0
    %1222 = vmatpush1.msra.mxu0 %v267
    %1223 = vmatprep.mubr.f32.mxu0 %v637
    %1224 = vmatmul.mubr.f32.gmra.mrb[0].mxu0 %v629
    %v1225 = vpop.f32.mrb[0].mxu0
    %v1226 = vadd.f32 %v1156, %v1225
    %v1227 = vpop.f32.mrb[0].mxu0
    %1228 = vdwg.mxu0
    %1229 = vmatprep.subr.mxu0 0.0
    %1230 = vmatpush1.msra.mxu0 %v268
    %1231 = vmatprep.subr.mxu0 0.0
    %1232 = vmatpush1.msra.mxu0 %v269
    %1233 = vmatprep.subr.mxu0 0.0
    %1234 = vmatpush1.msra.mxu0 %v270
    %1235 = vmatprep.subr.mxu0 0.0
    %1236 = vmatpush1.msra.mxu0 %v271
    %1237 = vmatprep.subr.mxu0 0.0
    %1238 = vmatpush1.msra.mxu0 %v272
    %1239 = vmatprep.subr.mxu0 0.0
    %1240 = vmatpush1.msra.mxu0 %v273
    %1241 = vmatprep.subr.mxu0 0.0
    %1242 = vmatpush1.msra.mxu0 %v274
    %1243 = vmatprep.subr.mxu0 0.0
    %1244 = vmatpush1.msra.mxu0 %v275
    %1245 = vmatprep.subr.mxu0 0.0
    %1246 = vmatpush1.msra.mxu0 %v276
    %1247 = vmatprep.subr.mxu0 0.0
    %1248 = vmatpush1.msra.mxu0 %v277
    %1249 = vmatprep.subr.mxu0 0.0
    %1250 = vmatpush1.msra.mxu0 %v278
    %1251 = vmatprep.subr.mxu0 0.0
    %1252 = vmatpush1.msra.mxu0 %v279
    %1253 = vmatprep.subr.mxu0 0.0
    %1254 = vmatpush1.msra.mxu0 %v280
    %1255 = vmatprep.subr.mxu0 0.0
    %1256 = vmatpush1.msra.mxu0 %v281
    %1257 = vmatprep.subr.mxu0 0.0
    %1258 = vmatpush1.msra.mxu0 %v282
    %1259 = vmatprep.subr.mxu0 0.0
    %1260 = vmatpush1.msra.mxu0 %v283
    %1261 = vmatprep.subr.mxu0 0.0
    %1262 = vmatpush1.msra.mxu0 %v284
    %1263 = vmatprep.subr.mxu0 0.0
    %1264 = vmatpush1.msra.mxu0 %v285
    %1265 = vmatprep.subr.mxu0 0.0
    %1266 = vmatpush1.msra.mxu0 %v286
    %1267 = vmatprep.subr.mxu0 0.0
    %1268 = vmatpush1.msra.mxu0 %v287
    %1269 = vmatprep.subr.mxu0 0.0
    %1270 = vmatpush1.msra.mxu0 %v288
    %1271 = vmatprep.subr.mxu0 0.0
    %1272 = vmatpush1.msra.mxu0 %v289
    %1273 = vmatprep.subr.mxu0 0.0
    %1274 = vmatpush1.msra.mxu0 %v290
    %1275 = vmatprep.subr.mxu0 0.0
    %1276 = vmatpush1.msra.mxu0 %v291
    %1277 = vmatprep.subr.mxu0 0.0
    %1278 = vmatpush1.msra.mxu0 %v292
    %1279 = vmatprep.subr.mxu0 0.0
    %1280 = vmatpush1.msra.mxu0 %v293
    %1281 = vmatprep.subr.mxu0 0.0
    %1282 = vmatpush1.msra.mxu0 %v294
    %1283 = vmatprep.subr.mxu0 0.0
    %1284 = vmatpush1.msra.mxu0 %v295
    %1285 = vmatprep.subr.mxu0 0.0
    %1286 = vmatpush1.msra.mxu0 %v296
    %1287 = vmatprep.subr.mxu0 0.0
    %1288 = vmatpush1.msra.mxu0 %v297
    %1289 = vmatprep.subr.mxu0 0.0
    %1290 = vmatpush1.msra.mxu0 %v298
    %1291 = vmatprep.subr.mxu0 0.0
    %1292 = vmatpush1.msra.mxu0 %v299
    %1293 = vmatprep.mubr.f32.mxu0 %v638
    %1294 = vmatmul.mubr.f32.gmra.mrb[0].mxu0 %v636
    %v1295 = vpop.f32.mrb[0].mxu0
    %v1296 = vadd.f32 %v1226, %v1295
    %v1297 = vpop.f32.mrb[0].mxu0
    %1298 = vdwg.mxu0
    %1299 = vmatprep.subr.mxu0 0.0
    %1300 = vmatpush1.msra.mxu0 %v300
    %1301 = vmatprep.subr.mxu0 0.0
    %1302 = vmatpush1.msra.mxu0 %v301
    %1303 = vmatprep.subr.mxu0 0.0
    %1304 = vmatpush1.msra.mxu0 %v302
    %1305 = vmatprep.subr.mxu0 0.0
    %1306 = vmatpush1.msra.mxu0 %v303
    %1307 = vmatprep.subr.mxu0 0.0
    %1308 = vmatpush1.msra.mxu0 %v304
    %1309 = vmatprep.subr.mxu0 0.0
    %1310 = vmatpush1.msra.mxu0 %v305
    %1311 = vmatprep.subr.mxu0 0.0
    %1312 = vmatpush1.msra.mxu0 %v306
    %1313 = vmatprep.subr.mxu0 0.0
    %1314 = vmatpush1.msra.mxu0 %v307
    %1315 = vmatprep.subr.mxu0 0.0
    %1316 = vmatpush1.msra.mxu0 %v308
    %1317 = vmatprep.subr.mxu0 0.0
    %1318 = vmatpush1.msra.mxu0 %v309
    %1319 = vmatprep.subr.mxu0 0.0
    %1320 = vmatpush1.msra.mxu0 %v310
    %1321 = vmatprep.subr.mxu0 0.0
    %1322 = vmatpush1.msra.mxu0 %v311
    %1323 = vmatprep.subr.mxu0 0.0
    %1324 = vmatpush1.msra.mxu0 %v312
    %1325 = vmatprep.subr.mxu0 0.0
    %1326 = vmatpush1.msra.mxu0 %v313
    %1327 = vmatprep.subr.mxu0 0.0
    %1328 = vmatpush1.msra.mxu0 %v314
    %1329 = vmatprep.subr.mxu0 0.0
    %1330 = vmatpush1.msra.mxu0 %v315
    %1331 = vmatprep.subr.mxu0 0.0
    %1332 = vmatpush1.msra.mxu0 %v316
    %1333 = vmatprep.subr.mxu0 0.0
    %1334 = vmatpush1.msra.mxu0 %v317
    %1335 = vmatprep.subr.mxu0 0.0
    %1336 = vmatpush1.msra.mxu0 %v318
    %1337 = vmatprep.subr.mxu0 0.0
    %1338 = vmatpush1.msra.mxu0 %v319
    %1339 = vmatprep.subr.mxu0 0.0
    %1340 = vmatpush1.msra.mxu0 %v320
    %1341 = vmatprep.subr.mxu0 0.0
    %1342 = vmatpush1.msra.mxu0 %v321
    %1343 = vmatprep.subr.mxu0 0.0
    %1344 = vmatpush1.msra.mxu0 %v322
    %1345 = vmatprep.subr.mxu0 0.0
    %1346 = vmatpush1.msra.mxu0 %v323
    %1347 = vmatprep.subr.mxu0 0.0
    %1348 = vmatpush1.msra.mxu0 %v324
    %1349 = vmatprep.subr.mxu0 0.0
    %1350 = vmatpush1.msra.mxu0 %v325
    %1351 = vmatprep.subr.mxu0 0.0
    %1352 = vmatpush1.msra.mxu0 %v326
    %1353 = vmatprep.subr.mxu0 0.0
    %1354 = vmatpush1.msra.mxu0 %v327
    %1355 = vmatprep.subr.mxu0 0.0
    %1356 = vmatpush1.msra.mxu0 %v328
    %1357 = vmatprep.subr.mxu0 0.0
    %1358 = vmatpush1.msra.mxu0 %v329
    %1359 = vmatprep.subr.mxu0 0.0
    %1360 = vmatpush1.msra.mxu0 %v330
    %1361 = vmatprep.subr.mxu0 0.0
    %1362 = vmatpush1.msra.mxu0 %v331
    %1363 = vmatprep.mubr.f32.mxu0 %v654
    %1364 = vmatmul.mubr.f32.gmra.mrb[0].mxu0 %v646
    %v1365 = vpop.f32.mrb[0].mxu0
    %v1366 = vadd.f32 %v1296, %v1365
    %v1367 = vpop.f32.mrb[0].mxu0
    %1368 = vdwg.mxu0
    %1369 = vmatprep.subr.mxu0 0.0
    %1370 = vmatpush1.msra.mxu0 %v332
    %1371 = vmatprep.subr.mxu0 0.0
    %1372 = vmatpush1.msra.mxu0 %v333
    %1373 = vmatprep.subr.mxu0 0.0
    %1374 = vmatpush1.msra.mxu0 %v334
    %1375 = vmatprep.subr.mxu0 0.0
    %1376 = vmatpush1.msra.mxu0 %v335
    %1377 = vmatprep.subr.mxu0 0.0
    %1378 = vmatpush1.msra.mxu0 %v336
    %1379 = vmatprep.subr.mxu0 0.0
    %1380 = vmatpush1.msra.mxu0 %v337
    %1381 = vmatprep.subr.mxu0 0.0
    %1382 = vmatpush1.msra.mxu0 %v338
    %1383 = vmatprep.subr.mxu0 0.0
    %1384 = vmatpush1.msra.mxu0 %v339
    %1385 = vmatprep.subr.mxu0 0.0
    %1386 = vmatpush1.msra.mxu0 %v340
    %1387 = vmatprep.subr.mxu0 0.0
    %1388 = vmatpush1.msra.mxu0 %v341
    %1389 = vmatprep.subr.mxu0 0.0
    %1390 = vmatpush1.msra.mxu0 %v342
    %1391 = vmatprep.subr.mxu0 0.0
    %1392 = vmatpush1.msra.mxu0 %v343
    %1393 = vmatprep.subr.mxu0 0.0
    %1394 = vmatpush1.msra.mxu0 %v344
    %1395 = vmatprep.subr.mxu0 0.0
    %1396 = vmatpush1.msra.mxu0 %v345
    %1397 = vmatprep.subr.mxu0 0.0
    %1398 = vmatpush1.msra.mxu0 %v346
    %1399 = vmatprep.subr.mxu0 0.0
    %1400 = vmatpush1.msra.mxu0 %v347
    %1401 = vmatprep.subr.mxu0 0.0
    %1402 = vmatpush1.msra.mxu0 %v348
    %1403 = vmatprep.subr.mxu0 0.0
    %1404 = vmatpush1.msra.mxu0 %v349
    %1405 = vmatprep.subr.mxu0 0.0
    %1406 = vmatpush1.msra.mxu0 %v350
    %1407 = vmatprep.subr.mxu0 0.0
    %1408 = vmatpush1.msra.mxu0 %v351
    %1409 = vmatprep.subr.mxu0 0.0
    %1410 = vmatpush1.msra.mxu0 %v352
    %1411 = vmatprep.subr.mxu0 0.0
    %1412 = vmatpush1.msra.mxu0 %v353
    %1413 = vmatprep.subr.mxu0 0.0
    %1414 = vmatpush1.msra.mxu0 %v354
    %1415 = vmatprep.subr.mxu0 0.0
    %1416 = vmatpush1.msra.mxu0 %v355
    %1417 = vmatprep.subr.mxu0 0.0
    %1418 = vmatpush1.msra.mxu0 %v356
    %1419 = vmatprep.subr.mxu0 0.0
    %1420 = vmatpush1.msra.mxu0 %v357
    %1421 = vmatprep.subr.mxu0 0.0
    %1422 = vmatpush1.msra.mxu0 %v358
    %1423 = vmatprep.subr.mxu0 0.0
    %1424 = vmatpush1.msra.mxu0 %v359
    %1425 = vmatprep.subr.mxu0 0.0
    %1426 = vmatpush1.msra.mxu0 %v360
    %1427 = vmatprep.subr.mxu0 0.0
    %1428 = vmatpush1.msra.mxu0 %v361
    %1429 = vmatprep.subr.mxu0 0.0
    %1430 = vmatpush1.msra.mxu0 %v362
    %1431 = vmatprep.subr.mxu0 0.0
    %1432 = vmatpush1.msra.mxu0 %v363
    %1433 = vmatprep.mubr.f32.mxu0 %v655
    %1434 = vmatmul.mubr.f32.gmra.mrb[0].mxu0 %v653
    %v1435 = vpop.f32.mrb[0].mxu0
    %v1436 = vadd.f32 %v1366, %v1435
    %v1437 = vpop.f32.mrb[0].mxu0
    %1438 = vdwg.mxu0
    %1439 = vmatprep.subr.mxu0 0.0
    %1440 = vmatpush1.msra.mxu0 %v364
    %1441 = vmatprep.subr.mxu0 0.0
    %1442 = vmatpush1.msra.mxu0 %v365
    %1443 = vmatprep.subr.mxu0 0.0
    %1444 = vmatpush1.msra.mxu0 %v366
    %1445 = vmatprep.subr.mxu0 0.0
    %1446 = vmatpush1.msra.mxu0 %v367
    %1447 = vmatprep.subr.mxu0 0.0
    %1448 = vmatpush1.msra.mxu0 %v368
    %1449 = vmatprep.subr.mxu0 0.0
    %1450 = vmatpush1.msra.mxu0 %v369
    %1451 = vmatprep.subr.mxu0 0.0
    %1452 = vmatpush1.msra.mxu0 %v370
    %1453 = vmatprep.subr.mxu0 0.0
    %1454 = vmatpush1.msra.mxu0 %v371
    %1455 = vmatprep.subr.mxu0 0.0
    %1456 = vmatpush1.msra.mxu0 %v372
    %1457 = vmatprep.subr.mxu0 0.0
    %1458 = vmatpush1.msra.mxu0 %v373
    %1459 = vmatprep.subr.mxu0 0.0
    %1460 = vmatpush1.msra.mxu0 %v374
    %1461 = vmatprep.subr.mxu0 0.0
    %1462 = vmatpush1.msra.mxu0 %v375
    %1463 = vmatprep.subr.mxu0 0.0
    %1464 = vmatpush1.msra.mxu0 %v376
    %1465 = vmatprep.subr.mxu0 0.0
    %1466 = vmatpush1.msra.mxu0 %v377
    %1467 = vmatprep.subr.mxu0 0.0
    %1468 = vmatpush1.msra.mxu0 %v378
    %1469 = vmatprep.subr.mxu0 0.0
    %1470 = vmatpush1.msra.mxu0 %v379
    %1471 = vmatprep.subr.mxu0 0.0
    %1472 = vmatpush1.msra.mxu0 %v380
    %1473 = vmatprep.subr.mxu0 0.0
    %1474 = vmatpush1.msra.mxu0 %v381
    %1475 = vmatprep.subr.mxu0 0.0
    %1476 = vmatpush1.msra.mxu0 %v382
    %1477 = vmatprep.subr.mxu0 0.0
    %1478 = vmatpush1.msra.mxu0 %v383
    %1479 = vmatprep.subr.mxu0 0.0
    %1480 = vmatpush1.msra.mxu0 %v384
    %1481 = vmatprep.subr.mxu0 0.0
    %1482 = vmatpush1.msra.mxu0 %v385
    %1483 = vmatprep.subr.mxu0 0.0
    %1484 = vmatpush1.msra.mxu0 %v386
    %1485 = vmatprep.subr.mxu0 0.0
    %1486 = vmatpush1.msra.mxu0 %v387
    %1487 = vmatprep.subr.mxu0 0.0
    %1488 = vmatpush1.msra.mxu0 %v388
    %1489 = vmatprep.subr.mxu0 0.0
    %1490 = vmatpush1.msra.mxu0 %v389
    %1491 = vmatprep.subr.mxu0 0.0
    %1492 = vmatpush1.msra.mxu0 %v390
    %1493 = vmatprep.subr.mxu0 0.0
    %1494 = vmatpush1.msra.mxu0 %v391
    %1495 = vmatprep.subr.mxu0 0.0
    %1496 = vmatpush1.msra.mxu0 %v392
    %1497 = vmatprep.subr.mxu0 0.0
    %1498 = vmatpush1.msra.mxu0 %v393
    %1499 = vmatprep.subr.mxu0 0.0
    %1500 = vmatpush1.msra.mxu0 %v394
    %1501 = vmatprep.subr.mxu0 0.0
    %1502 = vmatpush1.msra.mxu0 %v395
    %1503 = vmatprep.mubr.f32.mxu0 %v671
    %1504 = vmatmul.mubr.f32.gmra.mrb[0].mxu0 %v663
    %v1505 = vpop.f32.mrb[0].mxu0
    %v1506 = vadd.f32 %v1436, %v1505
    %v1507 = vpop.f32.mrb[0].mxu0
    %1508 = vdwg.mxu0
    %1509 = vmatprep.subr.mxu0 0.0
    %1510 = vmatpush1.msra.mxu0 %v396
    %1511 = vmatprep.subr.mxu0 0.0
    %1512 = vmatpush1.msra.mxu0 %v397
    %1513 = vmatprep.subr.mxu0 0.0
    %1514 = vmatpush1.msra.mxu0 %v398
    %1515 = vmatprep.subr.mxu0 0.0
    %1516 = vmatpush1.msra.mxu0 %v399
    %1517 = vmatprep.subr.mxu0 0.0
    %1518 = vmatpush1.msra.mxu0 %v400
    %1519 = vmatprep.subr.mxu0 0.0
    %1520 = vmatpush1.msra.mxu0 %v401
    %1521 = vmatprep.subr.mxu0 0.0
    %1522 = vmatpush1.msra.mxu0 %v402
    %1523 = vmatprep.subr.mxu0 0.0
    %1524 = vmatpush1.msra.mxu0 %v403
    %1525 = vmatprep.subr.mxu0 0.0
    %1526 = vmatpush1.msra.mxu0 %v404
    %1527 = vmatprep.subr.mxu0 0.0
    %1528 = vmatpush1.msra.mxu0 %v405
    %1529 = vmatprep.subr.mxu0 0.0
    %1530 = vmatpush1.msra.mxu0 %v406
    %1531 = vmatprep.subr.mxu0 0.0
    %1532 = vmatpush1.msra.mxu0 %v407
    %1533 = vmatprep.subr.mxu0 0.0
    %1534 = vmatpush1.msra.mxu0 %v408
    %1535 = vmatprep.subr.mxu0 0.0
    %1536 = vmatpush1.msra.mxu0 %v409
    %1537 = vmatprep.subr.mxu0 0.0
    %1538 = vmatpush1.msra.mxu0 %v410
    %1539 = vmatprep.subr.mxu0 0.0
    %1540 = vmatpush1.msra.mxu0 %v411
    %1541 = vmatprep.subr.mxu0 0.0
    %1542 = vmatpush1.msra.mxu0 %v412
    %1543 = vmatprep.subr.mxu0 0.0
    %1544 = vmatpush1.msra.mxu0 %v413
    %1545 = vmatprep.subr.mxu0 0.0
    %1546 = vmatpush1.msra.mxu0 %v414
    %1547 = vmatprep.subr.mxu0 0.0
    %1548 = vmatpush1.msra.mxu0 %v415
    %1549 = vmatprep.subr.mxu0 0.0
    %1550 = vmatpush1.msra.mxu0 %v416
    %1551 = vmatprep.subr.mxu0 0.0
    %1552 = vmatpush1.msra.mxu0 %v417
    %1553 = vmatprep.subr.mxu0 0.0
    %1554 = vmatpush1.msra.mxu0 %v418
    %1555 = vmatprep.subr.mxu0 0.0
    %1556 = vmatpush1.msra.mxu0 %v419
    %1557 = vmatprep.subr.mxu0 0.0
    %1558 = vmatpush1.msra.mxu0 %v420
    %1559 = vmatprep.subr.mxu0 0.0
    %1560 = vmatpush1.msra.mxu0 %v421
    %1561 = vmatprep.subr.mxu0 0.0
    %1562 = vmatpush1.msra.mxu0 %v422
    %1563 = vmatprep.subr.mxu0 0.0
    %1564 = vmatpush1.msra.mxu0 %v423
    %1565 = vmatprep.subr.mxu0 0.0
    %1566 = vmatpush1.msra.mxu0 %v424
    %1567 = vmatprep.subr.mxu0 0.0
    %1568 = vmatpush1.msra.mxu0 %v425
    %1569 = vmatprep.subr.mxu0 0.0
    %1570 = vmatpush1.msra.mxu0 %v426
    %1571 = vmatprep.subr.mxu0 0.0
    %1572 = vmatpush1.msra.mxu0 %v427
    %1573 = vmatprep.mubr.f32.mxu0 %v672
    %1574 = vmatmul.mubr.f32.gmra.mrb[0].mxu0 %v670
    %v1575 = vpop.f32.mrb[0].mxu0
    %v1576 = vadd.f32 %v1506, %v1575
    %v1577 = vpop.f32.mrb[0].mxu0
    %1578 = vdwg.mxu0
    %1579 = vmatprep.subr.mxu0 0.0
    %1580 = vmatpush1.msra.mxu0 %v428
    %1581 = vmatprep.subr.mxu0 0.0
    %1582 = vmatpush1.msra.mxu0 %v429
    %1583 = vmatprep.subr.mxu0 0.0
    %1584 = vmatpush1.msra.mxu0 %v430
    %1585 = vmatprep.subr.mxu0 0.0
    %1586 = vmatpush1.msra.mxu0 %v431
    %1587 = vmatprep.subr.mxu0 0.0
    %1588 = vmatpush1.msra.mxu0 %v432
    %1589 = vmatprep.subr.mxu0 0.0
    %1590 = vmatpush1.msra.mxu0 %v433
    %1591 = vmatprep.subr.mxu0 0.0
    %1592 = vmatpush1.msra.mxu0 %v434
    %1593 = vmatprep.subr.mxu0 0.0
    %1594 = vmatpush1.msra.mxu0 %v435
    %1595 = vmatprep.subr.mxu0 0.0
    %1596 = vmatpush1.msra.mxu0 %v436
    %1597 = vmatprep.subr.mxu0 0.0
    %1598 = vmatpush1.msra.mxu0 %v437
    %1599 = vmatprep.subr.mxu0 0.0
    %1600 = vmatpush1.msra.mxu0 %v438
    %1601 = vmatprep.subr.mxu0 0.0
    %1602 = vmatpush1.msra.mxu0 %v439
    %1603 = vmatprep.subr.mxu0 0.0
    %1604 = vmatpush1.msra.mxu0 %v440
    %1605 = vmatprep.subr.mxu0 0.0
    %1606 = vmatpush1.msra.mxu0 %v441
    %1607 = vmatprep.subr.mxu0 0.0
    %1608 = vmatpush1.msra.mxu0 %v442
    %1609 = vmatprep.subr.mxu0 0.0
    %1610 = vmatpush1.msra.mxu0 %v443
    %1611 = vmatprep.subr.mxu0 0.0
    %1612 = vmatpush1.msra.mxu0 %v444
    %1613 = vmatprep.subr.mxu0 0.0
    %1614 = vmatpush1.msra.mxu0 %v445
    %1615 = vmatprep.subr.mxu0 0.0
    %1616 = vmatpush1.msra.mxu0 %v446
    %1617 = vmatprep.subr.mxu0 0.0
    %1618 = vmatpush1.msra.mxu0 %v447
    %1619 = vmatprep.subr.mxu0 0.0
    %1620 = vmatpush1.msra.mxu0 %v448
    %1621 = vmatprep.subr.mxu0 0.0
    %1622 = vmatpush1.msra.mxu0 %v449
    %1623 = vmatprep.subr.mxu0 0.0
    %1624 = vmatpush1.msra.mxu0 %v450
    %1625 = vmatprep.subr.mxu0 0.0
    %1626 = vmatpush1.msra.mxu0 %v451
    %1627 = vmatprep.subr.mxu0 0.0
    %1628 = vmatpush1.msra.mxu0 %v452
    %1629 = vmatprep.subr.mxu0 0.0
    %1630 = vmatpush1.msra.mxu0 %v453
    %1631 = vmatprep.subr.mxu0 0.0
    %1632 = vmatpush1.msra.mxu0 %v454
    %1633 = vmatprep.subr.mxu0 0.0
    %1634 = vmatpush1.msra.mxu0 %v455
    %1635 = vmatprep.subr.mxu0 0.0
    %1636 = vmatpush1.msra.mxu0 %v456
    %1637 = vmatprep.subr.mxu0 0.0
    %1638 = vmatpush1.msra.mxu0 %v457
    %1639 = vmatprep.subr.mxu0 0.0
    %1640 = vmatpush1.msra.mxu0 %v458
    %1641 = vmatprep.subr.mxu0 0.0
    %1642 = vmatpush1.msra.mxu0 %v459
    %1643 = vmatprep.mubr.f32.mxu0 %v688
    %1644 = vmatmul.mubr.f32.gmra.mrb[0].mxu0 %v680
    %v1645 = vpop.f32.mrb[0].mxu0
    %v1646 = vadd.f32 %v1576, %v1645
    %v1647 = vpop.f32.mrb[0].mxu0
    %1648 = vdwg.mxu0
    %1649 = vmatprep.subr.mxu0 0.0
    %1650 = vmatpush1.msra.mxu0 %v460
    %1651 = vmatprep.subr.mxu0 0.0
    %1652 = vmatpush1.msra.mxu0 %v461
    %1653 = vmatprep.subr.mxu0 0.0
    %1654 = vmatpush1.msra.mxu0 %v462
    %1655 = vmatprep.subr.mxu0 0.0
    %1656 = vmatpush1.msra.mxu0 %v463
    %1657 = vmatprep.subr.mxu0 0.0
    %1658 = vmatpush1.msra.mxu0 %v464
    %1659 = vmatprep.subr.mxu0 0.0
    %1660 = vmatpush1.msra.mxu0 %v465
    %1661 = vmatprep.subr.mxu0 0.0
    %1662 = vmatpush1.msra.mxu0 %v466
    %1663 = vmatprep.subr.mxu0 0.0
    %1664 = vmatpush1.msra.mxu0 %v467
    %1665 = vmatprep.subr.mxu0 0.0
    %1666 = vmatpush1.msra.mxu0 %v468
    %1667 = vmatprep.subr.mxu0 0.0
    %1668 = vmatpush1.msra.mxu0 %v469
    %1669 = vmatprep.subr.mxu0 0.0
    %1670 = vmatpush1.msra.mxu0 %v470
    %1671 = vmatprep.subr.mxu0 0.0
    %1672 = vmatpush1.msra.mxu0 %v471
    %1673 = vmatprep.subr.mxu0 0.0
    %1674 = vmatpush1.msra.mxu0 %v472
    %1675 = vmatprep.subr.mxu0 0.0
    %1676 = vmatpush1.msra.mxu0 %v473
    %1677 = vmatprep.subr.mxu0 0.0
    %1678 = vmatpush1.msra.mxu0 %v474
    %1679 = vmatprep.subr.mxu0 0.0
    %1680 = vmatpush1.msra.mxu0 %v475
    %1681 = vmatprep.subr.mxu0 0.0
    %1682 = vmatpush1.msra.mxu0 %v476
    %1683 = vmatprep.subr.mxu0 0.0
    %1684 = vmatpush1.msra.mxu0 %v477
    %1685 = vmatprep.subr.mxu0 0.0
    %1686 = vmatpush1.msra.mxu0 %v478
    %1687 = vmatprep.subr.mxu0 0.0
    %1688 = vmatpush1.msra.mxu0 %v479
    %1689 = vmatprep.subr.mxu0 0.0
    %1690 = vmatpush1.msra.mxu0 %v480
    %1691 = vmatprep.subr.mxu0 0.0
    %1692 = vmatpush1.msra.mxu0 %v481
    %1693 = vmatprep.subr.mxu0 0.0
    %1694 = vmatpush1.msra.mxu0 %v482
    %1695 = vmatprep.subr.mxu0 0.0
    %1696 = vmatpush1.msra.mxu0 %v483
    %1697 = vmatprep.subr.mxu0 0.0
    %1698 = vmatpush1.msra.mxu0 %v484
    %1699 = vmatprep.subr.mxu0 0.0
    %1700 = vmatpush1.msra.mxu0 %v485
    %1701 = vmatprep.subr.mxu0 0.0
    %1702 = vmatpush1.msra.mxu0 %v486
    %1703 = vmatprep.subr.mxu0 0.0
    %1704 = vmatpush1.msra.mxu0 %v487
    %1705 = vmatprep.subr.mxu0 0.0
    %1706 = vmatpush1.msra.mxu0 %v488
    %1707 = vmatprep.subr.mxu0 0.0
    %1708 = vmatpush1.msra.mxu0 %v489
    %1709 = vmatprep.subr.mxu0 0.0
    %1710 = vmatpush1.msra.mxu0 %v490
    %1711 = vmatprep.subr.mxu0 0.0
    %1712 = vmatpush1.msra.mxu0 %v491
    %1713 = vmatprep.mubr.f32.mxu0 %v689
    %1714 = vmatmul.mubr.f32.gmra.mrb[0].mxu0 %v687
    %v1715 = vpop.f32.mrb[0].mxu0
    %v1716 = vadd.f32 %v1646, %v1715
    %v1717 = vpop.f32.mrb[0].mxu0
    %1718 = vdwg.mxu0
    %1719 = vmatprep.subr.mxu0 0.0
    %1720 = vmatpush1.msra.mxu0 %v492
    %1721 = vmatprep.subr.mxu0 0.0
    %1722 = vmatpush1.msra.mxu0 %v493
    %1723 = vmatprep.subr.mxu0 0.0
    %1724 = vmatpush1.msra.mxu0 %v494
    %1725 = vmatprep.subr.mxu0 0.0
    %1726 = vmatpush1.msra.mxu0 %v495
    %1727 = vmatprep.subr.mxu0 0.0
    %1728 = vmatpush1.msra.mxu0 %v496
    %1729 = vmatprep.subr.mxu0 0.0
    %1730 = vmatpush1.msra.mxu0 %v497
    %1731 = vmatprep.subr.mxu0 0.0
    %1732 = vmatpush1.msra.mxu0 %v498
    %1733 = vmatprep.subr.mxu0 0.0
    %1734 = vmatpush1.msra.mxu0 %v499
    %1735 = vmatprep.subr.mxu0 0.0
    %1736 = vmatpush1.msra.mxu0 %v500
    %1737 = vmatprep.subr.mxu0 0.0
    %1738 = vmatpush1.msra.mxu0 %v501
    %1739 = vmatprep.subr.mxu0 0.0
    %1740 = vmatpush1.msra.mxu0 %v502
    %1741 = vmatprep.subr.mxu0 0.0
    %1742 = vmatpush1.msra.mxu0 %v503
    %1743 = vmatprep.subr.mxu0 0.0
    %1744 = vmatpush1.msra.mxu0 %v504
    %1745 = vmatprep.subr.mxu0 0.0
    %1746 = vmatpush1.msra.mxu0 %v505
    %1747 = vmatprep.subr.mxu0 0.0
    %1748 = vmatpush1.msra.mxu0 %v506
    %1749 = vmatprep.subr.mxu0 0.0
    %1750 = vmatpush1.msra.mxu0 %v507
    %1751 = vmatprep.subr.mxu0 0.0
    %1752 = vmatpush1.msra.mxu0 %v508
    %1753 = vmatprep.subr.mxu0 0.0
    %1754 = vmatpush1.msra.mxu0 %v509
    %1755 = vmatprep.subr.mxu0 0.0
    %1756 = vmatpush1.msra.mxu0 %v510
    %1757 = vmatprep.subr.mxu0 0.0
    %1758 = vmatpush1.msra.mxu0 %v511
    %1759 = vmatprep.subr.mxu0 0.0
    %1760 = vmatpush1.msra.mxu0 %v512
    %1761 = vmatprep.subr.mxu0 0.0
    %1762 = vmatpush1.msra.mxu0 %v513
    %1763 = vmatprep.subr.mxu0 0.0
    %1764 = vmatpush1.msra.mxu0 %v514
    %1765 = vmatprep.subr.mxu0 0.0
    %1766 = vmatpush1.msra.mxu0 %v515
    %1767 = vmatprep.subr.mxu0 0.0
    %1768 = vmatpush1.msra.mxu0 %v516
    %1769 = vmatprep.subr.mxu0 0.0
    %1770 = vmatpush1.msra.mxu0 %v517
    %1771 = vmatprep.subr.mxu0 0.0
    %1772 = vmatpush1.msra.mxu0 %v518
    %1773 = vmatprep.subr.mxu0 0.0
    %1774 = vmatpush1.msra.mxu0 %v519
    %1775 = vmatprep.subr.mxu0 0.0
    %1776 = vmatpush1.msra.mxu0 %v520
    %1777 = vmatprep.subr.mxu0 0.0
    %1778 = vmatpush1.msra.mxu0 %v521
    %1779 = vmatprep.subr.mxu0 0.0
    %1780 = vmatpush1.msra.mxu0 %v522
    %1781 = vmatprep.subr.mxu0 0.0
    %1782 = vmatpush1.msra.mxu0 %v523
    %1783 = vmatprep.mubr.f32.mxu0 %v705
    %1784 = vmatmul.mubr.f32.gmra.mrb[0].mxu0 %v697
    %v1785 = vpop.f32.mrb[0].mxu0
    %v1786 = vadd.f32 %v1716, %v1785
    %v1787 = vpop.f32.mrb[0].mxu0
    %1788 = vdwg.mxu0
    %1789 = vmatprep.subr.mxu0 0.0
    %1790 = vmatpush1.msra.mxu0 %v524
    %1791 = vmatprep.subr.mxu0 0.0
    %1792 = vmatpush1.msra.mxu0 %v525
    %1793 = vmatprep.subr.mxu0 0.0
    %1794 = vmatpush1.msra.mxu0 %v526
    %1795 = vmatprep.subr.mxu0 0.0
    %1796 = vmatpush1.msra.mxu0 %v527
    %1797 = vmatprep.subr.mxu0 0.0
    %1798 = vmatpush1.msra.mxu0 %v528
    %1799 = vmatprep.subr.mxu0 0.0
    %1800 = vmatpush1.msra.mxu0 %v529
    %1801 = vmatprep.subr.mxu0 0.0
    %1802 = vmatpush1.msra.mxu0 %v530
    %1803 = vmatprep.subr.mxu0 0.0
    %1804 = vmatpush1.msra.mxu0 %v531
    %1805 = vmatprep.subr.mxu0 0.0
    %1806 = vmatpush1.msra.mxu0 %v532
    %1807 = vmatprep.subr.mxu0 0.0
    %1808 = vmatpush1.msra.mxu0 %v533
    %1809 = vmatprep.subr.mxu0 0.0
    %1810 = vmatpush1.msra.mxu0 %v534
    %1811 = vmatprep.subr.mxu0 0.0
    %1812 = vmatpush1.msra.mxu0 %v535
    %1813 = vmatprep.subr.mxu0 0.0
    %1814 = vmatpush1.msra.mxu0 %v536
    %1815 = vmatprep.subr.mxu0 0.0
    %1816 = vmatpush1.msra.mxu0 %v537
    %1817 = vmatprep.subr.mxu0 0.0
    %1818 = vmatpush1.msra.mxu0 %v538
    %1819 = vmatprep.subr.mxu0 0.0
    %1820 = vmatpush1.msra.mxu0 %v539
    %1821 = vmatprep.subr.mxu0 0.0
    %1822 = vmatpush1.msra.mxu0 %v540
    %1823 = vmatprep.subr.mxu0 0.0
    %1824 = vmatpush1.msra.mxu0 %v541
    %1825 = vmatprep.subr.mxu0 0.0
    %1826 = vmatpush1.msra.mxu0 %v542
    %1827 = vmatprep.subr.mxu0 0.0
    %1828 = vmatpush1.msra.mxu0 %v543
    %1829 = vmatprep.subr.mxu0 0.0
    %1830 = vmatpush1.msra.mxu0 %v544
    %1831 = vmatprep.subr.mxu0 0.0
    %1832 = vmatpush1.msra.mxu0 %v545
    %1833 = vmatprep.subr.mxu0 0.0
    %1834 = vmatpush1.msra.mxu0 %v546
    %1835 = vmatprep.subr.mxu0 0.0
    %1836 = vmatpush1.msra.mxu0 %v547
    %1837 = vmatprep.subr.mxu0 0.0
    %1838 = vmatpush1.msra.mxu0 %v548
    %1839 = vmatprep.subr.mxu0 0.0
    %1840 = vmatpush1.msra.mxu0 %v549
    %1841 = vmatprep.subr.mxu0 0.0
    %1842 = vmatpush1.msra.mxu0 %v550
    %1843 = vmatprep.subr.mxu0 0.0
    %1844 = vmatpush1.msra.mxu0 %v551
    %1845 = vmatprep.subr.mxu0 0.0
    %1846 = vmatpush1.msra.mxu0 %v552
    %1847 = vmatprep.subr.mxu0 0.0
    %1848 = vmatpush1.msra.mxu0 %v553
    %1849 = vmatprep.subr.mxu0 0.0
    %1850 = vmatpush1.msra.mxu0 %v554
    %1851 = vmatprep.subr.mxu0 0.0
    %1852 = vmatpush1.msra.mxu0 %v555
    %1853 = vmatprep.mubr.f32.mxu0 %v706
    %1854 = vmatmul.mubr.f32.gmra.mrb[0].mxu0 %v704
    %v1855 = vpop.f32.mrb[0].mxu0
    %v1856 = vadd.f32 %v1786, %v1855
    %v1857 = vpop.f32.mrb[0].mxu0
    %1858 = vdwg.mxu0
    %v1859 = vmax.f32 %v1856, 0.0
    %1860 = vst [vmem:[#allocation2] sm:$0x3] %v1859
    %v1861 = vld [vmem:[%s3] sm:$0xff]
    %v1862 = vld [vmem:[%s3 + $0x8] sm:$0xff]
    %v1863 = vld [vmem:[%s3 + $0x10] sm:$0xff]
    %v1864 = vld [vmem:[%s3 + $0x18] sm:$0xff]
    %v1865 = vld [vmem:[%s3 + $0x20] sm:$0xff]
    %v1866 = vld [vmem:[%s3 + $0x28] sm:$0xff]
    %v1867 = vld [vmem:[%s3 + $0x30] sm:$0xff]
    %v1868 = vld [vmem:[%s3 + $0x38] sm:$0xff]
    %v1869 = vld [vmem:[%s3 + $0x40] sm:$0xff]
    %v1870 = vld [vmem:[%s3 + $0x48] sm:$0xff]
    %v1871 = vld [vmem:[%s3 + $0x50] sm:$0xff]
    %v1872 = vld [vmem:[%s3 + $0x58] sm:$0xff]
    %v1873 = vld [vmem:[%s3 + $0x60] sm:$0xff]
    %v1874 = vld [vmem:[%s3 + $0x68] sm:$0xff]
    %v1875 = vld [vmem:[%s3 + $0x70] sm:$0xff]
    %v1876 = vld [vmem:[%s3 + $0x78] sm:$0xff]
    %v1877 = vld [vmem:[%s3 + $0x80] sm:$0xff]
    %v1878 = vld [vmem:[%s3 + $0x88] sm:$0xff]
    %v1879 = vld [vmem:[%s3 + $0x90] sm:$0xff]
    %v1880 = vld [vmem:[%s3 + $0x98] sm:$0xff]
    %v1881 = vld [vmem:[%s3 + $0xa0] sm:$0xff]
    %v1882 = vld [vmem:[%s3 + $0xa8] sm:$0xff]
    %v1883 = vld [vmem:[%s3 + $0xb0] sm:$0xff]
    %v1884 = vld [vmem:[%s3 + $0xb8] sm:$0xff]
    %v1885 = vld [vmem:[%s3 + $0xc0] sm:$0xff]
    %v1886 = vld [vmem:[%s3 + $0xc8] sm:$0xff]
    %v1887 = vld [vmem:[%s3 + $0xd0] sm:$0xff]
    %v1888 = vld [vmem:[%s3 + $0xd8] sm:$0xff]
    %v1889 = vld [vmem:[%s3 + $0xe0] sm:$0xff]
    %v1890 = vld [vmem:[%s3 + $0xe8] sm:$0xff]
    %v1891 = vld [vmem:[%s3 + $0xf0] sm:$0xff]
    %v1892 = vld [vmem:[%s3 + $0xf8] sm:$0xff]
    %v1893 = vld [vmem:[%s4] sm:$0x3]
    %v1895 = vlaneseq
    %v1896 = vshrl.u32 %v1895, 7
    %v1897 = vsub.s32 0, %v1896
    %v1898 = vrot.slane %v1893, %v1897
    %v1899 = vlaneseq
    %v1900 = vshrl.u32 %v1899, 7
    %v1901 = vsub.s32 1, %v1900
    %v1902 = vrot.slane %v1893, %v1901
    %1905 = vmatprep.subr.mxu0 %v1862
    %1906 = vmatpush1.msra.mxu0 %v1861
    %1907 = vmatprep.subr.mxu0 %v1864
    %1908 = vmatpush1.msra.mxu0 %v1863
    %1909 = vmatprep.subr.mxu0 %v1866
    %1910 = vmatpush1.msra.mxu0 %v1865
    %1911 = vmatprep.subr.mxu0 %v1868
    %1912 = vmatpush1.msra.mxu0 %v1867
    %1913 = vmatprep.subr.mxu0 %v1870
    %1914 = vmatpush1.msra.mxu0 %v1869
    %1915 = vmatprep.subr.mxu0 %v1872
    %1916 = vmatpush1.msra.mxu0 %v1871
    %1917 = vmatprep.subr.mxu0 %v1874
    %1918 = vmatpush1.msra.mxu0 %v1873
    %1919 = vmatprep.subr.mxu0 %v1876
    %1920 = vmatpush1.msra.mxu0 %v1875
    %1921 = vmatprep.subr.mxu0 %v1878
    %1922 = vmatpush1.msra.mxu0 %v1877
    %1923 = vmatprep.subr.mxu0 %v1880
    %1924 = vmatpush1.msra.mxu0 %v1879
    %1925 = vmatprep.subr.mxu0 %v1882
    %1926 = vmatpush1.msra.mxu0 %v1881
    %1927 = vmatprep.subr.mxu0 %v1884
    %1928 = vmatpush1.msra.mxu0 %v1883
    %1929 = vmatprep.subr.mxu0 %v1886
    %1930 = vmatpush1.msra.mxu0 %v1885
    %1931 = vmatprep.subr.mxu0 %v1888
    %1932 = vmatpush1.msra.mxu0 %v1887
    %1933 = vmatprep.subr.mxu0 %v1890
    %1934 = vmatpush1.msra.mxu0 %v1889
    %1935 = vmatprep.subr.mxu0 %v1892
    %1936 = vmatpush1.msra.mxu0 %v1891
    %1937 = vmatprep.subr.mxu0 0.0
    %1938 = vmatpush1.msra.mxu0 0.0
    %1939 = vmatprep.subr.mxu0 0.0
    %1940 = vmatpush1.msra.mxu0 0.0
    %1941 = vmatprep.subr.mxu0 0.0
    %1942 = vmatpush1.msra.mxu0 0.0
    %1943 = vmatprep.subr.mxu0 0.0
    %1944 = vmatpush1.msra.mxu0 0.0
    %1945 = vmatprep.subr.mxu0 0.0
    %1946 = vmatpush1.msra.mxu0 0.0
    %1947 = vmatprep.subr.mxu0 0.0
    %1948 = vmatpush1.msra.mxu0 0.0
    %1949 = vmatprep.subr.mxu0 0.0
    %1950 = vmatpush1.msra.mxu0 0.0
    %1951 = vmatprep.subr.mxu0 0.0
    %1952 = vmatpush1.msra.mxu0 0.0
    %1953 = vmatprep.subr.mxu0 0.0
    %1954 = vmatpush1.msra.mxu0 0.0
    %1955 = vmatprep.subr.mxu0 0.0
    %1956 = vmatpush1.msra.mxu0 0.0
    %1957 = vmatprep.subr.mxu0 0.0
    %1958 = vmatpush1.msra.mxu0 0.0
    %1959 = vmatprep.subr.mxu0 0.0
    %1960 = vmatpush1.msra.mxu0 0.0
    %1961 = vmatprep.subr.mxu0 0.0
    %1962 = vmatpush1.msra.mxu0 0.0
    %1963 = vmatprep.subr.mxu0 0.0
    %1964 = vmatpush1.msra.mxu0 0.0
    %1965 = vmatprep.subr.mxu0 0.0
    %1966 = vmatpush1.msra.mxu0 0.0
    %1967 = vmatprep.subr.mxu0 0.0
    %1968 = vmatpush1.msra.mxu0 0.0
    %1969 = vmatprep.mubr.f32.mxu0 0.0
    %1970 = vmatmul.mubr.f32.gmra.mrb[0].mxu0 %v1859
    %v1971 = vpop.f32.mrb[0].mxu0
    %v1972 = vadd.f32 %v1898, %v1971
    %v1973 = vpop.f32.mrb[0].mxu0
    %v1974 = vadd.f32 %v1902, %v1973
    %1975 = vdwg.mxu0
    %v1976 = vmax.f32 %v1972, 0.0
    %v1977 = vmax.f32 %v1974, 0.0
    %v1978 = vld [vmem:[%s5] sm:$0xff]
    %v1979 = vld [vmem:[%s5 + $0x8] sm:$0xff]
    %v1980 = vld [vmem:[%s5 + $0x10] sm:$0xff]
    %v1981 = vld [vmem:[%s5 + $0x18] sm:$0xff]
    %v1982 = vld [vmem:[%s5 + $0x20] sm:$0xff]
    %v1983 = vld [vmem:[%s5 + $0x28] sm:$0xff]
    %v1984 = vld [vmem:[%s5 + $0x30] sm:$0xff]
    %v1985 = vld [vmem:[%s5 + $0x38] sm:$0xff]
    %v1986 = vld [vmem:[%s5 + $0x40] sm:$0xff]
    %v1987 = vld [vmem:[%s5 + $0x48] sm:$0xff]
    %v1988 = vld [vmem:[%s5 + $0x50] sm:$0xff]
    %v1989 = vld [vmem:[%s5 + $0x58] sm:$0xff]
    %v1990 = vld [vmem:[%s5 + $0x60] sm:$0xff]
    %v1991 = vld [vmem:[%s5 + $0x68] sm:$0xff]
    %v1992 = vld [vmem:[%s5 + $0x70] sm:$0xff]
    %v1993 = vld [vmem:[%s5 + $0x78] sm:$0xff]
    %v1994 = vld [vmem:[%s5 + $0x80] sm:$0xff]
    %v1995 = vld [vmem:[%s5 + $0x88] sm:$0xff]
    %v1996 = vld [vmem:[%s5 + $0x90] sm:$0xff]
    %v1997 = vld [vmem:[%s5 + $0x98] sm:$0xff]
    %v1998 = vld [vmem:[%s5 + $0xa0] sm:$0xff]
    %v1999 = vld [vmem:[%s5 + $0xa8] sm:$0xff]
    %v2000 = vld [vmem:[%s5 + $0xb0] sm:$0xff]
    %v2001 = vld [vmem:[%s5 + $0xb8] sm:$0xff]
    %v2002 = vld [vmem:[%s5 + $0xc0] sm:$0xff]
    %v2003 = vld [vmem:[%s5 + $0xc8] sm:$0xff]
    %v2004 = vld [vmem:[%s5 + $0xd0] sm:$0xff]
    %v2005 = vld [vmem:[%s5 + $0xd8] sm:$0xff]
    %v2006 = vld [vmem:[%s5 + $0xe0] sm:$0xff]
    %v2007 = vld [vmem:[%s5 + $0xe8] sm:$0xff]
    %v2008 = vld [vmem:[%s5 + $0xf0] sm:$0xff]
    %v2009 = vld [vmem:[%s5 + $0xf8] sm:$0xff]
    %v2010 = vld [vmem:[%s5 + $0x100] sm:$0xff]
    %v2011 = vld [vmem:[%s5 + $0x108] sm:$0xff]
    %v2012 = vld [vmem:[%s5 + $0x110] sm:$0xff]
    %v2013 = vld [vmem:[%s5 + $0x118] sm:$0xff]
    %v2014 = vld [vmem:[%s5 + $0x120] sm:$0xff]
    %v2015 = vld [vmem:[%s5 + $0x128] sm:$0xff]
    %v2016 = vld [vmem:[%s5 + $0x130] sm:$0xff]
    %v2017 = vld [vmem:[%s5 + $0x138] sm:$0xff]
    %v2018 = vld [vmem:[%s5 + $0x140] sm:$0xff]
    %v2019 = vld [vmem:[%s5 + $0x148] sm:$0xff]
    %v2020 = vld [vmem:[%s5 + $0x150] sm:$0xff]
    %v2021 = vld [vmem:[%s5 + $0x158] sm:$0xff]
    %v2022 = vld [vmem:[%s5 + $0x160] sm:$0xff]
    %v2023 = vld [vmem:[%s5 + $0x168] sm:$0xff]
    %v2024 = vld [vmem:[%s5 + $0x170] sm:$0xff]
    %v2025 = vld [vmem:[%s5 + $0x178] sm:$0xff]
    %v2026 = vld [vmem:[%s5 + $0x180] sm:$0xff]
    %v2027 = vld [vmem:[%s5 + $0x188] sm:$0xff]
    %v2028 = vld [vmem:[%s5 + $0x190] sm:$0xff]
    %v2029 = vld [vmem:[%s5 + $0x198] sm:$0xff]
    %v2030 = vld [vmem:[%s5 + $0x1a0] sm:$0xff]
    %v2031 = vld [vmem:[%s5 + $0x1a8] sm:$0xff]
    %v2032 = vld [vmem:[%s5 + $0x1b0] sm:$0xff]
    %v2033 = vld [vmem:[%s5 + $0x1b8] sm:$0xff]
    %v2034 = vld [vmem:[%s5 + $0x1c0] sm:$0xff]
    %v2035 = vld [vmem:[%s5 + $0x1c8] sm:$0xff]
    %v2036 = vld [vmem:[%s5 + $0x1d0] sm:$0xff]
    %v2037 = vld [vmem:[%s5 + $0x1d8] sm:$0xff]
    %v2038 = vld [vmem:[%s5 + $0x1e0] sm:$0xff]
    %v2039 = vld [vmem:[%s5 + $0x1e8] sm:$0xff]
    %v2040 = vld [vmem:[%s5 + $0x1f0] sm:$0xff]
    %v2041 = vld [vmem:[%s5 + $0x1f8] sm:$0xff]
    %v2042 = vld [vmem:[%s6] sm:$0x3]
    %v2044 = vlaneseq
    %v2045 = vshrl.u32 %v2044, 7
    %v2046 = vsub.s32 0, %v2045
    %v2047 = vrot.slane %v2042, %v2046
    %v2048 = vlaneseq
    %v2049 = vshrl.u32 %v2048, 7
    %v2050 = vsub.s32 1, %v2049
    %v2051 = vrot.slane %v2042, %v2050
    %2054 = vmatprep.subr.mxu0 %v1979
    %2055 = vmatpush1.msra.mxu0 %v1978
    %2056 = vmatprep.subr.mxu0 %v1981
    %2057 = vmatpush1.msra.mxu0 %v1980
    %2058 = vmatprep.subr.mxu0 %v1983
    %2059 = vmatpush1.msra.mxu0 %v1982
    %2060 = vmatprep.subr.mxu0 %v1985
    %2061 = vmatpush1.msra.mxu0 %v1984
    %2062 = vmatprep.subr.mxu0 %v1987
    %2063 = vmatpush1.msra.mxu0 %v1986
    %2064 = vmatprep.subr.mxu0 %v1989
    %2065 = vmatpush1.msra.mxu0 %v1988
    %2066 = vmatprep.subr.mxu0 %v1991
    %2067 = vmatpush1.msra.mxu0 %v1990
    %2068 = vmatprep.subr.mxu0 %v1993
    %2069 = vmatpush1.msra.mxu0 %v1992
    %2070 = vmatprep.subr.mxu0 %v1995
    %2071 = vmatpush1.msra.mxu0 %v1994
    %2072 = vmatprep.subr.mxu0 %v1997
    %2073 = vmatpush1.msra.mxu0 %v1996
    %2074 = vmatprep.subr.mxu0 %v1999
    %2075 = vmatpush1.msra.mxu0 %v1998
    %2076 = vmatprep.subr.mxu0 %v2001
    %2077 = vmatpush1.msra.mxu0 %v2000
    %2078 = vmatprep.subr.mxu0 %v2003
    %2079 = vmatpush1.msra.mxu0 %v2002
    %2080 = vmatprep.subr.mxu0 %v2005
    %2081 = vmatpush1.msra.mxu0 %v2004
    %2082 = vmatprep.subr.mxu0 %v2007
    %2083 = vmatpush1.msra.mxu0 %v2006
    %2084 = vmatprep.subr.mxu0 %v2009
    %2085 = vmatpush1.msra.mxu0 %v2008
    %2086 = vmatprep.subr.mxu0 %v2011
    %2087 = vmatpush1.msra.mxu0 %v2010
    %2088 = vmatprep.subr.mxu0 %v2013
    %2089 = vmatpush1.msra.mxu0 %v2012
    %2090 = vmatprep.subr.mxu0 %v2015
    %2091 = vmatpush1.msra.mxu0 %v2014
    %2092 = vmatprep.subr.mxu0 %v2017
    %2093 = vmatpush1.msra.mxu0 %v2016
    %2094 = vmatprep.subr.mxu0 %v2019
    %2095 = vmatpush1.msra.mxu0 %v2018
    %2096 = vmatprep.subr.mxu0 %v2021
    %2097 = vmatpush1.msra.mxu0 %v2020
    %2098 = vmatprep.subr.mxu0 %v2023
    %2099 = vmatpush1.msra.mxu0 %v2022
    %2100 = vmatprep.subr.mxu0 %v2025
    %2101 = vmatpush1.msra.mxu0 %v2024
    %2102 = vmatprep.subr.mxu0 %v2027
    %2103 = vmatpush1.msra.mxu0 %v2026
    %2104 = vmatprep.subr.mxu0 %v2029
    %2105 = vmatpush1.msra.mxu0 %v2028
    %2106 = vmatprep.subr.mxu0 %v2031
    %2107 = vmatpush1.msra.mxu0 %v2030
    %2108 = vmatprep.subr.mxu0 %v2033
    %2109 = vmatpush1.msra.mxu0 %v2032
    %2110 = vmatprep.subr.mxu0 %v2035
    %2111 = vmatpush1.msra.mxu0 %v2034
    %2112 = vmatprep.subr.mxu0 %v2037
    %2113 = vmatpush1.msra.mxu0 %v2036
    %2114 = vmatprep.subr.mxu0 %v2039
    %2115 = vmatpush1.msra.mxu0 %v2038
    %2116 = vmatprep.subr.mxu0 %v2041
    %2117 = vmatpush1.msra.mxu0 %v2040
    %2118 = vmatprep.mubr.f32.mxu0 %v1977
    %2119 = vmatmul.mubr.f32.gmra.mrb[0].mxu0 %v1976
    %v2120 = vpop.f32.mrb[0].mxu0
    %v2121 = vadd.f32 %v2047, %v2120
    %v2122 = vpop.f32.mrb[0].mxu0
    %v2123 = vadd.f32 %v2051, %v2122
    %2124 = vdwg.mxu0
    %v2125 = vmax.f32 %v2121, 0.0
    %v2126 = vmax.f32 %v2123, 0.0
    %v2127 = vld [vmem:[%s7] sm:$0xff]
    %v2128 = vld [vmem:[%s7 + $0x8] sm:$0xff]
    %v2129 = vld [vmem:[%s7 + $0x10] sm:$0xff]
    %v2130 = vld [vmem:[%s7 + $0x18] sm:$0xff]
    %v2131 = vld [vmem:[%s7 + $0x20] sm:$0xff]
    %v2132 = vld [vmem:[%s7 + $0x28] sm:$0xff]
    %v2133 = vld [vmem:[%s7 + $0x30] sm:$0xff]
    %v2134 = vld [vmem:[%s7 + $0x38] sm:$0xff]
    %v2135 = vld [vmem:[%s7 + $0x40] sm:$0xff]
    %v2136 = vld [vmem:[%s7 + $0x48] sm:$0xff]
    %v2137 = vld [vmem:[%s7 + $0x50] sm:$0xff]
    %v2138 = vld [vmem:[%s7 + $0x58] sm:$0xff]
    %v2139 = vld [vmem:[%s7 + $0x60] sm:$0xff]
    %v2140 = vld [vmem:[%s7 + $0x68] sm:$0xff]
    %v2141 = vld [vmem:[%s7 + $0x70] sm:$0xff]
    %v2142 = vld [vmem:[%s7 + $0x78] sm:$0xff]
    %v2143 = vld [vmem:[%s7 + $0x80] sm:$0xff]
    %v2144 = vld [vmem:[%s7 + $0x88] sm:$0xff]
    %v2145 = vld [vmem:[%s7 + $0x90] sm:$0xff]
    %v2146 = vld [vmem:[%s7 + $0x98] sm:$0xff]
    %v2147 = vld [vmem:[%s7 + $0xa0] sm:$0xff]
    %v2148 = vld [vmem:[%s7 + $0xa8] sm:$0xff]
    %v2149 = vld [vmem:[%s7 + $0xb0] sm:$0xff]
    %v2150 = vld [vmem:[%s7 + $0xb8] sm:$0xff]
    %v2151 = vld [vmem:[%s7 + $0xc0] sm:$0xff]
    %v2152 = vld [vmem:[%s7 + $0xc8] sm:$0xff]
    %v2153 = vld [vmem:[%s7 + $0xd0] sm:$0xff]
    %v2154 = vld [vmem:[%s7 + $0xd8] sm:$0xff]
    %v2155 = vld [vmem:[%s7 + $0xe0] sm:$0xff]
    %v2156 = vld [vmem:[%s7 + $0xe8] sm:$0xff]
    %v2157 = vld [vmem:[%s7 + $0xf0] sm:$0xff]
    %v2158 = vld [vmem:[%s7 + $0xf8] sm:$0xff]
    %v2159 = vld [vmem:[%s8] sm:$0x1]
    %v2161 = vlaneseq
    %v2162 = vshrl.u32 %v2161, 7
    %v2163 = vsub.s32 0, %v2162
    %v2164 = vrot.slane %v2159, %v2163
    %2166 = vmatprep.subr.mxu0 0.0
    %2167 = vmatpush1.msra.mxu0 %v2127
    %2168 = vmatprep.subr.mxu0 0.0
    %2169 = vmatpush1.msra.mxu0 %v2128
    %2170 = vmatprep.subr.mxu0 0.0
    %2171 = vmatpush1.msra.mxu0 %v2129
    %2172 = vmatprep.subr.mxu0 0.0
    %2173 = vmatpush1.msra.mxu0 %v2130
    %2174 = vmatprep.subr.mxu0 0.0
    %2175 = vmatpush1.msra.mxu0 %v2131
    %2176 = vmatprep.subr.mxu0 0.0
    %2177 = vmatpush1.msra.mxu0 %v2132
    %2178 = vmatprep.subr.mxu0 0.0
    %2179 = vmatpush1.msra.mxu0 %v2133
    %2180 = vmatprep.subr.mxu0 0.0
    %2181 = vmatpush1.msra.mxu0 %v2134
    %2182 = vmatprep.subr.mxu0 0.0
    %2183 = vmatpush1.msra.mxu0 %v2135
    %2184 = vmatprep.subr.mxu0 0.0
    %2185 = vmatpush1.msra.mxu0 %v2136
    %2186 = vmatprep.subr.mxu0 0.0
    %2187 = vmatpush1.msra.mxu0 %v2137
    %2188 = vmatprep.subr.mxu0 0.0
    %2189 = vmatpush1.msra.mxu0 %v2138
    %2190 = vmatprep.subr.mxu0 0.0
    %2191 = vmatpush1.msra.mxu0 %v2139
    %2192 = vmatprep.subr.mxu0 0.0
    %2193 = vmatpush1.msra.mxu0 %v2140
    %2194 = vmatprep.subr.mxu0 0.0
    %2195 = vmatpush1.msra.mxu0 %v2141
    %2196 = vmatprep.subr.mxu0 0.0
    %2197 = vmatpush1.msra.mxu0 %v2142
    %2198 = vmatprep.subr.mxu0 0.0
    %2199 = vmatpush1.msra.mxu0 %v2143
    %2200 = vmatprep.subr.mxu0 0.0
    %2201 = vmatpush1.msra.mxu0 %v2144
    %2202 = vmatprep.subr.mxu0 0.0
    %2203 = vmatpush1.msra.mxu0 %v2145
    %2204 = vmatprep.subr.mxu0 0.0
    %2205 = vmatpush1.msra.mxu0 %v2146
    %2206 = vmatprep.subr.mxu0 0.0
    %2207 = vmatpush1.msra.mxu0 %v2147
    %2208 = vmatprep.subr.mxu0 0.0
    %2209 = vmatpush1.msra.mxu0 %v2148
    %2210 = vmatprep.subr.mxu0 0.0
    %2211 = vmatpush1.msra.mxu0 %v2149
    %2212 = vmatprep.subr.mxu0 0.0
    %2213 = vmatpush1.msra.mxu0 %v2150
    %2214 = vmatprep.subr.mxu0 0.0
    %2215 = vmatpush1.msra.mxu0 %v2151
    %2216 = vmatprep.subr.mxu0 0.0
    %2217 = vmatpush1.msra.mxu0 %v2152
    %2218 = vmatprep.subr.mxu0 0.0
    %2219 = vmatpush1.msra.mxu0 %v2153
    %2220 = vmatprep.subr.mxu0 0.0
    %2221 = vmatpush1.msra.mxu0 %v2154
    %2222 = vmatprep.subr.mxu0 0.0
    %2223 = vmatpush1.msra.mxu0 %v2155
    %2224 = vmatprep.subr.mxu0 0.0
    %2225 = vmatpush1.msra.mxu0 %v2156
    %2226 = vmatprep.subr.mxu0 0.0
    %2227 = vmatpush1.msra.mxu0 %v2157
    %2228 = vmatprep.subr.mxu0 0.0
    %2229 = vmatpush1.msra.mxu0 %v2158
    %2230 = vmatprep.mubr.f32.mxu0 %v2126
    %2231 = vmatmul.mubr.f32.gmra.mrb[0].mxu0 %v2125
    %v2232 = vpop.f32.mrb[0].mxu0
    %v2233 = vadd.f32 %v2164, %v2232
    %v2234 = vpop.f32.mrb[0].mxu0
    %2235 = vdwg.mxu0
    %2236 = vst [vmem:[#allocation4] sm:$0x3] %v2233
    // Predicated region
    $region38: #{encoder_forward_pallas.7} parent=1 // pred_check
      _
    $region39: #{encoder_forward_pallas.7} parent=1 // pred_check_branch
      %2238 = sbr.rel (0) target = $region41
    $region40: #{encoder_forward_pallas.7} parent=1 // pred_region
      %s2240 = ssub.s32 32, 32
      %2241 = vsyncadd [#allocation3], %s2240
      %s2243 = sshll.u32 [#allocation2], 4
      %s2244 = int_to_ptr.vmem [resolvable:$true] %s2243
      %2246 = dma.vmem_to_hbm [thread:$0]  %s2244, 32, %s9, [#allocation3]
    $region41: #{encoder_forward_pallas.7} parent=1 // pred_fallthru
      _
    // Predicated region
    $region42: #{encoder_forward_pallas.7} parent=1 // pred_check
      _
    $region43: #{encoder_forward_pallas.7} parent=1 // pred_check_branch
      %2248 = sbr.rel (0) target = $region45
    $region44: #{encoder_forward_pallas.7} parent=1 // pred_region
      %s2250 = ssub.s32 32, 32
      %2251 = vsyncadd [#allocation5], %s2250
      %s2253 = sshll.u32 [#allocation4], 4
      %s2254 = int_to_ptr.vmem [resolvable:$true] %s2253
      %2256 = dma.vmem_to_hbm [thread:$0]  %s2254, 32, %s10, [#allocation5]
    $region45: #{encoder_forward_pallas.7} parent=1 // pred_fallthru
      _
    // Predicated region
    $region46: #{encoder_forward_pallas.7} parent=1 // pred_check
      _
    $region47: #{encoder_forward_pallas.7} parent=1 // pred_check_branch
      %2258 = sbr.rel (0) target = $region49
    $region48: #{encoder_forward_pallas.7} parent=1 // pred_region
      %2259 = dma.done [#allocation3], 32
    $region49: #{encoder_forward_pallas.7} parent=1 // pred_fallthru
      _
    // Predicated region
    $region50: #{encoder_forward_pallas.7} parent=1 // pred_check
      _
    $region51: #{encoder_forward_pallas.7} parent=1 // pred_check_branch
      %2261 = sbr.rel (0) target = $region53
    $region52: #{encoder_forward_pallas.7} parent=1 // pred_region
      %2262 = dma.done [#allocation5], 32
    $region53: #{encoder_forward_pallas.7} parent=1 // pred_fallthru
      _
    %2263 = vsyncpa [#allocation3], 1
    %2264 = vsyncpa [#allocation5], 1

</llo_original>
